<compile_context>
chip_gen: v6e
topology: v6e:2x2x1
jax: 0.10.0
libtpu: 0.0.40
codegen_flags: <defaults>
</compile_context>

<pallas_src>
import functools

import jax
import jax.numpy as jnp
import numpy as np
from jax.experimental import pallas as pl
from jax.experimental.pallas import tpu as pltpu


# ----------------------------------------------------------------------------
# Conv(k=3, stride=2, pad=1) + ELU, fused im2col, NHWC
# ----------------------------------------------------------------------------
def _conv3x3s2_elu_kernel(pee_ref, peo_ref, poe_ref, poo_ref, w_ref, b_ref, o_ref):
    # phase refs: (1, PH, PW, Cin) stride-2 phases of the padded input
    # w_ref: (9, Cin, Cout) taps ordered kh*3+kw ; b_ref: (1, Cout)
    # o_ref: (1, OH, OW, Cout)
    _, oh, ow, cout = o_ref.shape
    cin = w_ref.shape[1]
    phases = ((pee_ref, peo_ref), (poe_ref, poo_ref))
    acc = jnp.zeros((oh, ow, cout), jnp.float32)
    for kh in range(3):
        for kw in range(3):
            ph_ref = phases[kh % 2][kw % 2]
            dh, dw = kh // 2, kw // 2
            # contiguous static window of the phase -> (oh, ow, cin)
            win = ph_ref[0, dh:dh + oh, dw:dw + ow, :].astype(jnp.bfloat16)
            wt = jnp.broadcast_to(w_ref[3 * kh + kw].astype(jnp.bfloat16),
                                  (oh, cin, cout))
            acc = acc + jnp.einsum('hwc,hcd->hwd', win, wt,
                                   preferred_element_type=jnp.float32)
    y = acc + b_ref[...]
    o_ref[0] = jnp.where(y > 0.0, y, jnp.exp(jnp.minimum(y, 0.0)) - 1.0)


def conv3x3s2_elu(x_nhwc, w9, b2):
    # x_nhwc: (B, H, W, Cin); w9: (9, Cin, Cout); b2: (1, Cout) -> (B, OH, OW, Cout)
    B, H, W, cin = x_nhwc.shape
    cout = w9.shape[2]
    oh = (H - 1) // 2 + 1
    ow = (W - 1) // 2 + 1
    xp = jnp.pad(x_nhwc, ((0, 0), (1, 1), (1, 1), (0, 0)))
    # 4 stride-2 phases: total bytes ~= padded input (vs ~9x for materialized im2col)
    phases = [xp[:, a::2, b::2, :] for a in (0, 1) for b in (0, 1)]

    in_specs = [pl.BlockSpec((1,) + tuple(p.shape[1:]), lambda bi: (bi, 0, 0, 0))
                for p in phases]
    in_specs.append(pl.BlockSpec(tuple(w9.shape), lambda bi: (0, 0, 0)))   # resident
    in_specs.append(pl.BlockSpec(tuple(b2.shape), lambda bi: (0, 0)))      # resident

    flops = 2 * B * oh * ow * 9 * cin * cout
    bytes_accessed = 4 * (int(x_nhwc.size) + int(w9.size) + int(b2.size)
                          + B * oh * ow * cout)
    return pl.pallas_call(
        _conv3x3s2_elu_kernel,
        out_shape=jax.ShapeDtypeStruct((B, oh, ow, cout), jnp.float32),
        grid=(B,),
        in_specs=in_specs,
        out_specs=pl.BlockSpec((1, oh, ow, cout), lambda bi: (bi, 0, 0, 0)),
        compiler_params=pltpu.CompilerParams(dimension_semantics=("parallel",)),
        cost_estimate=pl.CostEstimate(flops=flops,
                                      transcendentals=B * oh * ow * cout,
                                      bytes_accessed=bytes_accessed),
    )(*phases, w9, b2)


# ----------------------------------------------------------------------------
# Batched matmul + bias (used for the hoisted GRU input projection, all timesteps)
# ----------------------------------------------------------------------------
def _matmul_bias_kernel(x_ref, w_ref, b_ref, o_ref):
    o_ref[...] = (jnp.dot(x_ref[...], w_ref[...],
                          preferred_element_type=jnp.float32,
                          precision=jax.lax.Precision.HIGHEST)
                  + b_ref[...])


def matmul_bias(x, w_t, b2, block_m=256):
    # x: (M, K); w_t: (K, N); b2: (1, N) -> (M, N)
    M, K = x.shape
    N = w_t.shape[1]
    bm = block_m if M % block_m == 0 else M
    return pl.pallas_call(
        _matmul_bias_kernel,
        out_shape=jax.ShapeDtypeStruct((M, N), jnp.float32),
        grid=(M // bm,),
        in_specs=[pl.BlockSpec((bm, K), lambda i: (i, 0)),
                  pl.BlockSpec((K, N), lambda i: (0, 0)),
                  pl.BlockSpec((1, N), lambda i: (0, 0))],
        out_specs=pl.BlockSpec((bm, N), lambda i: (i, 0)),
        compiler_params=pltpu.CompilerParams(dimension_semantics=("parallel",)),
    )(x, w_t, b2)


# ----------------------------------------------------------------------------
# GRU recurrence: one pallas_call over the whole sequence, state in VMEM scratch
# ----------------------------------------------------------------------------
def _gru_seq_kernel(gi_ref, m_ref, h0_ref, whh_ref, bhh_ref, o_ref, h_scr):
    # gi_ref: (1, Bc, 3H) precomputed x @ W_ih^T + b_ih at step t
    # m_ref: (1, Bc, 1) state mask, h0_ref: (Bc, H) initial state
    # whh_ref: (H, 3H), bhh_ref: (1, 3H), o_ref: (1, Bc, H), h_scr: (Bc, H)
    t = pl.program_id(0)
    hsz = h0_ref.shape[1]

    @pl.when(t == 0)
    def _():
        h_scr[...] = h0_ref[...]

    h = h_scr[...] * m_ref[0]
    gh = jnp.dot(h, whh_ref[...], preferred_element_type=jnp.float32,
                 precision=jax.lax.Precision.HIGHEST) + bhh_ref[...]
    gi = gi_ref[0]
    r = jax.nn.sigmoid(gi[:, 0:hsz] + gh[:, 0:hsz])
    z = jax.nn.sigmoid(gi[:, hsz:2 * hsz] + gh[:, hsz:2 * hsz])
    n = jnp.tanh(gi[:, 2 * hsz:3 * hsz] + r * gh[:, 2 * hsz:3 * hsz])
    h_new = (1.0 - z) * n + z * h
    h_scr[...] = h_new
    o_ref[0] = h_new


def gru_sequence(gi_seq, mask_seq, h0, w_hh_t, b_hh_2):
    T, bc, h3 = gi_seq.shape
    H = h0.shape[1]
    return pl.pallas_call(
        _gru_seq_kernel,
        out_shape=jax.ShapeDtypeStruct((T, bc, H), jnp.float32),
        grid=(T,),
        in_specs=[pl.BlockSpec((1, bc, h3), lambda t: (t, 0, 0)),
                  pl.BlockSpec((1, bc, 1), lambda t: (t, 0, 0)),
                  pl.BlockSpec((bc, H), lambda t: (0, 0)),      # resident
                  pl.BlockSpec((H, h3), lambda t: (0, 0)),      # resident
                  pl.BlockSpec((1, h3), lambda t: (0, 0))],     # resident
        out_specs=pl.BlockSpec((1, bc, H), lambda t: (t, 0, 0)),
        scratch_shapes=[pltpu.VMEM((bc, H), jnp.float32)],
        compiler_params=pltpu.CompilerParams(dimension_semantics=("arbitrary",)),
    )(gi_seq, mask_seq, h0, w_hh_t, b_hh_2)


# ----------------------------------------------------------------------------
# Parameter init (orthogonal via QR, zero biases — mirrors the module) + packing
# ----------------------------------------------------------------------------
def orthogonal(key, rows, cols, gain=1.0):
    big, small = max(rows, cols), min(rows, cols)
    a = jax.random.normal(key, (big, small), dtype=jnp.float32)
    q, r = jnp.linalg.qr(a)
    q = q * jnp.sign(jnp.diagonal(r))
    if rows < cols:
        q = q.T
    return gain * q


def init_params(key, in_channels, frame_dim, rnn_size, action_dim):
    gain_relu = float(np.sqrt(2.0))
    w = frame_dim
    for _ in range(4):
        w = (w - 3 + 2) // 2 + 1
    rnn_insize = w * w * 32 + action_dim
    keys = jax.random.split(key, 6)
    params = {}
    cin = in_channels
    for i in range(4):
        params[f"conv{i + 1}_w"] = orthogonal(keys[i], 32, cin * 9,
                                              gain_relu).reshape(32, cin, 3, 3)
        params[f"conv{i + 1}_b"] = jnp.zeros((32,), jnp.float32)
        cin = 32
    params["gru_w_ih"] = orthogonal(keys[4], 3 * rnn_size, rnn_insize)
    params["gru_w_hh"] = orthogonal(keys[5], 3 * rnn_size, rnn_size)
    params["gru_b_ih"] = jnp.zeros((3 * rnn_size,), jnp.float32)
    params["gru_b_hh"] = jnp.zeros((3 * rnn_size,), jnp.float32)
    return params, rnn_insize


def prepare_params(params):
    """Hoisted (one-time) layout transforms for the kernel path."""
    prepped = {}
    for i in range(1, 5):
        w = params[f"conv{i}_w"]                    # (Cout, Cin, 3, 3) PyTorch OIHW
        cout, cin = w.shape[0], w.shape[1]
        prepped[f"conv{i}_w9"] = jnp.transpose(w, (2, 3, 1, 0)).reshape(9, cin, cout)
        prepped[f"conv{i}_b2"] = params[f"conv{i}_b"].reshape(1, cout)
    prepped["gru_w_ih_t"] = params["gru_w_ih"].T    # (In, 3H)
    prepped["gru_w_hh_t"] = params["gru_w_hh"].T    # (H, 3H)
    prepped["gru_b_ih_2"] = params["gru_b_ih"].reshape(1, -1)
    prepped["gru_b_hh_2"] = params["gru_b_hh"].reshape(1, -1)
    return prepped


# ----------------------------------------------------------------------------
# Forward pass (mirrors CNNRNNBase.forward)
# ----------------------------------------------------------------------------
def cnnrnn_forward(kparams, current_obs, pre_action, pre_state, state_mask,
                   rnn_step_size, action_dim, rnn_size):
    x = jnp.transpose(current_obs, (0, 2, 3, 1))          # NCHW -> NHWC (once)
    for i in range(1, 5):
        x = conv3x3s2_elu(x, kparams[f"conv{i}_w9"], kparams[f"conv{i}_b2"])
    batch = current_obs.shape[0]
    # back to NCHW ordering so the flatten matches PyTorch's .view(batch, -1)
    cnn = jnp.transpose(x, (0, 3, 1, 2)).reshape(batch, -1)

    onehot = jax.nn.one_hot(pre_action.astype(jnp.int32), action_dim,
                            dtype=jnp.float32)
    mask = state_mask.reshape(batch, 1).astype(jnp.float32)
    onehot = onehot * mask
    rnn_input = jnp.concatenate([cnn, onehot], axis=1)

    # hoisted input-to-hidden projection over ALL timesteps in one matmul
    gi_all = matmul_bias(rnn_input, kparams["gru_w_ih_t"], kparams["gru_b_ih_2"])

    T = rnn_step_size
    bc = batch // T
    gi_seq = gi_all.reshape(T, bc, 3 * rnn_size)
    mask_seq = mask.reshape(T, bc, 1)
    h0 = pre_state.reshape(T, bc, rnn_size)[0]
    states = gru_sequence(gi_seq, mask_seq, h0,
                          kparams["gru_w_hh_t"], kparams["gru_b_hh_2"])
    return states.reshape(-1, rnn_size)


# ----------------------------------------------------------------------------
# Pure-JAX reference (matched numerics: bf16 conv matmuls, f32 accumulate/gates)
# ----------------------------------------------------------------------------
def reference_forward(params, current_obs, pre_action, pre_state, state_mask,
                      rnn_step_size, action_dim, rnn_size):
    x = current_obs
    for i in range(1, 5):
        w = params[f"conv{i}_w"]
        b = params[f"conv{i}_b"]
        y = jax.lax.conv_general_dilated(
            x.astype(jnp.bfloat16), w.astype(jnp.bfloat16), (2, 2),
            [(1, 1), (1, 1)],
            dimension_numbers=("NCHW", "OIHW", "NCHW"),
            preferred_element_type=jnp.float32)
        y = y + b.reshape(1, -1, 1, 1)
        x = jnp.where(y > 0.0, y, jnp.exp(jnp.minimum(y, 0.0)) - 1.0)
    batch = current_obs.shape[0]
    cnn = x.reshape(batch, -1)
    onehot = jax.nn.one_hot(pre_action.astype(jnp.int32), action_dim,
                            dtype=jnp.float32)
    mask = state_mask.reshape(batch, 1).astype(jnp.float32)
    onehot = onehot * mask
    rnn_input = jnp.concatenate([cnn, onehot], axis=1)
    rnn_input = rnn_input.reshape(rnn_step_size, batch // rnn_step_size, -1)
    mask_t = mask.reshape(rnn_step_size, batch // rnn_step_size, 1)
    pre_state = pre_state.reshape(rnn_step_size, batch // rnn_step_size, -1)
    wih, whh = params["gru_w_ih"], params["gru_w_hh"]
    bih, bhh = params["gru_b_ih"], params["gru_b_hh"]
    H = rnn_size
    hi = jax.lax.Precision.HIGHEST
    state = pre_state[0]
    outs = []
    for t in range(rnn_step_size):
        h = state * mask_t[t]
        gi = jnp.dot(rnn_input[t], wih.T, precision=hi) + bih
        gh = jnp.dot(h, whh.T, precision=hi) + bhh
        r = jax.nn.sigmoid(gi[:, :H] + gh[:, :H])
        z = jax.nn.sigmoid(gi[:, H:2 * H] + gh[:, H:2 * H])
        n = jnp.tanh(gi[:, 2 * H:] + r * gh[:, 2 * H:])
        state = (1.0 - z) * n + z * h
        outs.append(state)
    return jnp.stack(outs, axis=0).reshape(-1, H)


# ----------------------------------------------------------------------------
if __name__ == "__main__":
    # obs_shape=(4, 16, 16), action_dim=6, rnn_size=32, batch=4 as 2 steps x 2 envs.
    CH, FRAME = 4, 16
    ACTION_DIM = 6
    RNN_SIZE = 32
    BATCH = 4
    RNN_STEP = 2

    key = jax.random.PRNGKey(0)
    k_param, k_obs, k_act, k_state, k_mask = jax.random.split(key, 5)

    params, rnn_insize = init_params(k_param, CH, FRAME, RNN_SIZE, ACTION_DIM)
    kparams = prepare_params(params)

    current_obs = jax.random.normal(k_obs, (BATCH, CH, FRAME, FRAME), jnp.float32)
    pre_action = jax.random.randint(k_act, (BATCH,), 0, ACTION_DIM)
    pre_state = jax.random.normal(k_state, (BATCH, RNN_SIZE), jnp.float32)
    state_mask = (jax.random.uniform(k_mask, (BATCH,)) > 0.3).astype(jnp.float32)

    fwd = jax.jit(functools.partial(cnnrnn_forward,
                                    rnn_step_size=RNN_STEP,
                                    action_dim=ACTION_DIM,
                                    rnn_size=RNN_SIZE))
    states = jax.block_until_ready(
        fwd(kparams, current_obs, pre_action, pre_state, state_mask))

    ref = jax.block_until_ready(
        reference_forward(params, current_obs, pre_action, pre_state,
                          state_mask, RNN_STEP, ACTION_DIM, RNN_SIZE))

    assert states.shape == (BATCH, RNN_SIZE), states.shape
    np.testing.assert_allclose(np.asarray(states), np.asarray(ref),
                               rtol=1e-2, atol=1e-2)
    print("KERNEL_OK")
</pallas_src>

<mosaic_0001>
module attributes {stable_mosaic.version = 11 : i64} {
  func.func @_conv3x3s2_elu_kernel(%arg0: i32, %arg1: memref<1x9x9x4xf32, #tpu.memory_space<vmem>>, %arg2: memref<1x9x9x4xf32, #tpu.memory_space<vmem>>, %arg3: memref<1x9x9x4xf32, #tpu.memory_space<vmem>>, %arg4: memref<1x9x9x4xf32, #tpu.memory_space<vmem>>, %arg5: memref<9x4x32xf32, #tpu.memory_space<vmem>>, %arg6: memref<1x32xf32, #tpu.memory_space<vmem>>, %arg7: memref<1x8x8x32xf32, #tpu.memory_space<vmem>>) attributes {dimension_semantics = [#tpu.dimension_semantics<parallel>], iteration_bounds = array<i64: 4>, scalar_prefetch = 0 : i64, scratch_operands = 0 : i64, tpu.core_type = #tpu.core_type<tc>, window_params = [{transform_indices = @transform_0, window_bounds = array<i64: 1, 9, 9, 4>}, {transform_indices = @transform_1, window_bounds = array<i64: 1, 9, 9, 4>}, {transform_indices = @transform_2, window_bounds = array<i64: 1, 9, 9, 4>}, {transform_indices = @transform_3, window_bounds = array<i64: 1, 9, 9, 4>}, {pipeline_mode = #tpu.pipeline_mode<synchronous>, transform_indices = @transform_4, window_bounds = array<i64: 9, 4, 32>}, {pipeline_mode = #tpu.pipeline_mode<synchronous>, transform_indices = @transform_5, window_bounds = array<i64: 1, 32>}, {transform_indices = @transform_6, window_bounds = array<i64: 1, 8, 8, 32>}]} {
    %cst = arith.constant 0.000000e+00 : f32
    %0 = vector.broadcast %cst : f32 to vector<8x8x32xf32>
    %c0 = arith.constant 0 : index
    %c0_0 = arith.constant 0 : index
    %c0_1 = arith.constant 0 : index
    %c0_2 = arith.constant 0 : index
    %1 = vector.load %arg1[%c0, %c0_0, %c0_1, %c0_2] : memref<1x9x9x4xf32, #tpu.memory_space<vmem>>, vector<1x8x8x4xf32>
    %2 = vector.shape_cast %1 : vector<1x8x8x4xf32> to vector<8x8x4xf32>
    %3 = arith.truncf %2 : vector<8x8x4xf32> to vector<8x8x4xbf16>
    %c0_3 = arith.constant 0 : index
    %c0_4 = arith.constant 0 : index
    %c0_5 = arith.constant 0 : index
    %4 = vector.load %arg5[%c0_3, %c0_4, %c0_5] : memref<9x4x32xf32, #tpu.memory_space<vmem>>, vector<1x4x32xf32>
    %5 = vector.shape_cast %4 : vector<1x4x32xf32> to vector<4x32xf32>
    %6 = arith.truncf %5 : vector<4x32xf32> to vector<4x32xbf16>
    %7 = vector.shape_cast %6 : vector<4x32xbf16> to vector<1x4x32xbf16>
    %8 = vector.broadcast %7 : vector<1x4x32xbf16> to vector<8x4x32xbf16>
    "tpu.trace_start"() <{level = 10 : i32, message = "hwc,hcd->hwd"}> : () -> ()
    %cst_6 = arith.constant dense<0.000000e+00> : vector<8x8x32xf32>
    %9 = tpu.matmul %3, %8, %cst_6 {dimension_numbers = #tpu.dot_dimension_numbers<[2], [1], [1], [2], [0, 0, 0, 1, 1, 2], [0], [0]>} : vector<8x8x4xbf16>, vector<8x4x32xbf16>, vector<8x8x32xf32> -> vector<8x8x32xf32>
    "tpu.trace_stop"() : () -> ()
    %10 = arith.addf %0, %9 : vector<8x8x32xf32>
    %c0_7 = arith.constant 0 : index
    %c0_8 = arith.constant 0 : index
    %c0_9 = arith.constant 0 : index
    %c0_10 = arith.constant 0 : index
    %11 = vector.load %arg2[%c0_7, %c0_8, %c0_9, %c0_10] : memref<1x9x9x4xf32, #tpu.memory_space<vmem>>, vector<1x8x8x4xf32>
    %12 = vector.shape_cast %11 : vector<1x8x8x4xf32> to vector<8x8x4xf32>
    %13 = arith.truncf %12 : vector<8x8x4xf32> to vector<8x8x4xbf16>
    %c1 = arith.constant 1 : index
    %c0_11 = arith.constant 0 : index
    %c0_12 = arith.constant 0 : index
    %14 = vector.load %arg5[%c1, %c0_11, %c0_12] : memref<9x4x32xf32, #tpu.memory_space<vmem>>, vector<1x4x32xf32>
    %15 = vector.shape_cast %14 : vector<1x4x32xf32> to vector<4x32xf32>
    %16 = arith.truncf %15 : vector<4x32xf32> to vector<4x32xbf16>
    %17 = vector.shape_cast %16 : vector<4x32xbf16> to vector<1x4x32xbf16>
    %18 = vector.broadcast %17 : vector<1x4x32xbf16> to vector<8x4x32xbf16>
    "tpu.trace_start"() <{level = 10 : i32, message = "hwc,hcd->hwd"}> : () -> ()
    %cst_13 = arith.constant dense<0.000000e+00> : vector<8x8x32xf32>
    %19 = tpu.matmul %13, %18, %cst_13 {dimension_numbers = #tpu.dot_dimension_numbers<[2], [1], [1], [2], [0, 0, 0, 1, 1, 2], [0], [0]>} : vector<8x8x4xbf16>, vector<8x4x32xbf16>, vector<8x8x32xf32> -> vector<8x8x32xf32>
    "tpu.trace_stop"() : () -> ()
    %20 = arith.addf %10, %19 : vector<8x8x32xf32>
    %c0_14 = arith.constant 0 : index
    %c0_15 = arith.constant 0 : index
    %c1_16 = arith.constant 1 : index
    %c0_17 = arith.constant 0 : index
    %21 = vector.load %arg1[%c0_14, %c0_15, %c1_16, %c0_17] : memref<1x9x9x4xf32, #tpu.memory_space<vmem>>, vector<1x8x8x4xf32>
    %22 = vector.shape_cast %21 : vector<1x8x8x4xf32> to vector<8x8x4xf32>
    %23 = arith.truncf %22 : vector<8x8x4xf32> to vector<8x8x4xbf16>
    %c2 = arith.constant 2 : index
    %c0_18 = arith.constant 0 : index
    %c0_19 = arith.constant 0 : index
    %24 = vector.load %arg5[%c2, %c0_18, %c0_19] : memref<9x4x32xf32, #tpu.memory_space<vmem>>, vector<1x4x32xf32>
    %25 = vector.shape_cast %24 : vector<1x4x32xf32> to vector<4x32xf32>
    %26 = arith.truncf %25 : vector<4x32xf32> to vector<4x32xbf16>
    %27 = vector.shape_cast %26 : vector<4x32xbf16> to vector<1x4x32xbf16>
    %28 = vector.broadcast %27 : vector<1x4x32xbf16> to vector<8x4x32xbf16>
    "tpu.trace_start"() <{level = 10 : i32, message = "hwc,hcd->hwd"}> : () -> ()
    %cst_20 = arith.constant dense<0.000000e+00> : vector<8x8x32xf32>
    %29 = tpu.matmul %23, %28, %cst_20 {dimension_numbers = #tpu.dot_dimension_numbers<[2], [1], [1], [2], [0, 0, 0, 1, 1, 2], [0], [0]>} : vector<8x8x4xbf16>, vector<8x4x32xbf16>, vector<8x8x32xf32> -> vector<8x8x32xf32>
    "tpu.trace_stop"() : () -> ()
    %30 = arith.addf %20, %29 : vector<8x8x32xf32>
    %c0_21 = arith.constant 0 : index
    %c0_22 = arith.constant 0 : index
    %c0_23 = arith.constant 0 : index
    %c0_24 = arith.constant 0 : index
    %31 = vector.load %arg3[%c0_21, %c0_22, %c0_23, %c0_24] : memref<1x9x9x4xf32, #tpu.memory_space<vmem>>, vector<1x8x8x4xf32>
    %32 = vector.shape_cast %31 : vector<1x8x8x4xf32> to vector<8x8x4xf32>
    %33 = arith.truncf %32 : vector<8x8x4xf32> to vector<8x8x4xbf16>
    %c3 = arith.constant 3 : index
    %c0_25 = arith.constant 0 : index
    %c0_26 = arith.constant 0 : index
    %34 = vector.load %arg5[%c3, %c0_25, %c0_26] : memref<9x4x32xf32, #tpu.memory_space<vmem>>, vector<1x4x32xf32>
    %35 = vector.shape_cast %34 : vector<1x4x32xf32> to vector<4x32xf32>
    %36 = arith.truncf %35 : vector<4x32xf32> to vector<4x32xbf16>
    %37 = vector.shape_cast %36 : vector<4x32xbf16> to vector<1x4x32xbf16>
    %38 = vector.broadcast %37 : vector<1x4x32xbf16> to vector<8x4x32xbf16>
    "tpu.trace_start"() <{level = 10 : i32, message = "hwc,hcd->hwd"}> : () -> ()
    %cst_27 = arith.constant dense<0.000000e+00> : vector<8x8x32xf32>
    %39 = tpu.matmul %33, %38, %cst_27 {dimension_numbers = #tpu.dot_dimension_numbers<[2], [1], [1], [2], [0, 0, 0, 1, 1, 2], [0], [0]>} : vector<8x8x4xbf16>, vector<8x4x32xbf16>, vector<8x8x32xf32> -> vector<8x8x32xf32>
    "tpu.trace_stop"() : () -> ()
    %40 = arith.addf %30, %39 : vector<8x8x32xf32>
    %c0_28 = arith.constant 0 : index
    %c0_29 = arith.constant 0 : index
    %c0_30 = arith.constant 0 : index
    %c0_31 = arith.constant 0 : index
    %41 = vector.load %arg4[%c0_28, %c0_29, %c0_30, %c0_31] : memref<1x9x9x4xf32, #tpu.memory_space<vmem>>, vector<1x8x8x4xf32>
    %42 = vector.shape_cast %41 : vector<1x8x8x4xf32> to vector<8x8x4xf32>
    %43 = arith.truncf %42 : vector<8x8x4xf32> to vector<8x8x4xbf16>
    %c4 = arith.constant 4 : index
    %c0_32 = arith.constant 0 : index
    %c0_33 = arith.constant 0 : index
    %44 = vector.load %arg5[%c4, %c0_32, %c0_33] : memref<9x4x32xf32, #tpu.memory_space<vmem>>, vector<1x4x32xf32>
    %45 = vector.shape_cast %44 : vector<1x4x32xf32> to vector<4x32xf32>
    %46 = arith.truncf %45 : vector<4x32xf32> to vector<4x32xbf16>
    %47 = vector.shape_cast %46 : vector<4x32xbf16> to vector<1x4x32xbf16>
    %48 = vector.broadcast %47 : vector<1x4x32xbf16> to vector<8x4x32xbf16>
    "tpu.trace_start"() <{level = 10 : i32, message = "hwc,hcd->hwd"}> : () -> ()
    %cst_34 = arith.constant dense<0.000000e+00> : vector<8x8x32xf32>
    %49 = tpu.matmul %43, %48, %cst_34 {dimension_numbers = #tpu.dot_dimension_numbers<[2], [1], [1], [2], [0, 0, 0, 1, 1, 2], [0], [0]>} : vector<8x8x4xbf16>, vector<8x4x32xbf16>, vector<8x8x32xf32> -> vector<8x8x32xf32>
    "tpu.trace_stop"() : () -> ()
    %50 = arith.addf %40, %49 : vector<8x8x32xf32>
    %c0_35 = arith.constant 0 : index
    %c0_36 = arith.constant 0 : index
    %c1_37 = arith.constant 1 : index
    %c0_38 = arith.constant 0 : index
    %51 = vector.load %arg3[%c0_35, %c0_36, %c1_37, %c0_38] : memref<1x9x9x4xf32, #tpu.memory_space<vmem>>, vector<1x8x8x4xf32>
    %52 = vector.shape_cast %51 : vector<1x8x8x4xf32> to vector<8x8x4xf32>
    %53 = arith.truncf %52 : vector<8x8x4xf32> to vector<8x8x4xbf16>
    %c5 = arith.constant 5 : index
    %c0_39 = arith.constant 0 : index
    %c0_40 = arith.constant 0 : index
    %54 = vector.load %arg5[%c5, %c0_39, %c0_40] : memref<9x4x32xf32, #tpu.memory_space<vmem>>, vector<1x4x32xf32>
    %55 = vector.shape_cast %54 : vector<1x4x32xf32> to vector<4x32xf32>
    %56 = arith.truncf %55 : vector<4x32xf32> to vector<4x32xbf16>
    %57 = vector.shape_cast %56 : vector<4x32xbf16> to vector<1x4x32xbf16>
    %58 = vector.broadcast %57 : vector<1x4x32xbf16> to vector<8x4x32xbf16>
    "tpu.trace_start"() <{level = 10 : i32, message = "hwc,hcd->hwd"}> : () -> ()
    %cst_41 = arith.constant dense<0.000000e+00> : vector<8x8x32xf32>
    %59 = tpu.matmul %53, %58, %cst_41 {dimension_numbers = #tpu.dot_dimension_numbers<[2], [1], [1], [2], [0, 0, 0, 1, 1, 2], [0], [0]>} : vector<8x8x4xbf16>, vector<8x4x32xbf16>, vector<8x8x32xf32> -> vector<8x8x32xf32>
    "tpu.trace_stop"() : () -> ()
    %60 = arith.addf %50, %59 : vector<8x8x32xf32>
    %c0_42 = arith.constant 0 : index
    %c1_43 = arith.constant 1 : index
    %c0_44 = arith.constant 0 : index
    %c0_45 = arith.constant 0 : index
    %61 = vector.load %arg1[%c0_42, %c1_43, %c0_44, %c0_45] : memref<1x9x9x4xf32, #tpu.memory_space<vmem>>, vector<1x8x8x4xf32>
    %62 = vector.shape_cast %61 : vector<1x8x8x4xf32> to vector<8x8x4xf32>
    %63 = arith.truncf %62 : vector<8x8x4xf32> to vector<8x8x4xbf16>
    %c6 = arith.constant 6 : index
    %c0_46 = arith.constant 0 : index
    %c0_47 = arith.constant 0 : index
    %64 = vector.load %arg5[%c6, %c0_46, %c0_47] : memref<9x4x32xf32, #tpu.memory_space<vmem>>, vector<1x4x32xf32>
    %65 = vector.shape_cast %64 : vector<1x4x32xf32> to vector<4x32xf32>
    %66 = arith.truncf %65 : vector<4x32xf32> to vector<4x32xbf16>
    %67 = vector.shape_cast %66 : vector<4x32xbf16> to vector<1x4x32xbf16>
    %68 = vector.broadcast %67 : vector<1x4x32xbf16> to vector<8x4x32xbf16>
    "tpu.trace_start"() <{level = 10 : i32, message = "hwc,hcd->hwd"}> : () -> ()
    %cst_48 = arith.constant dense<0.000000e+00> : vector<8x8x32xf32>
    %69 = tpu.matmul %63, %68, %cst_48 {dimension_numbers = #tpu.dot_dimension_numbers<[2], [1], [1], [2], [0, 0, 0, 1, 1, 2], [0], [0]>} : vector<8x8x4xbf16>, vector<8x4x32xbf16>, vector<8x8x32xf32> -> vector<8x8x32xf32>
    "tpu.trace_stop"() : () -> ()
    %70 = arith.addf %60, %69 : vector<8x8x32xf32>
    %c0_49 = arith.constant 0 : index
    %c1_50 = arith.constant 1 : index
    %c0_51 = arith.constant 0 : index
    %c0_52 = arith.constant 0 : index
    %71 = vector.load %arg2[%c0_49, %c1_50, %c0_51, %c0_52] : memref<1x9x9x4xf32, #tpu.memory_space<vmem>>, vector<1x8x8x4xf32>
    %72 = vector.shape_cast %71 : vector<1x8x8x4xf32> to vector<8x8x4xf32>
    %73 = arith.truncf %72 : vector<8x8x4xf32> to vector<8x8x4xbf16>
    %c7 = arith.constant 7 : index
    %c0_53 = arith.constant 0 : index
    %c0_54 = arith.constant 0 : index
    %74 = vector.load %arg5[%c7, %c0_53, %c0_54] : memref<9x4x32xf32, #tpu.memory_space<vmem>>, vector<1x4x32xf32>
    %75 = vector.shape_cast %74 : vector<1x4x32xf32> to vector<4x32xf32>
    %76 = arith.truncf %75 : vector<4x32xf32> to vector<4x32xbf16>
    %77 = vector.shape_cast %76 : vector<4x32xbf16> to vector<1x4x32xbf16>
    %78 = vector.broadcast %77 : vector<1x4x32xbf16> to vector<8x4x32xbf16>
    "tpu.trace_start"() <{level = 10 : i32, message = "hwc,hcd->hwd"}> : () -> ()
    %cst_55 = arith.constant dense<0.000000e+00> : vector<8x8x32xf32>
    %79 = tpu.matmul %73, %78, %cst_55 {dimension_numbers = #tpu.dot_dimension_numbers<[2], [1], [1], [2], [0, 0, 0, 1, 1, 2], [0], [0]>} : vector<8x8x4xbf16>, vector<8x4x32xbf16>, vector<8x8x32xf32> -> vector<8x8x32xf32>
    "tpu.trace_stop"() : () -> ()
    %80 = arith.addf %70, %79 : vector<8x8x32xf32>
    %c0_56 = arith.constant 0 : index
    %c1_57 = arith.constant 1 : index
    %c1_58 = arith.constant 1 : index
    %c0_59 = arith.constant 0 : index
    %81 = vector.load %arg1[%c0_56, %c1_57, %c1_58, %c0_59] : memref<1x9x9x4xf32, #tpu.memory_space<vmem>>, vector<1x8x8x4xf32>
    %82 = vector.shape_cast %81 : vector<1x8x8x4xf32> to vector<8x8x4xf32>
    %83 = arith.truncf %82 : vector<8x8x4xf32> to vector<8x8x4xbf16>
    %c8 = arith.constant 8 : index
    %c0_60 = arith.constant 0 : index
    %c0_61 = arith.constant 0 : index
    %84 = vector.load %arg5[%c8, %c0_60, %c0_61] : memref<9x4x32xf32, #tpu.memory_space<vmem>>, vector<1x4x32xf32>
    %85 = vector.shape_cast %84 : vector<1x4x32xf32> to vector<4x32xf32>
    %86 = arith.truncf %85 : vector<4x32xf32> to vector<4x32xbf16>
    %87 = vector.shape_cast %86 : vector<4x32xbf16> to vector<1x4x32xbf16>
    %88 = vector.broadcast %87 : vector<1x4x32xbf16> to vector<8x4x32xbf16>
    "tpu.trace_start"() <{level = 10 : i32, message = "hwc,hcd->hwd"}> : () -> ()
    %cst_62 = arith.constant dense<0.000000e+00> : vector<8x8x32xf32>
    %89 = tpu.matmul %83, %88, %cst_62 {dimension_numbers = #tpu.dot_dimension_numbers<[2], [1], [1], [2], [0, 0, 0, 1, 1, 2], [0], [0]>} : vector<8x8x4xbf16>, vector<8x4x32xbf16>, vector<8x8x32xf32> -> vector<8x8x32xf32>
    "tpu.trace_stop"() : () -> ()
    %90 = arith.addf %80, %89 : vector<8x8x32xf32>
    %c0_63 = arith.constant 0 : index
    %c0_64 = arith.constant 0 : index
    %91 = vector.load %arg6[%c0_63, %c0_64] : memref<1x32xf32, #tpu.memory_space<vmem>>, vector<1x32xf32>
    %92 = vector.shape_cast %91 : vector<1x32xf32> to vector<1x1x32xf32>
    %93 = vector.broadcast %92 : vector<1x1x32xf32> to vector<8x8x32xf32>
    %94 = arith.addf %90, %93 : vector<8x8x32xf32>
    %cst_65 = arith.constant 0.000000e+00 : f32
    %95 = vector.broadcast %cst_65 : f32 to vector<8x8x32xf32>
    %96 = arith.cmpf ogt, %94, %95 : vector<8x8x32xf32>
    %cst_66 = arith.constant 0.000000e+00 : f32
    %97 = vector.broadcast %cst_66 : f32 to vector<8x8x32xf32>
    %98 = arith.minimumf %94, %97 : vector<8x8x32xf32>
    %99 = math.exp %98 : vector<8x8x32xf32>
    %cst_67 = arith.constant 1.000000e+00 : f32
    %100 = vector.broadcast %cst_67 : f32 to vector<8x8x32xf32>
    %101 = arith.subf %99, %100 : vector<8x8x32xf32>
    %102 = arith.select %96, %94, %101 : vector<8x8x32xi1>, vector<8x8x32xf32>
    %c0_68 = arith.constant 0 : index
    %c0_69 = arith.constant 0 : index
    %c0_70 = arith.constant 0 : index
    %c0_71 = arith.constant 0 : index
    %103 = vector.load %arg7[%c0_68, %c0_69, %c0_70, %c0_71] : memref<1x8x8x32xf32, #tpu.memory_space<vmem>>, vector<1x8x8x32xf32>
    %104 = vector.shape_cast %103 : vector<1x8x8x32xf32> to vector<8x8x32xf32>
    %105 = vector.shape_cast %102 : vector<8x8x32xf32> to vector<1x8x8x32xf32>
    tpu.vector_store %arg7[%c0_68, %c0_69, %c0_70, %c0_71], %105 {strides = array<i32>} : memref<1x8x8x32xf32, #tpu.memory_space<vmem>>, vector<1x8x8x32xf32>,
    return
  }
  func.func @transform_0(%arg0: i32) -> (i32, i32, i32, i32) {
    %c0_i32 = arith.constant 0 : i32
    %c0_i32_0 = arith.constant 0 : i32
    %c0_i32_1 = arith.constant 0 : i32
    %c0_i32_2 = arith.constant 0 : i32
    return %arg0, %c0_i32, %c0_i32_0, %c0_i32_1 : i32, i32, i32, i32
  }
  func.func @transform_1(%arg0: i32) -> (i32, i32, i32, i32) {
    %c0_i32 = arith.constant 0 : i32
    %c0_i32_0 = arith.constant 0 : i32
    %c0_i32_1 = arith.constant 0 : i32
    %c0_i32_2 = arith.constant 0 : i32
    return %arg0, %c0_i32, %c0_i32_0, %c0_i32_1 : i32, i32, i32, i32
  }
  func.func @transform_2(%arg0: i32) -> (i32, i32, i32, i32) {
    %c0_i32 = arith.constant 0 : i32
    %c0_i32_0 = arith.constant 0 : i32
    %c0_i32_1 = arith.constant 0 : i32
    %c0_i32_2 = arith.constant 0 : i32
    return %arg0, %c0_i32, %c0_i32_0, %c0_i32_1 : i32, i32, i32, i32
  }
  func.func @transform_3(%arg0: i32) -> (i32, i32, i32, i32) {
    %c0_i32 = arith.constant 0 : i32
    %c0_i32_0 = arith.constant 0 : i32
    %c0_i32_1 = arith.constant 0 : i32
    %c0_i32_2 = arith.constant 0 : i32
    return %arg0, %c0_i32, %c0_i32_0, %c0_i32_1 : i32, i32, i32, i32
  }
  func.func @transform_4(%arg0: i32) -> (i32, i32, i32) {
    %c0_i32 = arith.constant 0 : i32
    %c0_i32_0 = arith.constant 0 : i32
    %c0_i32_1 = arith.constant 0 : i32
    %c0_i32_2 = arith.constant 0 : i32
    return %c0_i32, %c0_i32_0, %c0_i32_1 : i32, i32, i32
  }
  func.func @transform_5(%arg0: i32) -> (i32, i32) {
    %c0_i32 = arith.constant 0 : i32
    %c0_i32_0 = arith.constant 0 : i32
    %c0_i32_1 = arith.constant 0 : i32
    return %c0_i32, %c0_i32_0 : i32, i32
  }
  func.func @transform_6(%arg0: i32) -> (i32, i32, i32, i32) {
    %c0_i32 = arith.constant 0 : i32
    %c0_i32_0 = arith.constant 0 : i32
    %c0_i32_1 = arith.constant 0 : i32
    %c0_i32_2 = arith.constant 0 : i32
    return %arg0, %c0_i32, %c0_i32_0, %c0_i32_1 : i32, i32, i32, i32
  }
}

module attributes {stable_mosaic.version = 11 : i64} {
  func.func @_conv3x3s2_elu_kernel(%arg0: i32, %arg1: memref<1x5x5x32xf32, #tpu.memory_space<vmem>>, %arg2: memref<1x5x5x32xf32, #tpu.memory_space<vmem>>, %arg3: memref<1x5x5x32xf32, #tpu.memory_space<vmem>>, %arg4: memref<1x5x5x32xf32, #tpu.memory_space<vmem>>, %arg5: memref<9x32x32xf32, #tpu.memory_space<vmem>>, %arg6: memref<1x32xf32, #tpu.memory_space<vmem>>, %arg7: memref<1x4x4x32xf32, #tpu.memory_space<vmem>>) attributes {dimension_semantics = [#tpu.dimension_semantics<parallel>], iteration_bounds = array<i64: 4>, scalar_prefetch = 0 : i64, scratch_operands = 0 : i64, tpu.core_type = #tpu.core_type<tc>, window_params = [{transform_indices = @transform_0, window_bounds = array<i64: 1, 5, 5, 32>}, {transform_indices = @transform_1, window_bounds = array<i64: 1, 5, 5, 32>}, {transform_indices = @transform_2, window_bounds = array<i64: 1, 5, 5, 32>}, {transform_indices = @transform_3, window_bounds = array<i64: 1, 5, 5, 32>}, {pipeline_mode = #tpu.pipeline_mode<synchronous>, transform_indices = @transform_4, window_bounds = array<i64: 9, 32, 32>}, {pipeline_mode = #tpu.pipeline_mode<synchronous>, transform_indices = @transform_5, window_bounds = array<i64: 1, 32>}, {transform_indices = @transform_6, window_bounds = array<i64: 1, 4, 4, 32>}]} {
    %cst = arith.constant 0.000000e+00 : f32
    %0 = vector.broadcast %cst : f32 to vector<4x4x32xf32>
    %c0 = arith.constant 0 : index
    %c0_0 = arith.constant 0 : index
    %c0_1 = arith.constant 0 : index
    %c0_2 = arith.constant 0 : index
    %1 = vector.load %arg1[%c0, %c0_0, %c0_1, %c0_2] : memref<1x5x5x32xf32, #tpu.memory_space<vmem>>, vector<1x4x4x32xf32>
    %2 = vector.shape_cast %1 : vector<1x4x4x32xf32> to vector<4x4x32xf32>
    %3 = arith.truncf %2 : vector<4x4x32xf32> to vector<4x4x32xbf16>
    %c0_3 = arith.constant 0 : index
    %c0_4 = arith.constant 0 : index
    %c0_5 = arith.constant 0 : index
    %4 = vector.load %arg5[%c0_3, %c0_4, %c0_5] : memref<9x32x32xf32, #tpu.memory_space<vmem>>, vector<1x32x32xf32>
    %5 = vector.shape_cast %4 : vector<1x32x32xf32> to vector<32x32xf32>
    %6 = arith.truncf %5 : vector<32x32xf32> to vector<32x32xbf16>
    %7 = vector.shape_cast %6 : vector<32x32xbf16> to vector<1x32x32xbf16>
    %8 = vector.broadcast %7 : vector<1x32x32xbf16> to vector<4x32x32xbf16>
    "tpu.trace_start"() <{level = 10 : i32, message = "hwc,hcd->hwd"}> : () -> ()
    %cst_6 = arith.constant dense<0.000000e+00> : vector<4x4x32xf32>
    %9 = tpu.matmul %3, %8, %cst_6 {dimension_numbers = #tpu.dot_dimension_numbers<[2], [1], [1], [2], [0, 0, 0, 1, 1, 2], [0], [0]>} : vector<4x4x32xbf16>, vector<4x32x32xbf16>, vector<4x4x32xf32> -> vector<4x4x32xf32>
    "tpu.trace_stop"() : () -> ()
    %10 = arith.addf %0, %9 : vector<4x4x32xf32>
    %c0_7 = arith.constant 0 : index
    %c0_8 = arith.constant 0 : index
    %c0_9 = arith.constant 0 : index
    %c0_10 = arith.constant 0 : index
    %11 = vector.load %arg2[%c0_7, %c0_8, %c0_9, %c0_10] : memref<1x5x5x32xf32, #tpu.memory_space<vmem>>, vector<1x4x4x32xf32>
    %12 = vector.shape_cast %11 : vector<1x4x4x32xf32> to vector<4x4x32xf32>
    %13 = arith.truncf %12 : vector<4x4x32xf32> to vector<4x4x32xbf16>
    %c1 = arith.constant 1 : index
    %c0_11 = arith.constant 0 : index
    %c0_12 = arith.constant 0 : index
    %14 = vector.load %arg5[%c1, %c0_11, %c0_12] : memref<9x32x32xf32, #tpu.memory_space<vmem>>, vector<1x32x32xf32>
    %15 = vector.shape_cast %14 : vector<1x32x32xf32> to vector<32x32xf32>
    %16 = arith.truncf %15 : vector<32x32xf32> to vector<32x32xbf16>
    %17 = vector.shape_cast %16 : vector<32x32xbf16> to vector<1x32x32xbf16>
    %18 = vector.broadcast %17 : vector<1x32x32xbf16> to vector<4x32x32xbf16>
    "tpu.trace_start"() <{level = 10 : i32, message = "hwc,hcd->hwd"}> : () -> ()
    %cst_13 = arith.constant dense<0.000000e+00> : vector<4x4x32xf32>
    %19 = tpu.matmul %13, %18, %cst_13 {dimension_numbers = #tpu.dot_dimension_numbers<[2], [1], [1], [2], [0, 0, 0, 1, 1, 2], [0], [0]>} : vector<4x4x32xbf16>, vector<4x32x32xbf16>, vector<4x4x32xf32> -> vector<4x4x32xf32>
    "tpu.trace_stop"() : () -> ()
    %20 = arith.addf %10, %19 : vector<4x4x32xf32>
    %c0_14 = arith.constant 0 : index
    %c0_15 = arith.constant 0 : index
    %c1_16 = arith.constant 1 : index
    %c0_17 = arith.constant 0 : index
    %21 = vector.load %arg1[%c0_14, %c0_15, %c1_16, %c0_17] : memref<1x5x5x32xf32, #tpu.memory_space<vmem>>, vector<1x4x4x32xf32>
    %22 = vector.shape_cast %21 : vector<1x4x4x32xf32> to vector<4x4x32xf32>
    %23 = arith.truncf %22 : vector<4x4x32xf32> to vector<4x4x32xbf16>
    %c2 = arith.constant 2 : index
    %c0_18 = arith.constant 0 : index
    %c0_19 = arith.constant 0 : index
    %24 = vector.load %arg5[%c2, %c0_18, %c0_19] : memref<9x32x32xf32, #tpu.memory_space<vmem>>, vector<1x32x32xf32>
    %25 = vector.shape_cast %24 : vector<1x32x32xf32> to vector<32x32xf32>
    %26 = arith.truncf %25 : vector<32x32xf32> to vector<32x32xbf16>
    %27 = vector.shape_cast %26 : vector<32x32xbf16> to vector<1x32x32xbf16>
    %28 = vector.broadcast %27 : vector<1x32x32xbf16> to vector<4x32x32xbf16>
    "tpu.trace_start"() <{level = 10 : i32, message = "hwc,hcd->hwd"}> : () -> ()
    %cst_20 = arith.constant dense<0.000000e+00> : vector<4x4x32xf32>
    %29 = tpu.matmul %23, %28, %cst_20 {dimension_numbers = #tpu.dot_dimension_numbers<[2], [1], [1], [2], [0, 0, 0, 1, 1, 2], [0], [0]>} : vector<4x4x32xbf16>, vector<4x32x32xbf16>, vector<4x4x32xf32> -> vector<4x4x32xf32>
    "tpu.trace_stop"() : () -> ()
    %30 = arith.addf %20, %29 : vector<4x4x32xf32>
    %c0_21 = arith.constant 0 : index
    %c0_22 = arith.constant 0 : index
    %c0_23 = arith.constant 0 : index
    %c0_24 = arith.constant 0 : index
    %31 = vector.load %arg3[%c0_21, %c0_22, %c0_23, %c0_24] : memref<1x5x5x32xf32, #tpu.memory_space<vmem>>, vector<1x4x4x32xf32>
    %32 = vector.shape_cast %31 : vector<1x4x4x32xf32> to vector<4x4x32xf32>
    %33 = arith.truncf %32 : vector<4x4x32xf32> to vector<4x4x32xbf16>
    %c3 = arith.constant 3 : index
    %c0_25 = arith.constant 0 : index
    %c0_26 = arith.constant 0 : index
    %34 = vector.load %arg5[%c3, %c0_25, %c0_26] : memref<9x32x32xf32, #tpu.memory_space<vmem>>, vector<1x32x32xf32>
    %35 = vector.shape_cast %34 : vector<1x32x32xf32> to vector<32x32xf32>
    %36 = arith.truncf %35 : vector<32x32xf32> to vector<32x32xbf16>
    %37 = vector.shape_cast %36 : vector<32x32xbf16> to vector<1x32x32xbf16>
    %38 = vector.broadcast %37 : vector<1x32x32xbf16> to vector<4x32x32xbf16>
    "tpu.trace_start"() <{level = 10 : i32, message = "hwc,hcd->hwd"}> : () -> ()
    %cst_27 = arith.constant dense<0.000000e+00> : vector<4x4x32xf32>
    %39 = tpu.matmul %33, %38, %cst_27 {dimension_numbers = #tpu.dot_dimension_numbers<[2], [1], [1], [2], [0, 0, 0, 1, 1, 2], [0], [0]>} : vector<4x4x32xbf16>, vector<4x32x32xbf16>, vector<4x4x32xf32> -> vector<4x4x32xf32>
    "tpu.trace_stop"() : () -> ()
    %40 = arith.addf %30, %39 : vector<4x4x32xf32>
    %c0_28 = arith.constant 0 : index
    %c0_29 = arith.constant 0 : index
    %c0_30 = arith.constant 0 : index
    %c0_31 = arith.constant 0 : index
    %41 = vector.load %arg4[%c0_28, %c0_29, %c0_30, %c0_31] : memref<1x5x5x32xf32, #tpu.memory_space<vmem>>, vector<1x4x4x32xf32>
    %42 = vector.shape_cast %41 : vector<1x4x4x32xf32> to vector<4x4x32xf32>
    %43 = arith.truncf %42 : vector<4x4x32xf32> to vector<4x4x32xbf16>
    %c4 = arith.constant 4 : index
    %c0_32 = arith.constant 0 : index
    %c0_33 = arith.constant 0 : index
    %44 = vector.load %arg5[%c4, %c0_32, %c0_33] : memref<9x32x32xf32, #tpu.memory_space<vmem>>, vector<1x32x32xf32>
    %45 = vector.shape_cast %44 : vector<1x32x32xf32> to vector<32x32xf32>
    %46 = arith.truncf %45 : vector<32x32xf32> to vector<32x32xbf16>
    %47 = vector.shape_cast %46 : vector<32x32xbf16> to vector<1x32x32xbf16>
    %48 = vector.broadcast %47 : vector<1x32x32xbf16> to vector<4x32x32xbf16>
    "tpu.trace_start"() <{level = 10 : i32, message = "hwc,hcd->hwd"}> : () -> ()
    %cst_34 = arith.constant dense<0.000000e+00> : vector<4x4x32xf32>
    %49 = tpu.matmul %43, %48, %cst_34 {dimension_numbers = #tpu.dot_dimension_numbers<[2], [1], [1], [2], [0, 0, 0, 1, 1, 2], [0], [0]>} : vector<4x4x32xbf16>, vector<4x32x32xbf16>, vector<4x4x32xf32> -> vector<4x4x32xf32>
    "tpu.trace_stop"() : () -> ()
    %50 = arith.addf %40, %49 : vector<4x4x32xf32>
    %c0_35 = arith.constant 0 : index
    %c0_36 = arith.constant 0 : index
    %c1_37 = arith.constant 1 : index
    %c0_38 = arith.constant 0 : index
    %51 = vector.load %arg3[%c0_35, %c0_36, %c1_37, %c0_38] : memref<1x5x5x32xf32, #tpu.memory_space<vmem>>, vector<1x4x4x32xf32>
    %52 = vector.shape_cast %51 : vector<1x4x4x32xf32> to vector<4x4x32xf32>
    %53 = arith.truncf %52 : vector<4x4x32xf32> to vector<4x4x32xbf16>
    %c5 = arith.constant 5 : index
    %c0_39 = arith.constant 0 : index
    %c0_40 = arith.constant 0 : index
    %54 = vector.load %arg5[%c5, %c0_39, %c0_40] : memref<9x32x32xf32, #tpu.memory_space<vmem>>, vector<1x32x32xf32>
    %55 = vector.shape_cast %54 : vector<1x32x32xf32> to vector<32x32xf32>
    %56 = arith.truncf %55 : vector<32x32xf32> to vector<32x32xbf16>
    %57 = vector.shape_cast %56 : vector<32x32xbf16> to vector<1x32x32xbf16>
    %58 = vector.broadcast %57 : vector<1x32x32xbf16> to vector<4x32x32xbf16>
    "tpu.trace_start"() <{level = 10 : i32, message = "hwc,hcd->hwd"}> : () -> ()
    %cst_41 = arith.constant dense<0.000000e+00> : vector<4x4x32xf32>
    %59 = tpu.matmul %53, %58, %cst_41 {dimension_numbers = #tpu.dot_dimension_numbers<[2], [1], [1], [2], [0, 0, 0, 1, 1, 2], [0], [0]>} : vector<4x4x32xbf16>, vector<4x32x32xbf16>, vector<4x4x32xf32> -> vector<4x4x32xf32>
    "tpu.trace_stop"() : () -> ()
    %60 = arith.addf %50, %59 : vector<4x4x32xf32>
    %c0_42 = arith.constant 0 : index
    %c1_43 = arith.constant 1 : index
    %c0_44 = arith.constant 0 : index
    %c0_45 = arith.constant 0 : index
    %61 = vector.load %arg1[%c0_42, %c1_43, %c0_44, %c0_45] : memref<1x5x5x32xf32, #tpu.memory_space<vmem>>, vector<1x4x4x32xf32>
    %62 = vector.shape_cast %61 : vector<1x4x4x32xf32> to vector<4x4x32xf32>
    %63 = arith.truncf %62 : vector<4x4x32xf32> to vector<4x4x32xbf16>
    %c6 = arith.constant 6 : index
    %c0_46 = arith.constant 0 : index
    %c0_47 = arith.constant 0 : index
    %64 = vector.load %arg5[%c6, %c0_46, %c0_47] : memref<9x32x32xf32, #tpu.memory_space<vmem>>, vector<1x32x32xf32>
    %65 = vector.shape_cast %64 : vector<1x32x32xf32> to vector<32x32xf32>
    %66 = arith.truncf %65 : vector<32x32xf32> to vector<32x32xbf16>
    %67 = vector.shape_cast %66 : vector<32x32xbf16> to vector<1x32x32xbf16>
    %68 = vector.broadcast %67 : vector<1x32x32xbf16> to vector<4x32x32xbf16>
    "tpu.trace_start"() <{level = 10 : i32, message = "hwc,hcd->hwd"}> : () -> ()
    %cst_48 = arith.constant dense<0.000000e+00> : vector<4x4x32xf32>
    %69 = tpu.matmul %63, %68, %cst_48 {dimension_numbers = #tpu.dot_dimension_numbers<[2], [1], [1], [2], [0, 0, 0, 1, 1, 2], [0], [0]>} : vector<4x4x32xbf16>, vector<4x32x32xbf16>, vector<4x4x32xf32> -> vector<4x4x32xf32>
    "tpu.trace_stop"() : () -> ()
    %70 = arith.addf %60, %69 : vector<4x4x32xf32>
    %c0_49 = arith.constant 0 : index
    %c1_50 = arith.constant 1 : index
    %c0_51 = arith.constant 0 : index
    %c0_52 = arith.constant 0 : index
    %71 = vector.load %arg2[%c0_49, %c1_50, %c0_51, %c0_52] : memref<1x5x5x32xf32, #tpu.memory_space<vmem>>, vector<1x4x4x32xf32>
    %72 = vector.shape_cast %71 : vector<1x4x4x32xf32> to vector<4x4x32xf32>
    %73 = arith.truncf %72 : vector<4x4x32xf32> to vector<4x4x32xbf16>
    %c7 = arith.constant 7 : index
    %c0_53 = arith.constant 0 : index
    %c0_54 = arith.constant 0 : index
    %74 = vector.load %arg5[%c7, %c0_53, %c0_54] : memref<9x32x32xf32, #tpu.memory_space<vmem>>, vector<1x32x32xf32>
    %75 = vector.shape_cast %74 : vector<1x32x32xf32> to vector<32x32xf32>
    %76 = arith.truncf %75 : vector<32x32xf32> to vector<32x32xbf16>
    %77 = vector.shape_cast %76 : vector<32x32xbf16> to vector<1x32x32xbf16>
    %78 = vector.broadcast %77 : vector<1x32x32xbf16> to vector<4x32x32xbf16>
    "tpu.trace_start"() <{level = 10 : i32, message = "hwc,hcd->hwd"}> : () -> ()
    %cst_55 = arith.constant dense<0.000000e+00> : vector<4x4x32xf32>
    %79 = tpu.matmul %73, %78, %cst_55 {dimension_numbers = #tpu.dot_dimension_numbers<[2], [1], [1], [2], [0, 0, 0, 1, 1, 2], [0], [0]>} : vector<4x4x32xbf16>, vector<4x32x32xbf16>, vector<4x4x32xf32> -> vector<4x4x32xf32>
    "tpu.trace_stop"() : () -> ()
    %80 = arith.addf %70, %79 : vector<4x4x32xf32>
    %c0_56 = arith.constant 0 : index
    %c1_57 = arith.constant 1 : index
    %c1_58 = arith.constant 1 : index
    %c0_59 = arith.constant 0 : index
    %81 = vector.load %arg1[%c0_56, %c1_57, %c1_58, %c0_59] : memref<1x5x5x32xf32, #tpu.memory_space<vmem>>, vector<1x4x4x32xf32>
    %82 = vector.shape_cast %81 : vector<1x4x4x32xf32> to vector<4x4x32xf32>
    %83 = arith.truncf %82 : vector<4x4x32xf32> to vector<4x4x32xbf16>
    %c8 = arith.constant 8 : index
    %c0_60 = arith.constant 0 : index
    %c0_61 = arith.constant 0 : index
    %84 = vector.load %arg5[%c8, %c0_60, %c0_61] : memref<9x32x32xf32, #tpu.memory_space<vmem>>, vector<1x32x32xf32>
    %85 = vector.shape_cast %84 : vector<1x32x32xf32> to vector<32x32xf32>
    %86 = arith.truncf %85 : vector<32x32xf32> to vector<32x32xbf16>
    %87 = vector.shape_cast %86 : vector<32x32xbf16> to vector<1x32x32xbf16>
    %88 = vector.broadcast %87 : vector<1x32x32xbf16> to vector<4x32x32xbf16>
    "tpu.trace_start"() <{level = 10 : i32, message = "hwc,hcd->hwd"}> : () -> ()
    %cst_62 = arith.constant dense<0.000000e+00> : vector<4x4x32xf32>
    %89 = tpu.matmul %83, %88, %cst_62 {dimension_numbers = #tpu.dot_dimension_numbers<[2], [1], [1], [2], [0, 0, 0, 1, 1, 2], [0], [0]>} : vector<4x4x32xbf16>, vector<4x32x32xbf16>, vector<4x4x32xf32> -> vector<4x4x32xf32>
    "tpu.trace_stop"() : () -> ()
    %90 = arith.addf %80, %89 : vector<4x4x32xf32>
    %c0_63 = arith.constant 0 : index
    %c0_64 = arith.constant 0 : index
    %91 = vector.load %arg6[%c0_63, %c0_64] : memref<1x32xf32, #tpu.memory_space<vmem>>, vector<1x32xf32>
    %92 = vector.shape_cast %91 : vector<1x32xf32> to vector<1x1x32xf32>
    %93 = vector.broadcast %92 : vector<1x1x32xf32> to vector<4x4x32xf32>
    %94 = arith.addf %90, %93 : vector<4x4x32xf32>
    %cst_65 = arith.constant 0.000000e+00 : f32
    %95 = vector.broadcast %cst_65 : f32 to vector<4x4x32xf32>
    %96 = arith.cmpf ogt, %94, %95 : vector<4x4x32xf32>
    %cst_66 = arith.constant 0.000000e+00 : f32
    %97 = vector.broadcast %cst_66 : f32 to vector<4x4x32xf32>
    %98 = arith.minimumf %94, %97 : vector<4x4x32xf32>
    %99 = math.exp %98 : vector<4x4x32xf32>
    %cst_67 = arith.constant 1.000000e+00 : f32
    %100 = vector.broadcast %cst_67 : f32 to vector<4x4x32xf32>
    %101 = arith.subf %99, %100 : vector<4x4x32xf32>
    %102 = arith.select %96, %94, %101 : vector<4x4x32xi1>, vector<4x4x32xf32>
    %c0_68 = arith.constant 0 : index
    %c0_69 = arith.constant 0 : index
    %c0_70 = arith.constant 0 : index
    %c0_71 = arith.constant 0 : index
    %103 = vector.load %arg7[%c0_68, %c0_69, %c0_70, %c0_71] : memref<1x4x4x32xf32, #tpu.memory_space<vmem>>, vector<1x4x4x32xf32>
    %104 = vector.shape_cast %103 : vector<1x4x4x32xf32> to vector<4x4x32xf32>
    %105 = vector.shape_cast %102 : vector<4x4x32xf32> to vector<1x4x4x32xf32>
    tpu.vector_store %arg7[%c0_68, %c0_69, %c0_70, %c0_71], %105 {strides = array<i32>} : memref<1x4x4x32xf32, #tpu.memory_space<vmem>>, vector<1x4x4x32xf32>,
    return
  }
  func.func @transform_0(%arg0: i32) -> (i32, i32, i32, i32) {
    %c0_i32 = arith.constant 0 : i32
    %c0_i32_0 = arith.constant 0 : i32
    %c0_i32_1 = arith.constant 0 : i32
    %c0_i32_2 = arith.constant 0 : i32
    return %arg0, %c0_i32, %c0_i32_0, %c0_i32_1 : i32, i32, i32, i32
  }
  func.func @transform_1(%arg0: i32) -> (i32, i32, i32, i32) {
    %c0_i32 = arith.constant 0 : i32
    %c0_i32_0 = arith.constant 0 : i32
    %c0_i32_1 = arith.constant 0 : i32
    %c0_i32_2 = arith.constant 0 : i32
    return %arg0, %c0_i32, %c0_i32_0, %c0_i32_1 : i32, i32, i32, i32
  }
  func.func @transform_2(%arg0: i32) -> (i32, i32, i32, i32) {
    %c0_i32 = arith.constant 0 : i32
    %c0_i32_0 = arith.constant 0 : i32
    %c0_i32_1 = arith.constant 0 : i32
    %c0_i32_2 = arith.constant 0 : i32
    return %arg0, %c0_i32, %c0_i32_0, %c0_i32_1 : i32, i32, i32, i32
  }
  func.func @transform_3(%arg0: i32) -> (i32, i32, i32, i32) {
    %c0_i32 = arith.constant 0 : i32
    %c0_i32_0 = arith.constant 0 : i32
    %c0_i32_1 = arith.constant 0 : i32
    %c0_i32_2 = arith.constant 0 : i32
    return %arg0, %c0_i32, %c0_i32_0, %c0_i32_1 : i32, i32, i32, i32
  }
  func.func @transform_4(%arg0: i32) -> (i32, i32, i32) {
    %c0_i32 = arith.constant 0 : i32
    %c0_i32_0 = arith.constant 0 : i32
    %c0_i32_1 = arith.constant 0 : i32
    %c0_i32_2 = arith.constant 0 : i32
    return %c0_i32, %c0_i32_0, %c0_i32_1 : i32, i32, i32
  }
  func.func @transform_5(%arg0: i32) -> (i32, i32) {
    %c0_i32 = arith.constant 0 : i32
    %c0_i32_0 = arith.constant 0 : i32
    %c0_i32_1 = arith.constant 0 : i32
    return %c0_i32, %c0_i32_0 : i32, i32
  }
  func.func @transform_6(%arg0: i32) -> (i32, i32, i32, i32) {
    %c0_i32 = arith.constant 0 : i32
    %c0_i32_0 = arith.constant 0 : i32
    %c0_i32_1 = arith.constant 0 : i32
    %c0_i32_2 = arith.constant 0 : i32
    return %arg0, %c0_i32, %c0_i32_0, %c0_i32_1 : i32, i32, i32, i32
  }
}

module attributes {stable_mosaic.version = 11 : i64} {
  func.func @_conv3x3s2_elu_kernel(%arg0: i32, %arg1: memref<1x3x3x32xf32, #tpu.memory_space<vmem>>, %arg2: memref<1x3x3x32xf32, #tpu.memory_space<vmem>>, %arg3: memref<1x3x3x32xf32, #tpu.memory_space<vmem>>, %arg4: memref<1x3x3x32xf32, #tpu.memory_space<vmem>>, %arg5: memref<9x32x32xf32, #tpu.memory_space<vmem>>, %arg6: memref<1x32xf32, #tpu.memory_space<vmem>>, %arg7: memref<1x2x2x32xf32, #tpu.memory_space<vmem>>) attributes {dimension_semantics = [#tpu.dimension_semantics<parallel>], iteration_bounds = array<i64: 4>, scalar_prefetch = 0 : i64, scratch_operands = 0 : i64, tpu.core_type = #tpu.core_type<tc>, window_params = [{transform_indices = @transform_0, window_bounds = array<i64: 1, 3, 3, 32>}, {transform_indices = @transform_1, window_bounds = array<i64: 1, 3, 3, 32>}, {transform_indices = @transform_2, window_bounds = array<i64: 1, 3, 3, 32>}, {transform_indices = @transform_3, window_bounds = array<i64: 1, 3, 3, 32>}, {pipeline_mode = #tpu.pipeline_mode<synchronous>, transform_indices = @transform_4, window_bounds = array<i64: 9, 32, 32>}, {pipeline_mode = #tpu.pipeline_mode<synchronous>, transform_indices = @transform_5, window_bounds = array<i64: 1, 32>}, {transform_indices = @transform_6, window_bounds = array<i64: 1, 2, 2, 32>}]} {
    %cst = arith.constant 0.000000e+00 : f32
    %0 = vector.broadcast %cst : f32 to vector<2x2x32xf32>
    %c0 = arith.constant 0 : index
    %c0_0 = arith.constant 0 : index
    %c0_1 = arith.constant 0 : index
    %c0_2 = arith.constant 0 : index
    %1 = vector.load %arg1[%c0, %c0_0, %c0_1, %c0_2] : memref<1x3x3x32xf32, #tpu.memory_space<vmem>>, vector<1x2x2x32xf32>
    %2 = vector.shape_cast %1 : vector<1x2x2x32xf32> to vector<2x2x32xf32>
    %3 = arith.truncf %2 : vector<2x2x32xf32> to vector<2x2x32xbf16>
    %c0_3 = arith.constant 0 : index
    %c0_4 = arith.constant 0 : index
    %c0_5 = arith.constant 0 : index
    %4 = vector.load %arg5[%c0_3, %c0_4, %c0_5] : memref<9x32x32xf32, #tpu.memory_space<vmem>>, vector<1x32x32xf32>
    %5 = vector.shape_cast %4 : vector<1x32x32xf32> to vector<32x32xf32>
    %6 = arith.truncf %5 : vector<32x32xf32> to vector<32x32xbf16>
    %7 = vector.shape_cast %6 : vector<32x32xbf16> to vector<1x32x32xbf16>
    %8 = vector.broadcast %7 : vector<1x32x32xbf16> to vector<2x32x32xbf16>
    "tpu.trace_start"() <{level = 10 : i32, message = "hwc,hcd->hwd"}> : () -> ()
    %cst_6 = arith.constant dense<0.000000e+00> : vector<2x2x32xf32>
    %9 = tpu.matmul %3, %8, %cst_6 {dimension_numbers = #tpu.dot_dimension_numbers<[2], [1], [1], [2], [0, 0, 0, 1, 1, 2], [0], [0]>} : vector<2x2x32xbf16>, vector<2x32x32xbf16>, vector<2x2x32xf32> -> vector<2x2x32xf32>
    "tpu.trace_stop"() : () -> ()
    %10 = arith.addf %0, %9 : vector<2x2x32xf32>
    %c0_7 = arith.constant 0 : index
    %c0_8 = arith.constant 0 : index
    %c0_9 = arith.constant 0 : index
    %c0_10 = arith.constant 0 : index
    %11 = vector.load %arg2[%c0_7, %c0_8, %c0_9, %c0_10] : memref<1x3x3x32xf32, #tpu.memory_space<vmem>>, vector<1x2x2x32xf32>
    %12 = vector.shape_cast %11 : vector<1x2x2x32xf32> to vector<2x2x32xf32>
    %13 = arith.truncf %12 : vector<2x2x32xf32> to vector<2x2x32xbf16>
    %c1 = arith.constant 1 : index
    %c0_11 = arith.constant 0 : index
    %c0_12 = arith.constant 0 : index
    %14 = vector.load %arg5[%c1, %c0_11, %c0_12] : memref<9x32x32xf32, #tpu.memory_space<vmem>>, vector<1x32x32xf32>
    %15 = vector.shape_cast %14 : vector<1x32x32xf32> to vector<32x32xf32>
    %16 = arith.truncf %15 : vector<32x32xf32> to vector<32x32xbf16>
    %17 = vector.shape_cast %16 : vector<32x32xbf16> to vector<1x32x32xbf16>
    %18 = vector.broadcast %17 : vector<1x32x32xbf16> to vector<2x32x32xbf16>
    "tpu.trace_start"() <{level = 10 : i32, message = "hwc,hcd->hwd"}> : () -> ()
    %cst_13 = arith.constant dense<0.000000e+00> : vector<2x2x32xf32>
    %19 = tpu.matmul %13, %18, %cst_13 {dimension_numbers = #tpu.dot_dimension_numbers<[2], [1], [1], [2], [0, 0, 0, 1, 1, 2], [0], [0]>} : vector<2x2x32xbf16>, vector<2x32x32xbf16>, vector<2x2x32xf32> -> vector<2x2x32xf32>
    "tpu.trace_stop"() : () -> ()
    %20 = arith.addf %10, %19 : vector<2x2x32xf32>
    %c0_14 = arith.constant 0 : index
    %c0_15 = arith.constant 0 : index
    %c1_16 = arith.constant 1 : index
    %c0_17 = arith.constant 0 : index
    %21 = vector.load %arg1[%c0_14, %c0_15, %c1_16, %c0_17] : memref<1x3x3x32xf32, #tpu.memory_space<vmem>>, vector<1x2x2x32xf32>
    %22 = vector.shape_cast %21 : vector<1x2x2x32xf32> to vector<2x2x32xf32>
    %23 = arith.truncf %22 : vector<2x2x32xf32> to vector<2x2x32xbf16>
    %c2 = arith.constant 2 : index
    %c0_18 = arith.constant 0 : index
    %c0_19 = arith.constant 0 : index
    %24 = vector.load %arg5[%c2, %c0_18, %c0_19] : memref<9x32x32xf32, #tpu.memory_space<vmem>>, vector<1x32x32xf32>
    %25 = vector.shape_cast %24 : vector<1x32x32xf32> to vector<32x32xf32>
    %26 = arith.truncf %25 : vector<32x32xf32> to vector<32x32xbf16>
    %27 = vector.shape_cast %26 : vector<32x32xbf16> to vector<1x32x32xbf16>
    %28 = vector.broadcast %27 : vector<1x32x32xbf16> to vector<2x32x32xbf16>
    "tpu.trace_start"() <{level = 10 : i32, message = "hwc,hcd->hwd"}> : () -> ()
    %cst_20 = arith.constant dense<0.000000e+00> : vector<2x2x32xf32>
    %29 = tpu.matmul %23, %28, %cst_20 {dimension_numbers = #tpu.dot_dimension_numbers<[2], [1], [1], [2], [0, 0, 0, 1, 1, 2], [0], [0]>} : vector<2x2x32xbf16>, vector<2x32x32xbf16>, vector<2x2x32xf32> -> vector<2x2x32xf32>
    "tpu.trace_stop"() : () -> ()
    %30 = arith.addf %20, %29 : vector<2x2x32xf32>
    %c0_21 = arith.constant 0 : index
    %c0_22 = arith.constant 0 : index
    %c0_23 = arith.constant 0 : index
    %c0_24 = arith.constant 0 : index
    %31 = vector.load %arg3[%c0_21, %c0_22, %c0_23, %c0_24] : memref<1x3x3x32xf32, #tpu.memory_space<vmem>>, vector<1x2x2x32xf32>
    %32 = vector.shape_cast %31 : vector<1x2x2x32xf32> to vector<2x2x32xf32>
    %33 = arith.truncf %32 : vector<2x2x32xf32> to vector<2x2x32xbf16>
    %c3 = arith.constant 3 : index
    %c0_25 = arith.constant 0 : index
    %c0_26 = arith.constant 0 : index
    %34 = vector.load %arg5[%c3, %c0_25, %c0_26] : memref<9x32x32xf32, #tpu.memory_space<vmem>>, vector<1x32x32xf32>
    %35 = vector.shape_cast %34 : vector<1x32x32xf32> to vector<32x32xf32>
    %36 = arith.truncf %35 : vector<32x32xf32> to vector<32x32xbf16>
    %37 = vector.shape_cast %36 : vector<32x32xbf16> to vector<1x32x32xbf16>
    %38 = vector.broadcast %37 : vector<1x32x32xbf16> to vector<2x32x32xbf16>
    "tpu.trace_start"() <{level = 10 : i32, message = "hwc,hcd->hwd"}> : () -> ()
    %cst_27 = arith.constant dense<0.000000e+00> : vector<2x2x32xf32>
    %39 = tpu.matmul %33, %38, %cst_27 {dimension_numbers = #tpu.dot_dimension_numbers<[2], [1], [1], [2], [0, 0, 0, 1, 1, 2], [0], [0]>} : vector<2x2x32xbf16>, vector<2x32x32xbf16>, vector<2x2x32xf32> -> vector<2x2x32xf32>
    "tpu.trace_stop"() : () -> ()
    %40 = arith.addf %30, %39 : vector<2x2x32xf32>
    %c0_28 = arith.constant 0 : index
    %c0_29 = arith.constant 0 : index
    %c0_30 = arith.constant 0 : index
    %c0_31 = arith.constant 0 : index
    %41 = vector.load %arg4[%c0_28, %c0_29, %c0_30, %c0_31] : memref<1x3x3x32xf32, #tpu.memory_space<vmem>>, vector<1x2x2x32xf32>
    %42 = vector.shape_cast %41 : vector<1x2x2x32xf32> to vector<2x2x32xf32>
    %43 = arith.truncf %42 : vector<2x2x32xf32> to vector<2x2x32xbf16>
    %c4 = arith.constant 4 : index
    %c0_32 = arith.constant 0 : index
    %c0_33 = arith.constant 0 : index
    %44 = vector.load %arg5[%c4, %c0_32, %c0_33] : memref<9x32x32xf32, #tpu.memory_space<vmem>>, vector<1x32x32xf32>
    %45 = vector.shape_cast %44 : vector<1x32x32xf32> to vector<32x32xf32>
    %46 = arith.truncf %45 : vector<32x32xf32> to vector<32x32xbf16>
    %47 = vector.shape_cast %46 : vector<32x32xbf16> to vector<1x32x32xbf16>
    %48 = vector.broadcast %47 : vector<1x32x32xbf16> to vector<2x32x32xbf16>
    "tpu.trace_start"() <{level = 10 : i32, message = "hwc,hcd->hwd"}> : () -> ()
    %cst_34 = arith.constant dense<0.000000e+00> : vector<2x2x32xf32>
    %49 = tpu.matmul %43, %48, %cst_34 {dimension_numbers = #tpu.dot_dimension_numbers<[2], [1], [1], [2], [0, 0, 0, 1, 1, 2], [0], [0]>} : vector<2x2x32xbf16>, vector<2x32x32xbf16>, vector<2x2x32xf32> -> vector<2x2x32xf32>
    "tpu.trace_stop"() : () -> ()
    %50 = arith.addf %40, %49 : vector<2x2x32xf32>
    %c0_35 = arith.constant 0 : index
    %c0_36 = arith.constant 0 : index
    %c1_37 = arith.constant 1 : index
    %c0_38 = arith.constant 0 : index
    %51 = vector.load %arg3[%c0_35, %c0_36, %c1_37, %c0_38] : memref<1x3x3x32xf32, #tpu.memory_space<vmem>>, vector<1x2x2x32xf32>
    %52 = vector.shape_cast %51 : vector<1x2x2x32xf32> to vector<2x2x32xf32>
    %53 = arith.truncf %52 : vector<2x2x32xf32> to vector<2x2x32xbf16>
    %c5 = arith.constant 5 : index
    %c0_39 = arith.constant 0 : index
    %c0_40 = arith.constant 0 : index
    %54 = vector.load %arg5[%c5, %c0_39, %c0_40] : memref<9x32x32xf32, #tpu.memory_space<vmem>>, vector<1x32x32xf32>
    %55 = vector.shape_cast %54 : vector<1x32x32xf32> to vector<32x32xf32>
    %56 = arith.truncf %55 : vector<32x32xf32> to vector<32x32xbf16>
    %57 = vector.shape_cast %56 : vector<32x32xbf16> to vector<1x32x32xbf16>
    %58 = vector.broadcast %57 : vector<1x32x32xbf16> to vector<2x32x32xbf16>
    "tpu.trace_start"() <{level = 10 : i32, message = "hwc,hcd->hwd"}> : () -> ()
    %cst_41 = arith.constant dense<0.000000e+00> : vector<2x2x32xf32>
    %59 = tpu.matmul %53, %58, %cst_41 {dimension_numbers = #tpu.dot_dimension_numbers<[2], [1], [1], [2], [0, 0, 0, 1, 1, 2], [0], [0]>} : vector<2x2x32xbf16>, vector<2x32x32xbf16>, vector<2x2x32xf32> -> vector<2x2x32xf32>
    "tpu.trace_stop"() : () -> ()
    %60 = arith.addf %50, %59 : vector<2x2x32xf32>
    %c0_42 = arith.constant 0 : index
    %c1_43 = arith.constant 1 : index
    %c0_44 = arith.constant 0 : index
    %c0_45 = arith.constant 0 : index
    %61 = vector.load %arg1[%c0_42, %c1_43, %c0_44, %c0_45] : memref<1x3x3x32xf32, #tpu.memory_space<vmem>>, vector<1x2x2x32xf32>
    %62 = vector.shape_cast %61 : vector<1x2x2x32xf32> to vector<2x2x32xf32>
    %63 = arith.truncf %62 : vector<2x2x32xf32> to vector<2x2x32xbf16>
    %c6 = arith.constant 6 : index
    %c0_46 = arith.constant 0 : index
    %c0_47 = arith.constant 0 : index
    %64 = vector.load %arg5[%c6, %c0_46, %c0_47] : memref<9x32x32xf32, #tpu.memory_space<vmem>>, vector<1x32x32xf32>
    %65 = vector.shape_cast %64 : vector<1x32x32xf32> to vector<32x32xf32>
    %66 = arith.truncf %65 : vector<32x32xf32> to vector<32x32xbf16>
    %67 = vector.shape_cast %66 : vector<32x32xbf16> to vector<1x32x32xbf16>
    %68 = vector.broadcast %67 : vector<1x32x32xbf16> to vector<2x32x32xbf16>
    "tpu.trace_start"() <{level = 10 : i32, message = "hwc,hcd->hwd"}> : () -> ()
    %cst_48 = arith.constant dense<0.000000e+00> : vector<2x2x32xf32>
    %69 = tpu.matmul %63, %68, %cst_48 {dimension_numbers = #tpu.dot_dimension_numbers<[2], [1], [1], [2], [0, 0, 0, 1, 1, 2], [0], [0]>} : vector<2x2x32xbf16>, vector<2x32x32xbf16>, vector<2x2x32xf32> -> vector<2x2x32xf32>
    "tpu.trace_stop"() : () -> ()
    %70 = arith.addf %60, %69 : vector<2x2x32xf32>
    %c0_49 = arith.constant 0 : index
    %c1_50 = arith.constant 1 : index
    %c0_51 = arith.constant 0 : index
    %c0_52 = arith.constant 0 : index
    %71 = vector.load %arg2[%c0_49, %c1_50, %c0_51, %c0_52] : memref<1x3x3x32xf32, #tpu.memory_space<vmem>>, vector<1x2x2x32xf32>
    %72 = vector.shape_cast %71 : vector<1x2x2x32xf32> to vector<2x2x32xf32>
    %73 = arith.truncf %72 : vector<2x2x32xf32> to vector<2x2x32xbf16>
    %c7 = arith.constant 7 : index
    %c0_53 = arith.constant 0 : index
    %c0_54 = arith.constant 0 : index
    %74 = vector.load %arg5[%c7, %c0_53, %c0_54] : memref<9x32x32xf32, #tpu.memory_space<vmem>>, vector<1x32x32xf32>
    %75 = vector.shape_cast %74 : vector<1x32x32xf32> to vector<32x32xf32>
    %76 = arith.truncf %75 : vector<32x32xf32> to vector<32x32xbf16>
    %77 = vector.shape_cast %76 : vector<32x32xbf16> to vector<1x32x32xbf16>
    %78 = vector.broadcast %77 : vector<1x32x32xbf16> to vector<2x32x32xbf16>
    "tpu.trace_start"() <{level = 10 : i32, message = "hwc,hcd->hwd"}> : () -> ()
    %cst_55 = arith.constant dense<0.000000e+00> : vector<2x2x32xf32>
    %79 = tpu.matmul %73, %78, %cst_55 {dimension_numbers = #tpu.dot_dimension_numbers<[2], [1], [1], [2], [0, 0, 0, 1, 1, 2], [0], [0]>} : vector<2x2x32xbf16>, vector<2x32x32xbf16>, vector<2x2x32xf32> -> vector<2x2x32xf32>
    "tpu.trace_stop"() : () -> ()
    %80 = arith.addf %70, %79 : vector<2x2x32xf32>
    %c0_56 = arith.constant 0 : index
    %c1_57 = arith.constant 1 : index
    %c1_58 = arith.constant 1 : index
    %c0_59 = arith.constant 0 : index
    %81 = vector.load %arg1[%c0_56, %c1_57, %c1_58, %c0_59] : memref<1x3x3x32xf32, #tpu.memory_space<vmem>>, vector<1x2x2x32xf32>
    %82 = vector.shape_cast %81 : vector<1x2x2x32xf32> to vector<2x2x32xf32>
    %83 = arith.truncf %82 : vector<2x2x32xf32> to vector<2x2x32xbf16>
    %c8 = arith.constant 8 : index
    %c0_60 = arith.constant 0 : index
    %c0_61 = arith.constant 0 : index
    %84 = vector.load %arg5[%c8, %c0_60, %c0_61] : memref<9x32x32xf32, #tpu.memory_space<vmem>>, vector<1x32x32xf32>
    %85 = vector.shape_cast %84 : vector<1x32x32xf32> to vector<32x32xf32>
    %86 = arith.truncf %85 : vector<32x32xf32> to vector<32x32xbf16>
    %87 = vector.shape_cast %86 : vector<32x32xbf16> to vector<1x32x32xbf16>
    %88 = vector.broadcast %87 : vector<1x32x32xbf16> to vector<2x32x32xbf16>
    "tpu.trace_start"() <{level = 10 : i32, message = "hwc,hcd->hwd"}> : () -> ()
    %cst_62 = arith.constant dense<0.000000e+00> : vector<2x2x32xf32>
    %89 = tpu.matmul %83, %88, %cst_62 {dimension_numbers = #tpu.dot_dimension_numbers<[2], [1], [1], [2], [0, 0, 0, 1, 1, 2], [0], [0]>} : vector<2x2x32xbf16>, vector<2x32x32xbf16>, vector<2x2x32xf32> -> vector<2x2x32xf32>
    "tpu.trace_stop"() : () -> ()
    %90 = arith.addf %80, %89 : vector<2x2x32xf32>
    %c0_63 = arith.constant 0 : index
    %c0_64 = arith.constant 0 : index
    %91 = vector.load %arg6[%c0_63, %c0_64] : memref<1x32xf32, #tpu.memory_space<vmem>>, vector<1x32xf32>
    %92 = vector.shape_cast %91 : vector<1x32xf32> to vector<1x1x32xf32>
    %93 = vector.broadcast %92 : vector<1x1x32xf32> to vector<2x2x32xf32>
    %94 = arith.addf %90, %93 : vector<2x2x32xf32>
    %cst_65 = arith.constant 0.000000e+00 : f32
    %95 = vector.broadcast %cst_65 : f32 to vector<2x2x32xf32>
    %96 = arith.cmpf ogt, %94, %95 : vector<2x2x32xf32>
    %cst_66 = arith.constant 0.000000e+00 : f32
    %97 = vector.broadcast %cst_66 : f32 to vector<2x2x32xf32>
    %98 = arith.minimumf %94, %97 : vector<2x2x32xf32>
    %99 = math.exp %98 : vector<2x2x32xf32>
    %cst_67 = arith.constant 1.000000e+00 : f32
    %100 = vector.broadcast %cst_67 : f32 to vector<2x2x32xf32>
    %101 = arith.subf %99, %100 : vector<2x2x32xf32>
    %102 = arith.select %96, %94, %101 : vector<2x2x32xi1>, vector<2x2x32xf32>
    %c0_68 = arith.constant 0 : index
    %c0_69 = arith.constant 0 : index
    %c0_70 = arith.constant 0 : index
    %c0_71 = arith.constant 0 : index
    %103 = vector.load %arg7[%c0_68, %c0_69, %c0_70, %c0_71] : memref<1x2x2x32xf32, #tpu.memory_space<vmem>>, vector<1x2x2x32xf32>
    %104 = vector.shape_cast %103 : vector<1x2x2x32xf32> to vector<2x2x32xf32>
    %105 = vector.shape_cast %102 : vector<2x2x32xf32> to vector<1x2x2x32xf32>
    tpu.vector_store %arg7[%c0_68, %c0_69, %c0_70, %c0_71], %105 {strides = array<i32>} : memref<1x2x2x32xf32, #tpu.memory_space<vmem>>, vector<1x2x2x32xf32>,
    return
  }
  func.func @transform_0(%arg0: i32) -> (i32, i32, i32, i32) {
    %c0_i32 = arith.constant 0 : i32
    %c0_i32_0 = arith.constant 0 : i32
    %c0_i32_1 = arith.constant 0 : i32
    %c0_i32_2 = arith.constant 0 : i32
    return %arg0, %c0_i32, %c0_i32_0, %c0_i32_1 : i32, i32, i32, i32
  }
  func.func @transform_1(%arg0: i32) -> (i32, i32, i32, i32) {
    %c0_i32 = arith.constant 0 : i32
    %c0_i32_0 = arith.constant 0 : i32
    %c0_i32_1 = arith.constant 0 : i32
    %c0_i32_2 = arith.constant 0 : i32
    return %arg0, %c0_i32, %c0_i32_0, %c0_i32_1 : i32, i32, i32, i32
  }
  func.func @transform_2(%arg0: i32) -> (i32, i32, i32, i32) {
    %c0_i32 = arith.constant 0 : i32
    %c0_i32_0 = arith.constant 0 : i32
    %c0_i32_1 = arith.constant 0 : i32
    %c0_i32_2 = arith.constant 0 : i32
    return %arg0, %c0_i32, %c0_i32_0, %c0_i32_1 : i32, i32, i32, i32
  }
  func.func @transform_3(%arg0: i32) -> (i32, i32, i32, i32) {
    %c0_i32 = arith.constant 0 : i32
    %c0_i32_0 = arith.constant 0 : i32
    %c0_i32_1 = arith.constant 0 : i32
    %c0_i32_2 = arith.constant 0 : i32
    return %arg0, %c0_i32, %c0_i32_0, %c0_i32_1 : i32, i32, i32, i32
  }
  func.func @transform_4(%arg0: i32) -> (i32, i32, i32) {
    %c0_i32 = arith.constant 0 : i32
    %c0_i32_0 = arith.constant 0 : i32
    %c0_i32_1 = arith.constant 0 : i32
    %c0_i32_2 = arith.constant 0 : i32
    return %c0_i32, %c0_i32_0, %c0_i32_1 : i32, i32, i32
  }
  func.func @transform_5(%arg0: i32) -> (i32, i32) {
    %c0_i32 = arith.constant 0 : i32
    %c0_i32_0 = arith.constant 0 : i32
    %c0_i32_1 = arith.constant 0 : i32
    return %c0_i32, %c0_i32_0 : i32, i32
  }
  func.func @transform_6(%arg0: i32) -> (i32, i32, i32, i32) {
    %c0_i32 = arith.constant 0 : i32
    %c0_i32_0 = arith.constant 0 : i32
    %c0_i32_1 = arith.constant 0 : i32
    %c0_i32_2 = arith.constant 0 : i32
    return %arg0, %c0_i32, %c0_i32_0, %c0_i32_1 : i32, i32, i32, i32
  }
}

module attributes {stable_mosaic.version = 11 : i64} {
  func.func @_conv3x3s2_elu_kernel(%arg0: i32, %arg1: memref<1x2x2x32xf32, #tpu.memory_space<vmem>>, %arg2: memref<1x2x2x32xf32, #tpu.memory_space<vmem>>, %arg3: memref<1x2x2x32xf32, #tpu.memory_space<vmem>>, %arg4: memref<1x2x2x32xf32, #tpu.memory_space<vmem>>, %arg5: memref<9x32x32xf32, #tpu.memory_space<vmem>>, %arg6: memref<1x32xf32, #tpu.memory_space<vmem>>, %arg7: memref<1x1x1x32xf32, #tpu.memory_space<vmem>>) attributes {dimension_semantics = [#tpu.dimension_semantics<parallel>], iteration_bounds = array<i64: 4>, scalar_prefetch = 0 : i64, scratch_operands = 0 : i64, tpu.core_type = #tpu.core_type<tc>, window_params = [{transform_indices = @transform_0, window_bounds = array<i64: 1, 2, 2, 32>}, {transform_indices = @transform_1, window_bounds = array<i64: 1, 2, 2, 32>}, {transform_indices = @transform_2, window_bounds = array<i64: 1, 2, 2, 32>}, {transform_indices = @transform_3, window_bounds = array<i64: 1, 2, 2, 32>}, {pipeline_mode = #tpu.pipeline_mode<synchronous>, transform_indices = @transform_4, window_bounds = array<i64: 9, 32, 32>}, {pipeline_mode = #tpu.pipeline_mode<synchronous>, transform_indices = @transform_5, window_bounds = array<i64: 1, 32>}, {transform_indices = @transform_6, window_bounds = array<i64: 1, 1, 1, 32>}]} {
    %cst = arith.constant 0.000000e+00 : f32
    %0 = vector.broadcast %cst : f32 to vector<1x1x32xf32>
    %c0 = arith.constant 0 : index
    %c0_0 = arith.constant 0 : index
    %c0_1 = arith.constant 0 : index
    %c0_2 = arith.constant 0 : index
    %1 = vector.load %arg1[%c0, %c0_0, %c0_1, %c0_2] : memref<1x2x2x32xf32, #tpu.memory_space<vmem>>, vector<1x1x1x32xf32>
    %2 = vector.shape_cast %1 : vector<1x1x1x32xf32> to vector<1x1x32xf32>
    %3 = arith.truncf %2 : vector<1x1x32xf32> to vector<1x1x32xbf16>
    %c0_3 = arith.constant 0 : index
    %c0_4 = arith.constant 0 : index
    %c0_5 = arith.constant 0 : index
    %4 = vector.load %arg5[%c0_3, %c0_4, %c0_5] : memref<9x32x32xf32, #tpu.memory_space<vmem>>, vector<1x32x32xf32>
    %5 = vector.shape_cast %4 : vector<1x32x32xf32> to vector<32x32xf32>
    %6 = arith.truncf %5 : vector<32x32xf32> to vector<32x32xbf16>
    %7 = vector.shape_cast %6 : vector<32x32xbf16> to vector<1x32x32xbf16>
    "tpu.trace_start"() <{level = 10 : i32, message = "hwc,hcd->hwd"}> : () -> ()
    %cst_6 = arith.constant dense<0.000000e+00> : vector<1x1x32xf32>
    %8 = tpu.matmul %3, %7, %cst_6 {dimension_numbers = #tpu.dot_dimension_numbers<[2], [1], [1], [2], [0, 0, 0, 1, 1, 2], [0], [0]>} : vector<1x1x32xbf16>, vector<1x32x32xbf16>, vector<1x1x32xf32> -> vector<1x1x32xf32>
    "tpu.trace_stop"() : () -> ()
    %9 = arith.addf %0, %8 : vector<1x1x32xf32>
    %c0_7 = arith.constant 0 : index
    %c0_8 = arith.constant 0 : index
    %c0_9 = arith.constant 0 : index
    %c0_10 = arith.constant 0 : index
    %10 = vector.load %arg2[%c0_7, %c0_8, %c0_9, %c0_10] : memref<1x2x2x32xf32, #tpu.memory_space<vmem>>, vector<1x1x1x32xf32>
    %11 = vector.shape_cast %10 : vector<1x1x1x32xf32> to vector<1x1x32xf32>
    %12 = arith.truncf %11 : vector<1x1x32xf32> to vector<1x1x32xbf16>
    %c1 = arith.constant 1 : index
    %c0_11 = arith.constant 0 : index
    %c0_12 = arith.constant 0 : index
    %13 = vector.load %arg5[%c1, %c0_11, %c0_12] : memref<9x32x32xf32, #tpu.memory_space<vmem>>, vector<1x32x32xf32>
    %14 = vector.shape_cast %13 : vector<1x32x32xf32> to vector<32x32xf32>
    %15 = arith.truncf %14 : vector<32x32xf32> to vector<32x32xbf16>
    %16 = vector.shape_cast %15 : vector<32x32xbf16> to vector<1x32x32xbf16>
    "tpu.trace_start"() <{level = 10 : i32, message = "hwc,hcd->hwd"}> : () -> ()
    %cst_13 = arith.constant dense<0.000000e+00> : vector<1x1x32xf32>
    %17 = tpu.matmul %12, %16, %cst_13 {dimension_numbers = #tpu.dot_dimension_numbers<[2], [1], [1], [2], [0, 0, 0, 1, 1, 2], [0], [0]>} : vector<1x1x32xbf16>, vector<1x32x32xbf16>, vector<1x1x32xf32> -> vector<1x1x32xf32>
    "tpu.trace_stop"() : () -> ()
    %18 = arith.addf %9, %17 : vector<1x1x32xf32>
    %c0_14 = arith.constant 0 : index
    %c0_15 = arith.constant 0 : index
    %c1_16 = arith.constant 1 : index
    %c0_17 = arith.constant 0 : index
    %19 = vector.load %arg1[%c0_14, %c0_15, %c1_16, %c0_17] : memref<1x2x2x32xf32, #tpu.memory_space<vmem>>, vector<1x1x1x32xf32>
    %20 = vector.shape_cast %19 : vector<1x1x1x32xf32> to vector<1x1x32xf32>
    %21 = arith.truncf %20 : vector<1x1x32xf32> to vector<1x1x32xbf16>
    %c2 = arith.constant 2 : index
    %c0_18 = arith.constant 0 : index
    %c0_19 = arith.constant 0 : index
    %22 = vector.load %arg5[%c2, %c0_18, %c0_19] : memref<9x32x32xf32, #tpu.memory_space<vmem>>, vector<1x32x32xf32>
    %23 = vector.shape_cast %22 : vector<1x32x32xf32> to vector<32x32xf32>
    %24 = arith.truncf %23 : vector<32x32xf32> to vector<32x32xbf16>
    %25 = vector.shape_cast %24 : vector<32x32xbf16> to vector<1x32x32xbf16>
    "tpu.trace_start"() <{level = 10 : i32, message = "hwc,hcd->hwd"}> : () -> ()
    %cst_20 = arith.constant dense<0.000000e+00> : vector<1x1x32xf32>
    %26 = tpu.matmul %21, %25, %cst_20 {dimension_numbers = #tpu.dot_dimension_numbers<[2], [1], [1], [2], [0, 0, 0, 1, 1, 2], [0], [0]>} : vector<1x1x32xbf16>, vector<1x32x32xbf16>, vector<1x1x32xf32> -> vector<1x1x32xf32>
    "tpu.trace_stop"() : () -> ()
    %27 = arith.addf %18, %26 : vector<1x1x32xf32>
    %c0_21 = arith.constant 0 : index
    %c0_22 = arith.constant 0 : index
    %c0_23 = arith.constant 0 : index
    %c0_24 = arith.constant 0 : index
    %28 = vector.load %arg3[%c0_21, %c0_22, %c0_23, %c0_24] : memref<1x2x2x32xf32, #tpu.memory_space<vmem>>, vector<1x1x1x32xf32>
    %29 = vector.shape_cast %28 : vector<1x1x1x32xf32> to vector<1x1x32xf32>
    %30 = arith.truncf %29 : vector<1x1x32xf32> to vector<1x1x32xbf16>
    %c3 = arith.constant 3 : index
    %c0_25 = arith.constant 0 : index
    %c0_26 = arith.constant 0 : index
    %31 = vector.load %arg5[%c3, %c0_25, %c0_26] : memref<9x32x32xf32, #tpu.memory_space<vmem>>, vector<1x32x32xf32>
    %32 = vector.shape_cast %31 : vector<1x32x32xf32> to vector<32x32xf32>
    %33 = arith.truncf %32 : vector<32x32xf32> to vector<32x32xbf16>
    %34 = vector.shape_cast %33 : vector<32x32xbf16> to vector<1x32x32xbf16>
    "tpu.trace_start"() <{level = 10 : i32, message = "hwc,hcd->hwd"}> : () -> ()
    %cst_27 = arith.constant dense<0.000000e+00> : vector<1x1x32xf32>
    %35 = tpu.matmul %30, %34, %cst_27 {dimension_numbers = #tpu.dot_dimension_numbers<[2], [1], [1], [2], [0, 0, 0, 1, 1, 2], [0], [0]>} : vector<1x1x32xbf16>, vector<1x32x32xbf16>, vector<1x1x32xf32> -> vector<1x1x32xf32>
    "tpu.trace_stop"() : () -> ()
    %36 = arith.addf %27, %35 : vector<1x1x32xf32>
    %c0_28 = arith.constant 0 : index
    %c0_29 = arith.constant 0 : index
    %c0_30 = arith.constant 0 : index
    %c0_31 = arith.constant 0 : index
    %37 = vector.load %arg4[%c0_28, %c0_29, %c0_30, %c0_31] : memref<1x2x2x32xf32, #tpu.memory_space<vmem>>, vector<1x1x1x32xf32>
    %38 = vector.shape_cast %37 : vector<1x1x1x32xf32> to vector<1x1x32xf32>
    %39 = arith.truncf %38 : vector<1x1x32xf32> to vector<1x1x32xbf16>
    %c4 = arith.constant 4 : index
    %c0_32 = arith.constant 0 : index
    %c0_33 = arith.constant 0 : index
    %40 = vector.load %arg5[%c4, %c0_32, %c0_33] : memref<9x32x32xf32, #tpu.memory_space<vmem>>, vector<1x32x32xf32>
    %41 = vector.shape_cast %40 : vector<1x32x32xf32> to vector<32x32xf32>
    %42 = arith.truncf %41 : vector<32x32xf32> to vector<32x32xbf16>
    %43 = vector.shape_cast %42 : vector<32x32xbf16> to vector<1x32x32xbf16>
    "tpu.trace_start"() <{level = 10 : i32, message = "hwc,hcd->hwd"}> : () -> ()
    %cst_34 = arith.constant dense<0.000000e+00> : vector<1x1x32xf32>
    %44 = tpu.matmul %39, %43, %cst_34 {dimension_numbers = #tpu.dot_dimension_numbers<[2], [1], [1], [2], [0, 0, 0, 1, 1, 2], [0], [0]>} : vector<1x1x32xbf16>, vector<1x32x32xbf16>, vector<1x1x32xf32> -> vector<1x1x32xf32>
    "tpu.trace_stop"() : () -> ()
    %45 = arith.addf %36, %44 : vector<1x1x32xf32>
    %c0_35 = arith.constant 0 : index
    %c0_36 = arith.constant 0 : index
    %c1_37 = arith.constant 1 : index
    %c0_38 = arith.constant 0 : index
    %46 = vector.load %arg3[%c0_35, %c0_36, %c1_37, %c0_38] : memref<1x2x2x32xf32, #tpu.memory_space<vmem>>, vector<1x1x1x32xf32>
    %47 = vector.shape_cast %46 : vector<1x1x1x32xf32> to vector<1x1x32xf32>
    %48 = arith.truncf %47 : vector<1x1x32xf32> to vector<1x1x32xbf16>
    %c5 = arith.constant 5 : index
    %c0_39 = arith.constant 0 : index
    %c0_40 = arith.constant 0 : index
    %49 = vector.load %arg5[%c5, %c0_39, %c0_40] : memref<9x32x32xf32, #tpu.memory_space<vmem>>, vector<1x32x32xf32>
    %50 = vector.shape_cast %49 : vector<1x32x32xf32> to vector<32x32xf32>
    %51 = arith.truncf %50 : vector<32x32xf32> to vector<32x32xbf16>
    %52 = vector.shape_cast %51 : vector<32x32xbf16> to vector<1x32x32xbf16>
    "tpu.trace_start"() <{level = 10 : i32, message = "hwc,hcd->hwd"}> : () -> ()
    %cst_41 = arith.constant dense<0.000000e+00> : vector<1x1x32xf32>
    %53 = tpu.matmul %48, %52, %cst_41 {dimension_numbers = #tpu.dot_dimension_numbers<[2], [1], [1], [2], [0, 0, 0, 1, 1, 2], [0], [0]>} : vector<1x1x32xbf16>, vector<1x32x32xbf16>, vector<1x1x32xf32> -> vector<1x1x32xf32>
    "tpu.trace_stop"() : () -> ()
    %54 = arith.addf %45, %53 : vector<1x1x32xf32>
    %c0_42 = arith.constant 0 : index
    %c1_43 = arith.constant 1 : index
    %c0_44 = arith.constant 0 : index
    %c0_45 = arith.constant 0 : index
    %55 = vector.load %arg1[%c0_42, %c1_43, %c0_44, %c0_45] : memref<1x2x2x32xf32, #tpu.memory_space<vmem>>, vector<1x1x1x32xf32>
    %56 = vector.shape_cast %55 : vector<1x1x1x32xf32> to vector<1x1x32xf32>
    %57 = arith.truncf %56 : vector<1x1x32xf32> to vector<1x1x32xbf16>
    %c6 = arith.constant 6 : index
    %c0_46 = arith.constant 0 : index
    %c0_47 = arith.constant 0 : index
    %58 = vector.load %arg5[%c6, %c0_46, %c0_47] : memref<9x32x32xf32, #tpu.memory_space<vmem>>, vector<1x32x32xf32>
    %59 = vector.shape_cast %58 : vector<1x32x32xf32> to vector<32x32xf32>
    %60 = arith.truncf %59 : vector<32x32xf32> to vector<32x32xbf16>
    %61 = vector.shape_cast %60 : vector<32x32xbf16> to vector<1x32x32xbf16>
    "tpu.trace_start"() <{level = 10 : i32, message = "hwc,hcd->hwd"}> : () -> ()
    %cst_48 = arith.constant dense<0.000000e+00> : vector<1x1x32xf32>
    %62 = tpu.matmul %57, %61, %cst_48 {dimension_numbers = #tpu.dot_dimension_numbers<[2], [1], [1], [2], [0, 0, 0, 1, 1, 2], [0], [0]>} : vector<1x1x32xbf16>, vector<1x32x32xbf16>, vector<1x1x32xf32> -> vector<1x1x32xf32>
    "tpu.trace_stop"() : () -> ()
    %63 = arith.addf %54, %62 : vector<1x1x32xf32>
    %c0_49 = arith.constant 0 : index
    %c1_50 = arith.constant 1 : index
    %c0_51 = arith.constant 0 : index
    %c0_52 = arith.constant 0 : index
    %64 = vector.load %arg2[%c0_49, %c1_50, %c0_51, %c0_52] : memref<1x2x2x32xf32, #tpu.memory_space<vmem>>, vector<1x1x1x32xf32>
    %65 = vector.shape_cast %64 : vector<1x1x1x32xf32> to vector<1x1x32xf32>
    %66 = arith.truncf %65 : vector<1x1x32xf32> to vector<1x1x32xbf16>
    %c7 = arith.constant 7 : index
    %c0_53 = arith.constant 0 : index
    %c0_54 = arith.constant 0 : index
    %67 = vector.load %arg5[%c7, %c0_53, %c0_54] : memref<9x32x32xf32, #tpu.memory_space<vmem>>, vector<1x32x32xf32>
    %68 = vector.shape_cast %67 : vector<1x32x32xf32> to vector<32x32xf32>
    %69 = arith.truncf %68 : vector<32x32xf32> to vector<32x32xbf16>
    %70 = vector.shape_cast %69 : vector<32x32xbf16> to vector<1x32x32xbf16>
    "tpu.trace_start"() <{level = 10 : i32, message = "hwc,hcd->hwd"}> : () -> ()
    %cst_55 = arith.constant dense<0.000000e+00> : vector<1x1x32xf32>
    %71 = tpu.matmul %66, %70, %cst_55 {dimension_numbers = #tpu.dot_dimension_numbers<[2], [1], [1], [2], [0, 0, 0, 1, 1, 2], [0], [0]>} : vector<1x1x32xbf16>, vector<1x32x32xbf16>, vector<1x1x32xf32> -> vector<1x1x32xf32>
    "tpu.trace_stop"() : () -> ()
    %72 = arith.addf %63, %71 : vector<1x1x32xf32>
    %c0_56 = arith.constant 0 : index
    %c1_57 = arith.constant 1 : index
    %c1_58 = arith.constant 1 : index
    %c0_59 = arith.constant 0 : index
    %73 = vector.load %arg1[%c0_56, %c1_57, %c1_58, %c0_59] : memref<1x2x2x32xf32, #tpu.memory_space<vmem>>, vector<1x1x1x32xf32>
    %74 = vector.shape_cast %73 : vector<1x1x1x32xf32> to vector<1x1x32xf32>
    %75 = arith.truncf %74 : vector<1x1x32xf32> to vector<1x1x32xbf16>
    %c8 = arith.constant 8 : index
    %c0_60 = arith.constant 0 : index
    %c0_61 = arith.constant 0 : index
    %76 = vector.load %arg5[%c8, %c0_60, %c0_61] : memref<9x32x32xf32, #tpu.memory_space<vmem>>, vector<1x32x32xf32>
    %77 = vector.shape_cast %76 : vector<1x32x32xf32> to vector<32x32xf32>
    %78 = arith.truncf %77 : vector<32x32xf32> to vector<32x32xbf16>
    %79 = vector.shape_cast %78 : vector<32x32xbf16> to vector<1x32x32xbf16>
    "tpu.trace_start"() <{level = 10 : i32, message = "hwc,hcd->hwd"}> : () -> ()
    %cst_62 = arith.constant dense<0.000000e+00> : vector<1x1x32xf32>
    %80 = tpu.matmul %75, %79, %cst_62 {dimension_numbers = #tpu.dot_dimension_numbers<[2], [1], [1], [2], [0, 0, 0, 1, 1, 2], [0], [0]>} : vector<1x1x32xbf16>, vector<1x32x32xbf16>, vector<1x1x32xf32> -> vector<1x1x32xf32>
    "tpu.trace_stop"() : () -> ()
    %81 = arith.addf %72, %80 : vector<1x1x32xf32>
    %c0_63 = arith.constant 0 : index
    %c0_64 = arith.constant 0 : index
    %82 = vector.load %arg6[%c0_63, %c0_64] : memref<1x32xf32, #tpu.memory_space<vmem>>, vector<1x32xf32>
    %83 = vector.shape_cast %82 : vector<1x32xf32> to vector<1x1x32xf32>
    %84 = arith.addf %81, %83 : vector<1x1x32xf32>
    %cst_65 = arith.constant 0.000000e+00 : f32
    %85 = vector.broadcast %cst_65 : f32 to vector<1x1x32xf32>
    %86 = arith.cmpf ogt, %84, %85 : vector<1x1x32xf32>
    %cst_66 = arith.constant 0.000000e+00 : f32
    %87 = vector.broadcast %cst_66 : f32 to vector<1x1x32xf32>
    %88 = arith.minimumf %84, %87 : vector<1x1x32xf32>
    %89 = math.exp %88 : vector<1x1x32xf32>
    %cst_67 = arith.constant 1.000000e+00 : f32
    %90 = vector.broadcast %cst_67 : f32 to vector<1x1x32xf32>
    %91 = arith.subf %89, %90 : vector<1x1x32xf32>
    %92 = arith.select %86, %84, %91 : vector<1x1x32xi1>, vector<1x1x32xf32>
    %c0_68 = arith.constant 0 : index
    %c0_69 = arith.constant 0 : index
    %c0_70 = arith.constant 0 : index
    %c0_71 = arith.constant 0 : index
    %93 = vector.load %arg7[%c0_68, %c0_69, %c0_70, %c0_71] : memref<1x1x1x32xf32, #tpu.memory_space<vmem>>, vector<1x1x1x32xf32>
    %94 = vector.shape_cast %93 : vector<1x1x1x32xf32> to vector<1x1x32xf32>
    %95 = vector.shape_cast %92 : vector<1x1x32xf32> to vector<1x1x1x32xf32>
    tpu.vector_store %arg7[%c0_68, %c0_69, %c0_70, %c0_71], %95 {strides = array<i32>} : memref<1x1x1x32xf32, #tpu.memory_space<vmem>>, vector<1x1x1x32xf32>,
    return
  }
  func.func @transform_0(%arg0: i32) -> (i32, i32, i32, i32) {
    %c0_i32 = arith.constant 0 : i32
    %c0_i32_0 = arith.constant 0 : i32
    %c0_i32_1 = arith.constant 0 : i32
    %c0_i32_2 = arith.constant 0 : i32
    return %arg0, %c0_i32, %c0_i32_0, %c0_i32_1 : i32, i32, i32, i32
  }
  func.func @transform_1(%arg0: i32) -> (i32, i32, i32, i32) {
    %c0_i32 = arith.constant 0 : i32
    %c0_i32_0 = arith.constant 0 : i32
    %c0_i32_1 = arith.constant 0 : i32
    %c0_i32_2 = arith.constant 0 : i32
    return %arg0, %c0_i32, %c0_i32_0, %c0_i32_1 : i32, i32, i32, i32
  }
  func.func @transform_2(%arg0: i32) -> (i32, i32, i32, i32) {
    %c0_i32 = arith.constant 0 : i32
    %c0_i32_0 = arith.constant 0 : i32
    %c0_i32_1 = arith.constant 0 : i32
    %c0_i32_2 = arith.constant 0 : i32
    return %arg0, %c0_i32, %c0_i32_0, %c0_i32_1 : i32, i32, i32, i32
  }
  func.func @transform_3(%arg0: i32) -> (i32, i32, i32, i32) {
    %c0_i32 = arith.constant 0 : i32
    %c0_i32_0 = arith.constant 0 : i32
    %c0_i32_1 = arith.constant 0 : i32
    %c0_i32_2 = arith.constant 0 : i32
    return %arg0, %c0_i32, %c0_i32_0, %c0_i32_1 : i32, i32, i32, i32
  }
  func.func @transform_4(%arg0: i32) -> (i32, i32, i32) {
    %c0_i32 = arith.constant 0 : i32
    %c0_i32_0 = arith.constant 0 : i32
    %c0_i32_1 = arith.constant 0 : i32
    %c0_i32_2 = arith.constant 0 : i32
    return %c0_i32, %c0_i32_0, %c0_i32_1 : i32, i32, i32
  }
  func.func @transform_5(%arg0: i32) -> (i32, i32) {
    %c0_i32 = arith.constant 0 : i32
    %c0_i32_0 = arith.constant 0 : i32
    %c0_i32_1 = arith.constant 0 : i32
    return %c0_i32, %c0_i32_0 : i32, i32
  }
  func.func @transform_6(%arg0: i32) -> (i32, i32, i32, i32) {
    %c0_i32 = arith.constant 0 : i32
    %c0_i32_0 = arith.constant 0 : i32
    %c0_i32_1 = arith.constant 0 : i32
    %c0_i32_2 = arith.constant 0 : i32
    return %arg0, %c0_i32, %c0_i32_0, %c0_i32_1 : i32, i32, i32, i32
  }
}

module attributes {stable_mosaic.version = 11 : i64} {
  func.func @_matmul_bias_kernel(%arg0: i32, %arg1: memref<4x38xf32, #tpu.memory_space<vmem>>, %arg2: memref<38x96xf32, #tpu.memory_space<vmem>>, %arg3: memref<1x96xf32, #tpu.memory_space<vmem>>, %arg4: memref<4x96xf32, #tpu.memory_space<vmem>>) attributes {dimension_semantics = [#tpu.dimension_semantics<parallel>], iteration_bounds = array<i64: 1>, scalar_prefetch = 0 : i64, scratch_operands = 0 : i64, tpu.core_type = #tpu.core_type<tc>, window_params = [{transform_indices = @transform_0, window_bounds = array<i64: 4, 38>}, {pipeline_mode = #tpu.pipeline_mode<synchronous>, transform_indices = @transform_1, window_bounds = array<i64: 38, 96>}, {pipeline_mode = #tpu.pipeline_mode<synchronous>, transform_indices = @transform_2, window_bounds = array<i64: 1, 96>}, {transform_indices = @transform_3, window_bounds = array<i64: 4, 96>}]} {
    %c0 = arith.constant 0 : index
    %c0_0 = arith.constant 0 : index
    %0 = vector.load %arg1[%c0, %c0_0] : memref<4x38xf32, #tpu.memory_space<vmem>>, vector<4x38xf32>
    %c0_1 = arith.constant 0 : index
    %c0_2 = arith.constant 0 : index
    %1 = vector.load %arg2[%c0_1, %c0_2] : memref<38x96xf32, #tpu.memory_space<vmem>>, vector<38x96xf32>
    %cst = arith.constant dense<0.000000e+00> : vector<4x96xf32>
    %2 = tpu.matmul %0, %1, %cst {dimension_numbers = #tpu.dot_dimension_numbers<[1], [0], [0], [1], [0, 0, 1, 1], [], []>, precision = #tpu.contract_precision<fp32>} : vector<4x38xf32>, vector<38x96xf32>, vector<4x96xf32> -> vector<4x96xf32>
    %c0_3 = arith.constant 0 : index
    %c0_4 = arith.constant 0 : index
    %3 = vector.load %arg3[%c0_3, %c0_4] : memref<1x96xf32, #tpu.memory_space<vmem>>, vector<1x96xf32>
    %4 = vector.broadcast %3 : vector<1x96xf32> to vector<4x96xf32>
    %5 = arith.addf %2, %4 : vector<4x96xf32>
    %c0_5 = arith.constant 0 : index
    %c0_6 = arith.constant 0 : index
    %6 = vector.load %arg4[%c0_5, %c0_6] : memref<4x96xf32, #tpu.memory_space<vmem>>, vector<4x96xf32>
    tpu.vector_store %arg4[%c0_5, %c0_6], %5 {strides = array<i32>} : memref<4x96xf32, #tpu.memory_space<vmem>>, vector<4x96xf32>,
    return
  }
  func.func @transform_0(%arg0: i32) -> (i32, i32) {
    %c0_i32 = arith.constant 0 : i32
    %c0_i32_0 = arith.constant 0 : i32
    return %arg0, %c0_i32 : i32, i32
  }
  func.func @transform_1(%arg0: i32) -> (i32, i32) {
    %c0_i32 = arith.constant 0 : i32
    %c0_i32_0 = arith.constant 0 : i32
    %c0_i32_1 = arith.constant 0 : i32
    return %c0_i32, %c0_i32_0 : i32, i32
  }
  func.func @transform_2(%arg0: i32) -> (i32, i32) {
    %c0_i32 = arith.constant 0 : i32
    %c0_i32_0 = arith.constant 0 : i32
    %c0_i32_1 = arith.constant 0 : i32
    return %c0_i32, %c0_i32_0 : i32, i32
  }
  func.func @transform_3(%arg0: i32) -> (i32, i32) {
    %c0_i32 = arith.constant 0 : i32
    %c0_i32_0 = arith.constant 0 : i32
    return %arg0, %c0_i32 : i32, i32
  }
}

module attributes {stable_mosaic.version = 11 : i64} {
  func.func @_gru_seq_kernel(%arg0: i32, %arg1: memref<1x2x96xf32, #tpu.memory_space<vmem>>, %arg2: memref<1x2x1xf32, #tpu.memory_space<vmem>>, %arg3: memref<2x32xf32, #tpu.memory_space<vmem>>, %arg4: memref<32x96xf32, #tpu.memory_space<vmem>>, %arg5: memref<1x96xf32, #tpu.memory_space<vmem>>, %arg6: memref<1x2x32xf32, #tpu.memory_space<vmem>>, %arg7: memref<2x32xf32, #tpu.memory_space<vmem>>) attributes {dimension_semantics = [#tpu.dimension_semantics<arbitrary>], iteration_bounds = array<i64: 2>, scalar_prefetch = 0 : i64, scratch_operands = 1 : i64, tpu.core_type = #tpu.core_type<tc>, window_params = [{transform_indices = @transform_0, window_bounds = array<i64: 1, 2, 96>}, {transform_indices = @transform_1, window_bounds = array<i64: 1, 2, 1>}, {pipeline_mode = #tpu.pipeline_mode<synchronous>, transform_indices = @transform_2, window_bounds = array<i64: 2, 32>}, {pipeline_mode = #tpu.pipeline_mode<synchronous>, transform_indices = @transform_3, window_bounds = array<i64: 32, 96>}, {pipeline_mode = #tpu.pipeline_mode<synchronous>, transform_indices = @transform_4, window_bounds = array<i64: 1, 96>}, {transform_indices = @transform_5, window_bounds = array<i64: 1, 2, 32>}]} {
    %c0_i32 = arith.constant 0 : i32
    %0 = arith.cmpi eq, %arg0, %c0_i32 : i32
    %1 = arith.extui %0 : i1 to i32
    %c0_i32_0 = arith.constant 0 : i32
    %2 = arith.cmpi ne, %1, %c0_i32_0 : i32
    scf.if %2 {
      %c0_20 = arith.constant 0 : index
      %c0_21 = arith.constant 0 : index
      %45 = vector.load %arg3[%c0_20, %c0_21] : memref<2x32xf32, #tpu.memory_space<vmem>>, vector<2x32xf32>
      %c0_22 = arith.constant 0 : index
      %c0_23 = arith.constant 0 : index
      %46 = vector.load %arg7[%c0_22, %c0_23] : memref<2x32xf32, #tpu.memory_space<vmem>>, vector<2x32xf32>
      tpu.vector_store %arg7[%c0_22, %c0_23], %45 {strides = array<i32>} : memref<2x32xf32, #tpu.memory_space<vmem>>, vector<2x32xf32>,
    } else {
    }
    %c0 = arith.constant 0 : index
    %c0_1 = arith.constant 0 : index
    %3 = vector.load %arg7[%c0, %c0_1] : memref<2x32xf32, #tpu.memory_space<vmem>>, vector<2x32xf32>
    %c0_2 = arith.constant 0 : index
    %c0_3 = arith.constant 0 : index
    %c0_4 = arith.constant 0 : index
    %4 = vector.load %arg2[%c0_2, %c0_3, %c0_4] : memref<1x2x1xf32, #tpu.memory_space<vmem>>, vector<1x2x1xf32>
    %5 = vector.shape_cast %4 : vector<1x2x1xf32> to vector<2x1xf32>
    %6 = vector.broadcast %5 : vector<2x1xf32> to vector<2x32xf32>
    %7 = arith.mulf %3, %6 : vector<2x32xf32>
    %c0_5 = arith.constant 0 : index
    %c0_6 = arith.constant 0 : index
    %8 = vector.load %arg4[%c0_5, %c0_6] : memref<32x96xf32, #tpu.memory_space<vmem>>, vector<32x96xf32>
    %cst = arith.constant dense<0.000000e+00> : vector<2x96xf32>
    %9 = tpu.matmul %7, %8, %cst {dimension_numbers = #tpu.dot_dimension_numbers<[1], [0], [0], [1], [0, 0, 1, 1], [], []>, precision = #tpu.contract_precision<fp32>} : vector<2x32xf32>, vector<32x96xf32>, vector<2x96xf32> -> vector<2x96xf32>
    %c0_7 = arith.constant 0 : index
    %c0_8 = arith.constant 0 : index
    %10 = vector.load %arg5[%c0_7, %c0_8] : memref<1x96xf32, #tpu.memory_space<vmem>>, vector<1x96xf32>
    %11 = vector.broadcast %10 : vector<1x96xf32> to vector<2x96xf32>
    %12 = arith.addf %9, %11 : vector<2x96xf32>
    %c0_9 = arith.constant 0 : index
    %c0_10 = arith.constant 0 : index
    %c0_11 = arith.constant 0 : index
    %13 = vector.load %arg1[%c0_9, %c0_10, %c0_11] : memref<1x2x96xf32, #tpu.memory_space<vmem>>, vector<1x2x96xf32>
    %14 = vector.shape_cast %13 : vector<1x2x96xf32> to vector<2x96xf32>
    %15 = vector.extract_strided_slice %14 {offsets = [0, 0], sizes = [2, 32], strides = [1, 1]} : vector<2x96xf32> to vector<2x32xf32>
    %16 = vector.extract_strided_slice %12 {offsets = [0, 0], sizes = [2, 32], strides = [1, 1]} : vector<2x96xf32> to vector<2x32xf32>
    %17 = arith.addf %15, %16 : vector<2x32xf32>
    %18 = arith.negf %17 : vector<2x32xf32>
    %19 = math.exp %18 : vector<2x32xf32>
    %cst_12 = arith.constant 1.000000e+00 : f32
    %20 = vector.broadcast %cst_12 : f32 to vector<2x32xf32>
    %21 = arith.addf %20, %19 : vector<2x32xf32>
    %22 = arith.divf %20, %21 : vector<2x32xf32>
    %23 = vector.extract_strided_slice %14 {offsets = [0, 32], sizes = [2, 32], strides = [1, 1]} : vector<2x96xf32> to vector<2x32xf32>
    %24 = vector.extract_strided_slice %12 {offsets = [0, 32], sizes = [2, 32], strides = [1, 1]} : vector<2x96xf32> to vector<2x32xf32>
    %25 = arith.addf %23, %24 : vector<2x32xf32>
    %26 = arith.negf %25 : vector<2x32xf32>
    %27 = math.exp %26 : vector<2x32xf32>
    %cst_13 = arith.constant 1.000000e+00 : f32
    %28 = vector.broadcast %cst_13 : f32 to vector<2x32xf32>
    %29 = arith.addf %28, %27 : vector<2x32xf32>
    %30 = arith.divf %28, %29 : vector<2x32xf32>
    %31 = vector.extract_strided_slice %14 {offsets = [0, 64], sizes = [2, 32], strides = [1, 1]} : vector<2x96xf32> to vector<2x32xf32>
    %32 = vector.extract_strided_slice %12 {offsets = [0, 64], sizes = [2, 32], strides = [1, 1]} : vector<2x96xf32> to vector<2x32xf32>
    %33 = arith.mulf %22, %32 : vector<2x32xf32>
    %34 = arith.addf %31, %33 : vector<2x32xf32>
    %35 = math.tanh %34 : vector<2x32xf32>
    %cst_14 = arith.constant 1.000000e+00 : f32
    %36 = vector.broadcast %cst_14 : f32 to vector<2x32xf32>
    %37 = arith.subf %36, %30 : vector<2x32xf32>
    %38 = arith.mulf %37, %35 : vector<2x32xf32>
    %39 = arith.mulf %30, %7 : vector<2x32xf32>
    %40 = arith.addf %38, %39 : vector<2x32xf32>
    %c0_15 = arith.constant 0 : index
    %c0_16 = arith.constant 0 : index
    %41 = vector.load %arg7[%c0_15, %c0_16] : memref<2x32xf32, #tpu.memory_space<vmem>>, vector<2x32xf32>
    tpu.vector_store %arg7[%c0_15, %c0_16], %40 {strides = array<i32>} : memref<2x32xf32, #tpu.memory_space<vmem>>, vector<2x32xf32>,
    %c0_17 = arith.constant 0 : index
    %c0_18 = arith.constant 0 : index
    %c0_19 = arith.constant 0 : index
    %42 = vector.load %arg6[%c0_17, %c0_18, %c0_19] : memref<1x2x32xf32, #tpu.memory_space<vmem>>, vector<1x2x32xf32>
    %43 = vector.shape_cast %42 : vector<1x2x32xf32> to vector<2x32xf32>
    %44 = vector.shape_cast %40 : vector<2x32xf32> to vector<1x2x32xf32>
    tpu.vector_store %arg6[%c0_17, %c0_18, %c0_19], %44 {strides = array<i32>} : memref<1x2x32xf32, #tpu.memory_space<vmem>>, vector<1x2x32xf32>,
    return
  }
  func.func @transform_0(%arg0: i32) -> (i32, i32, i32) {
    %c0_i32 = arith.constant 0 : i32
    %c0_i32_0 = arith.constant 0 : i32
    %c0_i32_1 = arith.constant 0 : i32
    return %arg0, %c0_i32, %c0_i32_0 : i32, i32, i32
  }
  func.func @transform_1(%arg0: i32) -> (i32, i32, i32) {
    %c0_i32 = arith.constant 0 : i32
    %c0_i32_0 = arith.constant 0 : i32
    %c0_i32_1 = arith.constant 0 : i32
    return %arg0, %c0_i32, %c0_i32_0 : i32, i32, i32
  }
  func.func @transform_2(%arg0: i32) -> (i32, i32) {
    %c0_i32 = arith.constant 0 : i32
    %c0_i32_0 = arith.constant 0 : i32
    %c0_i32_1 = arith.constant 0 : i32
    return %c0_i32, %c0_i32_0 : i32, i32
  }
  func.func @transform_3(%arg0: i32) -> (i32, i32) {
    %c0_i32 = arith.constant 0 : i32
    %c0_i32_0 = arith.constant 0 : i32
    %c0_i32_1 = arith.constant 0 : i32
    return %c0_i32, %c0_i32_0 : i32, i32
  }
  func.func @transform_4(%arg0: i32) -> (i32, i32) {
    %c0_i32 = arith.constant 0 : i32
    %c0_i32_0 = arith.constant 0 : i32
    %c0_i32_1 = arith.constant 0 : i32
    return %c0_i32, %c0_i32_0 : i32, i32
  }
  func.func @transform_5(%arg0: i32) -> (i32, i32, i32) {
    %c0_i32 = arith.constant 0 : i32
    %c0_i32_0 = arith.constant 0 : i32
    %c0_i32_1 = arith.constant 0 : i32
    return %arg0, %c0_i32, %c0_i32_0 : i32, i32, i32
  }
}

</mosaic_0001>

<llo_original>
// kernel: cnnrnn_forward.7
$region0: #{cnnrnn_forward.7}
  #allocation0 [shape = 'u32[]', space=smem, size = 0x4, offset = 0x4, fixed_abs, tag = 'smem constant byte address 0x4 - core index']
  #allocation1 [shape = 'u32[144,128]{1,0:T(1,128)}', space=vmem, size = 0x12000, scoped, tag = 'internal scratch']
  %s0 = inlined_call_operand.vmem [shape: f32[4,5,5,32], index: 0, kind: input, shape index: {}]
  %s1 = inlined_call_operand.vmem [shape: f32[4,5,5,32], index: 1, kind: input, shape index: {}]
  %s2 = inlined_call_operand.vmem [shape: f32[4,5,5,32], index: 2, kind: input, shape index: {}]
  %s3 = inlined_call_operand.vmem [shape: f32[4,5,5,32], index: 3, kind: input, shape index: {}]
  %s4 = inlined_call_operand.vmem [shape: f32[9,32,32], index: 4, kind: input, shape index: {}]
  %s5 = inlined_call_operand.vmem [shape: f32[1,32], index: 5, kind: input, shape index: {}]
  %s6 = inlined_call_operand.vmem [shape: f32[4,4,4,32], index: 6, kind: output, shape index: {}]
  %s7 = sld [smem:[#allocation0]]
  $region57: #{cnnrnn_forward.7} parent=0
    _
  %s9 = ssub.s32 1, %s7
  %s10 = scalar_select 0, %s9, %s7
  loop: start=0, step=1, limit=6
  $region2: #{cnnrnn_forward.7} parent=0 // loop_pre_header
    _
  $region3: #{cnnrnn_forward.7} parent=0 // loop_header
    %s12 = sphi 0, %s16
    %p13 = scmp.ge.s32.totalorder %s12, 6
    %s22 = sphi 0, %s24
    %s25 = sphi 0, %s22
    %s26 = sphi 0, %s25
    %s42 = sphi 0, %s26
    %s48 = sphi 0, %s50
    %s51 = sphi 0, %s48
    %s52 = sphi 0, %s51
    %s68 = sphi 0, %s52
    %s74 = sphi 0, %s76
    %s77 = sphi 0, %s74
    %s78 = sphi 0, %s77
    %s94 = sphi 0, %s78
    %s100 = sphi 0, %s102
    %s103 = sphi 0, %s100
    %s104 = sphi 0, %s103
    %s120 = sphi 0, %s104
    %s124 = sphi 0, %s124
    %s126 = sphi 0, %s124
    %s127 = sphi 0, %s126
    %s141 = sphi 0, %s127
    %s145 = sphi 0, %s145
    %s147 = sphi 0, %s145
    %s148 = sphi 0, %s147
    %s162 = sphi 0, %s148
    %s168 = sphi 0, %s170
    %s171 = sphi 0, %s168
    %s172 = sphi 0, %s171
    %s188 = sphi 0, %s172
  $region4: #{cnnrnn_forward.7} parent=0 // loop_header_branch
    %15 = sbr.rel (%p13) target = $region8
  $region5: #{cnnrnn_forward.7} parent=0 // loop_body
    %s17 = ssub.s32 %s12, 1
    %s18 = ssub.s32 %s12, 2
    %s19 = sadd.s32 %s12, 1
    %s20 = ssub.s32 %s12, %s19
    %p21 = scmp.eq.s32.totalorder %s20, 0
    %s23 = sadd.s32 %s22, 1
    %s24 = scalar_select %p21, %s22, %s23
    %p27 = pneg %p21
    %p28 = scmp.eq.s32.totalorder %s12, 3
    %p29 = por %p27, %p28
    %p30 = scmp.ne.s32.totalorder %s22, %s25
    %p31 = scmp.eq.s32.totalorder %s12, 0
    %p32 = por %p30, %p31
    %p33 = scmp.ne.s32.totalorder %s22, %s25
    %p34 = scmp.eq.s32.totalorder %s17, 3
    %p35 = por %p33, %p34
    %p36 = scmp.ne.s32.totalorder %s25, %s26
    %p37 = scmp.eq.s32.totalorder %s17, 0
    %p38 = por %p36, %p37
    %p39 = scmp.ne.s32.totalorder %s25, %s26
    %p40 = scmp.eq.s32.totalorder %s18, 3
    %p41 = por %p39, %p40
    %p43 = scmp.ne.s32.totalorder %s26, %s42
    %p44 = scmp.eq.s32.totalorder %s18, 0
    %p45 = por %p43, %p44
    %s46 = ssub.s32 %s12, %s19
    %p47 = scmp.eq.s32.totalorder %s46, 0
    %s49 = sadd.s32 %s48, 1
    %s50 = scalar_select %p47, %s48, %s49
    %p53 = pneg %p47
    %p54 = scmp.eq.s32.totalorder %s12, 3
    %p55 = por %p53, %p54
    %p56 = scmp.ne.s32.totalorder %s48, %s51
    %p57 = scmp.eq.s32.totalorder %s12, 0
    %p58 = por %p56, %p57
    %p59 = scmp.ne.s32.totalorder %s48, %s51
    %p60 = scmp.eq.s32.totalorder %s17, 3
    %p61 = por %p59, %p60
    %p62 = scmp.ne.s32.totalorder %s51, %s52
    %p63 = scmp.eq.s32.totalorder %s17, 0
    %p64 = por %p62, %p63
    %p65 = scmp.ne.s32.totalorder %s51, %s52
    %p66 = scmp.eq.s32.totalorder %s18, 3
    %p67 = por %p65, %p66
    %p69 = scmp.ne.s32.totalorder %s52, %s68
    %p70 = scmp.eq.s32.totalorder %s18, 0
    %p71 = por %p69, %p70
    %s72 = ssub.s32 %s12, %s19
    %p73 = scmp.eq.s32.totalorder %s72, 0
    %s75 = sadd.s32 %s74, 1
    %s76 = scalar_select %p73, %s74, %s75
    %p79 = pneg %p73
    %p80 = scmp.eq.s32.totalorder %s12, 3
    %p81 = por %p79, %p80
    %p82 = scmp.ne.s32.totalorder %s74, %s77
    %p83 = scmp.eq.s32.totalorder %s12, 0
    %p84 = por %p82, %p83
    %p85 = scmp.ne.s32.totalorder %s74, %s77
    %p86 = scmp.eq.s32.totalorder %s17, 3
    %p87 = por %p85, %p86
    %p88 = scmp.ne.s32.totalorder %s77, %s78
    %p89 = scmp.eq.s32.totalorder %s17, 0
    %p90 = por %p88, %p89
    %p91 = scmp.ne.s32.totalorder %s77, %s78
    %p92 = scmp.eq.s32.totalorder %s18, 3
    %p93 = por %p91, %p92
    %p95 = scmp.ne.s32.totalorder %s78, %s94
    %p96 = scmp.eq.s32.totalorder %s18, 0
    %p97 = por %p95, %p96
    %s98 = ssub.s32 %s12, %s19
    %p99 = scmp.eq.s32.totalorder %s98, 0
    %s101 = sadd.s32 %s100, 1
    %s102 = scalar_select %p99, %s100, %s101
    %p105 = pneg %p99
    %p106 = scmp.eq.s32.totalorder %s12, 3
    %p107 = por %p105, %p106
    %p108 = scmp.ne.s32.totalorder %s100, %s103
    %p109 = scmp.eq.s32.totalorder %s12, 0
    %p110 = por %p108, %p109
    %p111 = scmp.ne.s32.totalorder %s100, %s103
    %p112 = scmp.eq.s32.totalorder %s17, 3
    %p113 = por %p111, %p112
    %p114 = scmp.ne.s32.totalorder %s103, %s104
    %p115 = scmp.eq.s32.totalorder %s17, 0
    %p116 = por %p114, %p115
    %p117 = scmp.ne.s32.totalorder %s103, %s104
    %p118 = scmp.eq.s32.totalorder %s18, 3
    %p119 = por %p117, %p118
    %p121 = scmp.ne.s32.totalorder %s104, %s120
    %p122 = scmp.eq.s32.totalorder %s18, 0
    %p123 = por %p121, %p122
    %s125 = sadd.s32 %s124, 1
    %p128 = scmp.eq.s32.totalorder %s12, 3
    %p129 = scmp.ne.s32.totalorder %s124, %s126
    %p130 = scmp.eq.s32.totalorder %s12, 0
    %p131 = por %p129, %p130
    %p132 = scmp.ne.s32.totalorder %s124, %s126
    %p133 = scmp.eq.s32.totalorder %s17, 3
    %p134 = por %p132, %p133
    %p135 = scmp.ne.s32.totalorder %s126, %s127
    %p136 = scmp.eq.s32.totalorder %s17, 0
    %p137 = por %p135, %p136
    %p138 = scmp.ne.s32.totalorder %s126, %s127
    %p139 = scmp.eq.s32.totalorder %s18, 3
    %p140 = por %p138, %p139
    %p142 = scmp.ne.s32.totalorder %s127, %s141
    %p143 = scmp.eq.s32.totalorder %s18, 0
    %p144 = por %p142, %p143
    %s146 = sadd.s32 %s145, 1
    %p149 = scmp.eq.s32.totalorder %s12, 3
    %p150 = scmp.ne.s32.totalorder %s145, %s147
    %p151 = scmp.eq.s32.totalorder %s12, 0
    %p152 = por %p150, %p151
    %p153 = scmp.ne.s32.totalorder %s145, %s147
    %p154 = scmp.eq.s32.totalorder %s17, 3
    %p155 = por %p153, %p154
    %p156 = scmp.ne.s32.totalorder %s147, %s148
    %p157 = scmp.eq.s32.totalorder %s17, 0
    %p158 = por %p156, %p157
    %p159 = scmp.ne.s32.totalorder %s147, %s148
    %p160 = scmp.eq.s32.totalorder %s18, 3
    %p161 = por %p159, %p160
    %p163 = scmp.ne.s32.totalorder %s148, %s162
    %p164 = scmp.eq.s32.totalorder %s18, 0
    %p165 = por %p163, %p164
    %s166 = ssub.s32 %s12, %s19
    %p167 = scmp.eq.s32.totalorder %s166, 0
    %s169 = sadd.s32 %s168, 1
    %s170 = scalar_select %p167, %s168, %s169
    %p173 = pneg %p167
    %p174 = scmp.eq.s32.totalorder %s12, 3
    %p175 = por %p173, %p174
    %p176 = scmp.ne.s32.totalorder %s168, %s171
    %p177 = scmp.eq.s32.totalorder %s12, 0
    %p178 = por %p176, %p177
    %p179 = scmp.ne.s32.totalorder %s168, %s171
    %p180 = scmp.eq.s32.totalorder %s17, 3
    %p181 = por %p179, %p180
    %p182 = scmp.ne.s32.totalorder %s171, %s172
    %p183 = scmp.eq.s32.totalorder %s17, 0
    %p184 = por %p182, %p183
    %p185 = scmp.ne.s32.totalorder %s171, %s172
    %p186 = scmp.eq.s32.totalorder %s18, 3
    %p187 = por %p185, %p186
    %p189 = scmp.ne.s32.totalorder %s172, %s188
    %p190 = scmp.eq.s32.totalorder %s18, 0
    %p191 = por %p189, %p190
    %p192 = scmp.le.s32.totalorder 1, %s12
    %p193 = scmp.lt.s32.totalorder %s12, 5
    %p194 = pnand %p192, %p193
    %p195 = pneg %p194
    // Predicated region
    $region9: #{cnnrnn_forward.7} parent=5 // pred_check
      _
    $region10: #{cnnrnn_forward.7} parent=5 // pred_check_branch
      %197 = sbr.rel (%p194) target = $region12
    $region11: #{cnnrnn_forward.7} parent=5 // pred_region
      %s198 = ssub.s32 %s12, 1
      // Predicated region
      $region13: #{cnnrnn_forward.7} parent=11 // pred_check
        %p199 = pneg %p137
      $region14: #{cnnrnn_forward.7} parent=11 // pred_check_branch
        %201 = sbr.rel (%p199) target = $region16
      $region15: #{cnnrnn_forward.7} parent=11 // pred_region
        _
      $region16: #{cnnrnn_forward.7} parent=11 // pred_fallthru
        _
      // Predicated region
      $region17: #{cnnrnn_forward.7} parent=11 // pred_check
        %p202 = pneg %p158
      $region18: #{cnnrnn_forward.7} parent=11 // pred_check_branch
        %204 = sbr.rel (%p202) target = $region20
      $region19: #{cnnrnn_forward.7} parent=11 // pred_region
        _
      $region20: #{cnnrnn_forward.7} parent=11 // pred_fallthru
        _
    $region12: #{cnnrnn_forward.7} parent=5 // pred_fallthru
      _
    %p205 = scmp.lt.s32.totalorder %s12, 4
    // Predicated region
    $region21: #{cnnrnn_forward.7} parent=5 // pred_check
      %p206 = pneg %p205
    $region22: #{cnnrnn_forward.7} parent=5 // pred_check_branch
      %208 = sbr.rel (%p206) target = $region24
    $region23: #{cnnrnn_forward.7} parent=5 // pred_region
      // Predicated region
      $region25: #{cnnrnn_forward.7} parent=23 // pred_check
        %p209 = pneg %p32
      $region26: #{cnnrnn_forward.7} parent=23 // pred_check_branch
        %211 = sbr.rel (%p209) target = $region28
      $region27: #{cnnrnn_forward.7} parent=23 // pred_region
        %p212 = scmp.lt.s32.totalorder %s12, 3
        %s213 = scalar_select %p212, %s12, 3
        %s214 = smul.addr %s213, 5
        %s215 = smul.addr %s214, 8
        %s216 = scalar_lea.vmem %s0, %s215
      $region28: #{cnnrnn_forward.7} parent=23 // pred_fallthru
        _
      // Predicated region
      $region29: #{cnnrnn_forward.7} parent=23 // pred_check
        %p217 = pneg %p58
      $region30: #{cnnrnn_forward.7} parent=23 // pred_check_branch
        %219 = sbr.rel (%p217) target = $region32
      $region31: #{cnnrnn_forward.7} parent=23 // pred_region
        %p220 = scmp.lt.s32.totalorder %s12, 3
        %s221 = scalar_select %p220, %s12, 3
        %s222 = smul.addr %s221, 5
        %s223 = smul.addr %s222, 8
        %s224 = scalar_lea.vmem %s1, %s223
      $region32: #{cnnrnn_forward.7} parent=23 // pred_fallthru
        _
      // Predicated region
      $region33: #{cnnrnn_forward.7} parent=23 // pred_check
        %p225 = pneg %p84
      $region34: #{cnnrnn_forward.7} parent=23 // pred_check_branch
        %227 = sbr.rel (%p225) target = $region36
      $region35: #{cnnrnn_forward.7} parent=23 // pred_region
        %p228 = scmp.lt.s32.totalorder %s12, 3
        %s229 = scalar_select %p228, %s12, 3
        %s230 = smul.addr %s229, 5
        %s231 = smul.addr %s230, 8
        %s232 = scalar_lea.vmem %s2, %s231
      $region36: #{cnnrnn_forward.7} parent=23 // pred_fallthru
        _
      // Predicated region
      $region37: #{cnnrnn_forward.7} parent=23 // pred_check
        %p233 = pneg %p110
      $region38: #{cnnrnn_forward.7} parent=23 // pred_check_branch
        %235 = sbr.rel (%p233) target = $region40
      $region39: #{cnnrnn_forward.7} parent=23 // pred_region
        %p236 = scmp.lt.s32.totalorder %s12, 3
        %s237 = scalar_select %p236, %s12, 3
        %s238 = smul.addr %s237, 5
        %s239 = smul.addr %s238, 8
        %s240 = scalar_lea.vmem %s3, %s239
      $region40: #{cnnrnn_forward.7} parent=23 // pred_fallthru
        _
    $region24: #{cnnrnn_forward.7} parent=5 // pred_fallthru
      _
    %p241 = scmp.le.s32.totalorder 1, %s12
    %p242 = scmp.lt.s32.totalorder %s12, 5
    %p243 = pnand %p241, %p242
    %p244 = pneg %p243
    // Predicated region
    $region41: #{cnnrnn_forward.7} parent=5 // pred_check
      _
    $region42: #{cnnrnn_forward.7} parent=5 // pred_check_branch
      %246 = sbr.rel (%p243) target = $region44
    $region43: #{cnnrnn_forward.7} parent=5 // pred_region
      %s247 = ssub.s32 %s12, 1
      %p248 = scmp.lt.s32.totalorder %s17, 3
      %s249 = scalar_select %p248, %s17, 3
      %s250 = smul.addr %s249, 5
      %s251 = smul.addr %s250, 8
      %s252 = scalar_lea.vmem %s0, %s251
      %p253 = pneg %p38
      %p254 = pneg %p35
      %p255 = scmp.lt.s32.totalorder %s17, 3
      %s256 = scalar_select %p255, %s17, 3
      %s257 = smul.addr %s256, 5
      %s258 = smul.addr %s257, 8
      %s259 = scalar_lea.vmem %s1, %s258
      %p260 = pneg %p64
      %p261 = pneg %p61
      %p262 = scmp.lt.s32.totalorder %s17, 3
      %s263 = scalar_select %p262, %s17, 3
      %s264 = smul.addr %s263, 5
      %s265 = smul.addr %s264, 8
      %s266 = scalar_lea.vmem %s2, %s265
      %p267 = pneg %p90
      %p268 = pneg %p87
      %p269 = scmp.lt.s32.totalorder %s17, 3
      %s270 = scalar_select %p269, %s17, 3
      %s271 = smul.addr %s270, 5
      %s272 = smul.addr %s271, 8
      %s273 = scalar_lea.vmem %s3, %s272
      %p274 = pneg %p116
      %p275 = pneg %p113
      %p276 = pneg %p137
      %p277 = pneg %p134
      %p278 = pneg %p158
      %p279 = pneg %p155
      %p280 = pneg %p184
      %p281 = pneg %p181
      %p282 = scmp.lt.s32.totalorder %s17, 3
      %s283 = scalar_select %p282, %s17, 3
      %s284 = smul.addr %s283, 4
      %s285 = smul.addr %s284, 4
      %s286 = scalar_lea.vmem %s6, %s285
      %p287 = scmp.lt.s32.totalorder %s17, 3
      %s288 = scalar_select %p287, %s17, 3
      %s289 = smul.addr %s288, 5
      %s290 = smul.addr %s289, 8
      %s291 = scalar_lea.vmem %s0, %s290
      %p292 = scmp.lt.s32.totalorder %s17, 3
      %s293 = scalar_select %p292, %s17, 3
      %s294 = smul.addr %s293, 5
      %s295 = smul.addr %s294, 8
      %s296 = scalar_lea.vmem %s1, %s295
      %p297 = scmp.lt.s32.totalorder %s17, 3
      %s298 = scalar_select %p297, %s17, 3
      %s299 = smul.addr %s298, 5
      %s300 = smul.addr %s299, 8
      %s301 = scalar_lea.vmem %s2, %s300
      %p302 = scmp.lt.s32.totalorder %s17, 3
      %s303 = scalar_select %p302, %s17, 3
      %s304 = smul.addr %s303, 5
      %s305 = smul.addr %s304, 8
      %s306 = scalar_lea.vmem %s3, %s305
      %p307 = scmp.lt.s32.totalorder %s17, 3
      %s308 = scalar_select %p307, %s17, 3
      %s309 = smul.addr %s308, 4
      %s310 = smul.addr %s309, 4
      %s311 = scalar_lea.vmem %s6, %s310
      %v313 = vld [vmem:[%s291] sm:$0xf]
      %v314 = vld [vmem:[%s291 + $0x8] sm:$0xf]
      %v315 = vld [vmem:[%s291 + $0x10] sm:$0xf]
      %v316 = vld [vmem:[%s291 + $0x18] sm:$0xf]
      %v317 = vpack.c.bf16 %v313, %v313
      %v318 = vpack.c.bf16 %v314, %v314
      %v319 = vpack.c.bf16 %v315, %v315
      %v320 = vpack.c.bf16 %v316, %v316
      %v321 = vld [vmem:[%s4] sm:$0xff]
      %v322 = vld [vmem:[%s4 + $0x8] sm:$0xff]
      %v323 = vld [vmem:[%s4 + $0x10] sm:$0xff]
      %v324 = vld [vmem:[%s4 + $0x18] sm:$0xff]
      %v325 = vpack.c.bf16 %v322, %v321
      %v326 = vpack.c.bf16 %v324, %v323
      %v327 = vld [vmem:[%s296] sm:$0xf]
      %v328 = vld [vmem:[%s296 + $0x8] sm:$0xf]
      %v329 = vld [vmem:[%s296 + $0x10] sm:$0xf]
      %v330 = vld [vmem:[%s296 + $0x18] sm:$0xf]
      %v331 = vpack.c.bf16 %v327, %v327
      %v332 = vpack.c.bf16 %v328, %v328
      %v333 = vpack.c.bf16 %v329, %v329
      %v334 = vpack.c.bf16 %v330, %v330
      %s335 = scalar_lea.vmem %s4, 32
      %v336 = vld [vmem:[%s335] sm:$0xff]
      %v337 = vld [vmem:[%s335 + $0x8] sm:$0xff]
      %v338 = vld [vmem:[%s335 + $0x10] sm:$0xff]
      %v339 = vld [vmem:[%s335 + $0x18] sm:$0xff]
      %v340 = vpack.c.bf16 %v337, %v336
      %v341 = vpack.c.bf16 %v339, %v338
      %vm342 = vcmask 261120
      %v344 = vsel %vm342, %v331, 0
      %346 = vmatprep.subr.bf16.mxu0 0
      %347 = vmatpush1.bf16.msra.mxu0 0
      %348 = vmatprep.subr.bf16.mxu0 0
      %349 = vmatpush1.bf16.msra.mxu0 0
      %350 = vmatprep.subr.bf16.mxu0 0
      %351 = vmatpush1.bf16.msra.mxu0 0
      %352 = vmatprep.subr.bf16.mxu0 0
      %353 = vmatpush1.bf16.msra.mxu0 0
      %354 = vmatprep.subr.bf16.mxu0 0
      %355 = vmatpush1.bf16.msra.mxu0 0
      %356 = vmatprep.subr.bf16.mxu0 0
      %357 = vmatpush1.bf16.msra.mxu0 0
      %358 = vmatprep.subr.bf16.mxu0 0
      %359 = vmatpush1.bf16.msra.mxu0 %v341
      %360 = vmatprep.subr.bf16.mxu0 0
      %361 = vmatpush1.bf16.msra.mxu0 %v340
      %362 = vmatprep.subr.bf16.mxu0 0
      %363 = vmatpush2.bf16.msra.mxu0 0
      %364 = vmatprep.subr.bf16.mxu0 0
      %365 = vmatpush2.bf16.msra.mxu0 0
      %366 = vmatprep.subr.bf16.mxu0 0
      %367 = vmatpush2.bf16.msra.mxu0 0
      %368 = vmatprep.subr.bf16.mxu0 0
      %369 = vmatpush2.bf16.msra.mxu0 0
      %370 = vmatprep.subr.bf16.mxu0 0
      %371 = vmatpush2.bf16.msra.mxu0 0
      %372 = vmatprep.subr.bf16.mxu0 0
      %373 = vmatpush2.bf16.msra.mxu0 0
      %374 = vmatprep.subr.bf16.mxu0 0
      %375 = vmatpush2.bf16.msra.mxu0 0
      %376 = vmatprep.subr.bf16.mxu0 0
      %377 = vmatpush2.bf16.msra.mxu0 0
      %378 = vmatprep.mubr.bf16.mxu0 0
      %379 = vmatmul.mubr.bf16.gmra.mxu0 %v344
      %v380 = vpop.f32.mrf.mxu0
      %v381 = vadd.f32 0.0, %v380
      %v382 = vpop.f32.mrf.mxu0
      %v383 = vpop.f32.mrf.mxu0
      %v384 = vpop.f32.mrf.mxu0
      %385 = vdwg.mxu0
      %v387 = vsel %vm342, %v332, 0
      %389 = vmatprep.subr.bf16.mxu0 0
      %390 = vmatpush1.bf16.msra.mxu0 0
      %391 = vmatprep.subr.bf16.mxu0 0
      %392 = vmatpush1.bf16.msra.mxu0 0
      %393 = vmatprep.subr.bf16.mxu0 0
      %394 = vmatpush1.bf16.msra.mxu0 0
      %395 = vmatprep.subr.bf16.mxu0 0
      %396 = vmatpush1.bf16.msra.mxu0 0
      %397 = vmatprep.subr.bf16.mxu0 0
      %398 = vmatpush1.bf16.msra.mxu0 0
      %399 = vmatprep.subr.bf16.mxu0 0
      %400 = vmatpush1.bf16.msra.mxu0 0
      %401 = vmatprep.subr.bf16.mxu0 0
      %402 = vmatpush1.bf16.msra.mxu0 %v341
      %403 = vmatprep.subr.bf16.mxu0 0
      %404 = vmatpush1.bf16.msra.mxu0 %v340
      %405 = vmatprep.subr.bf16.mxu0 0
      %406 = vmatpush2.bf16.msra.mxu0 0
      %407 = vmatprep.subr.bf16.mxu0 0
      %408 = vmatpush2.bf16.msra.mxu0 0
      %409 = vmatprep.subr.bf16.mxu0 0
      %410 = vmatpush2.bf16.msra.mxu0 0
      %411 = vmatprep.subr.bf16.mxu0 0
      %412 = vmatpush2.bf16.msra.mxu0 0
      %413 = vmatprep.subr.bf16.mxu0 0
      %414 = vmatpush2.bf16.msra.mxu0 0
      %415 = vmatprep.subr.bf16.mxu0 0
      %416 = vmatpush2.bf16.msra.mxu0 0
      %417 = vmatprep.subr.bf16.mxu0 0
      %418 = vmatpush2.bf16.msra.mxu0 0
      %419 = vmatprep.subr.bf16.mxu0 0
      %420 = vmatpush2.bf16.msra.mxu0 0
      %421 = vmatprep.mubr.bf16.mxu0 0
      %422 = vmatmul.mubr.bf16.gmra.mxu0 %v387
      %v423 = vpop.f32.mrf.mxu0
      %v424 = vadd.f32 0.0, %v423
      %v425 = vpop.f32.mrf.mxu0
      %v426 = vpop.f32.mrf.mxu0
      %v427 = vpop.f32.mrf.mxu0
      %428 = vdwg.mxu0
      %v430 = vsel %vm342, %v333, 0
      %432 = vmatprep.subr.bf16.mxu0 0
      %433 = vmatpush1.bf16.msra.mxu0 0
      %434 = vmatprep.subr.bf16.mxu0 0
      %435 = vmatpush1.bf16.msra.mxu0 0
      %436 = vmatprep.subr.bf16.mxu0 0
      %437 = vmatpush1.bf16.msra.mxu0 0
      %438 = vmatprep.subr.bf16.mxu0 0
      %439 = vmatpush1.bf16.msra.mxu0 0
      %440 = vmatprep.subr.bf16.mxu0 0
      %441 = vmatpush1.bf16.msra.mxu0 0
      %442 = vmatprep.subr.bf16.mxu0 0
      %443 = vmatpush1.bf16.msra.mxu0 0
      %444 = vmatprep.subr.bf16.mxu0 0
      %445 = vmatpush1.bf16.msra.mxu0 %v341
      %446 = vmatprep.subr.bf16.mxu0 0
      %447 = vmatpush1.bf16.msra.mxu0 %v340
      %448 = vmatprep.subr.bf16.mxu0 0
      %449 = vmatpush2.bf16.msra.mxu0 0
      %450 = vmatprep.subr.bf16.mxu0 0
      %451 = vmatpush2.bf16.msra.mxu0 0
      %452 = vmatprep.subr.bf16.mxu0 0
      %453 = vmatpush2.bf16.msra.mxu0 0
      %454 = vmatprep.subr.bf16.mxu0 0
      %455 = vmatpush2.bf16.msra.mxu0 0
      %456 = vmatprep.subr.bf16.mxu0 0
      %457 = vmatpush2.bf16.msra.mxu0 0
      %458 = vmatprep.subr.bf16.mxu0 0
      %459 = vmatpush2.bf16.msra.mxu0 0
      %460 = vmatprep.subr.bf16.mxu0 0
      %461 = vmatpush2.bf16.msra.mxu0 0
      %462 = vmatprep.subr.bf16.mxu0 0
      %463 = vmatpush2.bf16.msra.mxu0 0
      %464 = vmatprep.mubr.bf16.mxu0 0
      %465 = vmatmul.mubr.bf16.gmra.mxu0 %v430
      %v466 = vpop.f32.mrf.mxu0
      %v467 = vadd.f32 0.0, %v466
      %v468 = vpop.f32.mrf.mxu0
      %v469 = vpop.f32.mrf.mxu0
      %v470 = vpop.f32.mrf.mxu0
      %471 = vdwg.mxu0
      %v473 = vsel %vm342, %v334, 0
      %475 = vmatprep.subr.bf16.mxu0 0
      %476 = vmatpush1.bf16.msra.mxu0 0
      %477 = vmatprep.subr.bf16.mxu0 0
      %478 = vmatpush1.bf16.msra.mxu0 0
      %479 = vmatprep.subr.bf16.mxu0 0
      %480 = vmatpush1.bf16.msra.mxu0 0
      %481 = vmatprep.subr.bf16.mxu0 0
      %482 = vmatpush1.bf16.msra.mxu0 0
      %483 = vmatprep.subr.bf16.mxu0 0
      %484 = vmatpush1.bf16.msra.mxu0 0
      %485 = vmatprep.subr.bf16.mxu0 0
      %486 = vmatpush1.bf16.msra.mxu0 0
      %487 = vmatprep.subr.bf16.mxu0 0
      %488 = vmatpush1.bf16.msra.mxu0 %v341
      %489 = vmatprep.subr.bf16.mxu0 0
      %490 = vmatpush1.bf16.msra.mxu0 %v340
      %491 = vmatprep.subr.bf16.mxu0 0
      %492 = vmatpush2.bf16.msra.mxu0 0
      %493 = vmatprep.subr.bf16.mxu0 0
      %494 = vmatpush2.bf16.msra.mxu0 0
      %495 = vmatprep.subr.bf16.mxu0 0
      %496 = vmatpush2.bf16.msra.mxu0 0
      %497 = vmatprep.subr.bf16.mxu0 0
      %498 = vmatpush2.bf16.msra.mxu0 0
      %499 = vmatprep.subr.bf16.mxu0 0
      %500 = vmatpush2.bf16.msra.mxu0 0
      %501 = vmatprep.subr.bf16.mxu0 0
      %502 = vmatpush2.bf16.msra.mxu0 0
      %503 = vmatprep.subr.bf16.mxu0 0
      %504 = vmatpush2.bf16.msra.mxu0 0
      %505 = vmatprep.subr.bf16.mxu0 0
      %506 = vmatpush2.bf16.msra.mxu0 0
      %507 = vmatprep.mubr.bf16.mxu0 0
      %508 = vmatmul.mubr.bf16.gmra.mxu0 %v473
      %v509 = vpop.f32.mrf.mxu0
      %v510 = vadd.f32 0.0, %v509
      %v511 = vpop.f32.mrf.mxu0
      %v512 = vpop.f32.mrf.mxu0
      %v513 = vpop.f32.mrf.mxu0
      %514 = vdwg.mxu0
      %v516 = vsel %vm342, %v317, 0
      %518 = vmatprep.subr.bf16.mxu0 0
      %519 = vmatpush1.bf16.msra.mxu0 0
      %520 = vmatprep.subr.bf16.mxu0 0
      %521 = vmatpush1.bf16.msra.mxu0 0
      %522 = vmatprep.subr.bf16.mxu0 0
      %523 = vmatpush1.bf16.msra.mxu0 0
      %524 = vmatprep.subr.bf16.mxu0 0
      %525 = vmatpush1.bf16.msra.mxu0 0
      %526 = vmatprep.subr.bf16.mxu0 0
      %527 = vmatpush1.bf16.msra.mxu0 0
      %528 = vmatprep.subr.bf16.mxu0 0
      %529 = vmatpush1.bf16.msra.mxu0 0
      %530 = vmatprep.subr.bf16.mxu0 0
      %531 = vmatpush1.bf16.msra.mxu0 %v326
      %532 = vmatprep.subr.bf16.mxu0 0
      %533 = vmatpush1.bf16.msra.mxu0 %v325
      %534 = vmatprep.subr.bf16.mxu0 0
      %535 = vmatpush2.bf16.msra.mxu0 0
      %536 = vmatprep.subr.bf16.mxu0 0
      %537 = vmatpush2.bf16.msra.mxu0 0
      %538 = vmatprep.subr.bf16.mxu0 0
      %539 = vmatpush2.bf16.msra.mxu0 0
      %540 = vmatprep.subr.bf16.mxu0 0
      %541 = vmatpush2.bf16.msra.mxu0 0
      %542 = vmatprep.subr.bf16.mxu0 0
      %543 = vmatpush2.bf16.msra.mxu0 0
      %544 = vmatprep.subr.bf16.mxu0 0
      %545 = vmatpush2.bf16.msra.mxu0 0
      %546 = vmatprep.subr.bf16.mxu0 0
      %547 = vmatpush2.bf16.msra.mxu0 0
      %548 = vmatprep.subr.bf16.mxu0 0
      %549 = vmatpush2.bf16.msra.mxu0 0
      %550 = vmatprep.mubr.bf16.mxu0 0
      %551 = vmatmul.mubr.bf16.gmra.mxu0 %v516
      %v552 = vpop.f32.mrf.mxu0
      %v553 = vadd.f32 %v381, %v552
      %v554 = vpop.f32.mrf.mxu0
      %v555 = vpop.f32.mrf.mxu0
      %v556 = vpop.f32.mrf.mxu0
      %557 = vdwg.mxu0
      %v559 = vsel %vm342, %v318, 0
      %561 = vmatprep.subr.bf16.mxu0 0
      %562 = vmatpush1.bf16.msra.mxu0 0
      %563 = vmatprep.subr.bf16.mxu0 0
      %564 = vmatpush1.bf16.msra.mxu0 0
      %565 = vmatprep.subr.bf16.mxu0 0
      %566 = vmatpush1.bf16.msra.mxu0 0
      %567 = vmatprep.subr.bf16.mxu0 0
      %568 = vmatpush1.bf16.msra.mxu0 0
      %569 = vmatprep.subr.bf16.mxu0 0
      %570 = vmatpush1.bf16.msra.mxu0 0
      %571 = vmatprep.subr.bf16.mxu0 0
      %572 = vmatpush1.bf16.msra.mxu0 0
      %573 = vmatprep.subr.bf16.mxu0 0
      %574 = vmatpush1.bf16.msra.mxu0 %v326
      %575 = vmatprep.subr.bf16.mxu0 0
      %576 = vmatpush1.bf16.msra.mxu0 %v325
      %577 = vmatprep.subr.bf16.mxu0 0
      %578 = vmatpush2.bf16.msra.mxu0 0
      %579 = vmatprep.subr.bf16.mxu0 0
      %580 = vmatpush2.bf16.msra.mxu0 0
      %581 = vmatprep.subr.bf16.mxu0 0
      %582 = vmatpush2.bf16.msra.mxu0 0
      %583 = vmatprep.subr.bf16.mxu0 0
      %584 = vmatpush2.bf16.msra.mxu0 0
      %585 = vmatprep.subr.bf16.mxu0 0
      %586 = vmatpush2.bf16.msra.mxu0 0
      %587 = vmatprep.subr.bf16.mxu0 0
      %588 = vmatpush2.bf16.msra.mxu0 0
      %589 = vmatprep.subr.bf16.mxu0 0
      %590 = vmatpush2.bf16.msra.mxu0 0
      %591 = vmatprep.subr.bf16.mxu0 0
      %592 = vmatpush2.bf16.msra.mxu0 0
      %593 = vmatprep.mubr.bf16.mxu0 0
      %594 = vmatmul.mubr.bf16.gmra.mxu0 %v559
      %v595 = vpop.f32.mrf.mxu0
      %v596 = vadd.f32 %v424, %v595
      %v597 = vpop.f32.mrf.mxu0
      %v598 = vpop.f32.mrf.mxu0
      %v599 = vpop.f32.mrf.mxu0
      %600 = vdwg.mxu0
      %v602 = vsel %vm342, %v319, 0
      %604 = vmatprep.subr.bf16.mxu0 0
      %605 = vmatpush1.bf16.msra.mxu0 0
      %606 = vmatprep.subr.bf16.mxu0 0
      %607 = vmatpush1.bf16.msra.mxu0 0
      %608 = vmatprep.subr.bf16.mxu0 0
      %609 = vmatpush1.bf16.msra.mxu0 0
      %610 = vmatprep.subr.bf16.mxu0 0
      %611 = vmatpush1.bf16.msra.mxu0 0
      %612 = vmatprep.subr.bf16.mxu0 0
      %613 = vmatpush1.bf16.msra.mxu0 0
      %614 = vmatprep.subr.bf16.mxu0 0
      %615 = vmatpush1.bf16.msra.mxu0 0
      %616 = vmatprep.subr.bf16.mxu0 0
      %617 = vmatpush1.bf16.msra.mxu0 %v326
      %618 = vmatprep.subr.bf16.mxu0 0
      %619 = vmatpush1.bf16.msra.mxu0 %v325
      %620 = vmatprep.subr.bf16.mxu0 0
      %621 = vmatpush2.bf16.msra.mxu0 0
      %622 = vmatprep.subr.bf16.mxu0 0
      %623 = vmatpush2.bf16.msra.mxu0 0
      %624 = vmatprep.subr.bf16.mxu0 0
      %625 = vmatpush2.bf16.msra.mxu0 0
      %626 = vmatprep.subr.bf16.mxu0 0
      %627 = vmatpush2.bf16.msra.mxu0 0
      %628 = vmatprep.subr.bf16.mxu0 0
      %629 = vmatpush2.bf16.msra.mxu0 0
      %630 = vmatprep.subr.bf16.mxu0 0
      %631 = vmatpush2.bf16.msra.mxu0 0
      %632 = vmatprep.subr.bf16.mxu0 0
      %633 = vmatpush2.bf16.msra.mxu0 0
      %634 = vmatprep.subr.bf16.mxu0 0
      %635 = vmatpush2.bf16.msra.mxu0 0
      %636 = vmatprep.mubr.bf16.mxu0 0
      %637 = vmatmul.mubr.bf16.gmra.mxu0 %v602
      %v638 = vpop.f32.mrf.mxu0
      %v639 = vadd.f32 %v467, %v638
      %v640 = vpop.f32.mrf.mxu0
      %v641 = vpop.f32.mrf.mxu0
      %v642 = vpop.f32.mrf.mxu0
      %643 = vdwg.mxu0
      %v645 = vsel %vm342, %v320, 0
      %647 = vmatprep.subr.bf16.mxu0 0
      %648 = vmatpush1.bf16.msra.mxu0 0
      %649 = vmatprep.subr.bf16.mxu0 0
      %650 = vmatpush1.bf16.msra.mxu0 0
      %651 = vmatprep.subr.bf16.mxu0 0
      %652 = vmatpush1.bf16.msra.mxu0 0
      %653 = vmatprep.subr.bf16.mxu0 0
      %654 = vmatpush1.bf16.msra.mxu0 0
      %655 = vmatprep.subr.bf16.mxu0 0
      %656 = vmatpush1.bf16.msra.mxu0 0
      %657 = vmatprep.subr.bf16.mxu0 0
      %658 = vmatpush1.bf16.msra.mxu0 0
      %659 = vmatprep.subr.bf16.mxu0 0
      %660 = vmatpush1.bf16.msra.mxu0 %v326
      %661 = vmatprep.subr.bf16.mxu0 0
      %662 = vmatpush1.bf16.msra.mxu0 %v325
      %663 = vmatprep.subr.bf16.mxu0 0
      %664 = vmatpush2.bf16.msra.mxu0 0
      %665 = vmatprep.subr.bf16.mxu0 0
      %666 = vmatpush2.bf16.msra.mxu0 0
      %667 = vmatprep.subr.bf16.mxu0 0
      %668 = vmatpush2.bf16.msra.mxu0 0
      %669 = vmatprep.subr.bf16.mxu0 0
      %670 = vmatpush2.bf16.msra.mxu0 0
      %671 = vmatprep.subr.bf16.mxu0 0
      %672 = vmatpush2.bf16.msra.mxu0 0
      %673 = vmatprep.subr.bf16.mxu0 0
      %674 = vmatpush2.bf16.msra.mxu0 0
      %675 = vmatprep.subr.bf16.mxu0 0
      %676 = vmatpush2.bf16.msra.mxu0 0
      %677 = vmatprep.subr.bf16.mxu0 0
      %678 = vmatpush2.bf16.msra.mxu0 0
      %679 = vmatprep.mubr.bf16.mxu0 0
      %680 = vmatmul.mubr.bf16.gmra.mxu0 %v645
      %v681 = vpop.f32.mrf.mxu0
      %v682 = vadd.f32 %v510, %v681
      %v683 = vpop.f32.mrf.mxu0
      %v684 = vpop.f32.mrf.mxu0
      %v685 = vpop.f32.mrf.mxu0
      %686 = vdwg.mxu0
      %v687 = vld [vmem:[%s291 + $0x1] sm:$0xf]
      %v688 = vld [vmem:[%s291 + $0x9] sm:$0xf]
      %v689 = vld [vmem:[%s291 + $0x11] sm:$0xf]
      %v690 = vld [vmem:[%s291 + $0x19] sm:$0xf]
      %v691 = vpack.c.bf16 %v687, %v687
      %v692 = vpack.c.bf16 %v688, %v688
      %v693 = vpack.c.bf16 %v689, %v689
      %v694 = vpack.c.bf16 %v690, %v690
      %s695 = scalar_lea.vmem %s4, 64
      %v696 = vld [vmem:[%s695] sm:$0xff]
      %v697 = vld [vmem:[%s695 + $0x8] sm:$0xff]
      %v698 = vld [vmem:[%s695 + $0x10] sm:$0xff]
      %v699 = vld [vmem:[%s695 + $0x18] sm:$0xff]
      %v700 = vpack.c.bf16 %v697, %v696
      %v701 = vpack.c.bf16 %v699, %v698
      %v703 = vsel %vm342, %v691, 0
      %705 = vmatprep.subr.bf16.mxu0 0
      %706 = vmatpush1.bf16.msra.mxu0 0
      %707 = vmatprep.subr.bf16.mxu0 0
      %708 = vmatpush1.bf16.msra.mxu0 0
      %709 = vmatprep.subr.bf16.mxu0 0
      %710 = vmatpush1.bf16.msra.mxu0 0
      %711 = vmatprep.subr.bf16.mxu0 0
      %712 = vmatpush1.bf16.msra.mxu0 0
      %713 = vmatprep.subr.bf16.mxu0 0
      %714 = vmatpush1.bf16.msra.mxu0 0
      %715 = vmatprep.subr.bf16.mxu0 0
      %716 = vmatpush1.bf16.msra.mxu0 0
      %717 = vmatprep.subr.bf16.mxu0 0
      %718 = vmatpush1.bf16.msra.mxu0 %v701
      %719 = vmatprep.subr.bf16.mxu0 0
      %720 = vmatpush1.bf16.msra.mxu0 %v700
      %721 = vmatprep.subr.bf16.mxu0 0
      %722 = vmatpush2.bf16.msra.mxu0 0
      %723 = vmatprep.subr.bf16.mxu0 0
      %724 = vmatpush2.bf16.msra.mxu0 0
      %725 = vmatprep.subr.bf16.mxu0 0
      %726 = vmatpush2.bf16.msra.mxu0 0
      %727 = vmatprep.subr.bf16.mxu0 0
      %728 = vmatpush2.bf16.msra.mxu0 0
      %729 = vmatprep.subr.bf16.mxu0 0
      %730 = vmatpush2.bf16.msra.mxu0 0
      %731 = vmatprep.subr.bf16.mxu0 0
      %732 = vmatpush2.bf16.msra.mxu0 0
      %733 = vmatprep.subr.bf16.mxu0 0
      %734 = vmatpush2.bf16.msra.mxu0 0
      %735 = vmatprep.subr.bf16.mxu0 0
      %736 = vmatpush2.bf16.msra.mxu0 0
      %737 = vmatprep.mubr.bf16.mxu0 0
      %738 = vmatmul.mubr.bf16.gmra.mxu0 %v703
      %v739 = vpop.f32.mrf.mxu0
      %v740 = vadd.f32 0.0, %v739
      %v741 = vpop.f32.mrf.mxu0
      %v742 = vpop.f32.mrf.mxu0
      %v743 = vpop.f32.mrf.mxu0
      %744 = vdwg.mxu0
      %v746 = vsel %vm342, %v692, 0
      %748 = vmatprep.subr.bf16.mxu0 0
      %749 = vmatpush1.bf16.msra.mxu0 0
      %750 = vmatprep.subr.bf16.mxu0 0
      %751 = vmatpush1.bf16.msra.mxu0 0
      %752 = vmatprep.subr.bf16.mxu0 0
      %753 = vmatpush1.bf16.msra.mxu0 0
      %754 = vmatprep.subr.bf16.mxu0 0
      %755 = vmatpush1.bf16.msra.mxu0 0
      %756 = vmatprep.subr.bf16.mxu0 0
      %757 = vmatpush1.bf16.msra.mxu0 0
      %758 = vmatprep.subr.bf16.mxu0 0
      %759 = vmatpush1.bf16.msra.mxu0 0
      %760 = vmatprep.subr.bf16.mxu0 0
      %761 = vmatpush1.bf16.msra.mxu0 %v701
      %762 = vmatprep.subr.bf16.mxu0 0
      %763 = vmatpush1.bf16.msra.mxu0 %v700
      %764 = vmatprep.subr.bf16.mxu0 0
      %765 = vmatpush2.bf16.msra.mxu0 0
      %766 = vmatprep.subr.bf16.mxu0 0
      %767 = vmatpush2.bf16.msra.mxu0 0
      %768 = vmatprep.subr.bf16.mxu0 0
      %769 = vmatpush2.bf16.msra.mxu0 0
      %770 = vmatprep.subr.bf16.mxu0 0
      %771 = vmatpush2.bf16.msra.mxu0 0
      %772 = vmatprep.subr.bf16.mxu0 0
      %773 = vmatpush2.bf16.msra.mxu0 0
      %774 = vmatprep.subr.bf16.mxu0 0
      %775 = vmatpush2.bf16.msra.mxu0 0
      %776 = vmatprep.subr.bf16.mxu0 0
      %777 = vmatpush2.bf16.msra.mxu0 0
      %778 = vmatprep.subr.bf16.mxu0 0
      %779 = vmatpush2.bf16.msra.mxu0 0
      %780 = vmatprep.mubr.bf16.mxu0 0
      %781 = vmatmul.mubr.bf16.gmra.mxu0 %v746
      %v782 = vpop.f32.mrf.mxu0
      %v783 = vadd.f32 0.0, %v782
      %v784 = vpop.f32.mrf.mxu0
      %v785 = vpop.f32.mrf.mxu0
      %v786 = vpop.f32.mrf.mxu0
      %787 = vdwg.mxu0
      %v789 = vsel %vm342, %v693, 0
      %791 = vmatprep.subr.bf16.mxu0 0
      %792 = vmatpush1.bf16.msra.mxu0 0
      %793 = vmatprep.subr.bf16.mxu0 0
      %794 = vmatpush1.bf16.msra.mxu0 0
      %795 = vmatprep.subr.bf16.mxu0 0
      %796 = vmatpush1.bf16.msra.mxu0 0
      %797 = vmatprep.subr.bf16.mxu0 0
      %798 = vmatpush1.bf16.msra.mxu0 0
      %799 = vmatprep.subr.bf16.mxu0 0
      %800 = vmatpush1.bf16.msra.mxu0 0
      %801 = vmatprep.subr.bf16.mxu0 0
      %802 = vmatpush1.bf16.msra.mxu0 0
      %803 = vmatprep.subr.bf16.mxu0 0
      %804 = vmatpush1.bf16.msra.mxu0 %v701
      %805 = vmatprep.subr.bf16.mxu0 0
      %806 = vmatpush1.bf16.msra.mxu0 %v700
      %807 = vmatprep.subr.bf16.mxu0 0
      %808 = vmatpush2.bf16.msra.mxu0 0
      %809 = vmatprep.subr.bf16.mxu0 0
      %810 = vmatpush2.bf16.msra.mxu0 0
      %811 = vmatprep.subr.bf16.mxu0 0
      %812 = vmatpush2.bf16.msra.mxu0 0
      %813 = vmatprep.subr.bf16.mxu0 0
      %814 = vmatpush2.bf16.msra.mxu0 0
      %815 = vmatprep.subr.bf16.mxu0 0
      %816 = vmatpush2.bf16.msra.mxu0 0
      %817 = vmatprep.subr.bf16.mxu0 0
      %818 = vmatpush2.bf16.msra.mxu0 0
      %819 = vmatprep.subr.bf16.mxu0 0
      %820 = vmatpush2.bf16.msra.mxu0 0
      %821 = vmatprep.subr.bf16.mxu0 0
      %822 = vmatpush2.bf16.msra.mxu0 0
      %823 = vmatprep.mubr.bf16.mxu0 0
      %824 = vmatmul.mubr.bf16.gmra.mxu0 %v789
      %v825 = vpop.f32.mrf.mxu0
      %v826 = vadd.f32 0.0, %v825
      %v827 = vpop.f32.mrf.mxu0
      %v828 = vpop.f32.mrf.mxu0
      %v829 = vpop.f32.mrf.mxu0
      %830 = vdwg.mxu0
      %v832 = vsel %vm342, %v694, 0
      %834 = vmatprep.subr.bf16.mxu0 0
      %835 = vmatpush1.bf16.msra.mxu0 0
      %836 = vmatprep.subr.bf16.mxu0 0
      %837 = vmatpush1.bf16.msra.mxu0 0
      %838 = vmatprep.subr.bf16.mxu0 0
      %839 = vmatpush1.bf16.msra.mxu0 0
      %840 = vmatprep.subr.bf16.mxu0 0
      %841 = vmatpush1.bf16.msra.mxu0 0
      %842 = vmatprep.subr.bf16.mxu0 0
      %843 = vmatpush1.bf16.msra.mxu0 0
      %844 = vmatprep.subr.bf16.mxu0 0
      %845 = vmatpush1.bf16.msra.mxu0 0
      %846 = vmatprep.subr.bf16.mxu0 0
      %847 = vmatpush1.bf16.msra.mxu0 %v701
      %848 = vmatprep.subr.bf16.mxu0 0
      %849 = vmatpush1.bf16.msra.mxu0 %v700
      %850 = vmatprep.subr.bf16.mxu0 0
      %851 = vmatpush2.bf16.msra.mxu0 0
      %852 = vmatprep.subr.bf16.mxu0 0
      %853 = vmatpush2.bf16.msra.mxu0 0
      %854 = vmatprep.subr.bf16.mxu0 0
      %855 = vmatpush2.bf16.msra.mxu0 0
      %856 = vmatprep.subr.bf16.mxu0 0
      %857 = vmatpush2.bf16.msra.mxu0 0
      %858 = vmatprep.subr.bf16.mxu0 0
      %859 = vmatpush2.bf16.msra.mxu0 0
      %860 = vmatprep.subr.bf16.mxu0 0
      %861 = vmatpush2.bf16.msra.mxu0 0
      %862 = vmatprep.subr.bf16.mxu0 0
      %863 = vmatpush2.bf16.msra.mxu0 0
      %864 = vmatprep.subr.bf16.mxu0 0
      %865 = vmatpush2.bf16.msra.mxu0 0
      %866 = vmatprep.mubr.bf16.mxu0 0
      %867 = vmatmul.mubr.bf16.gmra.mxu0 %v832
      %v868 = vpop.f32.mrf.mxu0
      %v869 = vadd.f32 0.0, %v868
      %v870 = vpop.f32.mrf.mxu0
      %v871 = vpop.f32.mrf.mxu0
      %v872 = vpop.f32.mrf.mxu0
      %873 = vdwg.mxu0
      %v874 = vadd.f32 %v553, %v740
      %v875 = vadd.f32 %v596, %v783
      %v876 = vadd.f32 %v639, %v826
      %v877 = vadd.f32 %v682, %v869
      %v878 = vld [vmem:[%s301] sm:$0xf]
      %v879 = vld [vmem:[%s301 + $0x8] sm:$0xf]
      %v880 = vld [vmem:[%s301 + $0x10] sm:$0xf]
      %v881 = vld [vmem:[%s301 + $0x18] sm:$0xf]
      %v882 = vpack.c.bf16 %v878, %v878
      %v883 = vpack.c.bf16 %v879, %v879
      %v884 = vpack.c.bf16 %v880, %v880
      %v885 = vpack.c.bf16 %v881, %v881
      %s886 = scalar_lea.vmem %s4, 96
      %v887 = vld [vmem:[%s886] sm:$0xff]
      %v888 = vld [vmem:[%s886 + $0x8] sm:$0xff]
      %v889 = vld [vmem:[%s886 + $0x10] sm:$0xff]
      %v890 = vld [vmem:[%s886 + $0x18] sm:$0xff]
      %v891 = vpack.c.bf16 %v888, %v887
      %v892 = vpack.c.bf16 %v890, %v889
      %v894 = vsel %vm342, %v882, 0
      %896 = vmatprep.subr.bf16.mxu0 0
      %897 = vmatpush1.bf16.msra.mxu0 0
      %898 = vmatprep.subr.bf16.mxu0 0
      %899 = vmatpush1.bf16.msra.mxu0 0
      %900 = vmatprep.subr.bf16.mxu0 0
      %901 = vmatpush1.bf16.msra.mxu0 0
      %902 = vmatprep.subr.bf16.mxu0 0
      %903 = vmatpush1.bf16.msra.mxu0 0
      %904 = vmatprep.subr.bf16.mxu0 0
      %905 = vmatpush1.bf16.msra.mxu0 0
      %906 = vmatprep.subr.bf16.mxu0 0
      %907 = vmatpush1.bf16.msra.mxu0 0
      %908 = vmatprep.subr.bf16.mxu0 0
      %909 = vmatpush1.bf16.msra.mxu0 %v892
      %910 = vmatprep.subr.bf16.mxu0 0
      %911 = vmatpush1.bf16.msra.mxu0 %v891
      %912 = vmatprep.subr.bf16.mxu0 0
      %913 = vmatpush2.bf16.msra.mxu0 0
      %914 = vmatprep.subr.bf16.mxu0 0
      %915 = vmatpush2.bf16.msra.mxu0 0
      %916 = vmatprep.subr.bf16.mxu0 0
      %917 = vmatpush2.bf16.msra.mxu0 0
      %918 = vmatprep.subr.bf16.mxu0 0
      %919 = vmatpush2.bf16.msra.mxu0 0
      %920 = vmatprep.subr.bf16.mxu0 0
      %921 = vmatpush2.bf16.msra.mxu0 0
      %922 = vmatprep.subr.bf16.mxu0 0
      %923 = vmatpush2.bf16.msra.mxu0 0
      %924 = vmatprep.subr.bf16.mxu0 0
      %925 = vmatpush2.bf16.msra.mxu0 0
      %926 = vmatprep.subr.bf16.mxu0 0
      %927 = vmatpush2.bf16.msra.mxu0 0
      %928 = vmatprep.mubr.bf16.mxu0 0
      %929 = vmatmul.mubr.bf16.gmra.mxu0 %v894
      %v930 = vpop.f32.mrf.mxu0
      %v931 = vadd.f32 0.0, %v930
      %v932 = vpop.f32.mrf.mxu0
      %v933 = vpop.f32.mrf.mxu0
      %v934 = vpop.f32.mrf.mxu0
      %935 = vdwg.mxu0
      %v937 = vsel %vm342, %v883, 0
      %939 = vmatprep.subr.bf16.mxu0 0
      %940 = vmatpush1.bf16.msra.mxu0 0
      %941 = vmatprep.subr.bf16.mxu0 0
      %942 = vmatpush1.bf16.msra.mxu0 0
      %943 = vmatprep.subr.bf16.mxu0 0
      %944 = vmatpush1.bf16.msra.mxu0 0
      %945 = vmatprep.subr.bf16.mxu0 0
      %946 = vmatpush1.bf16.msra.mxu0 0
      %947 = vmatprep.subr.bf16.mxu0 0
      %948 = vmatpush1.bf16.msra.mxu0 0
      %949 = vmatprep.subr.bf16.mxu0 0
      %950 = vmatpush1.bf16.msra.mxu0 0
      %951 = vmatprep.subr.bf16.mxu0 0
      %952 = vmatpush1.bf16.msra.mxu0 %v892
      %953 = vmatprep.subr.bf16.mxu0 0
      %954 = vmatpush1.bf16.msra.mxu0 %v891
      %955 = vmatprep.subr.bf16.mxu0 0
      %956 = vmatpush2.bf16.msra.mxu0 0
      %957 = vmatprep.subr.bf16.mxu0 0
      %958 = vmatpush2.bf16.msra.mxu0 0
      %959 = vmatprep.subr.bf16.mxu0 0
      %960 = vmatpush2.bf16.msra.mxu0 0
      %961 = vmatprep.subr.bf16.mxu0 0
      %962 = vmatpush2.bf16.msra.mxu0 0
      %963 = vmatprep.subr.bf16.mxu0 0
      %964 = vmatpush2.bf16.msra.mxu0 0
      %965 = vmatprep.subr.bf16.mxu0 0
      %966 = vmatpush2.bf16.msra.mxu0 0
      %967 = vmatprep.subr.bf16.mxu0 0
      %968 = vmatpush2.bf16.msra.mxu0 0
      %969 = vmatprep.subr.bf16.mxu0 0
      %970 = vmatpush2.bf16.msra.mxu0 0
      %971 = vmatprep.mubr.bf16.mxu0 0
      %972 = vmatmul.mubr.bf16.gmra.mxu0 %v937
      %v973 = vpop.f32.mrf.mxu0
      %v974 = vadd.f32 0.0, %v973
      %v975 = vpop.f32.mrf.mxu0
      %v976 = vpop.f32.mrf.mxu0
      %v977 = vpop.f32.mrf.mxu0
      %978 = vdwg.mxu0
      %v980 = vsel %vm342, %v884, 0
      %982 = vmatprep.subr.bf16.mxu0 0
      %983 = vmatpush1.bf16.msra.mxu0 0
      %984 = vmatprep.subr.bf16.mxu0 0
      %985 = vmatpush1.bf16.msra.mxu0 0
      %986 = vmatprep.subr.bf16.mxu0 0
      %987 = vmatpush1.bf16.msra.mxu0 0
      %988 = vmatprep.subr.bf16.mxu0 0
      %989 = vmatpush1.bf16.msra.mxu0 0
      %990 = vmatprep.subr.bf16.mxu0 0
      %991 = vmatpush1.bf16.msra.mxu0 0
      %992 = vmatprep.subr.bf16.mxu0 0
      %993 = vmatpush1.bf16.msra.mxu0 0
      %994 = vmatprep.subr.bf16.mxu0 0
      %995 = vmatpush1.bf16.msra.mxu0 %v892
      %996 = vmatprep.subr.bf16.mxu0 0
      %997 = vmatpush1.bf16.msra.mxu0 %v891
      %998 = vmatprep.subr.bf16.mxu0 0
      %999 = vmatpush2.bf16.msra.mxu0 0
      %1000 = vmatprep.subr.bf16.mxu0 0
      %1001 = vmatpush2.bf16.msra.mxu0 0
      %1002 = vmatprep.subr.bf16.mxu0 0
      %1003 = vmatpush2.bf16.msra.mxu0 0
      %1004 = vmatprep.subr.bf16.mxu0 0
      %1005 = vmatpush2.bf16.msra.mxu0 0
      %1006 = vmatprep.subr.bf16.mxu0 0
      %1007 = vmatpush2.bf16.msra.mxu0 0
      %1008 = vmatprep.subr.bf16.mxu0 0
      %1009 = vmatpush2.bf16.msra.mxu0 0
      %1010 = vmatprep.subr.bf16.mxu0 0
      %1011 = vmatpush2.bf16.msra.mxu0 0
      %1012 = vmatprep.subr.bf16.mxu0 0
      %1013 = vmatpush2.bf16.msra.mxu0 0
      %1014 = vmatprep.mubr.bf16.mxu0 0
      %1015 = vmatmul.mubr.bf16.gmra.mxu0 %v980
      %v1016 = vpop.f32.mrf.mxu0
      %v1017 = vadd.f32 0.0, %v1016
      %v1018 = vpop.f32.mrf.mxu0
      %v1019 = vpop.f32.mrf.mxu0
      %v1020 = vpop.f32.mrf.mxu0
      %1021 = vdwg.mxu0
      %v1023 = vsel %vm342, %v885, 0
      %1025 = vmatprep.subr.bf16.mxu0 0
      %1026 = vmatpush1.bf16.msra.mxu0 0
      %1027 = vmatprep.subr.bf16.mxu0 0
      %1028 = vmatpush1.bf16.msra.mxu0 0
      %1029 = vmatprep.subr.bf16.mxu0 0
      %1030 = vmatpush1.bf16.msra.mxu0 0
      %1031 = vmatprep.subr.bf16.mxu0 0
      %1032 = vmatpush1.bf16.msra.mxu0 0
      %1033 = vmatprep.subr.bf16.mxu0 0
      %1034 = vmatpush1.bf16.msra.mxu0 0
      %1035 = vmatprep.subr.bf16.mxu0 0
      %1036 = vmatpush1.bf16.msra.mxu0 0
      %1037 = vmatprep.subr.bf16.mxu0 0
      %1038 = vmatpush1.bf16.msra.mxu0 %v892
      %1039 = vmatprep.subr.bf16.mxu0 0
      %1040 = vmatpush1.bf16.msra.mxu0 %v891
      %1041 = vmatprep.subr.bf16.mxu0 0
      %1042 = vmatpush2.bf16.msra.mxu0 0
      %1043 = vmatprep.subr.bf16.mxu0 0
      %1044 = vmatpush2.bf16.msra.mxu0 0
      %1045 = vmatprep.subr.bf16.mxu0 0
      %1046 = vmatpush2.bf16.msra.mxu0 0
      %1047 = vmatprep.subr.bf16.mxu0 0
      %1048 = vmatpush2.bf16.msra.mxu0 0
      %1049 = vmatprep.subr.bf16.mxu0 0
      %1050 = vmatpush2.bf16.msra.mxu0 0
      %1051 = vmatprep.subr.bf16.mxu0 0
      %1052 = vmatpush2.bf16.msra.mxu0 0
      %1053 = vmatprep.subr.bf16.mxu0 0
      %1054 = vmatpush2.bf16.msra.mxu0 0
      %1055 = vmatprep.subr.bf16.mxu0 0
      %1056 = vmatpush2.bf16.msra.mxu0 0
      %1057 = vmatprep.mubr.bf16.mxu0 0
      %1058 = vmatmul.mubr.bf16.gmra.mxu0 %v1023
      %v1059 = vpop.f32.mrf.mxu0
      %v1060 = vadd.f32 0.0, %v1059
      %v1061 = vpop.f32.mrf.mxu0
      %v1062 = vpop.f32.mrf.mxu0
      %v1063 = vpop.f32.mrf.mxu0
      %1064 = vdwg.mxu0
      %v1065 = vadd.f32 %v874, %v931
      %v1066 = vadd.f32 %v875, %v974
      %v1067 = vadd.f32 %v876, %v1017
      %v1068 = vadd.f32 %v877, %v1060
      %v1069 = vld [vmem:[%s306] sm:$0xf]
      %v1070 = vld [vmem:[%s306 + $0x8] sm:$0xf]
      %v1071 = vld [vmem:[%s306 + $0x10] sm:$0xf]
      %v1072 = vld [vmem:[%s306 + $0x18] sm:$0xf]
      %v1073 = vpack.c.bf16 %v1069, %v1069
      %v1074 = vpack.c.bf16 %v1070, %v1070
      %v1075 = vpack.c.bf16 %v1071, %v1071
      %v1076 = vpack.c.bf16 %v1072, %v1072
      %s1077 = scalar_lea.vmem %s4, 128
      %v1078 = vld [vmem:[%s1077] sm:$0xff]
      %v1079 = vld [vmem:[%s1077 + $0x8] sm:$0xff]
      %v1080 = vld [vmem:[%s1077 + $0x10] sm:$0xff]
      %v1081 = vld [vmem:[%s1077 + $0x18] sm:$0xff]
      %v1082 = vpack.c.bf16 %v1079, %v1078
      %v1083 = vpack.c.bf16 %v1081, %v1080
      %v1085 = vsel %vm342, %v1073, 0
      %1087 = vmatprep.subr.bf16.mxu0 0
      %1088 = vmatpush1.bf16.msra.mxu0 0
      %1089 = vmatprep.subr.bf16.mxu0 0
      %1090 = vmatpush1.bf16.msra.mxu0 0
      %1091 = vmatprep.subr.bf16.mxu0 0
      %1092 = vmatpush1.bf16.msra.mxu0 0
      %1093 = vmatprep.subr.bf16.mxu0 0
      %1094 = vmatpush1.bf16.msra.mxu0 0
      %1095 = vmatprep.subr.bf16.mxu0 0
      %1096 = vmatpush1.bf16.msra.mxu0 0
      %1097 = vmatprep.subr.bf16.mxu0 0
      %1098 = vmatpush1.bf16.msra.mxu0 0
      %1099 = vmatprep.subr.bf16.mxu0 0
      %1100 = vmatpush1.bf16.msra.mxu0 %v1083
      %1101 = vmatprep.subr.bf16.mxu0 0
      %1102 = vmatpush1.bf16.msra.mxu0 %v1082
      %1103 = vmatprep.subr.bf16.mxu0 0
      %1104 = vmatpush2.bf16.msra.mxu0 0
      %1105 = vmatprep.subr.bf16.mxu0 0
      %1106 = vmatpush2.bf16.msra.mxu0 0
      %1107 = vmatprep.subr.bf16.mxu0 0
      %1108 = vmatpush2.bf16.msra.mxu0 0
      %1109 = vmatprep.subr.bf16.mxu0 0
      %1110 = vmatpush2.bf16.msra.mxu0 0
      %1111 = vmatprep.subr.bf16.mxu0 0
      %1112 = vmatpush2.bf16.msra.mxu0 0
      %1113 = vmatprep.subr.bf16.mxu0 0
      %1114 = vmatpush2.bf16.msra.mxu0 0
      %1115 = vmatprep.subr.bf16.mxu0 0
      %1116 = vmatpush2.bf16.msra.mxu0 0
      %1117 = vmatprep.subr.bf16.mxu0 0
      %1118 = vmatpush2.bf16.msra.mxu0 0
      %1119 = vmatprep.mubr.bf16.mxu0 0
      %1120 = vmatmul.mubr.bf16.gmra.mxu0 %v1085
      %v1121 = vpop.f32.mrf.mxu0
      %v1122 = vadd.f32 0.0, %v1121
      %v1123 = vpop.f32.mrf.mxu0
      %v1124 = vpop.f32.mrf.mxu0
      %v1125 = vpop.f32.mrf.mxu0
      %1126 = vdwg.mxu0
      %v1128 = vsel %vm342, %v1074, 0
      %1130 = vmatprep.subr.bf16.mxu0 0
      %1131 = vmatpush1.bf16.msra.mxu0 0
      %1132 = vmatprep.subr.bf16.mxu0 0
      %1133 = vmatpush1.bf16.msra.mxu0 0
      %1134 = vmatprep.subr.bf16.mxu0 0
      %1135 = vmatpush1.bf16.msra.mxu0 0
      %1136 = vmatprep.subr.bf16.mxu0 0
      %1137 = vmatpush1.bf16.msra.mxu0 0
      %1138 = vmatprep.subr.bf16.mxu0 0
      %1139 = vmatpush1.bf16.msra.mxu0 0
      %1140 = vmatprep.subr.bf16.mxu0 0
      %1141 = vmatpush1.bf16.msra.mxu0 0
      %1142 = vmatprep.subr.bf16.mxu0 0
      %1143 = vmatpush1.bf16.msra.mxu0 %v1083
      %1144 = vmatprep.subr.bf16.mxu0 0
      %1145 = vmatpush1.bf16.msra.mxu0 %v1082
      %1146 = vmatprep.subr.bf16.mxu0 0
      %1147 = vmatpush2.bf16.msra.mxu0 0
      %1148 = vmatprep.subr.bf16.mxu0 0
      %1149 = vmatpush2.bf16.msra.mxu0 0
      %1150 = vmatprep.subr.bf16.mxu0 0
      %1151 = vmatpush2.bf16.msra.mxu0 0
      %1152 = vmatprep.subr.bf16.mxu0 0
      %1153 = vmatpush2.bf16.msra.mxu0 0
      %1154 = vmatprep.subr.bf16.mxu0 0
      %1155 = vmatpush2.bf16.msra.mxu0 0
      %1156 = vmatprep.subr.bf16.mxu0 0
      %1157 = vmatpush2.bf16.msra.mxu0 0
      %1158 = vmatprep.subr.bf16.mxu0 0
      %1159 = vmatpush2.bf16.msra.mxu0 0
      %1160 = vmatprep.subr.bf16.mxu0 0
      %1161 = vmatpush2.bf16.msra.mxu0 0
      %1162 = vmatprep.mubr.bf16.mxu0 0
      %1163 = vmatmul.mubr.bf16.gmra.mxu0 %v1128
      %v1164 = vpop.f32.mrf.mxu0
      %v1165 = vadd.f32 0.0, %v1164
      %v1166 = vpop.f32.mrf.mxu0
      %v1167 = vpop.f32.mrf.mxu0
      %v1168 = vpop.f32.mrf.mxu0
      %1169 = vdwg.mxu0
      %v1171 = vsel %vm342, %v1075, 0
      %1173 = vmatprep.subr.bf16.mxu0 0
      %1174 = vmatpush1.bf16.msra.mxu0 0
      %1175 = vmatprep.subr.bf16.mxu0 0
      %1176 = vmatpush1.bf16.msra.mxu0 0
      %1177 = vmatprep.subr.bf16.mxu0 0
      %1178 = vmatpush1.bf16.msra.mxu0 0
      %1179 = vmatprep.subr.bf16.mxu0 0
      %1180 = vmatpush1.bf16.msra.mxu0 0
      %1181 = vmatprep.subr.bf16.mxu0 0
      %1182 = vmatpush1.bf16.msra.mxu0 0
      %1183 = vmatprep.subr.bf16.mxu0 0
      %1184 = vmatpush1.bf16.msra.mxu0 0
      %1185 = vmatprep.subr.bf16.mxu0 0
      %1186 = vmatpush1.bf16.msra.mxu0 %v1083
      %1187 = vmatprep.subr.bf16.mxu0 0
      %1188 = vmatpush1.bf16.msra.mxu0 %v1082
      %1189 = vmatprep.subr.bf16.mxu0 0
      %1190 = vmatpush2.bf16.msra.mxu0 0
      %1191 = vmatprep.subr.bf16.mxu0 0
      %1192 = vmatpush2.bf16.msra.mxu0 0
      %1193 = vmatprep.subr.bf16.mxu0 0
      %1194 = vmatpush2.bf16.msra.mxu0 0
      %1195 = vmatprep.subr.bf16.mxu0 0
      %1196 = vmatpush2.bf16.msra.mxu0 0
      %1197 = vmatprep.subr.bf16.mxu0 0
      %1198 = vmatpush2.bf16.msra.mxu0 0
      %1199 = vmatprep.subr.bf16.mxu0 0
      %1200 = vmatpush2.bf16.msra.mxu0 0
      %1201 = vmatprep.subr.bf16.mxu0 0
      %1202 = vmatpush2.bf16.msra.mxu0 0
      %1203 = vmatprep.subr.bf16.mxu0 0
      %1204 = vmatpush2.bf16.msra.mxu0 0
      %1205 = vmatprep.mubr.bf16.mxu0 0
      %1206 = vmatmul.mubr.bf16.gmra.mxu0 %v1171
      %v1207 = vpop.f32.mrf.mxu0
      %v1208 = vadd.f32 0.0, %v1207
      %v1209 = vpop.f32.mrf.mxu0
      %v1210 = vpop.f32.mrf.mxu0
      %v1211 = vpop.f32.mrf.mxu0
      %1212 = vdwg.mxu0
      %v1214 = vsel %vm342, %v1076, 0
      %1216 = vmatprep.subr.bf16.mxu0 0
      %1217 = vmatpush1.bf16.msra.mxu0 0
      %1218 = vmatprep.subr.bf16.mxu0 0
      %1219 = vmatpush1.bf16.msra.mxu0 0
      %1220 = vmatprep.subr.bf16.mxu0 0
      %1221 = vmatpush1.bf16.msra.mxu0 0
      %1222 = vmatprep.subr.bf16.mxu0 0
      %1223 = vmatpush1.bf16.msra.mxu0 0
      %1224 = vmatprep.subr.bf16.mxu0 0
      %1225 = vmatpush1.bf16.msra.mxu0 0
      %1226 = vmatprep.subr.bf16.mxu0 0
      %1227 = vmatpush1.bf16.msra.mxu0 0
      %1228 = vmatprep.subr.bf16.mxu0 0
      %1229 = vmatpush1.bf16.msra.mxu0 %v1083
      %1230 = vmatprep.subr.bf16.mxu0 0
      %1231 = vmatpush1.bf16.msra.mxu0 %v1082
      %1232 = vmatprep.subr.bf16.mxu0 0
      %1233 = vmatpush2.bf16.msra.mxu0 0
      %1234 = vmatprep.subr.bf16.mxu0 0
      %1235 = vmatpush2.bf16.msra.mxu0 0
      %1236 = vmatprep.subr.bf16.mxu0 0
      %1237 = vmatpush2.bf16.msra.mxu0 0
      %1238 = vmatprep.subr.bf16.mxu0 0
      %1239 = vmatpush2.bf16.msra.mxu0 0
      %1240 = vmatprep.subr.bf16.mxu0 0
      %1241 = vmatpush2.bf16.msra.mxu0 0
      %1242 = vmatprep.subr.bf16.mxu0 0
      %1243 = vmatpush2.bf16.msra.mxu0 0
      %1244 = vmatprep.subr.bf16.mxu0 0
      %1245 = vmatpush2.bf16.msra.mxu0 0
      %1246 = vmatprep.subr.bf16.mxu0 0
      %1247 = vmatpush2.bf16.msra.mxu0 0
      %1248 = vmatprep.mubr.bf16.mxu0 0
      %1249 = vmatmul.mubr.bf16.gmra.mxu0 %v1214
      %v1250 = vpop.f32.mrf.mxu0
      %v1251 = vadd.f32 0.0, %v1250
      %v1252 = vpop.f32.mrf.mxu0
      %v1253 = vpop.f32.mrf.mxu0
      %v1254 = vpop.f32.mrf.mxu0
      %1255 = vdwg.mxu0
      %v1256 = vadd.f32 %v1065, %v1122
      %v1257 = vadd.f32 %v1066, %v1165
      %v1258 = vadd.f32 %v1067, %v1208
      %v1259 = vadd.f32 %v1068, %v1251
      %v1260 = vld [vmem:[%s301 + $0x1] sm:$0xf]
      %v1261 = vld [vmem:[%s301 + $0x9] sm:$0xf]
      %v1262 = vld [vmem:[%s301 + $0x11] sm:$0xf]
      %v1263 = vld [vmem:[%s301 + $0x19] sm:$0xf]
      %v1264 = vpack.c.bf16 %v1260, %v1260
      %v1265 = vpack.c.bf16 %v1261, %v1261
      %v1266 = vpack.c.bf16 %v1262, %v1262
      %v1267 = vpack.c.bf16 %v1263, %v1263
      %s1268 = scalar_lea.vmem %s4, 160
      %v1269 = vld [vmem:[%s1268] sm:$0xff]
      %v1270 = vld [vmem:[%s1268 + $0x8] sm:$0xff]
      %v1271 = vld [vmem:[%s1268 + $0x10] sm:$0xff]
      %v1272 = vld [vmem:[%s1268 + $0x18] sm:$0xff]
      %v1273 = vpack.c.bf16 %v1270, %v1269
      %v1274 = vpack.c.bf16 %v1272, %v1271
      %v1276 = vsel %vm342, %v1264, 0
      %1278 = vmatprep.subr.bf16.mxu0 0
      %1279 = vmatpush1.bf16.msra.mxu0 0
      %1280 = vmatprep.subr.bf16.mxu0 0
      %1281 = vmatpush1.bf16.msra.mxu0 0
      %1282 = vmatprep.subr.bf16.mxu0 0
      %1283 = vmatpush1.bf16.msra.mxu0 0
      %1284 = vmatprep.subr.bf16.mxu0 0
      %1285 = vmatpush1.bf16.msra.mxu0 0
      %1286 = vmatprep.subr.bf16.mxu0 0
      %1287 = vmatpush1.bf16.msra.mxu0 0
      %1288 = vmatprep.subr.bf16.mxu0 0
      %1289 = vmatpush1.bf16.msra.mxu0 0
      %1290 = vmatprep.subr.bf16.mxu0 0
      %1291 = vmatpush1.bf16.msra.mxu0 %v1274
      %1292 = vmatprep.subr.bf16.mxu0 0
      %1293 = vmatpush1.bf16.msra.mxu0 %v1273
      %1294 = vmatprep.subr.bf16.mxu0 0
      %1295 = vmatpush2.bf16.msra.mxu0 0
      %1296 = vmatprep.subr.bf16.mxu0 0
      %1297 = vmatpush2.bf16.msra.mxu0 0
      %1298 = vmatprep.subr.bf16.mxu0 0
      %1299 = vmatpush2.bf16.msra.mxu0 0
      %1300 = vmatprep.subr.bf16.mxu0 0
      %1301 = vmatpush2.bf16.msra.mxu0 0
      %1302 = vmatprep.subr.bf16.mxu0 0
      %1303 = vmatpush2.bf16.msra.mxu0 0
      %1304 = vmatprep.subr.bf16.mxu0 0
      %1305 = vmatpush2.bf16.msra.mxu0 0
      %1306 = vmatprep.subr.bf16.mxu0 0
      %1307 = vmatpush2.bf16.msra.mxu0 0
      %1308 = vmatprep.subr.bf16.mxu0 0
      %1309 = vmatpush2.bf16.msra.mxu0 0
      %1310 = vmatprep.mubr.bf16.mxu0 0
      %1311 = vmatmul.mubr.bf16.gmra.mxu0 %v1276
      %v1312 = vpop.f32.mrf.mxu0
      %v1313 = vadd.f32 0.0, %v1312
      %v1314 = vpop.f32.mrf.mxu0
      %v1315 = vpop.f32.mrf.mxu0
      %v1316 = vpop.f32.mrf.mxu0
      %1317 = vdwg.mxu0
      %v1319 = vsel %vm342, %v1265, 0
      %1321 = vmatprep.subr.bf16.mxu0 0
      %1322 = vmatpush1.bf16.msra.mxu0 0
      %1323 = vmatprep.subr.bf16.mxu0 0
      %1324 = vmatpush1.bf16.msra.mxu0 0
      %1325 = vmatprep.subr.bf16.mxu0 0
      %1326 = vmatpush1.bf16.msra.mxu0 0
      %1327 = vmatprep.subr.bf16.mxu0 0
      %1328 = vmatpush1.bf16.msra.mxu0 0
      %1329 = vmatprep.subr.bf16.mxu0 0
      %1330 = vmatpush1.bf16.msra.mxu0 0
      %1331 = vmatprep.subr.bf16.mxu0 0
      %1332 = vmatpush1.bf16.msra.mxu0 0
      %1333 = vmatprep.subr.bf16.mxu0 0
      %1334 = vmatpush1.bf16.msra.mxu0 %v1274
      %1335 = vmatprep.subr.bf16.mxu0 0
      %1336 = vmatpush1.bf16.msra.mxu0 %v1273
      %1337 = vmatprep.subr.bf16.mxu0 0
      %1338 = vmatpush2.bf16.msra.mxu0 0
      %1339 = vmatprep.subr.bf16.mxu0 0
      %1340 = vmatpush2.bf16.msra.mxu0 0
      %1341 = vmatprep.subr.bf16.mxu0 0
      %1342 = vmatpush2.bf16.msra.mxu0 0
      %1343 = vmatprep.subr.bf16.mxu0 0
      %1344 = vmatpush2.bf16.msra.mxu0 0
      %1345 = vmatprep.subr.bf16.mxu0 0
      %1346 = vmatpush2.bf16.msra.mxu0 0
      %1347 = vmatprep.subr.bf16.mxu0 0
      %1348 = vmatpush2.bf16.msra.mxu0 0
      %1349 = vmatprep.subr.bf16.mxu0 0
      %1350 = vmatpush2.bf16.msra.mxu0 0
      %1351 = vmatprep.subr.bf16.mxu0 0
      %1352 = vmatpush2.bf16.msra.mxu0 0
      %1353 = vmatprep.mubr.bf16.mxu0 0
      %1354 = vmatmul.mubr.bf16.gmra.mxu0 %v1319
      %v1355 = vpop.f32.mrf.mxu0
      %v1356 = vadd.f32 0.0, %v1355
      %v1357 = vpop.f32.mrf.mxu0
      %v1358 = vpop.f32.mrf.mxu0
      %v1359 = vpop.f32.mrf.mxu0
      %1360 = vdwg.mxu0
      %v1362 = vsel %vm342, %v1266, 0
      %1364 = vmatprep.subr.bf16.mxu0 0
      %1365 = vmatpush1.bf16.msra.mxu0 0
      %1366 = vmatprep.subr.bf16.mxu0 0
      %1367 = vmatpush1.bf16.msra.mxu0 0
      %1368 = vmatprep.subr.bf16.mxu0 0
      %1369 = vmatpush1.bf16.msra.mxu0 0
      %1370 = vmatprep.subr.bf16.mxu0 0
      %1371 = vmatpush1.bf16.msra.mxu0 0
      %1372 = vmatprep.subr.bf16.mxu0 0
      %1373 = vmatpush1.bf16.msra.mxu0 0
      %1374 = vmatprep.subr.bf16.mxu0 0
      %1375 = vmatpush1.bf16.msra.mxu0 0
      %1376 = vmatprep.subr.bf16.mxu0 0
      %1377 = vmatpush1.bf16.msra.mxu0 %v1274
      %1378 = vmatprep.subr.bf16.mxu0 0
      %1379 = vmatpush1.bf16.msra.mxu0 %v1273
      %1380 = vmatprep.subr.bf16.mxu0 0
      %1381 = vmatpush2.bf16.msra.mxu0 0
      %1382 = vmatprep.subr.bf16.mxu0 0
      %1383 = vmatpush2.bf16.msra.mxu0 0
      %1384 = vmatprep.subr.bf16.mxu0 0
      %1385 = vmatpush2.bf16.msra.mxu0 0
      %1386 = vmatprep.subr.bf16.mxu0 0
      %1387 = vmatpush2.bf16.msra.mxu0 0
      %1388 = vmatprep.subr.bf16.mxu0 0
      %1389 = vmatpush2.bf16.msra.mxu0 0
      %1390 = vmatprep.subr.bf16.mxu0 0
      %1391 = vmatpush2.bf16.msra.mxu0 0
      %1392 = vmatprep.subr.bf16.mxu0 0
      %1393 = vmatpush2.bf16.msra.mxu0 0
      %1394 = vmatprep.subr.bf16.mxu0 0
      %1395 = vmatpush2.bf16.msra.mxu0 0
      %1396 = vmatprep.mubr.bf16.mxu0 0
      %1397 = vmatmul.mubr.bf16.gmra.mxu0 %v1362
      %v1398 = vpop.f32.mrf.mxu0
      %v1399 = vadd.f32 0.0, %v1398
      %v1400 = vpop.f32.mrf.mxu0
      %v1401 = vpop.f32.mrf.mxu0
      %v1402 = vpop.f32.mrf.mxu0
      %1403 = vdwg.mxu0
      %v1405 = vsel %vm342, %v1267, 0
      %1407 = vmatprep.subr.bf16.mxu0 0
      %1408 = vmatpush1.bf16.msra.mxu0 0
      %1409 = vmatprep.subr.bf16.mxu0 0
      %1410 = vmatpush1.bf16.msra.mxu0 0
      %1411 = vmatprep.subr.bf16.mxu0 0
      %1412 = vmatpush1.bf16.msra.mxu0 0
      %1413 = vmatprep.subr.bf16.mxu0 0
      %1414 = vmatpush1.bf16.msra.mxu0 0
      %1415 = vmatprep.subr.bf16.mxu0 0
      %1416 = vmatpush1.bf16.msra.mxu0 0
      %1417 = vmatprep.subr.bf16.mxu0 0
      %1418 = vmatpush1.bf16.msra.mxu0 0
      %1419 = vmatprep.subr.bf16.mxu0 0
      %1420 = vmatpush1.bf16.msra.mxu0 %v1274
      %1421 = vmatprep.subr.bf16.mxu0 0
      %1422 = vmatpush1.bf16.msra.mxu0 %v1273
      %1423 = vmatprep.subr.bf16.mxu0 0
      %1424 = vmatpush2.bf16.msra.mxu0 0
      %1425 = vmatprep.subr.bf16.mxu0 0
      %1426 = vmatpush2.bf16.msra.mxu0 0
      %1427 = vmatprep.subr.bf16.mxu0 0
      %1428 = vmatpush2.bf16.msra.mxu0 0
      %1429 = vmatprep.subr.bf16.mxu0 0
      %1430 = vmatpush2.bf16.msra.mxu0 0
      %1431 = vmatprep.subr.bf16.mxu0 0
      %1432 = vmatpush2.bf16.msra.mxu0 0
      %1433 = vmatprep.subr.bf16.mxu0 0
      %1434 = vmatpush2.bf16.msra.mxu0 0
      %1435 = vmatprep.subr.bf16.mxu0 0
      %1436 = vmatpush2.bf16.msra.mxu0 0
      %1437 = vmatprep.subr.bf16.mxu0 0
      %1438 = vmatpush2.bf16.msra.mxu0 0
      %1439 = vmatprep.mubr.bf16.mxu0 0
      %1440 = vmatmul.mubr.bf16.gmra.mxu0 %v1405
      %v1441 = vpop.f32.mrf.mxu0
      %v1442 = vadd.f32 0.0, %v1441
      %v1443 = vpop.f32.mrf.mxu0
      %v1444 = vpop.f32.mrf.mxu0
      %v1445 = vpop.f32.mrf.mxu0
      %1446 = vdwg.mxu0
      %v1447 = vadd.f32 %v1256, %v1313
      %v1448 = vadd.f32 %v1257, %v1356
      %v1449 = vadd.f32 %v1258, %v1399
      %v1450 = vadd.f32 %v1259, %v1442
      %s1451 = scalar_lea.vmem %s291, 8
      %v1452 = vld [vmem:[%s1451] sm:$0xf]
      %v1453 = vld [vmem:[%s1451 + $0x8] sm:$0xf]
      %v1454 = vld [vmem:[%s1451 + $0x10] sm:$0xf]
      %v1455 = vld [vmem:[%s1451 + $0x18] sm:$0xf]
      %v1456 = vpack.c.bf16 %v1452, %v1452
      %v1457 = vpack.c.bf16 %v1453, %v1453
      %v1458 = vpack.c.bf16 %v1454, %v1454
      %v1459 = vpack.c.bf16 %v1455, %v1455
      %s1460 = scalar_lea.vmem %s4, 192
      %v1461 = vld [vmem:[%s1460] sm:$0xff]
      %v1462 = vld [vmem:[%s1460 + $0x8] sm:$0xff]
      %v1463 = vld [vmem:[%s1460 + $0x10] sm:$0xff]
      %v1464 = vld [vmem:[%s1460 + $0x18] sm:$0xff]
      %v1465 = vpack.c.bf16 %v1462, %v1461
      %v1466 = vpack.c.bf16 %v1464, %v1463
      %v1468 = vsel %vm342, %v1456, 0
      %1470 = vmatprep.subr.bf16.mxu0 0
      %1471 = vmatpush1.bf16.msra.mxu0 0
      %1472 = vmatprep.subr.bf16.mxu0 0
      %1473 = vmatpush1.bf16.msra.mxu0 0
      %1474 = vmatprep.subr.bf16.mxu0 0
      %1475 = vmatpush1.bf16.msra.mxu0 0
      %1476 = vmatprep.subr.bf16.mxu0 0
      %1477 = vmatpush1.bf16.msra.mxu0 0
      %1478 = vmatprep.subr.bf16.mxu0 0
      %1479 = vmatpush1.bf16.msra.mxu0 0
      %1480 = vmatprep.subr.bf16.mxu0 0
      %1481 = vmatpush1.bf16.msra.mxu0 0
      %1482 = vmatprep.subr.bf16.mxu0 0
      %1483 = vmatpush1.bf16.msra.mxu0 %v1466
      %1484 = vmatprep.subr.bf16.mxu0 0
      %1485 = vmatpush1.bf16.msra.mxu0 %v1465
      %1486 = vmatprep.subr.bf16.mxu0 0
      %1487 = vmatpush2.bf16.msra.mxu0 0
      %1488 = vmatprep.subr.bf16.mxu0 0
      %1489 = vmatpush2.bf16.msra.mxu0 0
      %1490 = vmatprep.subr.bf16.mxu0 0
      %1491 = vmatpush2.bf16.msra.mxu0 0
      %1492 = vmatprep.subr.bf16.mxu0 0
      %1493 = vmatpush2.bf16.msra.mxu0 0
      %1494 = vmatprep.subr.bf16.mxu0 0
      %1495 = vmatpush2.bf16.msra.mxu0 0
      %1496 = vmatprep.subr.bf16.mxu0 0
      %1497 = vmatpush2.bf16.msra.mxu0 0
      %1498 = vmatprep.subr.bf16.mxu0 0
      %1499 = vmatpush2.bf16.msra.mxu0 0
      %1500 = vmatprep.subr.bf16.mxu0 0
      %1501 = vmatpush2.bf16.msra.mxu0 0
      %1502 = vmatprep.mubr.bf16.mxu0 0
      %1503 = vmatmul.mubr.bf16.gmra.mxu0 %v1468
      %v1504 = vpop.f32.mrf.mxu0
      %v1505 = vadd.f32 0.0, %v1504
      %v1506 = vpop.f32.mrf.mxu0
      %v1507 = vpop.f32.mrf.mxu0
      %v1508 = vpop.f32.mrf.mxu0
      %1509 = vdwg.mxu0
      %v1511 = vsel %vm342, %v1457, 0
      %1513 = vmatprep.subr.bf16.mxu0 0
      %1514 = vmatpush1.bf16.msra.mxu0 0
      %1515 = vmatprep.subr.bf16.mxu0 0
      %1516 = vmatpush1.bf16.msra.mxu0 0
      %1517 = vmatprep.subr.bf16.mxu0 0
      %1518 = vmatpush1.bf16.msra.mxu0 0
      %1519 = vmatprep.subr.bf16.mxu0 0
      %1520 = vmatpush1.bf16.msra.mxu0 0
      %1521 = vmatprep.subr.bf16.mxu0 0
      %1522 = vmatpush1.bf16.msra.mxu0 0
      %1523 = vmatprep.subr.bf16.mxu0 0
      %1524 = vmatpush1.bf16.msra.mxu0 0
      %1525 = vmatprep.subr.bf16.mxu0 0
      %1526 = vmatpush1.bf16.msra.mxu0 %v1466
      %1527 = vmatprep.subr.bf16.mxu0 0
      %1528 = vmatpush1.bf16.msra.mxu0 %v1465
      %1529 = vmatprep.subr.bf16.mxu0 0
      %1530 = vmatpush2.bf16.msra.mxu0 0
      %1531 = vmatprep.subr.bf16.mxu0 0
      %1532 = vmatpush2.bf16.msra.mxu0 0
      %1533 = vmatprep.subr.bf16.mxu0 0
      %1534 = vmatpush2.bf16.msra.mxu0 0
      %1535 = vmatprep.subr.bf16.mxu0 0
      %1536 = vmatpush2.bf16.msra.mxu0 0
      %1537 = vmatprep.subr.bf16.mxu0 0
      %1538 = vmatpush2.bf16.msra.mxu0 0
      %1539 = vmatprep.subr.bf16.mxu0 0
      %1540 = vmatpush2.bf16.msra.mxu0 0
      %1541 = vmatprep.subr.bf16.mxu0 0
      %1542 = vmatpush2.bf16.msra.mxu0 0
      %1543 = vmatprep.subr.bf16.mxu0 0
      %1544 = vmatpush2.bf16.msra.mxu0 0
      %1545 = vmatprep.mubr.bf16.mxu0 0
      %1546 = vmatmul.mubr.bf16.gmra.mxu0 %v1511
      %v1547 = vpop.f32.mrf.mxu0
      %v1548 = vadd.f32 0.0, %v1547
      %v1549 = vpop.f32.mrf.mxu0
      %v1550 = vpop.f32.mrf.mxu0
      %v1551 = vpop.f32.mrf.mxu0
      %1552 = vdwg.mxu0
      %v1554 = vsel %vm342, %v1458, 0
      %1556 = vmatprep.subr.bf16.mxu0 0
      %1557 = vmatpush1.bf16.msra.mxu0 0
      %1558 = vmatprep.subr.bf16.mxu0 0
      %1559 = vmatpush1.bf16.msra.mxu0 0
      %1560 = vmatprep.subr.bf16.mxu0 0
      %1561 = vmatpush1.bf16.msra.mxu0 0
      %1562 = vmatprep.subr.bf16.mxu0 0
      %1563 = vmatpush1.bf16.msra.mxu0 0
      %1564 = vmatprep.subr.bf16.mxu0 0
      %1565 = vmatpush1.bf16.msra.mxu0 0
      %1566 = vmatprep.subr.bf16.mxu0 0
      %1567 = vmatpush1.bf16.msra.mxu0 0
      %1568 = vmatprep.subr.bf16.mxu0 0
      %1569 = vmatpush1.bf16.msra.mxu0 %v1466
      %1570 = vmatprep.subr.bf16.mxu0 0
      %1571 = vmatpush1.bf16.msra.mxu0 %v1465
      %1572 = vmatprep.subr.bf16.mxu0 0
      %1573 = vmatpush2.bf16.msra.mxu0 0
      %1574 = vmatprep.subr.bf16.mxu0 0
      %1575 = vmatpush2.bf16.msra.mxu0 0
      %1576 = vmatprep.subr.bf16.mxu0 0
      %1577 = vmatpush2.bf16.msra.mxu0 0
      %1578 = vmatprep.subr.bf16.mxu0 0
      %1579 = vmatpush2.bf16.msra.mxu0 0
      %1580 = vmatprep.subr.bf16.mxu0 0
      %1581 = vmatpush2.bf16.msra.mxu0 0
      %1582 = vmatprep.subr.bf16.mxu0 0
      %1583 = vmatpush2.bf16.msra.mxu0 0
      %1584 = vmatprep.subr.bf16.mxu0 0
      %1585 = vmatpush2.bf16.msra.mxu0 0
      %1586 = vmatprep.subr.bf16.mxu0 0
      %1587 = vmatpush2.bf16.msra.mxu0 0
      %1588 = vmatprep.mubr.bf16.mxu0 0
      %1589 = vmatmul.mubr.bf16.gmra.mxu0 %v1554
      %v1590 = vpop.f32.mrf.mxu0
      %v1591 = vadd.f32 0.0, %v1590
      %v1592 = vpop.f32.mrf.mxu0
      %v1593 = vpop.f32.mrf.mxu0
      %v1594 = vpop.f32.mrf.mxu0
      %1595 = vdwg.mxu0
      %v1597 = vsel %vm342, %v1459, 0
      %1599 = vmatprep.subr.bf16.mxu0 0
      %1600 = vmatpush1.bf16.msra.mxu0 0
      %1601 = vmatprep.subr.bf16.mxu0 0
      %1602 = vmatpush1.bf16.msra.mxu0 0
      %1603 = vmatprep.subr.bf16.mxu0 0
      %1604 = vmatpush1.bf16.msra.mxu0 0
      %1605 = vmatprep.subr.bf16.mxu0 0
      %1606 = vmatpush1.bf16.msra.mxu0 0
      %1607 = vmatprep.subr.bf16.mxu0 0
      %1608 = vmatpush1.bf16.msra.mxu0 0
      %1609 = vmatprep.subr.bf16.mxu0 0
      %1610 = vmatpush1.bf16.msra.mxu0 0
      %1611 = vmatprep.subr.bf16.mxu0 0
      %1612 = vmatpush1.bf16.msra.mxu0 %v1466
      %1613 = vmatprep.subr.bf16.mxu0 0
      %1614 = vmatpush1.bf16.msra.mxu0 %v1465
      %1615 = vmatprep.subr.bf16.mxu0 0
      %1616 = vmatpush2.bf16.msra.mxu0 0
      %1617 = vmatprep.subr.bf16.mxu0 0
      %1618 = vmatpush2.bf16.msra.mxu0 0
      %1619 = vmatprep.subr.bf16.mxu0 0
      %1620 = vmatpush2.bf16.msra.mxu0 0
      %1621 = vmatprep.subr.bf16.mxu0 0
      %1622 = vmatpush2.bf16.msra.mxu0 0
      %1623 = vmatprep.subr.bf16.mxu0 0
      %1624 = vmatpush2.bf16.msra.mxu0 0
      %1625 = vmatprep.subr.bf16.mxu0 0
      %1626 = vmatpush2.bf16.msra.mxu0 0
      %1627 = vmatprep.subr.bf16.mxu0 0
      %1628 = vmatpush2.bf16.msra.mxu0 0
      %1629 = vmatprep.subr.bf16.mxu0 0
      %1630 = vmatpush2.bf16.msra.mxu0 0
      %1631 = vmatprep.mubr.bf16.mxu0 0
      %1632 = vmatmul.mubr.bf16.gmra.mxu0 %v1597
      %v1633 = vpop.f32.mrf.mxu0
      %v1634 = vadd.f32 0.0, %v1633
      %v1635 = vpop.f32.mrf.mxu0
      %v1636 = vpop.f32.mrf.mxu0
      %v1637 = vpop.f32.mrf.mxu0
      %1638 = vdwg.mxu0
      %v1639 = vadd.f32 %v1447, %v1505
      %v1640 = vadd.f32 %v1448, %v1548
      %v1641 = vadd.f32 %v1449, %v1591
      %v1642 = vadd.f32 %v1450, %v1634
      %s1643 = scalar_lea.vmem %s296, 8
      %v1644 = vld [vmem:[%s1643] sm:$0xf]
      %v1645 = vld [vmem:[%s1643 + $0x8] sm:$0xf]
      %v1646 = vld [vmem:[%s1643 + $0x10] sm:$0xf]
      %v1647 = vld [vmem:[%s1643 + $0x18] sm:$0xf]
      %v1648 = vpack.c.bf16 %v1644, %v1644
      %v1649 = vpack.c.bf16 %v1645, %v1645
      %v1650 = vpack.c.bf16 %v1646, %v1646
      %v1651 = vpack.c.bf16 %v1647, %v1647
      %s1652 = scalar_lea.vmem %s4, 224
      %v1653 = vld [vmem:[%s1652] sm:$0xff]
      %v1654 = vld [vmem:[%s1652 + $0x8] sm:$0xff]
      %v1655 = vld [vmem:[%s1652 + $0x10] sm:$0xff]
      %v1656 = vld [vmem:[%s1652 + $0x18] sm:$0xff]
      %v1657 = vpack.c.bf16 %v1654, %v1653
      %v1658 = vpack.c.bf16 %v1656, %v1655
      %v1660 = vsel %vm342, %v1648, 0
      %1662 = vmatprep.subr.bf16.mxu0 0
      %1663 = vmatpush1.bf16.msra.mxu0 0
      %1664 = vmatprep.subr.bf16.mxu0 0
      %1665 = vmatpush1.bf16.msra.mxu0 0
      %1666 = vmatprep.subr.bf16.mxu0 0
      %1667 = vmatpush1.bf16.msra.mxu0 0
      %1668 = vmatprep.subr.bf16.mxu0 0
      %1669 = vmatpush1.bf16.msra.mxu0 0
      %1670 = vmatprep.subr.bf16.mxu0 0
      %1671 = vmatpush1.bf16.msra.mxu0 0
      %1672 = vmatprep.subr.bf16.mxu0 0
      %1673 = vmatpush1.bf16.msra.mxu0 0
      %1674 = vmatprep.subr.bf16.mxu0 0
      %1675 = vmatpush1.bf16.msra.mxu0 %v1658
      %1676 = vmatprep.subr.bf16.mxu0 0
      %1677 = vmatpush1.bf16.msra.mxu0 %v1657
      %1678 = vmatprep.subr.bf16.mxu0 0
      %1679 = vmatpush2.bf16.msra.mxu0 0
      %1680 = vmatprep.subr.bf16.mxu0 0
      %1681 = vmatpush2.bf16.msra.mxu0 0
      %1682 = vmatprep.subr.bf16.mxu0 0
      %1683 = vmatpush2.bf16.msra.mxu0 0
      %1684 = vmatprep.subr.bf16.mxu0 0
      %1685 = vmatpush2.bf16.msra.mxu0 0
      %1686 = vmatprep.subr.bf16.mxu0 0
      %1687 = vmatpush2.bf16.msra.mxu0 0
      %1688 = vmatprep.subr.bf16.mxu0 0
      %1689 = vmatpush2.bf16.msra.mxu0 0
      %1690 = vmatprep.subr.bf16.mxu0 0
      %1691 = vmatpush2.bf16.msra.mxu0 0
      %1692 = vmatprep.subr.bf16.mxu0 0
      %1693 = vmatpush2.bf16.msra.mxu0 0
      %1694 = vmatprep.mubr.bf16.mxu0 0
      %1695 = vmatmul.mubr.bf16.gmra.mxu0 %v1660
      %v1696 = vpop.f32.mrf.mxu0
      %v1697 = vadd.f32 0.0, %v1696
      %v1698 = vpop.f32.mrf.mxu0
      %v1699 = vpop.f32.mrf.mxu0
      %v1700 = vpop.f32.mrf.mxu0
      %1701 = vdwg.mxu0
      %v1703 = vsel %vm342, %v1649, 0
      %1705 = vmatprep.subr.bf16.mxu0 0
      %1706 = vmatpush1.bf16.msra.mxu0 0
      %1707 = vmatprep.subr.bf16.mxu0 0
      %1708 = vmatpush1.bf16.msra.mxu0 0
      %1709 = vmatprep.subr.bf16.mxu0 0
      %1710 = vmatpush1.bf16.msra.mxu0 0
      %1711 = vmatprep.subr.bf16.mxu0 0
      %1712 = vmatpush1.bf16.msra.mxu0 0
      %1713 = vmatprep.subr.bf16.mxu0 0
      %1714 = vmatpush1.bf16.msra.mxu0 0
      %1715 = vmatprep.subr.bf16.mxu0 0
      %1716 = vmatpush1.bf16.msra.mxu0 0
      %1717 = vmatprep.subr.bf16.mxu0 0
      %1718 = vmatpush1.bf16.msra.mxu0 %v1658
      %1719 = vmatprep.subr.bf16.mxu0 0
      %1720 = vmatpush1.bf16.msra.mxu0 %v1657
      %1721 = vmatprep.subr.bf16.mxu0 0
      %1722 = vmatpush2.bf16.msra.mxu0 0
      %1723 = vmatprep.subr.bf16.mxu0 0
      %1724 = vmatpush2.bf16.msra.mxu0 0
      %1725 = vmatprep.subr.bf16.mxu0 0
      %1726 = vmatpush2.bf16.msra.mxu0 0
      %1727 = vmatprep.subr.bf16.mxu0 0
      %1728 = vmatpush2.bf16.msra.mxu0 0
      %1729 = vmatprep.subr.bf16.mxu0 0
      %1730 = vmatpush2.bf16.msra.mxu0 0
      %1731 = vmatprep.subr.bf16.mxu0 0
      %1732 = vmatpush2.bf16.msra.mxu0 0
      %1733 = vmatprep.subr.bf16.mxu0 0
      %1734 = vmatpush2.bf16.msra.mxu0 0
      %1735 = vmatprep.subr.bf16.mxu0 0
      %1736 = vmatpush2.bf16.msra.mxu0 0
      %1737 = vmatprep.mubr.bf16.mxu0 0
      %1738 = vmatmul.mubr.bf16.gmra.mxu0 %v1703
      %v1739 = vpop.f32.mrf.mxu0
      %v1740 = vadd.f32 0.0, %v1739
      %v1741 = vpop.f32.mrf.mxu0
      %v1742 = vpop.f32.mrf.mxu0
      %v1743 = vpop.f32.mrf.mxu0
      %1744 = vdwg.mxu0
      %v1746 = vsel %vm342, %v1650, 0
      %1748 = vmatprep.subr.bf16.mxu0 0
      %1749 = vmatpush1.bf16.msra.mxu0 0
      %1750 = vmatprep.subr.bf16.mxu0 0
      %1751 = vmatpush1.bf16.msra.mxu0 0
      %1752 = vmatprep.subr.bf16.mxu0 0
      %1753 = vmatpush1.bf16.msra.mxu0 0
      %1754 = vmatprep.subr.bf16.mxu0 0
      %1755 = vmatpush1.bf16.msra.mxu0 0
      %1756 = vmatprep.subr.bf16.mxu0 0
      %1757 = vmatpush1.bf16.msra.mxu0 0
      %1758 = vmatprep.subr.bf16.mxu0 0
      %1759 = vmatpush1.bf16.msra.mxu0 0
      %1760 = vmatprep.subr.bf16.mxu0 0
      %1761 = vmatpush1.bf16.msra.mxu0 %v1658
      %1762 = vmatprep.subr.bf16.mxu0 0
      %1763 = vmatpush1.bf16.msra.mxu0 %v1657
      %1764 = vmatprep.subr.bf16.mxu0 0
      %1765 = vmatpush2.bf16.msra.mxu0 0
      %1766 = vmatprep.subr.bf16.mxu0 0
      %1767 = vmatpush2.bf16.msra.mxu0 0
      %1768 = vmatprep.subr.bf16.mxu0 0
      %1769 = vmatpush2.bf16.msra.mxu0 0
      %1770 = vmatprep.subr.bf16.mxu0 0
      %1771 = vmatpush2.bf16.msra.mxu0 0
      %1772 = vmatprep.subr.bf16.mxu0 0
      %1773 = vmatpush2.bf16.msra.mxu0 0
      %1774 = vmatprep.subr.bf16.mxu0 0
      %1775 = vmatpush2.bf16.msra.mxu0 0
      %1776 = vmatprep.subr.bf16.mxu0 0
      %1777 = vmatpush2.bf16.msra.mxu0 0
      %1778 = vmatprep.subr.bf16.mxu0 0
      %1779 = vmatpush2.bf16.msra.mxu0 0
      %1780 = vmatprep.mubr.bf16.mxu0 0
      %1781 = vmatmul.mubr.bf16.gmra.mxu0 %v1746
      %v1782 = vpop.f32.mrf.mxu0
      %v1783 = vadd.f32 0.0, %v1782
      %v1784 = vpop.f32.mrf.mxu0
      %v1785 = vpop.f32.mrf.mxu0
      %v1786 = vpop.f32.mrf.mxu0
      %1787 = vdwg.mxu0
      %v1789 = vsel %vm342, %v1651, 0
      %1791 = vmatprep.subr.bf16.mxu0 0
      %1792 = vmatpush1.bf16.msra.mxu0 0
      %1793 = vmatprep.subr.bf16.mxu0 0
      %1794 = vmatpush1.bf16.msra.mxu0 0
      %1795 = vmatprep.subr.bf16.mxu0 0
      %1796 = vmatpush1.bf16.msra.mxu0 0
      %1797 = vmatprep.subr.bf16.mxu0 0
      %1798 = vmatpush1.bf16.msra.mxu0 0
      %1799 = vmatprep.subr.bf16.mxu0 0
      %1800 = vmatpush1.bf16.msra.mxu0 0
      %1801 = vmatprep.subr.bf16.mxu0 0
      %1802 = vmatpush1.bf16.msra.mxu0 0
      %1803 = vmatprep.subr.bf16.mxu0 0
      %1804 = vmatpush1.bf16.msra.mxu0 %v1658
      %1805 = vmatprep.subr.bf16.mxu0 0
      %1806 = vmatpush1.bf16.msra.mxu0 %v1657
      %1807 = vmatprep.subr.bf16.mxu0 0
      %1808 = vmatpush2.bf16.msra.mxu0 0
      %1809 = vmatprep.subr.bf16.mxu0 0
      %1810 = vmatpush2.bf16.msra.mxu0 0
      %1811 = vmatprep.subr.bf16.mxu0 0
      %1812 = vmatpush2.bf16.msra.mxu0 0
      %1813 = vmatprep.subr.bf16.mxu0 0
      %1814 = vmatpush2.bf16.msra.mxu0 0
      %1815 = vmatprep.subr.bf16.mxu0 0
      %1816 = vmatpush2.bf16.msra.mxu0 0
      %1817 = vmatprep.subr.bf16.mxu0 0
      %1818 = vmatpush2.bf16.msra.mxu0 0
      %1819 = vmatprep.subr.bf16.mxu0 0
      %1820 = vmatpush2.bf16.msra.mxu0 0
      %1821 = vmatprep.subr.bf16.mxu0 0
      %1822 = vmatpush2.bf16.msra.mxu0 0
      %1823 = vmatprep.mubr.bf16.mxu0 0
      %1824 = vmatmul.mubr.bf16.gmra.mxu0 %v1789
      %v1825 = vpop.f32.mrf.mxu0
      %v1826 = vadd.f32 0.0, %v1825
      %v1827 = vpop.f32.mrf.mxu0
      %v1828 = vpop.f32.mrf.mxu0
      %v1829 = vpop.f32.mrf.mxu0
      %1830 = vdwg.mxu0
      %v1831 = vadd.f32 %v1639, %v1697
      %v1832 = vadd.f32 %v1640, %v1740
      %v1833 = vadd.f32 %v1641, %v1783
      %v1834 = vadd.f32 %v1642, %v1826
      %v1835 = vld [vmem:[%s1451 + $0x1] sm:$0xf]
      %v1836 = vld [vmem:[%s1451 + $0x9] sm:$0xf]
      %v1837 = vld [vmem:[%s1451 + $0x11] sm:$0xf]
      %v1838 = vld [vmem:[%s1451 + $0x19] sm:$0xf]
      %v1839 = vpack.c.bf16 %v1835, %v1835
      %v1840 = vpack.c.bf16 %v1836, %v1836
      %v1841 = vpack.c.bf16 %v1837, %v1837
      %v1842 = vpack.c.bf16 %v1838, %v1838
      %s1843 = scalar_lea.vmem %s4, 256
      %v1844 = vld [vmem:[%s1843] sm:$0xff]
      %v1845 = vld [vmem:[%s1843 + $0x8] sm:$0xff]
      %v1846 = vld [vmem:[%s1843 + $0x10] sm:$0xff]
      %v1847 = vld [vmem:[%s1843 + $0x18] sm:$0xff]
      %v1848 = vpack.c.bf16 %v1845, %v1844
      %v1849 = vpack.c.bf16 %v1847, %v1846
      %v1851 = vsel %vm342, %v1839, 0
      %1853 = vmatprep.subr.bf16.mxu0 0
      %1854 = vmatpush1.bf16.msra.mxu0 0
      %1855 = vmatprep.subr.bf16.mxu0 0
      %1856 = vmatpush1.bf16.msra.mxu0 0
      %1857 = vmatprep.subr.bf16.mxu0 0
      %1858 = vmatpush1.bf16.msra.mxu0 0
      %1859 = vmatprep.subr.bf16.mxu0 0
      %1860 = vmatpush1.bf16.msra.mxu0 0
      %1861 = vmatprep.subr.bf16.mxu0 0
      %1862 = vmatpush1.bf16.msra.mxu0 0
      %1863 = vmatprep.subr.bf16.mxu0 0
      %1864 = vmatpush1.bf16.msra.mxu0 0
      %1865 = vmatprep.subr.bf16.mxu0 0
      %1866 = vmatpush1.bf16.msra.mxu0 %v1849
      %1867 = vmatprep.subr.bf16.mxu0 0
      %1868 = vmatpush1.bf16.msra.mxu0 %v1848
      %1869 = vmatprep.subr.bf16.mxu0 0
      %1870 = vmatpush2.bf16.msra.mxu0 0
      %1871 = vmatprep.subr.bf16.mxu0 0
      %1872 = vmatpush2.bf16.msra.mxu0 0
      %1873 = vmatprep.subr.bf16.mxu0 0
      %1874 = vmatpush2.bf16.msra.mxu0 0
      %1875 = vmatprep.subr.bf16.mxu0 0
      %1876 = vmatpush2.bf16.msra.mxu0 0
      %1877 = vmatprep.subr.bf16.mxu0 0
      %1878 = vmatpush2.bf16.msra.mxu0 0
      %1879 = vmatprep.subr.bf16.mxu0 0
      %1880 = vmatpush2.bf16.msra.mxu0 0
      %1881 = vmatprep.subr.bf16.mxu0 0
      %1882 = vmatpush2.bf16.msra.mxu0 0
      %1883 = vmatprep.subr.bf16.mxu0 0
      %1884 = vmatpush2.bf16.msra.mxu0 0
      %1885 = vmatprep.mubr.bf16.mxu0 0
      %1886 = vmatmul.mubr.bf16.gmra.mxu0 %v1851
      %v1887 = vpop.f32.mrf.mxu0
      %v1888 = vadd.f32 0.0, %v1887
      %v1889 = vpop.f32.mrf.mxu0
      %v1890 = vpop.f32.mrf.mxu0
      %v1891 = vpop.f32.mrf.mxu0
      %1892 = vdwg.mxu0
      %v1894 = vsel %vm342, %v1840, 0
      %1896 = vmatprep.subr.bf16.mxu0 0
      %1897 = vmatpush1.bf16.msra.mxu0 0
      %1898 = vmatprep.subr.bf16.mxu0 0
      %1899 = vmatpush1.bf16.msra.mxu0 0
      %1900 = vmatprep.subr.bf16.mxu0 0
      %1901 = vmatpush1.bf16.msra.mxu0 0
      %1902 = vmatprep.subr.bf16.mxu0 0
      %1903 = vmatpush1.bf16.msra.mxu0 0
      %1904 = vmatprep.subr.bf16.mxu0 0
      %1905 = vmatpush1.bf16.msra.mxu0 0
      %1906 = vmatprep.subr.bf16.mxu0 0
      %1907 = vmatpush1.bf16.msra.mxu0 0
      %1908 = vmatprep.subr.bf16.mxu0 0
      %1909 = vmatpush1.bf16.msra.mxu0 %v1849
      %1910 = vmatprep.subr.bf16.mxu0 0
      %1911 = vmatpush1.bf16.msra.mxu0 %v1848
      %1912 = vmatprep.subr.bf16.mxu0 0
      %1913 = vmatpush2.bf16.msra.mxu0 0
      %1914 = vmatprep.subr.bf16.mxu0 0
      %1915 = vmatpush2.bf16.msra.mxu0 0
      %1916 = vmatprep.subr.bf16.mxu0 0
      %1917 = vmatpush2.bf16.msra.mxu0 0
      %1918 = vmatprep.subr.bf16.mxu0 0
      %1919 = vmatpush2.bf16.msra.mxu0 0
      %1920 = vmatprep.subr.bf16.mxu0 0
      %1921 = vmatpush2.bf16.msra.mxu0 0
      %1922 = vmatprep.subr.bf16.mxu0 0
      %1923 = vmatpush2.bf16.msra.mxu0 0
      %1924 = vmatprep.subr.bf16.mxu0 0
      %1925 = vmatpush2.bf16.msra.mxu0 0
      %1926 = vmatprep.subr.bf16.mxu0 0
      %1927 = vmatpush2.bf16.msra.mxu0 0
      %1928 = vmatprep.mubr.bf16.mxu0 0
      %1929 = vmatmul.mubr.bf16.gmra.mxu0 %v1894
      %v1930 = vpop.f32.mrf.mxu0
      %v1931 = vadd.f32 0.0, %v1930
      %v1932 = vpop.f32.mrf.mxu0
      %v1933 = vpop.f32.mrf.mxu0
      %v1934 = vpop.f32.mrf.mxu0
      %1935 = vdwg.mxu0
      %v1937 = vsel %vm342, %v1841, 0
      %1939 = vmatprep.subr.bf16.mxu0 0
      %1940 = vmatpush1.bf16.msra.mxu0 0
      %1941 = vmatprep.subr.bf16.mxu0 0
      %1942 = vmatpush1.bf16.msra.mxu0 0
      %1943 = vmatprep.subr.bf16.mxu0 0
      %1944 = vmatpush1.bf16.msra.mxu0 0
      %1945 = vmatprep.subr.bf16.mxu0 0
      %1946 = vmatpush1.bf16.msra.mxu0 0
      %1947 = vmatprep.subr.bf16.mxu0 0
      %1948 = vmatpush1.bf16.msra.mxu0 0
      %1949 = vmatprep.subr.bf16.mxu0 0
      %1950 = vmatpush1.bf16.msra.mxu0 0
      %1951 = vmatprep.subr.bf16.mxu0 0
      %1952 = vmatpush1.bf16.msra.mxu0 %v1849
      %1953 = vmatprep.subr.bf16.mxu0 0
      %1954 = vmatpush1.bf16.msra.mxu0 %v1848
      %1955 = vmatprep.subr.bf16.mxu0 0
      %1956 = vmatpush2.bf16.msra.mxu0 0
      %1957 = vmatprep.subr.bf16.mxu0 0
      %1958 = vmatpush2.bf16.msra.mxu0 0
      %1959 = vmatprep.subr.bf16.mxu0 0
      %1960 = vmatpush2.bf16.msra.mxu0 0
      %1961 = vmatprep.subr.bf16.mxu0 0
      %1962 = vmatpush2.bf16.msra.mxu0 0
      %1963 = vmatprep.subr.bf16.mxu0 0
      %1964 = vmatpush2.bf16.msra.mxu0 0
      %1965 = vmatprep.subr.bf16.mxu0 0
      %1966 = vmatpush2.bf16.msra.mxu0 0
      %1967 = vmatprep.subr.bf16.mxu0 0
      %1968 = vmatpush2.bf16.msra.mxu0 0
      %1969 = vmatprep.subr.bf16.mxu0 0
      %1970 = vmatpush2.bf16.msra.mxu0 0
      %1971 = vmatprep.mubr.bf16.mxu0 0
      %1972 = vmatmul.mubr.bf16.gmra.mxu0 %v1937
      %v1973 = vpop.f32.mrf.mxu0
      %v1974 = vadd.f32 0.0, %v1973
      %v1975 = vpop.f32.mrf.mxu0
      %v1976 = vpop.f32.mrf.mxu0
      %v1977 = vpop.f32.mrf.mxu0
      %1978 = vdwg.mxu0
      %v1980 = vsel %vm342, %v1842, 0
      %1982 = vmatprep.subr.bf16.mxu0 0
      %1983 = vmatpush1.bf16.msra.mxu0 0
      %1984 = vmatprep.subr.bf16.mxu0 0
      %1985 = vmatpush1.bf16.msra.mxu0 0
      %1986 = vmatprep.subr.bf16.mxu0 0
      %1987 = vmatpush1.bf16.msra.mxu0 0
      %1988 = vmatprep.subr.bf16.mxu0 0
      %1989 = vmatpush1.bf16.msra.mxu0 0
      %1990 = vmatprep.subr.bf16.mxu0 0
      %1991 = vmatpush1.bf16.msra.mxu0 0
      %1992 = vmatprep.subr.bf16.mxu0 0
      %1993 = vmatpush1.bf16.msra.mxu0 0
      %1994 = vmatprep.subr.bf16.mxu0 0
      %1995 = vmatpush1.bf16.msra.mxu0 %v1849
      %1996 = vmatprep.subr.bf16.mxu0 0
      %1997 = vmatpush1.bf16.msra.mxu0 %v1848
      %1998 = vmatprep.subr.bf16.mxu0 0
      %1999 = vmatpush2.bf16.msra.mxu0 0
      %2000 = vmatprep.subr.bf16.mxu0 0
      %2001 = vmatpush2.bf16.msra.mxu0 0
      %2002 = vmatprep.subr.bf16.mxu0 0
      %2003 = vmatpush2.bf16.msra.mxu0 0
      %2004 = vmatprep.subr.bf16.mxu0 0
      %2005 = vmatpush2.bf16.msra.mxu0 0
      %2006 = vmatprep.subr.bf16.mxu0 0
      %2007 = vmatpush2.bf16.msra.mxu0 0
      %2008 = vmatprep.subr.bf16.mxu0 0
      %2009 = vmatpush2.bf16.msra.mxu0 0
      %2010 = vmatprep.subr.bf16.mxu0 0
      %2011 = vmatpush2.bf16.msra.mxu0 0
      %2012 = vmatprep.subr.bf16.mxu0 0
      %2013 = vmatpush2.bf16.msra.mxu0 0
      %2014 = vmatprep.mubr.bf16.mxu0 0
      %2015 = vmatmul.mubr.bf16.gmra.mxu0 %v1980
      %v2016 = vpop.f32.mrf.mxu0
      %v2017 = vadd.f32 0.0, %v2016
      %v2018 = vpop.f32.mrf.mxu0
      %v2019 = vpop.f32.mrf.mxu0
      %v2020 = vpop.f32.mrf.mxu0
      %2021 = vdwg.mxu0
      %v2022 = vadd.f32 %v1831, %v1888
      %v2023 = vadd.f32 %v1832, %v1931
      %v2024 = vadd.f32 %v1833, %v1974
      %v2025 = vadd.f32 %v1834, %v2017
      %v2026 = vld [vmem:[%s5] sm:$0x1]
      %v2028 = vlaneseq
      %v2029 = vshrl.u32 %v2028, 7
      %v2030 = vsub.s32 0, %v2029
      %v2031 = vrot.slane %v2026, %v2030
      %v2033 = vadd.f32 %v2022, %v2031
      %v2034 = vadd.f32 %v2023, %v2031
      %v2035 = vadd.f32 %v2024, %v2031
      %v2036 = vadd.f32 %v2025, %v2031
      %vm2037 = vcmp.gt.f32.partialorder %v2033, 0.0
      %vm2038 = vcmp.gt.f32.partialorder %v2034, 0.0
      %vm2039 = vcmp.gt.f32.partialorder %v2035, 0.0
      %vm2040 = vcmp.gt.f32.partialorder %v2036, 0.0
      %v2041 = vmin.f32 %v2033, 0.0
      %v2042 = vmin.f32 %v2034, 0.0
      %v2043 = vmin.f32 %v2035, 0.0
      %v2044 = vmin.f32 %v2036, 0.0
      %v2045 = vmul.f32 %v2041, 1.442695
      %v2046 = vpow.pop %v2045
      %v2047 = vmul.f32 %v2042, 1.442695
      %v2048 = vpow.pop %v2047
      %v2049 = vmul.f32 %v2043, 1.442695
      %v2050 = vpow.pop %v2049
      %v2051 = vmul.f32 %v2044, 1.442695
      %v2052 = vpow.pop %v2051
      %v2053 = vsub.f32 %v2046, 1.0
      %v2054 = vsub.f32 %v2048, 1.0
      %v2055 = vsub.f32 %v2050, 1.0
      %v2056 = vsub.f32 %v2052, 1.0
      %v2057 = vsel %vm2037, %v2033, %v2053
      %v2058 = vsel %vm2038, %v2034, %v2054
      %v2059 = vsel %vm2039, %v2035, %v2055
      %v2060 = vsel %vm2040, %v2036, %v2056
      %vm2061 = vcmask 257024
      %2062 = vst.msk [vmem:[%s311] sm:$0xf] %vm2061, %v2057
      %2063 = vst.msk [vmem:[%s311 + $0x4] sm:$0xf] %vm2061, %v2058
      %2064 = vst.msk [vmem:[%s311 + $0x8] sm:$0xf] %vm2061, %v2059
      %2065 = vst.msk [vmem:[%s311 + $0xc] sm:$0xf] %vm2061, %v2060
      %p2066 = scmp.lt.s32.totalorder %s17, 3
      %s2067 = scalar_select %p2066, %s17, 3
      %s2068 = smul.addr %s2067, 4
      %s2069 = smul.addr %s2068, 4
      %s2070 = scalar_lea.vmem %s6, %s2069
      // Predicated region
      $region45: #{cnnrnn_forward.7} parent=43 // pred_check
        %p2071 = pneg %p181
      $region46: #{cnnrnn_forward.7} parent=43 // pred_check_branch
        %2073 = sbr.rel (%p2071) target = $region48
      $region47: #{cnnrnn_forward.7} parent=43 // pred_region
        _
      $region48: #{cnnrnn_forward.7} parent=43 // pred_fallthru
        _
    $region44: #{cnnrnn_forward.7} parent=5 // pred_fallthru
      _
    %p2074 = scmp.le.s32.totalorder 2, %s12
    // Predicated region
    $region49: #{cnnrnn_forward.7} parent=5 // pred_check
      %p2075 = pneg %p2074
    $region50: #{cnnrnn_forward.7} parent=5 // pred_check_branch
      %2077 = sbr.rel (%p2075) target = $region52
    $region51: #{cnnrnn_forward.7} parent=5 // pred_region
      %s2078 = ssub.s32 %s12, 2
      // Predicated region
      $region53: #{cnnrnn_forward.7} parent=51 // pred_check
        %p2079 = pneg %p187
      $region54: #{cnnrnn_forward.7} parent=51 // pred_check_branch
        %2081 = sbr.rel (%p2079) target = $region56
      $region55: #{cnnrnn_forward.7} parent=51 // pred_region
        %p2082 = scmp.lt.s32.totalorder %s18, 3
        %s2083 = scalar_select %p2082, %s18, 3
        %s2084 = smul.addr %s2083, 4
        %s2085 = smul.addr %s2084, 4
        %s2086 = scalar_lea.vmem %s6, %s2085
      $region56: #{cnnrnn_forward.7} parent=51 // pred_fallthru
        _
    $region52: #{cnnrnn_forward.7} parent=5 // pred_fallthru
      _
  $region6: #{cnnrnn_forward.7} parent=0 // loop_footer
    %s16 = sadd.s32 1, %s12
  $region7: #{cnnrnn_forward.7} parent=0 // loop_footer_branch
    %11 = sbr.rel target = $region3
  $region8: #{cnnrnn_forward.7} parent=0 // loop_exit
    _

// kernel: cnnrnn_forward.6
$region0: #{cnnrnn_forward.6}
  #allocation0 [shape = 'u32[]', space=smem, size = 0x4, offset = 0x4, fixed_abs, tag = 'smem constant byte address 0x4 - core index']
  #allocation1 [shape = 'u32[144,128]{1,0:T(1,128)}', space=vmem, size = 0x12000, scoped, tag = 'internal scratch']
  %s0 = inlined_call_operand.vmem [shape: f32[4,9,9,4], index: 0, kind: input, shape index: {}]
  %s1 = inlined_call_operand.vmem [shape: f32[4,9,9,4], index: 1, kind: input, shape index: {}]
  %s2 = inlined_call_operand.vmem [shape: f32[4,9,9,4], index: 2, kind: input, shape index: {}]
  %s3 = inlined_call_operand.vmem [shape: f32[4,9,9,4], index: 3, kind: input, shape index: {}]
  %s4 = inlined_call_operand.vmem [shape: f32[9,4,32], index: 4, kind: input, shape index: {}]
  %s5 = inlined_call_operand.vmem [shape: f32[1,32], index: 5, kind: input, shape index: {}]
  %s6 = inlined_call_operand.vmem [shape: f32[4,8,8,32], index: 6, kind: output, shape index: {}]
  %s7 = sld [smem:[#allocation0]]
  $region57: #{cnnrnn_forward.6} parent=0
    _
  %s9 = ssub.s32 1, %s7
  %s10 = scalar_select 0, %s9, %s7
  loop: start=0, step=1, limit=6
  $region2: #{cnnrnn_forward.6} parent=0 // loop_pre_header
    _
  $region3: #{cnnrnn_forward.6} parent=0 // loop_header
    %s12 = sphi 0, %s16
    %p13 = scmp.ge.s32.totalorder %s12, 6
    %s22 = sphi 0, %s24
    %s25 = sphi 0, %s22
    %s26 = sphi 0, %s25
    %s42 = sphi 0, %s26
    %s48 = sphi 0, %s50
    %s51 = sphi 0, %s48
    %s52 = sphi 0, %s51
    %s68 = sphi 0, %s52
    %s74 = sphi 0, %s76
    %s77 = sphi 0, %s74
    %s78 = sphi 0, %s77
    %s94 = sphi 0, %s78
    %s100 = sphi 0, %s102
    %s103 = sphi 0, %s100
    %s104 = sphi 0, %s103
    %s120 = sphi 0, %s104
    %s124 = sphi 0, %s124
    %s126 = sphi 0, %s124
    %s127 = sphi 0, %s126
    %s141 = sphi 0, %s127
    %s145 = sphi 0, %s145
    %s147 = sphi 0, %s145
    %s148 = sphi 0, %s147
    %s162 = sphi 0, %s148
    %s168 = sphi 0, %s170
    %s171 = sphi 0, %s168
    %s172 = sphi 0, %s171
    %s188 = sphi 0, %s172
  $region4: #{cnnrnn_forward.6} parent=0 // loop_header_branch
    %15 = sbr.rel (%p13) target = $region8
  $region5: #{cnnrnn_forward.6} parent=0 // loop_body
    %s17 = ssub.s32 %s12, 1
    %s18 = ssub.s32 %s12, 2
    %s19 = sadd.s32 %s12, 1
    %s20 = ssub.s32 %s12, %s19
    %p21 = scmp.eq.s32.totalorder %s20, 0
    %s23 = sadd.s32 %s22, 1
    %s24 = scalar_select %p21, %s22, %s23
    %p27 = pneg %p21
    %p28 = scmp.eq.s32.totalorder %s12, 3
    %p29 = por %p27, %p28
    %p30 = scmp.ne.s32.totalorder %s22, %s25
    %p31 = scmp.eq.s32.totalorder %s12, 0
    %p32 = por %p30, %p31
    %p33 = scmp.ne.s32.totalorder %s22, %s25
    %p34 = scmp.eq.s32.totalorder %s17, 3
    %p35 = por %p33, %p34
    %p36 = scmp.ne.s32.totalorder %s25, %s26
    %p37 = scmp.eq.s32.totalorder %s17, 0
    %p38 = por %p36, %p37
    %p39 = scmp.ne.s32.totalorder %s25, %s26
    %p40 = scmp.eq.s32.totalorder %s18, 3
    %p41 = por %p39, %p40
    %p43 = scmp.ne.s32.totalorder %s26, %s42
    %p44 = scmp.eq.s32.totalorder %s18, 0
    %p45 = por %p43, %p44
    %s46 = ssub.s32 %s12, %s19
    %p47 = scmp.eq.s32.totalorder %s46, 0
    %s49 = sadd.s32 %s48, 1
    %s50 = scalar_select %p47, %s48, %s49
    %p53 = pneg %p47
    %p54 = scmp.eq.s32.totalorder %s12, 3
    %p55 = por %p53, %p54
    %p56 = scmp.ne.s32.totalorder %s48, %s51
    %p57 = scmp.eq.s32.totalorder %s12, 0
    %p58 = por %p56, %p57
    %p59 = scmp.ne.s32.totalorder %s48, %s51
    %p60 = scmp.eq.s32.totalorder %s17, 3
    %p61 = por %p59, %p60
    %p62 = scmp.ne.s32.totalorder %s51, %s52
    %p63 = scmp.eq.s32.totalorder %s17, 0
    %p64 = por %p62, %p63
    %p65 = scmp.ne.s32.totalorder %s51, %s52
    %p66 = scmp.eq.s32.totalorder %s18, 3
    %p67 = por %p65, %p66
    %p69 = scmp.ne.s32.totalorder %s52, %s68
    %p70 = scmp.eq.s32.totalorder %s18, 0
    %p71 = por %p69, %p70
    %s72 = ssub.s32 %s12, %s19
    %p73 = scmp.eq.s32.totalorder %s72, 0
    %s75 = sadd.s32 %s74, 1
    %s76 = scalar_select %p73, %s74, %s75
    %p79 = pneg %p73
    %p80 = scmp.eq.s32.totalorder %s12, 3
    %p81 = por %p79, %p80
    %p82 = scmp.ne.s32.totalorder %s74, %s77
    %p83 = scmp.eq.s32.totalorder %s12, 0
    %p84 = por %p82, %p83
    %p85 = scmp.ne.s32.totalorder %s74, %s77
    %p86 = scmp.eq.s32.totalorder %s17, 3
    %p87 = por %p85, %p86
    %p88 = scmp.ne.s32.totalorder %s77, %s78
    %p89 = scmp.eq.s32.totalorder %s17, 0
    %p90 = por %p88, %p89
    %p91 = scmp.ne.s32.totalorder %s77, %s78
    %p92 = scmp.eq.s32.totalorder %s18, 3
    %p93 = por %p91, %p92
    %p95 = scmp.ne.s32.totalorder %s78, %s94
    %p96 = scmp.eq.s32.totalorder %s18, 0
    %p97 = por %p95, %p96
    %s98 = ssub.s32 %s12, %s19
    %p99 = scmp.eq.s32.totalorder %s98, 0
    %s101 = sadd.s32 %s100, 1
    %s102 = scalar_select %p99, %s100, %s101
    %p105 = pneg %p99
    %p106 = scmp.eq.s32.totalorder %s12, 3
    %p107 = por %p105, %p106
    %p108 = scmp.ne.s32.totalorder %s100, %s103
    %p109 = scmp.eq.s32.totalorder %s12, 0
    %p110 = por %p108, %p109
    %p111 = scmp.ne.s32.totalorder %s100, %s103
    %p112 = scmp.eq.s32.totalorder %s17, 3
    %p113 = por %p111, %p112
    %p114 = scmp.ne.s32.totalorder %s103, %s104
    %p115 = scmp.eq.s32.totalorder %s17, 0
    %p116 = por %p114, %p115
    %p117 = scmp.ne.s32.totalorder %s103, %s104
    %p118 = scmp.eq.s32.totalorder %s18, 3
    %p119 = por %p117, %p118
    %p121 = scmp.ne.s32.totalorder %s104, %s120
    %p122 = scmp.eq.s32.totalorder %s18, 0
    %p123 = por %p121, %p122
    %s125 = sadd.s32 %s124, 1
    %p128 = scmp.eq.s32.totalorder %s12, 3
    %p129 = scmp.ne.s32.totalorder %s124, %s126
    %p130 = scmp.eq.s32.totalorder %s12, 0
    %p131 = por %p129, %p130
    %p132 = scmp.ne.s32.totalorder %s124, %s126
    %p133 = scmp.eq.s32.totalorder %s17, 3
    %p134 = por %p132, %p133
    %p135 = scmp.ne.s32.totalorder %s126, %s127
    %p136 = scmp.eq.s32.totalorder %s17, 0
    %p137 = por %p135, %p136
    %p138 = scmp.ne.s32.totalorder %s126, %s127
    %p139 = scmp.eq.s32.totalorder %s18, 3
    %p140 = por %p138, %p139
    %p142 = scmp.ne.s32.totalorder %s127, %s141
    %p143 = scmp.eq.s32.totalorder %s18, 0
    %p144 = por %p142, %p143
    %s146 = sadd.s32 %s145, 1
    %p149 = scmp.eq.s32.totalorder %s12, 3
    %p150 = scmp.ne.s32.totalorder %s145, %s147
    %p151 = scmp.eq.s32.totalorder %s12, 0
    %p152 = por %p150, %p151
    %p153 = scmp.ne.s32.totalorder %s145, %s147
    %p154 = scmp.eq.s32.totalorder %s17, 3
    %p155 = por %p153, %p154
    %p156 = scmp.ne.s32.totalorder %s147, %s148
    %p157 = scmp.eq.s32.totalorder %s17, 0
    %p158 = por %p156, %p157
    %p159 = scmp.ne.s32.totalorder %s147, %s148
    %p160 = scmp.eq.s32.totalorder %s18, 3
    %p161 = por %p159, %p160
    %p163 = scmp.ne.s32.totalorder %s148, %s162
    %p164 = scmp.eq.s32.totalorder %s18, 0
    %p165 = por %p163, %p164
    %s166 = ssub.s32 %s12, %s19
    %p167 = scmp.eq.s32.totalorder %s166, 0
    %s169 = sadd.s32 %s168, 1
    %s170 = scalar_select %p167, %s168, %s169
    %p173 = pneg %p167
    %p174 = scmp.eq.s32.totalorder %s12, 3
    %p175 = por %p173, %p174
    %p176 = scmp.ne.s32.totalorder %s168, %s171
    %p177 = scmp.eq.s32.totalorder %s12, 0
    %p178 = por %p176, %p177
    %p179 = scmp.ne.s32.totalorder %s168, %s171
    %p180 = scmp.eq.s32.totalorder %s17, 3
    %p181 = por %p179, %p180
    %p182 = scmp.ne.s32.totalorder %s171, %s172
    %p183 = scmp.eq.s32.totalorder %s17, 0
    %p184 = por %p182, %p183
    %p185 = scmp.ne.s32.totalorder %s171, %s172
    %p186 = scmp.eq.s32.totalorder %s18, 3
    %p187 = por %p185, %p186
    %p189 = scmp.ne.s32.totalorder %s172, %s188
    %p190 = scmp.eq.s32.totalorder %s18, 0
    %p191 = por %p189, %p190
    %p192 = scmp.le.s32.totalorder 1, %s12
    %p193 = scmp.lt.s32.totalorder %s12, 5
    %p194 = pnand %p192, %p193
    %p195 = pneg %p194
    // Predicated region
    $region9: #{cnnrnn_forward.6} parent=5 // pred_check
      _
    $region10: #{cnnrnn_forward.6} parent=5 // pred_check_branch
      %197 = sbr.rel (%p194) target = $region12
    $region11: #{cnnrnn_forward.6} parent=5 // pred_region
      %s198 = ssub.s32 %s12, 1
      // Predicated region
      $region13: #{cnnrnn_forward.6} parent=11 // pred_check
        %p199 = pneg %p137
      $region14: #{cnnrnn_forward.6} parent=11 // pred_check_branch
        %201 = sbr.rel (%p199) target = $region16
      $region15: #{cnnrnn_forward.6} parent=11 // pred_region
        _
      $region16: #{cnnrnn_forward.6} parent=11 // pred_fallthru
        _
      // Predicated region
      $region17: #{cnnrnn_forward.6} parent=11 // pred_check
        %p202 = pneg %p158
      $region18: #{cnnrnn_forward.6} parent=11 // pred_check_branch
        %204 = sbr.rel (%p202) target = $region20
      $region19: #{cnnrnn_forward.6} parent=11 // pred_region
        _
      $region20: #{cnnrnn_forward.6} parent=11 // pred_fallthru
        _
    $region12: #{cnnrnn_forward.6} parent=5 // pred_fallthru
      _
    %p205 = scmp.lt.s32.totalorder %s12, 4
    // Predicated region
    $region21: #{cnnrnn_forward.6} parent=5 // pred_check
      %p206 = pneg %p205
    $region22: #{cnnrnn_forward.6} parent=5 // pred_check_branch
      %208 = sbr.rel (%p206) target = $region24
    $region23: #{cnnrnn_forward.6} parent=5 // pred_region
      // Predicated region
      $region25: #{cnnrnn_forward.6} parent=23 // pred_check
        %p209 = pneg %p32
      $region26: #{cnnrnn_forward.6} parent=23 // pred_check_branch
        %211 = sbr.rel (%p209) target = $region28
      $region27: #{cnnrnn_forward.6} parent=23 // pred_region
        %p212 = scmp.lt.s32.totalorder %s12, 3
        %s213 = scalar_select %p212, %s12, 3
        %s214 = smul.addr %s213, 18
        %s215 = smul.addr %s214, 8
        %s216 = scalar_lea.vmem %s0, %s215
      $region28: #{cnnrnn_forward.6} parent=23 // pred_fallthru
        _
      // Predicated region
      $region29: #{cnnrnn_forward.6} parent=23 // pred_check
        %p217 = pneg %p58
      $region30: #{cnnrnn_forward.6} parent=23 // pred_check_branch
        %219 = sbr.rel (%p217) target = $region32
      $region31: #{cnnrnn_forward.6} parent=23 // pred_region
        %p220 = scmp.lt.s32.totalorder %s12, 3
        %s221 = scalar_select %p220, %s12, 3
        %s222 = smul.addr %s221, 18
        %s223 = smul.addr %s222, 8
        %s224 = scalar_lea.vmem %s1, %s223
      $region32: #{cnnrnn_forward.6} parent=23 // pred_fallthru
        _
      // Predicated region
      $region33: #{cnnrnn_forward.6} parent=23 // pred_check
        %p225 = pneg %p84
      $region34: #{cnnrnn_forward.6} parent=23 // pred_check_branch
        %227 = sbr.rel (%p225) target = $region36
      $region35: #{cnnrnn_forward.6} parent=23 // pred_region
        %p228 = scmp.lt.s32.totalorder %s12, 3
        %s229 = scalar_select %p228, %s12, 3
        %s230 = smul.addr %s229, 18
        %s231 = smul.addr %s230, 8
        %s232 = scalar_lea.vmem %s2, %s231
      $region36: #{cnnrnn_forward.6} parent=23 // pred_fallthru
        _
      // Predicated region
      $region37: #{cnnrnn_forward.6} parent=23 // pred_check
        %p233 = pneg %p110
      $region38: #{cnnrnn_forward.6} parent=23 // pred_check_branch
        %235 = sbr.rel (%p233) target = $region40
      $region39: #{cnnrnn_forward.6} parent=23 // pred_region
        %p236 = scmp.lt.s32.totalorder %s12, 3
        %s237 = scalar_select %p236, %s12, 3
        %s238 = smul.addr %s237, 18
        %s239 = smul.addr %s238, 8
        %s240 = scalar_lea.vmem %s3, %s239
      $region40: #{cnnrnn_forward.6} parent=23 // pred_fallthru
        _
    $region24: #{cnnrnn_forward.6} parent=5 // pred_fallthru
      _
    %p241 = scmp.le.s32.totalorder 1, %s12
    %p242 = scmp.lt.s32.totalorder %s12, 5
    %p243 = pnand %p241, %p242
    %p244 = pneg %p243
    // Predicated region
    $region41: #{cnnrnn_forward.6} parent=5 // pred_check
      _
    $region42: #{cnnrnn_forward.6} parent=5 // pred_check_branch
      %246 = sbr.rel (%p243) target = $region44
    $region43: #{cnnrnn_forward.6} parent=5 // pred_region
      %s247 = ssub.s32 %s12, 1
      %p248 = scmp.lt.s32.totalorder %s17, 3
      %s249 = scalar_select %p248, %s17, 3
      %s250 = smul.addr %s249, 18
      %s251 = smul.addr %s250, 8
      %s252 = scalar_lea.vmem %s0, %s251
      %p253 = pneg %p38
      %p254 = pneg %p35
      %p255 = scmp.lt.s32.totalorder %s17, 3
      %s256 = scalar_select %p255, %s17, 3
      %s257 = smul.addr %s256, 18
      %s258 = smul.addr %s257, 8
      %s259 = scalar_lea.vmem %s1, %s258
      %p260 = pneg %p64
      %p261 = pneg %p61
      %p262 = scmp.lt.s32.totalorder %s17, 3
      %s263 = scalar_select %p262, %s17, 3
      %s264 = smul.addr %s263, 18
      %s265 = smul.addr %s264, 8
      %s266 = scalar_lea.vmem %s2, %s265
      %p267 = pneg %p90
      %p268 = pneg %p87
      %p269 = scmp.lt.s32.totalorder %s17, 3
      %s270 = scalar_select %p269, %s17, 3
      %s271 = smul.addr %s270, 18
      %s272 = smul.addr %s271, 8
      %s273 = scalar_lea.vmem %s3, %s272
      %p274 = pneg %p116
      %p275 = pneg %p113
      %p276 = pneg %p137
      %p277 = pneg %p134
      %p278 = pneg %p158
      %p279 = pneg %p155
      %p280 = pneg %p184
      %p281 = pneg %p181
      %p282 = scmp.lt.s32.totalorder %s17, 3
      %s283 = scalar_select %p282, %s17, 3
      %s284 = smul.addr %s283, 8
      %s285 = smul.addr %s284, 8
      %s286 = scalar_lea.vmem %s6, %s285
      %p287 = scmp.lt.s32.totalorder %s17, 3
      %s288 = scalar_select %p287, %s17, 3
      %s289 = smul.addr %s288, 18
      %s290 = smul.addr %s289, 8
      %s291 = scalar_lea.vmem %s0, %s290
      %p292 = scmp.lt.s32.totalorder %s17, 3
      %s293 = scalar_select %p292, %s17, 3
      %s294 = smul.addr %s293, 18
      %s295 = smul.addr %s294, 8
      %s296 = scalar_lea.vmem %s1, %s295
      %p297 = scmp.lt.s32.totalorder %s17, 3
      %s298 = scalar_select %p297, %s17, 3
      %s299 = smul.addr %s298, 18
      %s300 = smul.addr %s299, 8
      %s301 = scalar_lea.vmem %s2, %s300
      %p302 = scmp.lt.s32.totalorder %s17, 3
      %s303 = scalar_select %p302, %s17, 3
      %s304 = smul.addr %s303, 18
      %s305 = smul.addr %s304, 8
      %s306 = scalar_lea.vmem %s3, %s305
      %p307 = scmp.lt.s32.totalorder %s17, 3
      %s308 = scalar_select %p307, %s17, 3
      %s309 = smul.addr %s308, 8
      %s310 = smul.addr %s309, 8
      %s311 = scalar_lea.vmem %s6, %s310
      %v313 = vld [vmem:[%s291] sm:$0xff]
      %v314 = vld [vmem:[%s291 + $0x10] sm:$0xff]
      %v315 = vld [vmem:[%s291 + $0x20] sm:$0xff]
      %v316 = vld [vmem:[%s291 + $0x30] sm:$0xff]
      %v317 = vld [vmem:[%s291 + $0x40] sm:$0xff]
      %v318 = vld [vmem:[%s291 + $0x50] sm:$0xff]
      %v319 = vld [vmem:[%s291 + $0x60] sm:$0xff]
      %v320 = vld [vmem:[%s291 + $0x70] sm:$0xff]
      %v321 = vpack.c.bf16 %v313, %v313
      %v322 = vpack.c.bf16 %v314, %v314
      %v323 = vpack.c.bf16 %v315, %v315
      %v324 = vpack.c.bf16 %v316, %v316
      %v325 = vpack.c.bf16 %v317, %v317
      %v326 = vpack.c.bf16 %v318, %v318
      %v327 = vpack.c.bf16 %v319, %v319
      %v328 = vpack.c.bf16 %v320, %v320
      %v329 = vld [vmem:[%s4] sm:$0xf]
      %v330 = vpack.c.bf16 %v329, %v329
      %v331 = vld [vmem:[%s296] sm:$0xff]
      %v332 = vld [vmem:[%s296 + $0x10] sm:$0xff]
      %v333 = vld [vmem:[%s296 + $0x20] sm:$0xff]
      %v334 = vld [vmem:[%s296 + $0x30] sm:$0xff]
      %v335 = vld [vmem:[%s296 + $0x40] sm:$0xff]
      %v336 = vld [vmem:[%s296 + $0x50] sm:$0xff]
      %v337 = vld [vmem:[%s296 + $0x60] sm:$0xff]
      %v338 = vld [vmem:[%s296 + $0x70] sm:$0xff]
      %v339 = vpack.c.bf16 %v331, %v331
      %v340 = vpack.c.bf16 %v332, %v332
      %v341 = vpack.c.bf16 %v333, %v333
      %v342 = vpack.c.bf16 %v334, %v334
      %v343 = vpack.c.bf16 %v335, %v335
      %v344 = vpack.c.bf16 %v336, %v336
      %v345 = vpack.c.bf16 %v337, %v337
      %v346 = vpack.c.bf16 %v338, %v338
      %s347 = scalar_lea.vmem %s4, 4
      %v348 = vld [vmem:[%s347] sm:$0xf]
      %v349 = vpack.c.bf16 %v348, %v348
      %vm350 = vcmask 31744
      %v352 = vsel %vm350, %v339, 0
      %vm354 = vcmask 1041408
      %v356 = vsel %vm354, %v349, 0
      %358 = vmatprep.subr.bf16.mxu0 0
      %359 = vmatpush1.bf16.msra.mxu0 0
      %360 = vmatprep.subr.bf16.mxu0 0
      %361 = vmatpush1.bf16.msra.mxu0 0
      %362 = vmatprep.subr.bf16.mxu0 0
      %363 = vmatpush1.bf16.msra.mxu0 0
      %364 = vmatprep.subr.bf16.mxu0 0
      %365 = vmatpush1.bf16.msra.mxu0 0
      %366 = vmatprep.subr.bf16.mxu0 0
      %367 = vmatpush1.bf16.msra.mxu0 0
      %368 = vmatprep.subr.bf16.mxu0 0
      %369 = vmatpush1.bf16.msra.mxu0 0
      %370 = vmatprep.subr.bf16.mxu0 0
      %371 = vmatpush1.bf16.msra.mxu0 0
      %372 = vmatprep.subr.bf16.mxu0 0
      %373 = vmatpush1.bf16.msra.mxu0 %v356
      %374 = vmatprep.subr.bf16.mxu0 0
      %375 = vmatpush2.bf16.msra.mxu0 0
      %376 = vmatprep.subr.bf16.mxu0 0
      %377 = vmatpush2.bf16.msra.mxu0 0
      %378 = vmatprep.subr.bf16.mxu0 0
      %379 = vmatpush2.bf16.msra.mxu0 0
      %380 = vmatprep.subr.bf16.mxu0 0
      %381 = vmatpush2.bf16.msra.mxu0 0
      %382 = vmatprep.subr.bf16.mxu0 0
      %383 = vmatpush2.bf16.msra.mxu0 0
      %384 = vmatprep.subr.bf16.mxu0 0
      %385 = vmatpush2.bf16.msra.mxu0 0
      %386 = vmatprep.subr.bf16.mxu0 0
      %387 = vmatpush2.bf16.msra.mxu0 0
      %388 = vmatprep.subr.bf16.mxu0 0
      %389 = vmatpush2.bf16.msra.mxu0 0
      %390 = vmatprep.mubr.bf16.mxu0 0
      %391 = vmatmul.mubr.bf16.gmra.mxu0 %v352
      %v392 = vpop.f32.mrf.mxu0
      %v393 = vadd.f32 0.0, %v392
      %v394 = vpop.f32.mrf.mxu0
      %v395 = vpop.f32.mrf.mxu0
      %v396 = vpop.f32.mrf.mxu0
      %397 = vdwg.mxu0
      %v399 = vsel %vm350, %v340, 0
      %401 = vmatprep.subr.bf16.mxu0 0
      %402 = vmatpush1.bf16.msra.mxu0 0
      %403 = vmatprep.subr.bf16.mxu0 0
      %404 = vmatpush1.bf16.msra.mxu0 0
      %405 = vmatprep.subr.bf16.mxu0 0
      %406 = vmatpush1.bf16.msra.mxu0 0
      %407 = vmatprep.subr.bf16.mxu0 0
      %408 = vmatpush1.bf16.msra.mxu0 0
      %409 = vmatprep.subr.bf16.mxu0 0
      %410 = vmatpush1.bf16.msra.mxu0 0
      %411 = vmatprep.subr.bf16.mxu0 0
      %412 = vmatpush1.bf16.msra.mxu0 0
      %413 = vmatprep.subr.bf16.mxu0 0
      %414 = vmatpush1.bf16.msra.mxu0 0
      %415 = vmatprep.subr.bf16.mxu0 0
      %416 = vmatpush1.bf16.msra.mxu0 %v356
      %417 = vmatprep.subr.bf16.mxu0 0
      %418 = vmatpush2.bf16.msra.mxu0 0
      %419 = vmatprep.subr.bf16.mxu0 0
      %420 = vmatpush2.bf16.msra.mxu0 0
      %421 = vmatprep.subr.bf16.mxu0 0
      %422 = vmatpush2.bf16.msra.mxu0 0
      %423 = vmatprep.subr.bf16.mxu0 0
      %424 = vmatpush2.bf16.msra.mxu0 0
      %425 = vmatprep.subr.bf16.mxu0 0
      %426 = vmatpush2.bf16.msra.mxu0 0
      %427 = vmatprep.subr.bf16.mxu0 0
      %428 = vmatpush2.bf16.msra.mxu0 0
      %429 = vmatprep.subr.bf16.mxu0 0
      %430 = vmatpush2.bf16.msra.mxu0 0
      %431 = vmatprep.subr.bf16.mxu0 0
      %432 = vmatpush2.bf16.msra.mxu0 0
      %433 = vmatprep.mubr.bf16.mxu0 0
      %434 = vmatmul.mubr.bf16.gmra.mxu0 %v399
      %v435 = vpop.f32.mrf.mxu0
      %v436 = vadd.f32 0.0, %v435
      %v437 = vpop.f32.mrf.mxu0
      %v438 = vpop.f32.mrf.mxu0
      %v439 = vpop.f32.mrf.mxu0
      %440 = vdwg.mxu0
      %v442 = vsel %vm350, %v341, 0
      %444 = vmatprep.subr.bf16.mxu0 0
      %445 = vmatpush1.bf16.msra.mxu0 0
      %446 = vmatprep.subr.bf16.mxu0 0
      %447 = vmatpush1.bf16.msra.mxu0 0
      %448 = vmatprep.subr.bf16.mxu0 0
      %449 = vmatpush1.bf16.msra.mxu0 0
      %450 = vmatprep.subr.bf16.mxu0 0
      %451 = vmatpush1.bf16.msra.mxu0 0
      %452 = vmatprep.subr.bf16.mxu0 0
      %453 = vmatpush1.bf16.msra.mxu0 0
      %454 = vmatprep.subr.bf16.mxu0 0
      %455 = vmatpush1.bf16.msra.mxu0 0
      %456 = vmatprep.subr.bf16.mxu0 0
      %457 = vmatpush1.bf16.msra.mxu0 0
      %458 = vmatprep.subr.bf16.mxu0 0
      %459 = vmatpush1.bf16.msra.mxu0 %v356
      %460 = vmatprep.subr.bf16.mxu0 0
      %461 = vmatpush2.bf16.msra.mxu0 0
      %462 = vmatprep.subr.bf16.mxu0 0
      %463 = vmatpush2.bf16.msra.mxu0 0
      %464 = vmatprep.subr.bf16.mxu0 0
      %465 = vmatpush2.bf16.msra.mxu0 0
      %466 = vmatprep.subr.bf16.mxu0 0
      %467 = vmatpush2.bf16.msra.mxu0 0
      %468 = vmatprep.subr.bf16.mxu0 0
      %469 = vmatpush2.bf16.msra.mxu0 0
      %470 = vmatprep.subr.bf16.mxu0 0
      %471 = vmatpush2.bf16.msra.mxu0 0
      %472 = vmatprep.subr.bf16.mxu0 0
      %473 = vmatpush2.bf16.msra.mxu0 0
      %474 = vmatprep.subr.bf16.mxu0 0
      %475 = vmatpush2.bf16.msra.mxu0 0
      %476 = vmatprep.mubr.bf16.mxu0 0
      %477 = vmatmul.mubr.bf16.gmra.mxu0 %v442
      %v478 = vpop.f32.mrf.mxu0
      %v479 = vadd.f32 0.0, %v478
      %v480 = vpop.f32.mrf.mxu0
      %v481 = vpop.f32.mrf.mxu0
      %v482 = vpop.f32.mrf.mxu0
      %483 = vdwg.mxu0
      %v485 = vsel %vm350, %v342, 0
      %487 = vmatprep.subr.bf16.mxu0 0
      %488 = vmatpush1.bf16.msra.mxu0 0
      %489 = vmatprep.subr.bf16.mxu0 0
      %490 = vmatpush1.bf16.msra.mxu0 0
      %491 = vmatprep.subr.bf16.mxu0 0
      %492 = vmatpush1.bf16.msra.mxu0 0
      %493 = vmatprep.subr.bf16.mxu0 0
      %494 = vmatpush1.bf16.msra.mxu0 0
      %495 = vmatprep.subr.bf16.mxu0 0
      %496 = vmatpush1.bf16.msra.mxu0 0
      %497 = vmatprep.subr.bf16.mxu0 0
      %498 = vmatpush1.bf16.msra.mxu0 0
      %499 = vmatprep.subr.bf16.mxu0 0
      %500 = vmatpush1.bf16.msra.mxu0 0
      %501 = vmatprep.subr.bf16.mxu0 0
      %502 = vmatpush1.bf16.msra.mxu0 %v356
      %503 = vmatprep.subr.bf16.mxu0 0
      %504 = vmatpush2.bf16.msra.mxu0 0
      %505 = vmatprep.subr.bf16.mxu0 0
      %506 = vmatpush2.bf16.msra.mxu0 0
      %507 = vmatprep.subr.bf16.mxu0 0
      %508 = vmatpush2.bf16.msra.mxu0 0
      %509 = vmatprep.subr.bf16.mxu0 0
      %510 = vmatpush2.bf16.msra.mxu0 0
      %511 = vmatprep.subr.bf16.mxu0 0
      %512 = vmatpush2.bf16.msra.mxu0 0
      %513 = vmatprep.subr.bf16.mxu0 0
      %514 = vmatpush2.bf16.msra.mxu0 0
      %515 = vmatprep.subr.bf16.mxu0 0
      %516 = vmatpush2.bf16.msra.mxu0 0
      %517 = vmatprep.subr.bf16.mxu0 0
      %518 = vmatpush2.bf16.msra.mxu0 0
      %519 = vmatprep.mubr.bf16.mxu0 0
      %520 = vmatmul.mubr.bf16.gmra.mxu0 %v485
      %v521 = vpop.f32.mrf.mxu0
      %v522 = vadd.f32 0.0, %v521
      %v523 = vpop.f32.mrf.mxu0
      %v524 = vpop.f32.mrf.mxu0
      %v525 = vpop.f32.mrf.mxu0
      %526 = vdwg.mxu0
      %v528 = vsel %vm350, %v343, 0
      %530 = vmatprep.subr.bf16.mxu0 0
      %531 = vmatpush1.bf16.msra.mxu0 0
      %532 = vmatprep.subr.bf16.mxu0 0
      %533 = vmatpush1.bf16.msra.mxu0 0
      %534 = vmatprep.subr.bf16.mxu0 0
      %535 = vmatpush1.bf16.msra.mxu0 0
      %536 = vmatprep.subr.bf16.mxu0 0
      %537 = vmatpush1.bf16.msra.mxu0 0
      %538 = vmatprep.subr.bf16.mxu0 0
      %539 = vmatpush1.bf16.msra.mxu0 0
      %540 = vmatprep.subr.bf16.mxu0 0
      %541 = vmatpush1.bf16.msra.mxu0 0
      %542 = vmatprep.subr.bf16.mxu0 0
      %543 = vmatpush1.bf16.msra.mxu0 0
      %544 = vmatprep.subr.bf16.mxu0 0
      %545 = vmatpush1.bf16.msra.mxu0 %v356
      %546 = vmatprep.subr.bf16.mxu0 0
      %547 = vmatpush2.bf16.msra.mxu0 0
      %548 = vmatprep.subr.bf16.mxu0 0
      %549 = vmatpush2.bf16.msra.mxu0 0
      %550 = vmatprep.subr.bf16.mxu0 0
      %551 = vmatpush2.bf16.msra.mxu0 0
      %552 = vmatprep.subr.bf16.mxu0 0
      %553 = vmatpush2.bf16.msra.mxu0 0
      %554 = vmatprep.subr.bf16.mxu0 0
      %555 = vmatpush2.bf16.msra.mxu0 0
      %556 = vmatprep.subr.bf16.mxu0 0
      %557 = vmatpush2.bf16.msra.mxu0 0
      %558 = vmatprep.subr.bf16.mxu0 0
      %559 = vmatpush2.bf16.msra.mxu0 0
      %560 = vmatprep.subr.bf16.mxu0 0
      %561 = vmatpush2.bf16.msra.mxu0 0
      %562 = vmatprep.mubr.bf16.mxu0 0
      %563 = vmatmul.mubr.bf16.gmra.mxu0 %v528
      %v564 = vpop.f32.mrf.mxu0
      %v565 = vadd.f32 0.0, %v564
      %v566 = vpop.f32.mrf.mxu0
      %v567 = vpop.f32.mrf.mxu0
      %v568 = vpop.f32.mrf.mxu0
      %569 = vdwg.mxu0
      %v571 = vsel %vm350, %v344, 0
      %573 = vmatprep.subr.bf16.mxu0 0
      %574 = vmatpush1.bf16.msra.mxu0 0
      %575 = vmatprep.subr.bf16.mxu0 0
      %576 = vmatpush1.bf16.msra.mxu0 0
      %577 = vmatprep.subr.bf16.mxu0 0
      %578 = vmatpush1.bf16.msra.mxu0 0
      %579 = vmatprep.subr.bf16.mxu0 0
      %580 = vmatpush1.bf16.msra.mxu0 0
      %581 = vmatprep.subr.bf16.mxu0 0
      %582 = vmatpush1.bf16.msra.mxu0 0
      %583 = vmatprep.subr.bf16.mxu0 0
      %584 = vmatpush1.bf16.msra.mxu0 0
      %585 = vmatprep.subr.bf16.mxu0 0
      %586 = vmatpush1.bf16.msra.mxu0 0
      %587 = vmatprep.subr.bf16.mxu0 0
      %588 = vmatpush1.bf16.msra.mxu0 %v356
      %589 = vmatprep.subr.bf16.mxu0 0
      %590 = vmatpush2.bf16.msra.mxu0 0
      %591 = vmatprep.subr.bf16.mxu0 0
      %592 = vmatpush2.bf16.msra.mxu0 0
      %593 = vmatprep.subr.bf16.mxu0 0
      %594 = vmatpush2.bf16.msra.mxu0 0
      %595 = vmatprep.subr.bf16.mxu0 0
      %596 = vmatpush2.bf16.msra.mxu0 0
      %597 = vmatprep.subr.bf16.mxu0 0
      %598 = vmatpush2.bf16.msra.mxu0 0
      %599 = vmatprep.subr.bf16.mxu0 0
      %600 = vmatpush2.bf16.msra.mxu0 0
      %601 = vmatprep.subr.bf16.mxu0 0
      %602 = vmatpush2.bf16.msra.mxu0 0
      %603 = vmatprep.subr.bf16.mxu0 0
      %604 = vmatpush2.bf16.msra.mxu0 0
      %605 = vmatprep.mubr.bf16.mxu0 0
      %606 = vmatmul.mubr.bf16.gmra.mxu0 %v571
      %v607 = vpop.f32.mrf.mxu0
      %v608 = vadd.f32 0.0, %v607
      %v609 = vpop.f32.mrf.mxu0
      %v610 = vpop.f32.mrf.mxu0
      %v611 = vpop.f32.mrf.mxu0
      %612 = vdwg.mxu0
      %v614 = vsel %vm350, %v345, 0
      %616 = vmatprep.subr.bf16.mxu0 0
      %617 = vmatpush1.bf16.msra.mxu0 0
      %618 = vmatprep.subr.bf16.mxu0 0
      %619 = vmatpush1.bf16.msra.mxu0 0
      %620 = vmatprep.subr.bf16.mxu0 0
      %621 = vmatpush1.bf16.msra.mxu0 0
      %622 = vmatprep.subr.bf16.mxu0 0
      %623 = vmatpush1.bf16.msra.mxu0 0
      %624 = vmatprep.subr.bf16.mxu0 0
      %625 = vmatpush1.bf16.msra.mxu0 0
      %626 = vmatprep.subr.bf16.mxu0 0
      %627 = vmatpush1.bf16.msra.mxu0 0
      %628 = vmatprep.subr.bf16.mxu0 0
      %629 = vmatpush1.bf16.msra.mxu0 0
      %630 = vmatprep.subr.bf16.mxu0 0
      %631 = vmatpush1.bf16.msra.mxu0 %v356
      %632 = vmatprep.subr.bf16.mxu0 0
      %633 = vmatpush2.bf16.msra.mxu0 0
      %634 = vmatprep.subr.bf16.mxu0 0
      %635 = vmatpush2.bf16.msra.mxu0 0
      %636 = vmatprep.subr.bf16.mxu0 0
      %637 = vmatpush2.bf16.msra.mxu0 0
      %638 = vmatprep.subr.bf16.mxu0 0
      %639 = vmatpush2.bf16.msra.mxu0 0
      %640 = vmatprep.subr.bf16.mxu0 0
      %641 = vmatpush2.bf16.msra.mxu0 0
      %642 = vmatprep.subr.bf16.mxu0 0
      %643 = vmatpush2.bf16.msra.mxu0 0
      %644 = vmatprep.subr.bf16.mxu0 0
      %645 = vmatpush2.bf16.msra.mxu0 0
      %646 = vmatprep.subr.bf16.mxu0 0
      %647 = vmatpush2.bf16.msra.mxu0 0
      %648 = vmatprep.mubr.bf16.mxu0 0
      %649 = vmatmul.mubr.bf16.gmra.mxu0 %v614
      %v650 = vpop.f32.mrf.mxu0
      %v651 = vadd.f32 0.0, %v650
      %v652 = vpop.f32.mrf.mxu0
      %v653 = vpop.f32.mrf.mxu0
      %v654 = vpop.f32.mrf.mxu0
      %655 = vdwg.mxu0
      %v657 = vsel %vm350, %v346, 0
      %659 = vmatprep.subr.bf16.mxu0 0
      %660 = vmatpush1.bf16.msra.mxu0 0
      %661 = vmatprep.subr.bf16.mxu0 0
      %662 = vmatpush1.bf16.msra.mxu0 0
      %663 = vmatprep.subr.bf16.mxu0 0
      %664 = vmatpush1.bf16.msra.mxu0 0
      %665 = vmatprep.subr.bf16.mxu0 0
      %666 = vmatpush1.bf16.msra.mxu0 0
      %667 = vmatprep.subr.bf16.mxu0 0
      %668 = vmatpush1.bf16.msra.mxu0 0
      %669 = vmatprep.subr.bf16.mxu0 0
      %670 = vmatpush1.bf16.msra.mxu0 0
      %671 = vmatprep.subr.bf16.mxu0 0
      %672 = vmatpush1.bf16.msra.mxu0 0
      %673 = vmatprep.subr.bf16.mxu0 0
      %674 = vmatpush1.bf16.msra.mxu0 %v356
      %675 = vmatprep.subr.bf16.mxu0 0
      %676 = vmatpush2.bf16.msra.mxu0 0
      %677 = vmatprep.subr.bf16.mxu0 0
      %678 = vmatpush2.bf16.msra.mxu0 0
      %679 = vmatprep.subr.bf16.mxu0 0
      %680 = vmatpush2.bf16.msra.mxu0 0
      %681 = vmatprep.subr.bf16.mxu0 0
      %682 = vmatpush2.bf16.msra.mxu0 0
      %683 = vmatprep.subr.bf16.mxu0 0
      %684 = vmatpush2.bf16.msra.mxu0 0
      %685 = vmatprep.subr.bf16.mxu0 0
      %686 = vmatpush2.bf16.msra.mxu0 0
      %687 = vmatprep.subr.bf16.mxu0 0
      %688 = vmatpush2.bf16.msra.mxu0 0
      %689 = vmatprep.subr.bf16.mxu0 0
      %690 = vmatpush2.bf16.msra.mxu0 0
      %691 = vmatprep.mubr.bf16.mxu0 0
      %692 = vmatmul.mubr.bf16.gmra.mxu0 %v657
      %v693 = vpop.f32.mrf.mxu0
      %v694 = vadd.f32 0.0, %v693
      %v695 = vpop.f32.mrf.mxu0
      %v696 = vpop.f32.mrf.mxu0
      %v697 = vpop.f32.mrf.mxu0
      %698 = vdwg.mxu0
      %v700 = vsel %vm350, %v321, 0
      %v703 = vsel %vm354, %v330, 0
      %705 = vmatprep.subr.bf16.mxu0 0
      %706 = vmatpush1.bf16.msra.mxu0 0
      %707 = vmatprep.subr.bf16.mxu0 0
      %708 = vmatpush1.bf16.msra.mxu0 0
      %709 = vmatprep.subr.bf16.mxu0 0
      %710 = vmatpush1.bf16.msra.mxu0 0
      %711 = vmatprep.subr.bf16.mxu0 0
      %712 = vmatpush1.bf16.msra.mxu0 0
      %713 = vmatprep.subr.bf16.mxu0 0
      %714 = vmatpush1.bf16.msra.mxu0 0
      %715 = vmatprep.subr.bf16.mxu0 0
      %716 = vmatpush1.bf16.msra.mxu0 0
      %717 = vmatprep.subr.bf16.mxu0 0
      %718 = vmatpush1.bf16.msra.mxu0 0
      %719 = vmatprep.subr.bf16.mxu0 0
      %720 = vmatpush1.bf16.msra.mxu0 %v703
      %721 = vmatprep.subr.bf16.mxu0 0
      %722 = vmatpush2.bf16.msra.mxu0 0
      %723 = vmatprep.subr.bf16.mxu0 0
      %724 = vmatpush2.bf16.msra.mxu0 0
      %725 = vmatprep.subr.bf16.mxu0 0
      %726 = vmatpush2.bf16.msra.mxu0 0
      %727 = vmatprep.subr.bf16.mxu0 0
      %728 = vmatpush2.bf16.msra.mxu0 0
      %729 = vmatprep.subr.bf16.mxu0 0
      %730 = vmatpush2.bf16.msra.mxu0 0
      %731 = vmatprep.subr.bf16.mxu0 0
      %732 = vmatpush2.bf16.msra.mxu0 0
      %733 = vmatprep.subr.bf16.mxu0 0
      %734 = vmatpush2.bf16.msra.mxu0 0
      %735 = vmatprep.subr.bf16.mxu0 0
      %736 = vmatpush2.bf16.msra.mxu0 0
      %737 = vmatprep.mubr.bf16.mxu0 0
      %738 = vmatmul.mubr.bf16.gmra.mxu0 %v700
      %v739 = vpop.f32.mrf.mxu0
      %v740 = vadd.f32 %v393, %v739
      %v741 = vpop.f32.mrf.mxu0
      %v742 = vpop.f32.mrf.mxu0
      %v743 = vpop.f32.mrf.mxu0
      %744 = vdwg.mxu0
      %v746 = vsel %vm350, %v322, 0
      %748 = vmatprep.subr.bf16.mxu0 0
      %749 = vmatpush1.bf16.msra.mxu0 0
      %750 = vmatprep.subr.bf16.mxu0 0
      %751 = vmatpush1.bf16.msra.mxu0 0
      %752 = vmatprep.subr.bf16.mxu0 0
      %753 = vmatpush1.bf16.msra.mxu0 0
      %754 = vmatprep.subr.bf16.mxu0 0
      %755 = vmatpush1.bf16.msra.mxu0 0
      %756 = vmatprep.subr.bf16.mxu0 0
      %757 = vmatpush1.bf16.msra.mxu0 0
      %758 = vmatprep.subr.bf16.mxu0 0
      %759 = vmatpush1.bf16.msra.mxu0 0
      %760 = vmatprep.subr.bf16.mxu0 0
      %761 = vmatpush1.bf16.msra.mxu0 0
      %762 = vmatprep.subr.bf16.mxu0 0
      %763 = vmatpush1.bf16.msra.mxu0 %v703
      %764 = vmatprep.subr.bf16.mxu0 0
      %765 = vmatpush2.bf16.msra.mxu0 0
      %766 = vmatprep.subr.bf16.mxu0 0
      %767 = vmatpush2.bf16.msra.mxu0 0
      %768 = vmatprep.subr.bf16.mxu0 0
      %769 = vmatpush2.bf16.msra.mxu0 0
      %770 = vmatprep.subr.bf16.mxu0 0
      %771 = vmatpush2.bf16.msra.mxu0 0
      %772 = vmatprep.subr.bf16.mxu0 0
      %773 = vmatpush2.bf16.msra.mxu0 0
      %774 = vmatprep.subr.bf16.mxu0 0
      %775 = vmatpush2.bf16.msra.mxu0 0
      %776 = vmatprep.subr.bf16.mxu0 0
      %777 = vmatpush2.bf16.msra.mxu0 0
      %778 = vmatprep.subr.bf16.mxu0 0
      %779 = vmatpush2.bf16.msra.mxu0 0
      %780 = vmatprep.mubr.bf16.mxu0 0
      %781 = vmatmul.mubr.bf16.gmra.mxu0 %v746
      %v782 = vpop.f32.mrf.mxu0
      %v783 = vadd.f32 %v436, %v782
      %v784 = vpop.f32.mrf.mxu0
      %v785 = vpop.f32.mrf.mxu0
      %v786 = vpop.f32.mrf.mxu0
      %787 = vdwg.mxu0
      %v789 = vsel %vm350, %v323, 0
      %791 = vmatprep.subr.bf16.mxu0 0
      %792 = vmatpush1.bf16.msra.mxu0 0
      %793 = vmatprep.subr.bf16.mxu0 0
      %794 = vmatpush1.bf16.msra.mxu0 0
      %795 = vmatprep.subr.bf16.mxu0 0
      %796 = vmatpush1.bf16.msra.mxu0 0
      %797 = vmatprep.subr.bf16.mxu0 0
      %798 = vmatpush1.bf16.msra.mxu0 0
      %799 = vmatprep.subr.bf16.mxu0 0
      %800 = vmatpush1.bf16.msra.mxu0 0
      %801 = vmatprep.subr.bf16.mxu0 0
      %802 = vmatpush1.bf16.msra.mxu0 0
      %803 = vmatprep.subr.bf16.mxu0 0
      %804 = vmatpush1.bf16.msra.mxu0 0
      %805 = vmatprep.subr.bf16.mxu0 0
      %806 = vmatpush1.bf16.msra.mxu0 %v703
      %807 = vmatprep.subr.bf16.mxu0 0
      %808 = vmatpush2.bf16.msra.mxu0 0
      %809 = vmatprep.subr.bf16.mxu0 0
      %810 = vmatpush2.bf16.msra.mxu0 0
      %811 = vmatprep.subr.bf16.mxu0 0
      %812 = vmatpush2.bf16.msra.mxu0 0
      %813 = vmatprep.subr.bf16.mxu0 0
      %814 = vmatpush2.bf16.msra.mxu0 0
      %815 = vmatprep.subr.bf16.mxu0 0
      %816 = vmatpush2.bf16.msra.mxu0 0
      %817 = vmatprep.subr.bf16.mxu0 0
      %818 = vmatpush2.bf16.msra.mxu0 0
      %819 = vmatprep.subr.bf16.mxu0 0
      %820 = vmatpush2.bf16.msra.mxu0 0
      %821 = vmatprep.subr.bf16.mxu0 0
      %822 = vmatpush2.bf16.msra.mxu0 0
      %823 = vmatprep.mubr.bf16.mxu0 0
      %824 = vmatmul.mubr.bf16.gmra.mxu0 %v789
      %v825 = vpop.f32.mrf.mxu0
      %v826 = vadd.f32 %v479, %v825
      %v827 = vpop.f32.mrf.mxu0
      %v828 = vpop.f32.mrf.mxu0
      %v829 = vpop.f32.mrf.mxu0
      %830 = vdwg.mxu0
      %v832 = vsel %vm350, %v324, 0
      %834 = vmatprep.subr.bf16.mxu0 0
      %835 = vmatpush1.bf16.msra.mxu0 0
      %836 = vmatprep.subr.bf16.mxu0 0
      %837 = vmatpush1.bf16.msra.mxu0 0
      %838 = vmatprep.subr.bf16.mxu0 0
      %839 = vmatpush1.bf16.msra.mxu0 0
      %840 = vmatprep.subr.bf16.mxu0 0
      %841 = vmatpush1.bf16.msra.mxu0 0
      %842 = vmatprep.subr.bf16.mxu0 0
      %843 = vmatpush1.bf16.msra.mxu0 0
      %844 = vmatprep.subr.bf16.mxu0 0
      %845 = vmatpush1.bf16.msra.mxu0 0
      %846 = vmatprep.subr.bf16.mxu0 0
      %847 = vmatpush1.bf16.msra.mxu0 0
      %848 = vmatprep.subr.bf16.mxu0 0
      %849 = vmatpush1.bf16.msra.mxu0 %v703
      %850 = vmatprep.subr.bf16.mxu0 0
      %851 = vmatpush2.bf16.msra.mxu0 0
      %852 = vmatprep.subr.bf16.mxu0 0
      %853 = vmatpush2.bf16.msra.mxu0 0
      %854 = vmatprep.subr.bf16.mxu0 0
      %855 = vmatpush2.bf16.msra.mxu0 0
      %856 = vmatprep.subr.bf16.mxu0 0
      %857 = vmatpush2.bf16.msra.mxu0 0
      %858 = vmatprep.subr.bf16.mxu0 0
      %859 = vmatpush2.bf16.msra.mxu0 0
      %860 = vmatprep.subr.bf16.mxu0 0
      %861 = vmatpush2.bf16.msra.mxu0 0
      %862 = vmatprep.subr.bf16.mxu0 0
      %863 = vmatpush2.bf16.msra.mxu0 0
      %864 = vmatprep.subr.bf16.mxu0 0
      %865 = vmatpush2.bf16.msra.mxu0 0
      %866 = vmatprep.mubr.bf16.mxu0 0
      %867 = vmatmul.mubr.bf16.gmra.mxu0 %v832
      %v868 = vpop.f32.mrf.mxu0
      %v869 = vadd.f32 %v522, %v868
      %v870 = vpop.f32.mrf.mxu0
      %v871 = vpop.f32.mrf.mxu0
      %v872 = vpop.f32.mrf.mxu0
      %873 = vdwg.mxu0
      %v875 = vsel %vm350, %v325, 0
      %877 = vmatprep.subr.bf16.mxu0 0
      %878 = vmatpush1.bf16.msra.mxu0 0
      %879 = vmatprep.subr.bf16.mxu0 0
      %880 = vmatpush1.bf16.msra.mxu0 0
      %881 = vmatprep.subr.bf16.mxu0 0
      %882 = vmatpush1.bf16.msra.mxu0 0
      %883 = vmatprep.subr.bf16.mxu0 0
      %884 = vmatpush1.bf16.msra.mxu0 0
      %885 = vmatprep.subr.bf16.mxu0 0
      %886 = vmatpush1.bf16.msra.mxu0 0
      %887 = vmatprep.subr.bf16.mxu0 0
      %888 = vmatpush1.bf16.msra.mxu0 0
      %889 = vmatprep.subr.bf16.mxu0 0
      %890 = vmatpush1.bf16.msra.mxu0 0
      %891 = vmatprep.subr.bf16.mxu0 0
      %892 = vmatpush1.bf16.msra.mxu0 %v703
      %893 = vmatprep.subr.bf16.mxu0 0
      %894 = vmatpush2.bf16.msra.mxu0 0
      %895 = vmatprep.subr.bf16.mxu0 0
      %896 = vmatpush2.bf16.msra.mxu0 0
      %897 = vmatprep.subr.bf16.mxu0 0
      %898 = vmatpush2.bf16.msra.mxu0 0
      %899 = vmatprep.subr.bf16.mxu0 0
      %900 = vmatpush2.bf16.msra.mxu0 0
      %901 = vmatprep.subr.bf16.mxu0 0
      %902 = vmatpush2.bf16.msra.mxu0 0
      %903 = vmatprep.subr.bf16.mxu0 0
      %904 = vmatpush2.bf16.msra.mxu0 0
      %905 = vmatprep.subr.bf16.mxu0 0
      %906 = vmatpush2.bf16.msra.mxu0 0
      %907 = vmatprep.subr.bf16.mxu0 0
      %908 = vmatpush2.bf16.msra.mxu0 0
      %909 = vmatprep.mubr.bf16.mxu0 0
      %910 = vmatmul.mubr.bf16.gmra.mxu0 %v875
      %v911 = vpop.f32.mrf.mxu0
      %v912 = vadd.f32 %v565, %v911
      %v913 = vpop.f32.mrf.mxu0
      %v914 = vpop.f32.mrf.mxu0
      %v915 = vpop.f32.mrf.mxu0
      %916 = vdwg.mxu0
      %v918 = vsel %vm350, %v326, 0
      %920 = vmatprep.subr.bf16.mxu0 0
      %921 = vmatpush1.bf16.msra.mxu0 0
      %922 = vmatprep.subr.bf16.mxu0 0
      %923 = vmatpush1.bf16.msra.mxu0 0
      %924 = vmatprep.subr.bf16.mxu0 0
      %925 = vmatpush1.bf16.msra.mxu0 0
      %926 = vmatprep.subr.bf16.mxu0 0
      %927 = vmatpush1.bf16.msra.mxu0 0
      %928 = vmatprep.subr.bf16.mxu0 0
      %929 = vmatpush1.bf16.msra.mxu0 0
      %930 = vmatprep.subr.bf16.mxu0 0
      %931 = vmatpush1.bf16.msra.mxu0 0
      %932 = vmatprep.subr.bf16.mxu0 0
      %933 = vmatpush1.bf16.msra.mxu0 0
      %934 = vmatprep.subr.bf16.mxu0 0
      %935 = vmatpush1.bf16.msra.mxu0 %v703
      %936 = vmatprep.subr.bf16.mxu0 0
      %937 = vmatpush2.bf16.msra.mxu0 0
      %938 = vmatprep.subr.bf16.mxu0 0
      %939 = vmatpush2.bf16.msra.mxu0 0
      %940 = vmatprep.subr.bf16.mxu0 0
      %941 = vmatpush2.bf16.msra.mxu0 0
      %942 = vmatprep.subr.bf16.mxu0 0
      %943 = vmatpush2.bf16.msra.mxu0 0
      %944 = vmatprep.subr.bf16.mxu0 0
      %945 = vmatpush2.bf16.msra.mxu0 0
      %946 = vmatprep.subr.bf16.mxu0 0
      %947 = vmatpush2.bf16.msra.mxu0 0
      %948 = vmatprep.subr.bf16.mxu0 0
      %949 = vmatpush2.bf16.msra.mxu0 0
      %950 = vmatprep.subr.bf16.mxu0 0
      %951 = vmatpush2.bf16.msra.mxu0 0
      %952 = vmatprep.mubr.bf16.mxu0 0
      %953 = vmatmul.mubr.bf16.gmra.mxu0 %v918
      %v954 = vpop.f32.mrf.mxu0
      %v955 = vadd.f32 %v608, %v954
      %v956 = vpop.f32.mrf.mxu0
      %v957 = vpop.f32.mrf.mxu0
      %v958 = vpop.f32.mrf.mxu0
      %959 = vdwg.mxu0
      %v961 = vsel %vm350, %v327, 0
      %963 = vmatprep.subr.bf16.mxu0 0
      %964 = vmatpush1.bf16.msra.mxu0 0
      %965 = vmatprep.subr.bf16.mxu0 0
      %966 = vmatpush1.bf16.msra.mxu0 0
      %967 = vmatprep.subr.bf16.mxu0 0
      %968 = vmatpush1.bf16.msra.mxu0 0
      %969 = vmatprep.subr.bf16.mxu0 0
      %970 = vmatpush1.bf16.msra.mxu0 0
      %971 = vmatprep.subr.bf16.mxu0 0
      %972 = vmatpush1.bf16.msra.mxu0 0
      %973 = vmatprep.subr.bf16.mxu0 0
      %974 = vmatpush1.bf16.msra.mxu0 0
      %975 = vmatprep.subr.bf16.mxu0 0
      %976 = vmatpush1.bf16.msra.mxu0 0
      %977 = vmatprep.subr.bf16.mxu0 0
      %978 = vmatpush1.bf16.msra.mxu0 %v703
      %979 = vmatprep.subr.bf16.mxu0 0
      %980 = vmatpush2.bf16.msra.mxu0 0
      %981 = vmatprep.subr.bf16.mxu0 0
      %982 = vmatpush2.bf16.msra.mxu0 0
      %983 = vmatprep.subr.bf16.mxu0 0
      %984 = vmatpush2.bf16.msra.mxu0 0
      %985 = vmatprep.subr.bf16.mxu0 0
      %986 = vmatpush2.bf16.msra.mxu0 0
      %987 = vmatprep.subr.bf16.mxu0 0
      %988 = vmatpush2.bf16.msra.mxu0 0
      %989 = vmatprep.subr.bf16.mxu0 0
      %990 = vmatpush2.bf16.msra.mxu0 0
      %991 = vmatprep.subr.bf16.mxu0 0
      %992 = vmatpush2.bf16.msra.mxu0 0
      %993 = vmatprep.subr.bf16.mxu0 0
      %994 = vmatpush2.bf16.msra.mxu0 0
      %995 = vmatprep.mubr.bf16.mxu0 0
      %996 = vmatmul.mubr.bf16.gmra.mxu0 %v961
      %v997 = vpop.f32.mrf.mxu0
      %v998 = vadd.f32 %v651, %v997
      %v999 = vpop.f32.mrf.mxu0
      %v1000 = vpop.f32.mrf.mxu0
      %v1001 = vpop.f32.mrf.mxu0
      %1002 = vdwg.mxu0
      %v1004 = vsel %vm350, %v328, 0
      %1006 = vmatprep.subr.bf16.mxu0 0
      %1007 = vmatpush1.bf16.msra.mxu0 0
      %1008 = vmatprep.subr.bf16.mxu0 0
      %1009 = vmatpush1.bf16.msra.mxu0 0
      %1010 = vmatprep.subr.bf16.mxu0 0
      %1011 = vmatpush1.bf16.msra.mxu0 0
      %1012 = vmatprep.subr.bf16.mxu0 0
      %1013 = vmatpush1.bf16.msra.mxu0 0
      %1014 = vmatprep.subr.bf16.mxu0 0
      %1015 = vmatpush1.bf16.msra.mxu0 0
      %1016 = vmatprep.subr.bf16.mxu0 0
      %1017 = vmatpush1.bf16.msra.mxu0 0
      %1018 = vmatprep.subr.bf16.mxu0 0
      %1019 = vmatpush1.bf16.msra.mxu0 0
      %1020 = vmatprep.subr.bf16.mxu0 0
      %1021 = vmatpush1.bf16.msra.mxu0 %v703
      %1022 = vmatprep.subr.bf16.mxu0 0
      %1023 = vmatpush2.bf16.msra.mxu0 0
      %1024 = vmatprep.subr.bf16.mxu0 0
      %1025 = vmatpush2.bf16.msra.mxu0 0
      %1026 = vmatprep.subr.bf16.mxu0 0
      %1027 = vmatpush2.bf16.msra.mxu0 0
      %1028 = vmatprep.subr.bf16.mxu0 0
      %1029 = vmatpush2.bf16.msra.mxu0 0
      %1030 = vmatprep.subr.bf16.mxu0 0
      %1031 = vmatpush2.bf16.msra.mxu0 0
      %1032 = vmatprep.subr.bf16.mxu0 0
      %1033 = vmatpush2.bf16.msra.mxu0 0
      %1034 = vmatprep.subr.bf16.mxu0 0
      %1035 = vmatpush2.bf16.msra.mxu0 0
      %1036 = vmatprep.subr.bf16.mxu0 0
      %1037 = vmatpush2.bf16.msra.mxu0 0
      %1038 = vmatprep.mubr.bf16.mxu0 0
      %1039 = vmatmul.mubr.bf16.gmra.mxu0 %v1004
      %v1040 = vpop.f32.mrf.mxu0
      %v1041 = vadd.f32 %v694, %v1040
      %v1042 = vpop.f32.mrf.mxu0
      %v1043 = vpop.f32.mrf.mxu0
      %v1044 = vpop.f32.mrf.mxu0
      %1045 = vdwg.mxu0
      %v1046 = vld [vmem:[%s291 + $0x1] sm:$0xff]
      %v1047 = vld [vmem:[%s291 + $0x11] sm:$0xff]
      %v1048 = vld [vmem:[%s291 + $0x21] sm:$0xff]
      %v1049 = vld [vmem:[%s291 + $0x31] sm:$0xff]
      %v1050 = vld [vmem:[%s291 + $0x41] sm:$0xff]
      %v1051 = vld [vmem:[%s291 + $0x51] sm:$0xff]
      %v1052 = vld [vmem:[%s291 + $0x61] sm:$0xff]
      %v1053 = vld [vmem:[%s291 + $0x71] sm:$0xff]
      %v1054 = vpack.c.bf16 %v1046, %v1046
      %v1055 = vpack.c.bf16 %v1047, %v1047
      %v1056 = vpack.c.bf16 %v1048, %v1048
      %v1057 = vpack.c.bf16 %v1049, %v1049
      %v1058 = vpack.c.bf16 %v1050, %v1050
      %v1059 = vpack.c.bf16 %v1051, %v1051
      %v1060 = vpack.c.bf16 %v1052, %v1052
      %v1061 = vpack.c.bf16 %v1053, %v1053
      %s1062 = scalar_lea.vmem %s4, 8
      %v1063 = vld [vmem:[%s1062] sm:$0xf]
      %v1064 = vpack.c.bf16 %v1063, %v1063
      %v1066 = vsel %vm350, %v1054, 0
      %v1069 = vsel %vm354, %v1064, 0
      %1071 = vmatprep.subr.bf16.mxu0 0
      %1072 = vmatpush1.bf16.msra.mxu0 0
      %1073 = vmatprep.subr.bf16.mxu0 0
      %1074 = vmatpush1.bf16.msra.mxu0 0
      %1075 = vmatprep.subr.bf16.mxu0 0
      %1076 = vmatpush1.bf16.msra.mxu0 0
      %1077 = vmatprep.subr.bf16.mxu0 0
      %1078 = vmatpush1.bf16.msra.mxu0 0
      %1079 = vmatprep.subr.bf16.mxu0 0
      %1080 = vmatpush1.bf16.msra.mxu0 0
      %1081 = vmatprep.subr.bf16.mxu0 0
      %1082 = vmatpush1.bf16.msra.mxu0 0
      %1083 = vmatprep.subr.bf16.mxu0 0
      %1084 = vmatpush1.bf16.msra.mxu0 0
      %1085 = vmatprep.subr.bf16.mxu0 0
      %1086 = vmatpush1.bf16.msra.mxu0 %v1069
      %1087 = vmatprep.subr.bf16.mxu0 0
      %1088 = vmatpush2.bf16.msra.mxu0 0
      %1089 = vmatprep.subr.bf16.mxu0 0
      %1090 = vmatpush2.bf16.msra.mxu0 0
      %1091 = vmatprep.subr.bf16.mxu0 0
      %1092 = vmatpush2.bf16.msra.mxu0 0
      %1093 = vmatprep.subr.bf16.mxu0 0
      %1094 = vmatpush2.bf16.msra.mxu0 0
      %1095 = vmatprep.subr.bf16.mxu0 0
      %1096 = vmatpush2.bf16.msra.mxu0 0
      %1097 = vmatprep.subr.bf16.mxu0 0
      %1098 = vmatpush2.bf16.msra.mxu0 0
      %1099 = vmatprep.subr.bf16.mxu0 0
      %1100 = vmatpush2.bf16.msra.mxu0 0
      %1101 = vmatprep.subr.bf16.mxu0 0
      %1102 = vmatpush2.bf16.msra.mxu0 0
      %1103 = vmatprep.mubr.bf16.mxu0 0
      %1104 = vmatmul.mubr.bf16.gmra.mxu0 %v1066
      %v1105 = vpop.f32.mrf.mxu0
      %v1106 = vadd.f32 0.0, %v1105
      %v1107 = vpop.f32.mrf.mxu0
      %v1108 = vpop.f32.mrf.mxu0
      %v1109 = vpop.f32.mrf.mxu0
      %1110 = vdwg.mxu0
      %v1112 = vsel %vm350, %v1055, 0
      %1114 = vmatprep.subr.bf16.mxu0 0
      %1115 = vmatpush1.bf16.msra.mxu0 0
      %1116 = vmatprep.subr.bf16.mxu0 0
      %1117 = vmatpush1.bf16.msra.mxu0 0
      %1118 = vmatprep.subr.bf16.mxu0 0
      %1119 = vmatpush1.bf16.msra.mxu0 0
      %1120 = vmatprep.subr.bf16.mxu0 0
      %1121 = vmatpush1.bf16.msra.mxu0 0
      %1122 = vmatprep.subr.bf16.mxu0 0
      %1123 = vmatpush1.bf16.msra.mxu0 0
      %1124 = vmatprep.subr.bf16.mxu0 0
      %1125 = vmatpush1.bf16.msra.mxu0 0
      %1126 = vmatprep.subr.bf16.mxu0 0
      %1127 = vmatpush1.bf16.msra.mxu0 0
      %1128 = vmatprep.subr.bf16.mxu0 0
      %1129 = vmatpush1.bf16.msra.mxu0 %v1069
      %1130 = vmatprep.subr.bf16.mxu0 0
      %1131 = vmatpush2.bf16.msra.mxu0 0
      %1132 = vmatprep.subr.bf16.mxu0 0
      %1133 = vmatpush2.bf16.msra.mxu0 0
      %1134 = vmatprep.subr.bf16.mxu0 0
      %1135 = vmatpush2.bf16.msra.mxu0 0
      %1136 = vmatprep.subr.bf16.mxu0 0
      %1137 = vmatpush2.bf16.msra.mxu0 0
      %1138 = vmatprep.subr.bf16.mxu0 0
      %1139 = vmatpush2.bf16.msra.mxu0 0
      %1140 = vmatprep.subr.bf16.mxu0 0
      %1141 = vmatpush2.bf16.msra.mxu0 0
      %1142 = vmatprep.subr.bf16.mxu0 0
      %1143 = vmatpush2.bf16.msra.mxu0 0
      %1144 = vmatprep.subr.bf16.mxu0 0
      %1145 = vmatpush2.bf16.msra.mxu0 0
      %1146 = vmatprep.mubr.bf16.mxu0 0
      %1147 = vmatmul.mubr.bf16.gmra.mxu0 %v1112
      %v1148 = vpop.f32.mrf.mxu0
      %v1149 = vadd.f32 0.0, %v1148
      %v1150 = vpop.f32.mrf.mxu0
      %v1151 = vpop.f32.mrf.mxu0
      %v1152 = vpop.f32.mrf.mxu0
      %1153 = vdwg.mxu0
      %v1155 = vsel %vm350, %v1056, 0
      %1157 = vmatprep.subr.bf16.mxu0 0
      %1158 = vmatpush1.bf16.msra.mxu0 0
      %1159 = vmatprep.subr.bf16.mxu0 0
      %1160 = vmatpush1.bf16.msra.mxu0 0
      %1161 = vmatprep.subr.bf16.mxu0 0
      %1162 = vmatpush1.bf16.msra.mxu0 0
      %1163 = vmatprep.subr.bf16.mxu0 0
      %1164 = vmatpush1.bf16.msra.mxu0 0
      %1165 = vmatprep.subr.bf16.mxu0 0
      %1166 = vmatpush1.bf16.msra.mxu0 0
      %1167 = vmatprep.subr.bf16.mxu0 0
      %1168 = vmatpush1.bf16.msra.mxu0 0
      %1169 = vmatprep.subr.bf16.mxu0 0
      %1170 = vmatpush1.bf16.msra.mxu0 0
      %1171 = vmatprep.subr.bf16.mxu0 0
      %1172 = vmatpush1.bf16.msra.mxu0 %v1069
      %1173 = vmatprep.subr.bf16.mxu0 0
      %1174 = vmatpush2.bf16.msra.mxu0 0
      %1175 = vmatprep.subr.bf16.mxu0 0
      %1176 = vmatpush2.bf16.msra.mxu0 0
      %1177 = vmatprep.subr.bf16.mxu0 0
      %1178 = vmatpush2.bf16.msra.mxu0 0
      %1179 = vmatprep.subr.bf16.mxu0 0
      %1180 = vmatpush2.bf16.msra.mxu0 0
      %1181 = vmatprep.subr.bf16.mxu0 0
      %1182 = vmatpush2.bf16.msra.mxu0 0
      %1183 = vmatprep.subr.bf16.mxu0 0
      %1184 = vmatpush2.bf16.msra.mxu0 0
      %1185 = vmatprep.subr.bf16.mxu0 0
      %1186 = vmatpush2.bf16.msra.mxu0 0
      %1187 = vmatprep.subr.bf16.mxu0 0
      %1188 = vmatpush2.bf16.msra.mxu0 0
      %1189 = vmatprep.mubr.bf16.mxu0 0
      %1190 = vmatmul.mubr.bf16.gmra.mxu0 %v1155
      %v1191 = vpop.f32.mrf.mxu0
      %v1192 = vadd.f32 0.0, %v1191
      %v1193 = vpop.f32.mrf.mxu0
      %v1194 = vpop.f32.mrf.mxu0
      %v1195 = vpop.f32.mrf.mxu0
      %1196 = vdwg.mxu0
      %v1198 = vsel %vm350, %v1057, 0
      %1200 = vmatprep.subr.bf16.mxu0 0
      %1201 = vmatpush1.bf16.msra.mxu0 0
      %1202 = vmatprep.subr.bf16.mxu0 0
      %1203 = vmatpush1.bf16.msra.mxu0 0
      %1204 = vmatprep.subr.bf16.mxu0 0
      %1205 = vmatpush1.bf16.msra.mxu0 0
      %1206 = vmatprep.subr.bf16.mxu0 0
      %1207 = vmatpush1.bf16.msra.mxu0 0
      %1208 = vmatprep.subr.bf16.mxu0 0
      %1209 = vmatpush1.bf16.msra.mxu0 0
      %1210 = vmatprep.subr.bf16.mxu0 0
      %1211 = vmatpush1.bf16.msra.mxu0 0
      %1212 = vmatprep.subr.bf16.mxu0 0
      %1213 = vmatpush1.bf16.msra.mxu0 0
      %1214 = vmatprep.subr.bf16.mxu0 0
      %1215 = vmatpush1.bf16.msra.mxu0 %v1069
      %1216 = vmatprep.subr.bf16.mxu0 0
      %1217 = vmatpush2.bf16.msra.mxu0 0
      %1218 = vmatprep.subr.bf16.mxu0 0
      %1219 = vmatpush2.bf16.msra.mxu0 0
      %1220 = vmatprep.subr.bf16.mxu0 0
      %1221 = vmatpush2.bf16.msra.mxu0 0
      %1222 = vmatprep.subr.bf16.mxu0 0
      %1223 = vmatpush2.bf16.msra.mxu0 0
      %1224 = vmatprep.subr.bf16.mxu0 0
      %1225 = vmatpush2.bf16.msra.mxu0 0
      %1226 = vmatprep.subr.bf16.mxu0 0
      %1227 = vmatpush2.bf16.msra.mxu0 0
      %1228 = vmatprep.subr.bf16.mxu0 0
      %1229 = vmatpush2.bf16.msra.mxu0 0
      %1230 = vmatprep.subr.bf16.mxu0 0
      %1231 = vmatpush2.bf16.msra.mxu0 0
      %1232 = vmatprep.mubr.bf16.mxu0 0
      %1233 = vmatmul.mubr.bf16.gmra.mxu0 %v1198
      %v1234 = vpop.f32.mrf.mxu0
      %v1235 = vadd.f32 0.0, %v1234
      %v1236 = vpop.f32.mrf.mxu0
      %v1237 = vpop.f32.mrf.mxu0
      %v1238 = vpop.f32.mrf.mxu0
      %1239 = vdwg.mxu0
      %v1241 = vsel %vm350, %v1058, 0
      %1243 = vmatprep.subr.bf16.mxu0 0
      %1244 = vmatpush1.bf16.msra.mxu0 0
      %1245 = vmatprep.subr.bf16.mxu0 0
      %1246 = vmatpush1.bf16.msra.mxu0 0
      %1247 = vmatprep.subr.bf16.mxu0 0
      %1248 = vmatpush1.bf16.msra.mxu0 0
      %1249 = vmatprep.subr.bf16.mxu0 0
      %1250 = vmatpush1.bf16.msra.mxu0 0
      %1251 = vmatprep.subr.bf16.mxu0 0
      %1252 = vmatpush1.bf16.msra.mxu0 0
      %1253 = vmatprep.subr.bf16.mxu0 0
      %1254 = vmatpush1.bf16.msra.mxu0 0
      %1255 = vmatprep.subr.bf16.mxu0 0
      %1256 = vmatpush1.bf16.msra.mxu0 0
      %1257 = vmatprep.subr.bf16.mxu0 0
      %1258 = vmatpush1.bf16.msra.mxu0 %v1069
      %1259 = vmatprep.subr.bf16.mxu0 0
      %1260 = vmatpush2.bf16.msra.mxu0 0
      %1261 = vmatprep.subr.bf16.mxu0 0
      %1262 = vmatpush2.bf16.msra.mxu0 0
      %1263 = vmatprep.subr.bf16.mxu0 0
      %1264 = vmatpush2.bf16.msra.mxu0 0
      %1265 = vmatprep.subr.bf16.mxu0 0
      %1266 = vmatpush2.bf16.msra.mxu0 0
      %1267 = vmatprep.subr.bf16.mxu0 0
      %1268 = vmatpush2.bf16.msra.mxu0 0
      %1269 = vmatprep.subr.bf16.mxu0 0
      %1270 = vmatpush2.bf16.msra.mxu0 0
      %1271 = vmatprep.subr.bf16.mxu0 0
      %1272 = vmatpush2.bf16.msra.mxu0 0
      %1273 = vmatprep.subr.bf16.mxu0 0
      %1274 = vmatpush2.bf16.msra.mxu0 0
      %1275 = vmatprep.mubr.bf16.mxu0 0
      %1276 = vmatmul.mubr.bf16.gmra.mxu0 %v1241
      %v1277 = vpop.f32.mrf.mxu0
      %v1278 = vadd.f32 0.0, %v1277
      %v1279 = vpop.f32.mrf.mxu0
      %v1280 = vpop.f32.mrf.mxu0
      %v1281 = vpop.f32.mrf.mxu0
      %1282 = vdwg.mxu0
      %v1284 = vsel %vm350, %v1059, 0
      %1286 = vmatprep.subr.bf16.mxu0 0
      %1287 = vmatpush1.bf16.msra.mxu0 0
      %1288 = vmatprep.subr.bf16.mxu0 0
      %1289 = vmatpush1.bf16.msra.mxu0 0
      %1290 = vmatprep.subr.bf16.mxu0 0
      %1291 = vmatpush1.bf16.msra.mxu0 0
      %1292 = vmatprep.subr.bf16.mxu0 0
      %1293 = vmatpush1.bf16.msra.mxu0 0
      %1294 = vmatprep.subr.bf16.mxu0 0
      %1295 = vmatpush1.bf16.msra.mxu0 0
      %1296 = vmatprep.subr.bf16.mxu0 0
      %1297 = vmatpush1.bf16.msra.mxu0 0
      %1298 = vmatprep.subr.bf16.mxu0 0
      %1299 = vmatpush1.bf16.msra.mxu0 0
      %1300 = vmatprep.subr.bf16.mxu0 0
      %1301 = vmatpush1.bf16.msra.mxu0 %v1069
      %1302 = vmatprep.subr.bf16.mxu0 0
      %1303 = vmatpush2.bf16.msra.mxu0 0
      %1304 = vmatprep.subr.bf16.mxu0 0
      %1305 = vmatpush2.bf16.msra.mxu0 0
      %1306 = vmatprep.subr.bf16.mxu0 0
      %1307 = vmatpush2.bf16.msra.mxu0 0
      %1308 = vmatprep.subr.bf16.mxu0 0
      %1309 = vmatpush2.bf16.msra.mxu0 0
      %1310 = vmatprep.subr.bf16.mxu0 0
      %1311 = vmatpush2.bf16.msra.mxu0 0
      %1312 = vmatprep.subr.bf16.mxu0 0
      %1313 = vmatpush2.bf16.msra.mxu0 0
      %1314 = vmatprep.subr.bf16.mxu0 0
      %1315 = vmatpush2.bf16.msra.mxu0 0
      %1316 = vmatprep.subr.bf16.mxu0 0
      %1317 = vmatpush2.bf16.msra.mxu0 0
      %1318 = vmatprep.mubr.bf16.mxu0 0
      %1319 = vmatmul.mubr.bf16.gmra.mxu0 %v1284
      %v1320 = vpop.f32.mrf.mxu0
      %v1321 = vadd.f32 0.0, %v1320
      %v1322 = vpop.f32.mrf.mxu0
      %v1323 = vpop.f32.mrf.mxu0
      %v1324 = vpop.f32.mrf.mxu0
      %1325 = vdwg.mxu0
      %v1327 = vsel %vm350, %v1060, 0
      %1329 = vmatprep.subr.bf16.mxu0 0
      %1330 = vmatpush1.bf16.msra.mxu0 0
      %1331 = vmatprep.subr.bf16.mxu0 0
      %1332 = vmatpush1.bf16.msra.mxu0 0
      %1333 = vmatprep.subr.bf16.mxu0 0
      %1334 = vmatpush1.bf16.msra.mxu0 0
      %1335 = vmatprep.subr.bf16.mxu0 0
      %1336 = vmatpush1.bf16.msra.mxu0 0
      %1337 = vmatprep.subr.bf16.mxu0 0
      %1338 = vmatpush1.bf16.msra.mxu0 0
      %1339 = vmatprep.subr.bf16.mxu0 0
      %1340 = vmatpush1.bf16.msra.mxu0 0
      %1341 = vmatprep.subr.bf16.mxu0 0
      %1342 = vmatpush1.bf16.msra.mxu0 0
      %1343 = vmatprep.subr.bf16.mxu0 0
      %1344 = vmatpush1.bf16.msra.mxu0 %v1069
      %1345 = vmatprep.subr.bf16.mxu0 0
      %1346 = vmatpush2.bf16.msra.mxu0 0
      %1347 = vmatprep.subr.bf16.mxu0 0
      %1348 = vmatpush2.bf16.msra.mxu0 0
      %1349 = vmatprep.subr.bf16.mxu0 0
      %1350 = vmatpush2.bf16.msra.mxu0 0
      %1351 = vmatprep.subr.bf16.mxu0 0
      %1352 = vmatpush2.bf16.msra.mxu0 0
      %1353 = vmatprep.subr.bf16.mxu0 0
      %1354 = vmatpush2.bf16.msra.mxu0 0
      %1355 = vmatprep.subr.bf16.mxu0 0
      %1356 = vmatpush2.bf16.msra.mxu0 0
      %1357 = vmatprep.subr.bf16.mxu0 0
      %1358 = vmatpush2.bf16.msra.mxu0 0
      %1359 = vmatprep.subr.bf16.mxu0 0
      %1360 = vmatpush2.bf16.msra.mxu0 0
      %1361 = vmatprep.mubr.bf16.mxu0 0
      %1362 = vmatmul.mubr.bf16.gmra.mxu0 %v1327
      %v1363 = vpop.f32.mrf.mxu0
      %v1364 = vadd.f32 0.0, %v1363
      %v1365 = vpop.f32.mrf.mxu0
      %v1366 = vpop.f32.mrf.mxu0
      %v1367 = vpop.f32.mrf.mxu0
      %1368 = vdwg.mxu0
      %v1370 = vsel %vm350, %v1061, 0
      %1372 = vmatprep.subr.bf16.mxu0 0
      %1373 = vmatpush1.bf16.msra.mxu0 0
      %1374 = vmatprep.subr.bf16.mxu0 0
      %1375 = vmatpush1.bf16.msra.mxu0 0
      %1376 = vmatprep.subr.bf16.mxu0 0
      %1377 = vmatpush1.bf16.msra.mxu0 0
      %1378 = vmatprep.subr.bf16.mxu0 0
      %1379 = vmatpush1.bf16.msra.mxu0 0
      %1380 = vmatprep.subr.bf16.mxu0 0
      %1381 = vmatpush1.bf16.msra.mxu0 0
      %1382 = vmatprep.subr.bf16.mxu0 0
      %1383 = vmatpush1.bf16.msra.mxu0 0
      %1384 = vmatprep.subr.bf16.mxu0 0
      %1385 = vmatpush1.bf16.msra.mxu0 0
      %1386 = vmatprep.subr.bf16.mxu0 0
      %1387 = vmatpush1.bf16.msra.mxu0 %v1069
      %1388 = vmatprep.subr.bf16.mxu0 0
      %1389 = vmatpush2.bf16.msra.mxu0 0
      %1390 = vmatprep.subr.bf16.mxu0 0
      %1391 = vmatpush2.bf16.msra.mxu0 0
      %1392 = vmatprep.subr.bf16.mxu0 0
      %1393 = vmatpush2.bf16.msra.mxu0 0
      %1394 = vmatprep.subr.bf16.mxu0 0
      %1395 = vmatpush2.bf16.msra.mxu0 0
      %1396 = vmatprep.subr.bf16.mxu0 0
      %1397 = vmatpush2.bf16.msra.mxu0 0
      %1398 = vmatprep.subr.bf16.mxu0 0
      %1399 = vmatpush2.bf16.msra.mxu0 0
      %1400 = vmatprep.subr.bf16.mxu0 0
      %1401 = vmatpush2.bf16.msra.mxu0 0
      %1402 = vmatprep.subr.bf16.mxu0 0
      %1403 = vmatpush2.bf16.msra.mxu0 0
      %1404 = vmatprep.mubr.bf16.mxu0 0
      %1405 = vmatmul.mubr.bf16.gmra.mxu0 %v1370
      %v1406 = vpop.f32.mrf.mxu0
      %v1407 = vadd.f32 0.0, %v1406
      %v1408 = vpop.f32.mrf.mxu0
      %v1409 = vpop.f32.mrf.mxu0
      %v1410 = vpop.f32.mrf.mxu0
      %1411 = vdwg.mxu0
      %v1412 = vadd.f32 %v740, %v1106
      %v1413 = vadd.f32 %v783, %v1149
      %v1414 = vadd.f32 %v826, %v1192
      %v1415 = vadd.f32 %v869, %v1235
      %v1416 = vadd.f32 %v912, %v1278
      %v1417 = vadd.f32 %v955, %v1321
      %v1418 = vadd.f32 %v998, %v1364
      %v1419 = vadd.f32 %v1041, %v1407
      %v1420 = vld [vmem:[%s301] sm:$0xff]
      %v1421 = vld [vmem:[%s301 + $0x10] sm:$0xff]
      %v1422 = vld [vmem:[%s301 + $0x20] sm:$0xff]
      %v1423 = vld [vmem:[%s301 + $0x30] sm:$0xff]
      %v1424 = vld [vmem:[%s301 + $0x40] sm:$0xff]
      %v1425 = vld [vmem:[%s301 + $0x50] sm:$0xff]
      %v1426 = vld [vmem:[%s301 + $0x60] sm:$0xff]
      %v1427 = vld [vmem:[%s301 + $0x70] sm:$0xff]
      %v1428 = vpack.c.bf16 %v1420, %v1420
      %v1429 = vpack.c.bf16 %v1421, %v1421
      %v1430 = vpack.c.bf16 %v1422, %v1422
      %v1431 = vpack.c.bf16 %v1423, %v1423
      %v1432 = vpack.c.bf16 %v1424, %v1424
      %v1433 = vpack.c.bf16 %v1425, %v1425
      %v1434 = vpack.c.bf16 %v1426, %v1426
      %v1435 = vpack.c.bf16 %v1427, %v1427
      %s1436 = scalar_lea.vmem %s4, 12
      %v1437 = vld [vmem:[%s1436] sm:$0xf]
      %v1438 = vpack.c.bf16 %v1437, %v1437
      %v1440 = vsel %vm350, %v1428, 0
      %v1443 = vsel %vm354, %v1438, 0
      %1445 = vmatprep.subr.bf16.mxu0 0
      %1446 = vmatpush1.bf16.msra.mxu0 0
      %1447 = vmatprep.subr.bf16.mxu0 0
      %1448 = vmatpush1.bf16.msra.mxu0 0
      %1449 = vmatprep.subr.bf16.mxu0 0
      %1450 = vmatpush1.bf16.msra.mxu0 0
      %1451 = vmatprep.subr.bf16.mxu0 0
      %1452 = vmatpush1.bf16.msra.mxu0 0
      %1453 = vmatprep.subr.bf16.mxu0 0
      %1454 = vmatpush1.bf16.msra.mxu0 0
      %1455 = vmatprep.subr.bf16.mxu0 0
      %1456 = vmatpush1.bf16.msra.mxu0 0
      %1457 = vmatprep.subr.bf16.mxu0 0
      %1458 = vmatpush1.bf16.msra.mxu0 0
      %1459 = vmatprep.subr.bf16.mxu0 0
      %1460 = vmatpush1.bf16.msra.mxu0 %v1443
      %1461 = vmatprep.subr.bf16.mxu0 0
      %1462 = vmatpush2.bf16.msra.mxu0 0
      %1463 = vmatprep.subr.bf16.mxu0 0
      %1464 = vmatpush2.bf16.msra.mxu0 0
      %1465 = vmatprep.subr.bf16.mxu0 0
      %1466 = vmatpush2.bf16.msra.mxu0 0
      %1467 = vmatprep.subr.bf16.mxu0 0
      %1468 = vmatpush2.bf16.msra.mxu0 0
      %1469 = vmatprep.subr.bf16.mxu0 0
      %1470 = vmatpush2.bf16.msra.mxu0 0
      %1471 = vmatprep.subr.bf16.mxu0 0
      %1472 = vmatpush2.bf16.msra.mxu0 0
      %1473 = vmatprep.subr.bf16.mxu0 0
      %1474 = vmatpush2.bf16.msra.mxu0 0
      %1475 = vmatprep.subr.bf16.mxu0 0
      %1476 = vmatpush2.bf16.msra.mxu0 0
      %1477 = vmatprep.mubr.bf16.mxu0 0
      %1478 = vmatmul.mubr.bf16.gmra.mxu0 %v1440
      %v1479 = vpop.f32.mrf.mxu0
      %v1480 = vadd.f32 0.0, %v1479
      %v1481 = vpop.f32.mrf.mxu0
      %v1482 = vpop.f32.mrf.mxu0
      %v1483 = vpop.f32.mrf.mxu0
      %1484 = vdwg.mxu0
      %v1486 = vsel %vm350, %v1429, 0
      %1488 = vmatprep.subr.bf16.mxu0 0
      %1489 = vmatpush1.bf16.msra.mxu0 0
      %1490 = vmatprep.subr.bf16.mxu0 0
      %1491 = vmatpush1.bf16.msra.mxu0 0
      %1492 = vmatprep.subr.bf16.mxu0 0
      %1493 = vmatpush1.bf16.msra.mxu0 0
      %1494 = vmatprep.subr.bf16.mxu0 0
      %1495 = vmatpush1.bf16.msra.mxu0 0
      %1496 = vmatprep.subr.bf16.mxu0 0
      %1497 = vmatpush1.bf16.msra.mxu0 0
      %1498 = vmatprep.subr.bf16.mxu0 0
      %1499 = vmatpush1.bf16.msra.mxu0 0
      %1500 = vmatprep.subr.bf16.mxu0 0
      %1501 = vmatpush1.bf16.msra.mxu0 0
      %1502 = vmatprep.subr.bf16.mxu0 0
      %1503 = vmatpush1.bf16.msra.mxu0 %v1443
      %1504 = vmatprep.subr.bf16.mxu0 0
      %1505 = vmatpush2.bf16.msra.mxu0 0
      %1506 = vmatprep.subr.bf16.mxu0 0
      %1507 = vmatpush2.bf16.msra.mxu0 0
      %1508 = vmatprep.subr.bf16.mxu0 0
      %1509 = vmatpush2.bf16.msra.mxu0 0
      %1510 = vmatprep.subr.bf16.mxu0 0
      %1511 = vmatpush2.bf16.msra.mxu0 0
      %1512 = vmatprep.subr.bf16.mxu0 0
      %1513 = vmatpush2.bf16.msra.mxu0 0
      %1514 = vmatprep.subr.bf16.mxu0 0
      %1515 = vmatpush2.bf16.msra.mxu0 0
      %1516 = vmatprep.subr.bf16.mxu0 0
      %1517 = vmatpush2.bf16.msra.mxu0 0
      %1518 = vmatprep.subr.bf16.mxu0 0
      %1519 = vmatpush2.bf16.msra.mxu0 0
      %1520 = vmatprep.mubr.bf16.mxu0 0
      %1521 = vmatmul.mubr.bf16.gmra.mxu0 %v1486
      %v1522 = vpop.f32.mrf.mxu0
      %v1523 = vadd.f32 0.0, %v1522
      %v1524 = vpop.f32.mrf.mxu0
      %v1525 = vpop.f32.mrf.mxu0
      %v1526 = vpop.f32.mrf.mxu0
      %1527 = vdwg.mxu0
      %v1529 = vsel %vm350, %v1430, 0
      %1531 = vmatprep.subr.bf16.mxu0 0
      %1532 = vmatpush1.bf16.msra.mxu0 0
      %1533 = vmatprep.subr.bf16.mxu0 0
      %1534 = vmatpush1.bf16.msra.mxu0 0
      %1535 = vmatprep.subr.bf16.mxu0 0
      %1536 = vmatpush1.bf16.msra.mxu0 0
      %1537 = vmatprep.subr.bf16.mxu0 0
      %1538 = vmatpush1.bf16.msra.mxu0 0
      %1539 = vmatprep.subr.bf16.mxu0 0
      %1540 = vmatpush1.bf16.msra.mxu0 0
      %1541 = vmatprep.subr.bf16.mxu0 0
      %1542 = vmatpush1.bf16.msra.mxu0 0
      %1543 = vmatprep.subr.bf16.mxu0 0
      %1544 = vmatpush1.bf16.msra.mxu0 0
      %1545 = vmatprep.subr.bf16.mxu0 0
      %1546 = vmatpush1.bf16.msra.mxu0 %v1443
      %1547 = vmatprep.subr.bf16.mxu0 0
      %1548 = vmatpush2.bf16.msra.mxu0 0
      %1549 = vmatprep.subr.bf16.mxu0 0
      %1550 = vmatpush2.bf16.msra.mxu0 0
      %1551 = vmatprep.subr.bf16.mxu0 0
      %1552 = vmatpush2.bf16.msra.mxu0 0
      %1553 = vmatprep.subr.bf16.mxu0 0
      %1554 = vmatpush2.bf16.msra.mxu0 0
      %1555 = vmatprep.subr.bf16.mxu0 0
      %1556 = vmatpush2.bf16.msra.mxu0 0
      %1557 = vmatprep.subr.bf16.mxu0 0
      %1558 = vmatpush2.bf16.msra.mxu0 0
      %1559 = vmatprep.subr.bf16.mxu0 0
      %1560 = vmatpush2.bf16.msra.mxu0 0
      %1561 = vmatprep.subr.bf16.mxu0 0
      %1562 = vmatpush2.bf16.msra.mxu0 0
      %1563 = vmatprep.mubr.bf16.mxu0 0
      %1564 = vmatmul.mubr.bf16.gmra.mxu0 %v1529
      %v1565 = vpop.f32.mrf.mxu0
      %v1566 = vadd.f32 0.0, %v1565
      %v1567 = vpop.f32.mrf.mxu0
      %v1568 = vpop.f32.mrf.mxu0
      %v1569 = vpop.f32.mrf.mxu0
      %1570 = vdwg.mxu0
      %v1572 = vsel %vm350, %v1431, 0
      %1574 = vmatprep.subr.bf16.mxu0 0
      %1575 = vmatpush1.bf16.msra.mxu0 0
      %1576 = vmatprep.subr.bf16.mxu0 0
      %1577 = vmatpush1.bf16.msra.mxu0 0
      %1578 = vmatprep.subr.bf16.mxu0 0
      %1579 = vmatpush1.bf16.msra.mxu0 0
      %1580 = vmatprep.subr.bf16.mxu0 0
      %1581 = vmatpush1.bf16.msra.mxu0 0
      %1582 = vmatprep.subr.bf16.mxu0 0
      %1583 = vmatpush1.bf16.msra.mxu0 0
      %1584 = vmatprep.subr.bf16.mxu0 0
      %1585 = vmatpush1.bf16.msra.mxu0 0
      %1586 = vmatprep.subr.bf16.mxu0 0
      %1587 = vmatpush1.bf16.msra.mxu0 0
      %1588 = vmatprep.subr.bf16.mxu0 0
      %1589 = vmatpush1.bf16.msra.mxu0 %v1443
      %1590 = vmatprep.subr.bf16.mxu0 0
      %1591 = vmatpush2.bf16.msra.mxu0 0
      %1592 = vmatprep.subr.bf16.mxu0 0
      %1593 = vmatpush2.bf16.msra.mxu0 0
      %1594 = vmatprep.subr.bf16.mxu0 0
      %1595 = vmatpush2.bf16.msra.mxu0 0
      %1596 = vmatprep.subr.bf16.mxu0 0
      %1597 = vmatpush2.bf16.msra.mxu0 0
      %1598 = vmatprep.subr.bf16.mxu0 0
      %1599 = vmatpush2.bf16.msra.mxu0 0
      %1600 = vmatprep.subr.bf16.mxu0 0
      %1601 = vmatpush2.bf16.msra.mxu0 0
      %1602 = vmatprep.subr.bf16.mxu0 0
      %1603 = vmatpush2.bf16.msra.mxu0 0
      %1604 = vmatprep.subr.bf16.mxu0 0
      %1605 = vmatpush2.bf16.msra.mxu0 0
      %1606 = vmatprep.mubr.bf16.mxu0 0
      %1607 = vmatmul.mubr.bf16.gmra.mxu0 %v1572
      %v1608 = vpop.f32.mrf.mxu0
      %v1609 = vadd.f32 0.0, %v1608
      %v1610 = vpop.f32.mrf.mxu0
      %v1611 = vpop.f32.mrf.mxu0
      %v1612 = vpop.f32.mrf.mxu0
      %1613 = vdwg.mxu0
      %v1615 = vsel %vm350, %v1432, 0
      %1617 = vmatprep.subr.bf16.mxu0 0
      %1618 = vmatpush1.bf16.msra.mxu0 0
      %1619 = vmatprep.subr.bf16.mxu0 0
      %1620 = vmatpush1.bf16.msra.mxu0 0
      %1621 = vmatprep.subr.bf16.mxu0 0
      %1622 = vmatpush1.bf16.msra.mxu0 0
      %1623 = vmatprep.subr.bf16.mxu0 0
      %1624 = vmatpush1.bf16.msra.mxu0 0
      %1625 = vmatprep.subr.bf16.mxu0 0
      %1626 = vmatpush1.bf16.msra.mxu0 0
      %1627 = vmatprep.subr.bf16.mxu0 0
      %1628 = vmatpush1.bf16.msra.mxu0 0
      %1629 = vmatprep.subr.bf16.mxu0 0
      %1630 = vmatpush1.bf16.msra.mxu0 0
      %1631 = vmatprep.subr.bf16.mxu0 0
      %1632 = vmatpush1.bf16.msra.mxu0 %v1443
      %1633 = vmatprep.subr.bf16.mxu0 0
      %1634 = vmatpush2.bf16.msra.mxu0 0
      %1635 = vmatprep.subr.bf16.mxu0 0
      %1636 = vmatpush2.bf16.msra.mxu0 0
      %1637 = vmatprep.subr.bf16.mxu0 0
      %1638 = vmatpush2.bf16.msra.mxu0 0
      %1639 = vmatprep.subr.bf16.mxu0 0
      %1640 = vmatpush2.bf16.msra.mxu0 0
      %1641 = vmatprep.subr.bf16.mxu0 0
      %1642 = vmatpush2.bf16.msra.mxu0 0
      %1643 = vmatprep.subr.bf16.mxu0 0
      %1644 = vmatpush2.bf16.msra.mxu0 0
      %1645 = vmatprep.subr.bf16.mxu0 0
      %1646 = vmatpush2.bf16.msra.mxu0 0
      %1647 = vmatprep.subr.bf16.mxu0 0
      %1648 = vmatpush2.bf16.msra.mxu0 0
      %1649 = vmatprep.mubr.bf16.mxu0 0
      %1650 = vmatmul.mubr.bf16.gmra.mxu0 %v1615
      %v1651 = vpop.f32.mrf.mxu0
      %v1652 = vadd.f32 0.0, %v1651
      %v1653 = vpop.f32.mrf.mxu0
      %v1654 = vpop.f32.mrf.mxu0
      %v1655 = vpop.f32.mrf.mxu0
      %1656 = vdwg.mxu0
      %v1658 = vsel %vm350, %v1433, 0
      %1660 = vmatprep.subr.bf16.mxu0 0
      %1661 = vmatpush1.bf16.msra.mxu0 0
      %1662 = vmatprep.subr.bf16.mxu0 0
      %1663 = vmatpush1.bf16.msra.mxu0 0
      %1664 = vmatprep.subr.bf16.mxu0 0
      %1665 = vmatpush1.bf16.msra.mxu0 0
      %1666 = vmatprep.subr.bf16.mxu0 0
      %1667 = vmatpush1.bf16.msra.mxu0 0
      %1668 = vmatprep.subr.bf16.mxu0 0
      %1669 = vmatpush1.bf16.msra.mxu0 0
      %1670 = vmatprep.subr.bf16.mxu0 0
      %1671 = vmatpush1.bf16.msra.mxu0 0
      %1672 = vmatprep.subr.bf16.mxu0 0
      %1673 = vmatpush1.bf16.msra.mxu0 0
      %1674 = vmatprep.subr.bf16.mxu0 0
      %1675 = vmatpush1.bf16.msra.mxu0 %v1443
      %1676 = vmatprep.subr.bf16.mxu0 0
      %1677 = vmatpush2.bf16.msra.mxu0 0
      %1678 = vmatprep.subr.bf16.mxu0 0
      %1679 = vmatpush2.bf16.msra.mxu0 0
      %1680 = vmatprep.subr.bf16.mxu0 0
      %1681 = vmatpush2.bf16.msra.mxu0 0
      %1682 = vmatprep.subr.bf16.mxu0 0
      %1683 = vmatpush2.bf16.msra.mxu0 0
      %1684 = vmatprep.subr.bf16.mxu0 0
      %1685 = vmatpush2.bf16.msra.mxu0 0
      %1686 = vmatprep.subr.bf16.mxu0 0
      %1687 = vmatpush2.bf16.msra.mxu0 0
      %1688 = vmatprep.subr.bf16.mxu0 0
      %1689 = vmatpush2.bf16.msra.mxu0 0
      %1690 = vmatprep.subr.bf16.mxu0 0
      %1691 = vmatpush2.bf16.msra.mxu0 0
      %1692 = vmatprep.mubr.bf16.mxu0 0
      %1693 = vmatmul.mubr.bf16.gmra.mxu0 %v1658
      %v1694 = vpop.f32.mrf.mxu0
      %v1695 = vadd.f32 0.0, %v1694
      %v1696 = vpop.f32.mrf.mxu0
      %v1697 = vpop.f32.mrf.mxu0
      %v1698 = vpop.f32.mrf.mxu0
      %1699 = vdwg.mxu0
      %v1701 = vsel %vm350, %v1434, 0
      %1703 = vmatprep.subr.bf16.mxu0 0
      %1704 = vmatpush1.bf16.msra.mxu0 0
      %1705 = vmatprep.subr.bf16.mxu0 0
      %1706 = vmatpush1.bf16.msra.mxu0 0
      %1707 = vmatprep.subr.bf16.mxu0 0
      %1708 = vmatpush1.bf16.msra.mxu0 0
      %1709 = vmatprep.subr.bf16.mxu0 0
      %1710 = vmatpush1.bf16.msra.mxu0 0
      %1711 = vmatprep.subr.bf16.mxu0 0
      %1712 = vmatpush1.bf16.msra.mxu0 0
      %1713 = vmatprep.subr.bf16.mxu0 0
      %1714 = vmatpush1.bf16.msra.mxu0 0
      %1715 = vmatprep.subr.bf16.mxu0 0
      %1716 = vmatpush1.bf16.msra.mxu0 0
      %1717 = vmatprep.subr.bf16.mxu0 0
      %1718 = vmatpush1.bf16.msra.mxu0 %v1443
      %1719 = vmatprep.subr.bf16.mxu0 0
      %1720 = vmatpush2.bf16.msra.mxu0 0
      %1721 = vmatprep.subr.bf16.mxu0 0
      %1722 = vmatpush2.bf16.msra.mxu0 0
      %1723 = vmatprep.subr.bf16.mxu0 0
      %1724 = vmatpush2.bf16.msra.mxu0 0
      %1725 = vmatprep.subr.bf16.mxu0 0
      %1726 = vmatpush2.bf16.msra.mxu0 0
      %1727 = vmatprep.subr.bf16.mxu0 0
      %1728 = vmatpush2.bf16.msra.mxu0 0
      %1729 = vmatprep.subr.bf16.mxu0 0
      %1730 = vmatpush2.bf16.msra.mxu0 0
      %1731 = vmatprep.subr.bf16.mxu0 0
      %1732 = vmatpush2.bf16.msra.mxu0 0
      %1733 = vmatprep.subr.bf16.mxu0 0
      %1734 = vmatpush2.bf16.msra.mxu0 0
      %1735 = vmatprep.mubr.bf16.mxu0 0
      %1736 = vmatmul.mubr.bf16.gmra.mxu0 %v1701
      %v1737 = vpop.f32.mrf.mxu0
      %v1738 = vadd.f32 0.0, %v1737
      %v1739 = vpop.f32.mrf.mxu0
      %v1740 = vpop.f32.mrf.mxu0
      %v1741 = vpop.f32.mrf.mxu0
      %1742 = vdwg.mxu0
      %v1744 = vsel %vm350, %v1435, 0
      %1746 = vmatprep.subr.bf16.mxu0 0
      %1747 = vmatpush1.bf16.msra.mxu0 0
      %1748 = vmatprep.subr.bf16.mxu0 0
      %1749 = vmatpush1.bf16.msra.mxu0 0
      %1750 = vmatprep.subr.bf16.mxu0 0
      %1751 = vmatpush1.bf16.msra.mxu0 0
      %1752 = vmatprep.subr.bf16.mxu0 0
      %1753 = vmatpush1.bf16.msra.mxu0 0
      %1754 = vmatprep.subr.bf16.mxu0 0
      %1755 = vmatpush1.bf16.msra.mxu0 0
      %1756 = vmatprep.subr.bf16.mxu0 0
      %1757 = vmatpush1.bf16.msra.mxu0 0
      %1758 = vmatprep.subr.bf16.mxu0 0
      %1759 = vmatpush1.bf16.msra.mxu0 0
      %1760 = vmatprep.subr.bf16.mxu0 0
      %1761 = vmatpush1.bf16.msra.mxu0 %v1443
      %1762 = vmatprep.subr.bf16.mxu0 0
      %1763 = vmatpush2.bf16.msra.mxu0 0
      %1764 = vmatprep.subr.bf16.mxu0 0
      %1765 = vmatpush2.bf16.msra.mxu0 0
      %1766 = vmatprep.subr.bf16.mxu0 0
      %1767 = vmatpush2.bf16.msra.mxu0 0
      %1768 = vmatprep.subr.bf16.mxu0 0
      %1769 = vmatpush2.bf16.msra.mxu0 0
      %1770 = vmatprep.subr.bf16.mxu0 0
      %1771 = vmatpush2.bf16.msra.mxu0 0
      %1772 = vmatprep.subr.bf16.mxu0 0
      %1773 = vmatpush2.bf16.msra.mxu0 0
      %1774 = vmatprep.subr.bf16.mxu0 0
      %1775 = vmatpush2.bf16.msra.mxu0 0
      %1776 = vmatprep.subr.bf16.mxu0 0
      %1777 = vmatpush2.bf16.msra.mxu0 0
      %1778 = vmatprep.mubr.bf16.mxu0 0
      %1779 = vmatmul.mubr.bf16.gmra.mxu0 %v1744
      %v1780 = vpop.f32.mrf.mxu0
      %v1781 = vadd.f32 0.0, %v1780
      %v1782 = vpop.f32.mrf.mxu0
      %v1783 = vpop.f32.mrf.mxu0
      %v1784 = vpop.f32.mrf.mxu0
      %1785 = vdwg.mxu0
      %v1786 = vadd.f32 %v1412, %v1480
      %v1787 = vadd.f32 %v1413, %v1523
      %v1788 = vadd.f32 %v1414, %v1566
      %v1789 = vadd.f32 %v1415, %v1609
      %v1790 = vadd.f32 %v1416, %v1652
      %v1791 = vadd.f32 %v1417, %v1695
      %v1792 = vadd.f32 %v1418, %v1738
      %v1793 = vadd.f32 %v1419, %v1781
      %v1794 = vld [vmem:[%s306] sm:$0xff]
      %v1795 = vld [vmem:[%s306 + $0x10] sm:$0xff]
      %v1796 = vld [vmem:[%s306 + $0x20] sm:$0xff]
      %v1797 = vld [vmem:[%s306 + $0x30] sm:$0xff]
      %v1798 = vld [vmem:[%s306 + $0x40] sm:$0xff]
      %v1799 = vld [vmem:[%s306 + $0x50] sm:$0xff]
      %v1800 = vld [vmem:[%s306 + $0x60] sm:$0xff]
      %v1801 = vld [vmem:[%s306 + $0x70] sm:$0xff]
      %v1802 = vpack.c.bf16 %v1794, %v1794
      %v1803 = vpack.c.bf16 %v1795, %v1795
      %v1804 = vpack.c.bf16 %v1796, %v1796
      %v1805 = vpack.c.bf16 %v1797, %v1797
      %v1806 = vpack.c.bf16 %v1798, %v1798
      %v1807 = vpack.c.bf16 %v1799, %v1799
      %v1808 = vpack.c.bf16 %v1800, %v1800
      %v1809 = vpack.c.bf16 %v1801, %v1801
      %s1810 = scalar_lea.vmem %s4, 16
      %v1811 = vld [vmem:[%s1810] sm:$0xf]
      %v1812 = vpack.c.bf16 %v1811, %v1811
      %v1814 = vsel %vm350, %v1802, 0
      %v1817 = vsel %vm354, %v1812, 0
      %1819 = vmatprep.subr.bf16.mxu0 0
      %1820 = vmatpush1.bf16.msra.mxu0 0
      %1821 = vmatprep.subr.bf16.mxu0 0
      %1822 = vmatpush1.bf16.msra.mxu0 0
      %1823 = vmatprep.subr.bf16.mxu0 0
      %1824 = vmatpush1.bf16.msra.mxu0 0
      %1825 = vmatprep.subr.bf16.mxu0 0
      %1826 = vmatpush1.bf16.msra.mxu0 0
      %1827 = vmatprep.subr.bf16.mxu0 0
      %1828 = vmatpush1.bf16.msra.mxu0 0
      %1829 = vmatprep.subr.bf16.mxu0 0
      %1830 = vmatpush1.bf16.msra.mxu0 0
      %1831 = vmatprep.subr.bf16.mxu0 0
      %1832 = vmatpush1.bf16.msra.mxu0 0
      %1833 = vmatprep.subr.bf16.mxu0 0
      %1834 = vmatpush1.bf16.msra.mxu0 %v1817
      %1835 = vmatprep.subr.bf16.mxu0 0
      %1836 = vmatpush2.bf16.msra.mxu0 0
      %1837 = vmatprep.subr.bf16.mxu0 0
      %1838 = vmatpush2.bf16.msra.mxu0 0
      %1839 = vmatprep.subr.bf16.mxu0 0
      %1840 = vmatpush2.bf16.msra.mxu0 0
      %1841 = vmatprep.subr.bf16.mxu0 0
      %1842 = vmatpush2.bf16.msra.mxu0 0
      %1843 = vmatprep.subr.bf16.mxu0 0
      %1844 = vmatpush2.bf16.msra.mxu0 0
      %1845 = vmatprep.subr.bf16.mxu0 0
      %1846 = vmatpush2.bf16.msra.mxu0 0
      %1847 = vmatprep.subr.bf16.mxu0 0
      %1848 = vmatpush2.bf16.msra.mxu0 0
      %1849 = vmatprep.subr.bf16.mxu0 0
      %1850 = vmatpush2.bf16.msra.mxu0 0
      %1851 = vmatprep.mubr.bf16.mxu0 0
      %1852 = vmatmul.mubr.bf16.gmra.mxu0 %v1814
      %v1853 = vpop.f32.mrf.mxu0
      %v1854 = vadd.f32 0.0, %v1853
      %v1855 = vpop.f32.mrf.mxu0
      %v1856 = vpop.f32.mrf.mxu0
      %v1857 = vpop.f32.mrf.mxu0
      %1858 = vdwg.mxu0
      %v1860 = vsel %vm350, %v1803, 0
      %1862 = vmatprep.subr.bf16.mxu0 0
      %1863 = vmatpush1.bf16.msra.mxu0 0
      %1864 = vmatprep.subr.bf16.mxu0 0
      %1865 = vmatpush1.bf16.msra.mxu0 0
      %1866 = vmatprep.subr.bf16.mxu0 0
      %1867 = vmatpush1.bf16.msra.mxu0 0
      %1868 = vmatprep.subr.bf16.mxu0 0
      %1869 = vmatpush1.bf16.msra.mxu0 0
      %1870 = vmatprep.subr.bf16.mxu0 0
      %1871 = vmatpush1.bf16.msra.mxu0 0
      %1872 = vmatprep.subr.bf16.mxu0 0
      %1873 = vmatpush1.bf16.msra.mxu0 0
      %1874 = vmatprep.subr.bf16.mxu0 0
      %1875 = vmatpush1.bf16.msra.mxu0 0
      %1876 = vmatprep.subr.bf16.mxu0 0
      %1877 = vmatpush1.bf16.msra.mxu0 %v1817
      %1878 = vmatprep.subr.bf16.mxu0 0
      %1879 = vmatpush2.bf16.msra.mxu0 0
      %1880 = vmatprep.subr.bf16.mxu0 0
      %1881 = vmatpush2.bf16.msra.mxu0 0
      %1882 = vmatprep.subr.bf16.mxu0 0
      %1883 = vmatpush2.bf16.msra.mxu0 0
      %1884 = vmatprep.subr.bf16.mxu0 0
      %1885 = vmatpush2.bf16.msra.mxu0 0
      %1886 = vmatprep.subr.bf16.mxu0 0
      %1887 = vmatpush2.bf16.msra.mxu0 0
      %1888 = vmatprep.subr.bf16.mxu0 0
      %1889 = vmatpush2.bf16.msra.mxu0 0
      %1890 = vmatprep.subr.bf16.mxu0 0
      %1891 = vmatpush2.bf16.msra.mxu0 0
      %1892 = vmatprep.subr.bf16.mxu0 0
      %1893 = vmatpush2.bf16.msra.mxu0 0
      %1894 = vmatprep.mubr.bf16.mxu0 0
      %1895 = vmatmul.mubr.bf16.gmra.mxu0 %v1860
      %v1896 = vpop.f32.mrf.mxu0
      %v1897 = vadd.f32 0.0, %v1896
      %v1898 = vpop.f32.mrf.mxu0
      %v1899 = vpop.f32.mrf.mxu0
      %v1900 = vpop.f32.mrf.mxu0
      %1901 = vdwg.mxu0
      %v1903 = vsel %vm350, %v1804, 0
      %1905 = vmatprep.subr.bf16.mxu0 0
      %1906 = vmatpush1.bf16.msra.mxu0 0
      %1907 = vmatprep.subr.bf16.mxu0 0
      %1908 = vmatpush1.bf16.msra.mxu0 0
      %1909 = vmatprep.subr.bf16.mxu0 0
      %1910 = vmatpush1.bf16.msra.mxu0 0
      %1911 = vmatprep.subr.bf16.mxu0 0
      %1912 = vmatpush1.bf16.msra.mxu0 0
      %1913 = vmatprep.subr.bf16.mxu0 0
      %1914 = vmatpush1.bf16.msra.mxu0 0
      %1915 = vmatprep.subr.bf16.mxu0 0
      %1916 = vmatpush1.bf16.msra.mxu0 0
      %1917 = vmatprep.subr.bf16.mxu0 0
      %1918 = vmatpush1.bf16.msra.mxu0 0
      %1919 = vmatprep.subr.bf16.mxu0 0
      %1920 = vmatpush1.bf16.msra.mxu0 %v1817
      %1921 = vmatprep.subr.bf16.mxu0 0
      %1922 = vmatpush2.bf16.msra.mxu0 0
      %1923 = vmatprep.subr.bf16.mxu0 0
      %1924 = vmatpush2.bf16.msra.mxu0 0
      %1925 = vmatprep.subr.bf16.mxu0 0
      %1926 = vmatpush2.bf16.msra.mxu0 0
      %1927 = vmatprep.subr.bf16.mxu0 0
      %1928 = vmatpush2.bf16.msra.mxu0 0
      %1929 = vmatprep.subr.bf16.mxu0 0
      %1930 = vmatpush2.bf16.msra.mxu0 0
      %1931 = vmatprep.subr.bf16.mxu0 0
      %1932 = vmatpush2.bf16.msra.mxu0 0
      %1933 = vmatprep.subr.bf16.mxu0 0
      %1934 = vmatpush2.bf16.msra.mxu0 0
      %1935 = vmatprep.subr.bf16.mxu0 0
      %1936 = vmatpush2.bf16.msra.mxu0 0
      %1937 = vmatprep.mubr.bf16.mxu0 0
      %1938 = vmatmul.mubr.bf16.gmra.mxu0 %v1903
      %v1939 = vpop.f32.mrf.mxu0
      %v1940 = vadd.f32 0.0, %v1939
      %v1941 = vpop.f32.mrf.mxu0
      %v1942 = vpop.f32.mrf.mxu0
      %v1943 = vpop.f32.mrf.mxu0
      %1944 = vdwg.mxu0
      %v1946 = vsel %vm350, %v1805, 0
      %1948 = vmatprep.subr.bf16.mxu0 0
      %1949 = vmatpush1.bf16.msra.mxu0 0
      %1950 = vmatprep.subr.bf16.mxu0 0
      %1951 = vmatpush1.bf16.msra.mxu0 0
      %1952 = vmatprep.subr.bf16.mxu0 0
      %1953 = vmatpush1.bf16.msra.mxu0 0
      %1954 = vmatprep.subr.bf16.mxu0 0
      %1955 = vmatpush1.bf16.msra.mxu0 0
      %1956 = vmatprep.subr.bf16.mxu0 0
      %1957 = vmatpush1.bf16.msra.mxu0 0
      %1958 = vmatprep.subr.bf16.mxu0 0
      %1959 = vmatpush1.bf16.msra.mxu0 0
      %1960 = vmatprep.subr.bf16.mxu0 0
      %1961 = vmatpush1.bf16.msra.mxu0 0
      %1962 = vmatprep.subr.bf16.mxu0 0
      %1963 = vmatpush1.bf16.msra.mxu0 %v1817
      %1964 = vmatprep.subr.bf16.mxu0 0
      %1965 = vmatpush2.bf16.msra.mxu0 0
      %1966 = vmatprep.subr.bf16.mxu0 0
      %1967 = vmatpush2.bf16.msra.mxu0 0
      %1968 = vmatprep.subr.bf16.mxu0 0
      %1969 = vmatpush2.bf16.msra.mxu0 0
      %1970 = vmatprep.subr.bf16.mxu0 0
      %1971 = vmatpush2.bf16.msra.mxu0 0
      %1972 = vmatprep.subr.bf16.mxu0 0
      %1973 = vmatpush2.bf16.msra.mxu0 0
      %1974 = vmatprep.subr.bf16.mxu0 0
      %1975 = vmatpush2.bf16.msra.mxu0 0
      %1976 = vmatprep.subr.bf16.mxu0 0
      %1977 = vmatpush2.bf16.msra.mxu0 0
      %1978 = vmatprep.subr.bf16.mxu0 0
      %1979 = vmatpush2.bf16.msra.mxu0 0
      %1980 = vmatprep.mubr.bf16.mxu0 0
      %1981 = vmatmul.mubr.bf16.gmra.mxu0 %v1946
      %v1982 = vpop.f32.mrf.mxu0
      %v1983 = vadd.f32 0.0, %v1982
      %v1984 = vpop.f32.mrf.mxu0
      %v1985 = vpop.f32.mrf.mxu0
      %v1986 = vpop.f32.mrf.mxu0
      %1987 = vdwg.mxu0
      %v1989 = vsel %vm350, %v1806, 0
      %1991 = vmatprep.subr.bf16.mxu0 0
      %1992 = vmatpush1.bf16.msra.mxu0 0
      %1993 = vmatprep.subr.bf16.mxu0 0
      %1994 = vmatpush1.bf16.msra.mxu0 0
      %1995 = vmatprep.subr.bf16.mxu0 0
      %1996 = vmatpush1.bf16.msra.mxu0 0
      %1997 = vmatprep.subr.bf16.mxu0 0
      %1998 = vmatpush1.bf16.msra.mxu0 0
      %1999 = vmatprep.subr.bf16.mxu0 0
      %2000 = vmatpush1.bf16.msra.mxu0 0
      %2001 = vmatprep.subr.bf16.mxu0 0
      %2002 = vmatpush1.bf16.msra.mxu0 0
      %2003 = vmatprep.subr.bf16.mxu0 0
      %2004 = vmatpush1.bf16.msra.mxu0 0
      %2005 = vmatprep.subr.bf16.mxu0 0
      %2006 = vmatpush1.bf16.msra.mxu0 %v1817
      %2007 = vmatprep.subr.bf16.mxu0 0
      %2008 = vmatpush2.bf16.msra.mxu0 0
      %2009 = vmatprep.subr.bf16.mxu0 0
      %2010 = vmatpush2.bf16.msra.mxu0 0
      %2011 = vmatprep.subr.bf16.mxu0 0
      %2012 = vmatpush2.bf16.msra.mxu0 0
      %2013 = vmatprep.subr.bf16.mxu0 0
      %2014 = vmatpush2.bf16.msra.mxu0 0
      %2015 = vmatprep.subr.bf16.mxu0 0
      %2016 = vmatpush2.bf16.msra.mxu0 0
      %2017 = vmatprep.subr.bf16.mxu0 0
      %2018 = vmatpush2.bf16.msra.mxu0 0
      %2019 = vmatprep.subr.bf16.mxu0 0
      %2020 = vmatpush2.bf16.msra.mxu0 0
      %2021 = vmatprep.subr.bf16.mxu0 0
      %2022 = vmatpush2.bf16.msra.mxu0 0
      %2023 = vmatprep.mubr.bf16.mxu0 0
      %2024 = vmatmul.mubr.bf16.gmra.mxu0 %v1989
      %v2025 = vpop.f32.mrf.mxu0
      %v2026 = vadd.f32 0.0, %v2025
      %v2027 = vpop.f32.mrf.mxu0
      %v2028 = vpop.f32.mrf.mxu0
      %v2029 = vpop.f32.mrf.mxu0
      %2030 = vdwg.mxu0
      %v2032 = vsel %vm350, %v1807, 0
      %2034 = vmatprep.subr.bf16.mxu0 0
      %2035 = vmatpush1.bf16.msra.mxu0 0
      %2036 = vmatprep.subr.bf16.mxu0 0
      %2037 = vmatpush1.bf16.msra.mxu0 0
      %2038 = vmatprep.subr.bf16.mxu0 0
      %2039 = vmatpush1.bf16.msra.mxu0 0
      %2040 = vmatprep.subr.bf16.mxu0 0
      %2041 = vmatpush1.bf16.msra.mxu0 0
      %2042 = vmatprep.subr.bf16.mxu0 0
      %2043 = vmatpush1.bf16.msra.mxu0 0
      %2044 = vmatprep.subr.bf16.mxu0 0
      %2045 = vmatpush1.bf16.msra.mxu0 0
      %2046 = vmatprep.subr.bf16.mxu0 0
      %2047 = vmatpush1.bf16.msra.mxu0 0
      %2048 = vmatprep.subr.bf16.mxu0 0
      %2049 = vmatpush1.bf16.msra.mxu0 %v1817
      %2050 = vmatprep.subr.bf16.mxu0 0
      %2051 = vmatpush2.bf16.msra.mxu0 0
      %2052 = vmatprep.subr.bf16.mxu0 0
      %2053 = vmatpush2.bf16.msra.mxu0 0
      %2054 = vmatprep.subr.bf16.mxu0 0
      %2055 = vmatpush2.bf16.msra.mxu0 0
      %2056 = vmatprep.subr.bf16.mxu0 0
      %2057 = vmatpush2.bf16.msra.mxu0 0
      %2058 = vmatprep.subr.bf16.mxu0 0
      %2059 = vmatpush2.bf16.msra.mxu0 0
      %2060 = vmatprep.subr.bf16.mxu0 0
      %2061 = vmatpush2.bf16.msra.mxu0 0
      %2062 = vmatprep.subr.bf16.mxu0 0
      %2063 = vmatpush2.bf16.msra.mxu0 0
      %2064 = vmatprep.subr.bf16.mxu0 0
      %2065 = vmatpush2.bf16.msra.mxu0 0
      %2066 = vmatprep.mubr.bf16.mxu0 0
      %2067 = vmatmul.mubr.bf16.gmra.mxu0 %v2032
      %v2068 = vpop.f32.mrf.mxu0
      %v2069 = vadd.f32 0.0, %v2068
      %v2070 = vpop.f32.mrf.mxu0
      %v2071 = vpop.f32.mrf.mxu0
      %v2072 = vpop.f32.mrf.mxu0
      %2073 = vdwg.mxu0
      %v2075 = vsel %vm350, %v1808, 0
      %2077 = vmatprep.subr.bf16.mxu0 0
      %2078 = vmatpush1.bf16.msra.mxu0 0
      %2079 = vmatprep.subr.bf16.mxu0 0
      %2080 = vmatpush1.bf16.msra.mxu0 0
      %2081 = vmatprep.subr.bf16.mxu0 0
      %2082 = vmatpush1.bf16.msra.mxu0 0
      %2083 = vmatprep.subr.bf16.mxu0 0
      %2084 = vmatpush1.bf16.msra.mxu0 0
      %2085 = vmatprep.subr.bf16.mxu0 0
      %2086 = vmatpush1.bf16.msra.mxu0 0
      %2087 = vmatprep.subr.bf16.mxu0 0
      %2088 = vmatpush1.bf16.msra.mxu0 0
      %2089 = vmatprep.subr.bf16.mxu0 0
      %2090 = vmatpush1.bf16.msra.mxu0 0
      %2091 = vmatprep.subr.bf16.mxu0 0
      %2092 = vmatpush1.bf16.msra.mxu0 %v1817
      %2093 = vmatprep.subr.bf16.mxu0 0
      %2094 = vmatpush2.bf16.msra.mxu0 0
      %2095 = vmatprep.subr.bf16.mxu0 0
      %2096 = vmatpush2.bf16.msra.mxu0 0
      %2097 = vmatprep.subr.bf16.mxu0 0
      %2098 = vmatpush2.bf16.msra.mxu0 0
      %2099 = vmatprep.subr.bf16.mxu0 0
      %2100 = vmatpush2.bf16.msra.mxu0 0
      %2101 = vmatprep.subr.bf16.mxu0 0
      %2102 = vmatpush2.bf16.msra.mxu0 0
      %2103 = vmatprep.subr.bf16.mxu0 0
      %2104 = vmatpush2.bf16.msra.mxu0 0
      %2105 = vmatprep.subr.bf16.mxu0 0
      %2106 = vmatpush2.bf16.msra.mxu0 0
      %2107 = vmatprep.subr.bf16.mxu0 0
      %2108 = vmatpush2.bf16.msra.mxu0 0
      %2109 = vmatprep.mubr.bf16.mxu0 0
      %2110 = vmatmul.mubr.bf16.gmra.mxu0 %v2075
      %v2111 = vpop.f32.mrf.mxu0
      %v2112 = vadd.f32 0.0, %v2111
      %v2113 = vpop.f32.mrf.mxu0
      %v2114 = vpop.f32.mrf.mxu0
      %v2115 = vpop.f32.mrf.mxu0
      %2116 = vdwg.mxu0
      %v2118 = vsel %vm350, %v1809, 0
      %2120 = vmatprep.subr.bf16.mxu0 0
      %2121 = vmatpush1.bf16.msra.mxu0 0
      %2122 = vmatprep.subr.bf16.mxu0 0
      %2123 = vmatpush1.bf16.msra.mxu0 0
      %2124 = vmatprep.subr.bf16.mxu0 0
      %2125 = vmatpush1.bf16.msra.mxu0 0
      %2126 = vmatprep.subr.bf16.mxu0 0
      %2127 = vmatpush1.bf16.msra.mxu0 0
      %2128 = vmatprep.subr.bf16.mxu0 0
      %2129 = vmatpush1.bf16.msra.mxu0 0
      %2130 = vmatprep.subr.bf16.mxu0 0
      %2131 = vmatpush1.bf16.msra.mxu0 0
      %2132 = vmatprep.subr.bf16.mxu0 0
      %2133 = vmatpush1.bf16.msra.mxu0 0
      %2134 = vmatprep.subr.bf16.mxu0 0
      %2135 = vmatpush1.bf16.msra.mxu0 %v1817
      %2136 = vmatprep.subr.bf16.mxu0 0
      %2137 = vmatpush2.bf16.msra.mxu0 0
      %2138 = vmatprep.subr.bf16.mxu0 0
      %2139 = vmatpush2.bf16.msra.mxu0 0
      %2140 = vmatprep.subr.bf16.mxu0 0
      %2141 = vmatpush2.bf16.msra.mxu0 0
      %2142 = vmatprep.subr.bf16.mxu0 0
      %2143 = vmatpush2.bf16.msra.mxu0 0
      %2144 = vmatprep.subr.bf16.mxu0 0
      %2145 = vmatpush2.bf16.msra.mxu0 0
      %2146 = vmatprep.subr.bf16.mxu0 0
      %2147 = vmatpush2.bf16.msra.mxu0 0
      %2148 = vmatprep.subr.bf16.mxu0 0
      %2149 = vmatpush2.bf16.msra.mxu0 0
      %2150 = vmatprep.subr.bf16.mxu0 0
      %2151 = vmatpush2.bf16.msra.mxu0 0
      %2152 = vmatprep.mubr.bf16.mxu0 0
      %2153 = vmatmul.mubr.bf16.gmra.mxu0 %v2118
      %v2154 = vpop.f32.mrf.mxu0
      %v2155 = vadd.f32 0.0, %v2154
      %v2156 = vpop.f32.mrf.mxu0
      %v2157 = vpop.f32.mrf.mxu0
      %v2158 = vpop.f32.mrf.mxu0
      %2159 = vdwg.mxu0
      %v2160 = vadd.f32 %v1786, %v1854
      %v2161 = vadd.f32 %v1787, %v1897
      %v2162 = vadd.f32 %v1788, %v1940
      %v2163 = vadd.f32 %v1789, %v1983
      %v2164 = vadd.f32 %v1790, %v2026
      %v2165 = vadd.f32 %v1791, %v2069
      %v2166 = vadd.f32 %v1792, %v2112
      %v2167 = vadd.f32 %v1793, %v2155
      %v2168 = vld [vmem:[%s301 + $0x1] sm:$0xff]
      %v2169 = vld [vmem:[%s301 + $0x11] sm:$0xff]
      %v2170 = vld [vmem:[%s301 + $0x21] sm:$0xff]
      %v2171 = vld [vmem:[%s301 + $0x31] sm:$0xff]
      %v2172 = vld [vmem:[%s301 + $0x41] sm:$0xff]
      %v2173 = vld [vmem:[%s301 + $0x51] sm:$0xff]
      %v2174 = vld [vmem:[%s301 + $0x61] sm:$0xff]
      %v2175 = vld [vmem:[%s301 + $0x71] sm:$0xff]
      %v2176 = vpack.c.bf16 %v2168, %v2168
      %v2177 = vpack.c.bf16 %v2169, %v2169
      %v2178 = vpack.c.bf16 %v2170, %v2170
      %v2179 = vpack.c.bf16 %v2171, %v2171
      %v2180 = vpack.c.bf16 %v2172, %v2172
      %v2181 = vpack.c.bf16 %v2173, %v2173
      %v2182 = vpack.c.bf16 %v2174, %v2174
      %v2183 = vpack.c.bf16 %v2175, %v2175
      %s2184 = scalar_lea.vmem %s4, 20
      %v2185 = vld [vmem:[%s2184] sm:$0xf]
      %v2186 = vpack.c.bf16 %v2185, %v2185
      %v2188 = vsel %vm350, %v2176, 0
      %v2191 = vsel %vm354, %v2186, 0
      %2193 = vmatprep.subr.bf16.mxu0 0
      %2194 = vmatpush1.bf16.msra.mxu0 0
      %2195 = vmatprep.subr.bf16.mxu0 0
      %2196 = vmatpush1.bf16.msra.mxu0 0
      %2197 = vmatprep.subr.bf16.mxu0 0
      %2198 = vmatpush1.bf16.msra.mxu0 0
      %2199 = vmatprep.subr.bf16.mxu0 0
      %2200 = vmatpush1.bf16.msra.mxu0 0
      %2201 = vmatprep.subr.bf16.mxu0 0
      %2202 = vmatpush1.bf16.msra.mxu0 0
      %2203 = vmatprep.subr.bf16.mxu0 0
      %2204 = vmatpush1.bf16.msra.mxu0 0
      %2205 = vmatprep.subr.bf16.mxu0 0
      %2206 = vmatpush1.bf16.msra.mxu0 0
      %2207 = vmatprep.subr.bf16.mxu0 0
      %2208 = vmatpush1.bf16.msra.mxu0 %v2191
      %2209 = vmatprep.subr.bf16.mxu0 0
      %2210 = vmatpush2.bf16.msra.mxu0 0
      %2211 = vmatprep.subr.bf16.mxu0 0
      %2212 = vmatpush2.bf16.msra.mxu0 0
      %2213 = vmatprep.subr.bf16.mxu0 0
      %2214 = vmatpush2.bf16.msra.mxu0 0
      %2215 = vmatprep.subr.bf16.mxu0 0
      %2216 = vmatpush2.bf16.msra.mxu0 0
      %2217 = vmatprep.subr.bf16.mxu0 0
      %2218 = vmatpush2.bf16.msra.mxu0 0
      %2219 = vmatprep.subr.bf16.mxu0 0
      %2220 = vmatpush2.bf16.msra.mxu0 0
      %2221 = vmatprep.subr.bf16.mxu0 0
      %2222 = vmatpush2.bf16.msra.mxu0 0
      %2223 = vmatprep.subr.bf16.mxu0 0
      %2224 = vmatpush2.bf16.msra.mxu0 0
      %2225 = vmatprep.mubr.bf16.mxu0 0
      %2226 = vmatmul.mubr.bf16.gmra.mxu0 %v2188
      %v2227 = vpop.f32.mrf.mxu0
      %v2228 = vadd.f32 0.0, %v2227
      %v2229 = vpop.f32.mrf.mxu0
      %v2230 = vpop.f32.mrf.mxu0
      %v2231 = vpop.f32.mrf.mxu0
      %2232 = vdwg.mxu0
      %v2234 = vsel %vm350, %v2177, 0
      %2236 = vmatprep.subr.bf16.mxu0 0
      %2237 = vmatpush1.bf16.msra.mxu0 0
      %2238 = vmatprep.subr.bf16.mxu0 0
      %2239 = vmatpush1.bf16.msra.mxu0 0
      %2240 = vmatprep.subr.bf16.mxu0 0
      %2241 = vmatpush1.bf16.msra.mxu0 0
      %2242 = vmatprep.subr.bf16.mxu0 0
      %2243 = vmatpush1.bf16.msra.mxu0 0
      %2244 = vmatprep.subr.bf16.mxu0 0
      %2245 = vmatpush1.bf16.msra.mxu0 0
      %2246 = vmatprep.subr.bf16.mxu0 0
      %2247 = vmatpush1.bf16.msra.mxu0 0
      %2248 = vmatprep.subr.bf16.mxu0 0
      %2249 = vmatpush1.bf16.msra.mxu0 0
      %2250 = vmatprep.subr.bf16.mxu0 0
      %2251 = vmatpush1.bf16.msra.mxu0 %v2191
      %2252 = vmatprep.subr.bf16.mxu0 0
      %2253 = vmatpush2.bf16.msra.mxu0 0
      %2254 = vmatprep.subr.bf16.mxu0 0
      %2255 = vmatpush2.bf16.msra.mxu0 0
      %2256 = vmatprep.subr.bf16.mxu0 0
      %2257 = vmatpush2.bf16.msra.mxu0 0
      %2258 = vmatprep.subr.bf16.mxu0 0
      %2259 = vmatpush2.bf16.msra.mxu0 0
      %2260 = vmatprep.subr.bf16.mxu0 0
      %2261 = vmatpush2.bf16.msra.mxu0 0
      %2262 = vmatprep.subr.bf16.mxu0 0
      %2263 = vmatpush2.bf16.msra.mxu0 0
      %2264 = vmatprep.subr.bf16.mxu0 0
      %2265 = vmatpush2.bf16.msra.mxu0 0
      %2266 = vmatprep.subr.bf16.mxu0 0
      %2267 = vmatpush2.bf16.msra.mxu0 0
      %2268 = vmatprep.mubr.bf16.mxu0 0
      %2269 = vmatmul.mubr.bf16.gmra.mxu0 %v2234
      %v2270 = vpop.f32.mrf.mxu0
      %v2271 = vadd.f32 0.0, %v2270
      %v2272 = vpop.f32.mrf.mxu0
      %v2273 = vpop.f32.mrf.mxu0
      %v2274 = vpop.f32.mrf.mxu0
      %2275 = vdwg.mxu0
      %v2277 = vsel %vm350, %v2178, 0
      %2279 = vmatprep.subr.bf16.mxu0 0
      %2280 = vmatpush1.bf16.msra.mxu0 0
      %2281 = vmatprep.subr.bf16.mxu0 0
      %2282 = vmatpush1.bf16.msra.mxu0 0
      %2283 = vmatprep.subr.bf16.mxu0 0
      %2284 = vmatpush1.bf16.msra.mxu0 0
      %2285 = vmatprep.subr.bf16.mxu0 0
      %2286 = vmatpush1.bf16.msra.mxu0 0
      %2287 = vmatprep.subr.bf16.mxu0 0
      %2288 = vmatpush1.bf16.msra.mxu0 0
      %2289 = vmatprep.subr.bf16.mxu0 0
      %2290 = vmatpush1.bf16.msra.mxu0 0
      %2291 = vmatprep.subr.bf16.mxu0 0
      %2292 = vmatpush1.bf16.msra.mxu0 0
      %2293 = vmatprep.subr.bf16.mxu0 0
      %2294 = vmatpush1.bf16.msra.mxu0 %v2191
      %2295 = vmatprep.subr.bf16.mxu0 0
      %2296 = vmatpush2.bf16.msra.mxu0 0
      %2297 = vmatprep.subr.bf16.mxu0 0
      %2298 = vmatpush2.bf16.msra.mxu0 0
      %2299 = vmatprep.subr.bf16.mxu0 0
      %2300 = vmatpush2.bf16.msra.mxu0 0
      %2301 = vmatprep.subr.bf16.mxu0 0
      %2302 = vmatpush2.bf16.msra.mxu0 0
      %2303 = vmatprep.subr.bf16.mxu0 0
      %2304 = vmatpush2.bf16.msra.mxu0 0
      %2305 = vmatprep.subr.bf16.mxu0 0
      %2306 = vmatpush2.bf16.msra.mxu0 0
      %2307 = vmatprep.subr.bf16.mxu0 0
      %2308 = vmatpush2.bf16.msra.mxu0 0
      %2309 = vmatprep.subr.bf16.mxu0 0
      %2310 = vmatpush2.bf16.msra.mxu0 0
      %2311 = vmatprep.mubr.bf16.mxu0 0
      %2312 = vmatmul.mubr.bf16.gmra.mxu0 %v2277
      %v2313 = vpop.f32.mrf.mxu0
      %v2314 = vadd.f32 0.0, %v2313
      %v2315 = vpop.f32.mrf.mxu0
      %v2316 = vpop.f32.mrf.mxu0
      %v2317 = vpop.f32.mrf.mxu0
      %2318 = vdwg.mxu0
      %v2320 = vsel %vm350, %v2179, 0
      %2322 = vmatprep.subr.bf16.mxu0 0
      %2323 = vmatpush1.bf16.msra.mxu0 0
      %2324 = vmatprep.subr.bf16.mxu0 0
      %2325 = vmatpush1.bf16.msra.mxu0 0
      %2326 = vmatprep.subr.bf16.mxu0 0
      %2327 = vmatpush1.bf16.msra.mxu0 0
      %2328 = vmatprep.subr.bf16.mxu0 0
      %2329 = vmatpush1.bf16.msra.mxu0 0
      %2330 = vmatprep.subr.bf16.mxu0 0
      %2331 = vmatpush1.bf16.msra.mxu0 0
      %2332 = vmatprep.subr.bf16.mxu0 0
      %2333 = vmatpush1.bf16.msra.mxu0 0
      %2334 = vmatprep.subr.bf16.mxu0 0
      %2335 = vmatpush1.bf16.msra.mxu0 0
      %2336 = vmatprep.subr.bf16.mxu0 0
      %2337 = vmatpush1.bf16.msra.mxu0 %v2191
      %2338 = vmatprep.subr.bf16.mxu0 0
      %2339 = vmatpush2.bf16.msra.mxu0 0
      %2340 = vmatprep.subr.bf16.mxu0 0
      %2341 = vmatpush2.bf16.msra.mxu0 0
      %2342 = vmatprep.subr.bf16.mxu0 0
      %2343 = vmatpush2.bf16.msra.mxu0 0
      %2344 = vmatprep.subr.bf16.mxu0 0
      %2345 = vmatpush2.bf16.msra.mxu0 0
      %2346 = vmatprep.subr.bf16.mxu0 0
      %2347 = vmatpush2.bf16.msra.mxu0 0
      %2348 = vmatprep.subr.bf16.mxu0 0
      %2349 = vmatpush2.bf16.msra.mxu0 0
      %2350 = vmatprep.subr.bf16.mxu0 0
      %2351 = vmatpush2.bf16.msra.mxu0 0
      %2352 = vmatprep.subr.bf16.mxu0 0
      %2353 = vmatpush2.bf16.msra.mxu0 0
      %2354 = vmatprep.mubr.bf16.mxu0 0
      %2355 = vmatmul.mubr.bf16.gmra.mxu0 %v2320
      %v2356 = vpop.f32.mrf.mxu0
      %v2357 = vadd.f32 0.0, %v2356
      %v2358 = vpop.f32.mrf.mxu0
      %v2359 = vpop.f32.mrf.mxu0
      %v2360 = vpop.f32.mrf.mxu0
      %2361 = vdwg.mxu0
      %v2363 = vsel %vm350, %v2180, 0
      %2365 = vmatprep.subr.bf16.mxu0 0
      %2366 = vmatpush1.bf16.msra.mxu0 0
      %2367 = vmatprep.subr.bf16.mxu0 0
      %2368 = vmatpush1.bf16.msra.mxu0 0
      %2369 = vmatprep.subr.bf16.mxu0 0
      %2370 = vmatpush1.bf16.msra.mxu0 0
      %2371 = vmatprep.subr.bf16.mxu0 0
      %2372 = vmatpush1.bf16.msra.mxu0 0
      %2373 = vmatprep.subr.bf16.mxu0 0
      %2374 = vmatpush1.bf16.msra.mxu0 0
      %2375 = vmatprep.subr.bf16.mxu0 0
      %2376 = vmatpush1.bf16.msra.mxu0 0
      %2377 = vmatprep.subr.bf16.mxu0 0
      %2378 = vmatpush1.bf16.msra.mxu0 0
      %2379 = vmatprep.subr.bf16.mxu0 0
      %2380 = vmatpush1.bf16.msra.mxu0 %v2191
      %2381 = vmatprep.subr.bf16.mxu0 0
      %2382 = vmatpush2.bf16.msra.mxu0 0
      %2383 = vmatprep.subr.bf16.mxu0 0
      %2384 = vmatpush2.bf16.msra.mxu0 0
      %2385 = vmatprep.subr.bf16.mxu0 0
      %2386 = vmatpush2.bf16.msra.mxu0 0
      %2387 = vmatprep.subr.bf16.mxu0 0
      %2388 = vmatpush2.bf16.msra.mxu0 0
      %2389 = vmatprep.subr.bf16.mxu0 0
      %2390 = vmatpush2.bf16.msra.mxu0 0
      %2391 = vmatprep.subr.bf16.mxu0 0
      %2392 = vmatpush2.bf16.msra.mxu0 0
      %2393 = vmatprep.subr.bf16.mxu0 0
      %2394 = vmatpush2.bf16.msra.mxu0 0
      %2395 = vmatprep.subr.bf16.mxu0 0
      %2396 = vmatpush2.bf16.msra.mxu0 0
      %2397 = vmatprep.mubr.bf16.mxu0 0
      %2398 = vmatmul.mubr.bf16.gmra.mxu0 %v2363
      %v2399 = vpop.f32.mrf.mxu0
      %v2400 = vadd.f32 0.0, %v2399
      %v2401 = vpop.f32.mrf.mxu0
      %v2402 = vpop.f32.mrf.mxu0
      %v2403 = vpop.f32.mrf.mxu0
      %2404 = vdwg.mxu0
      %v2406 = vsel %vm350, %v2181, 0
      %2408 = vmatprep.subr.bf16.mxu0 0
      %2409 = vmatpush1.bf16.msra.mxu0 0
      %2410 = vmatprep.subr.bf16.mxu0 0
      %2411 = vmatpush1.bf16.msra.mxu0 0
      %2412 = vmatprep.subr.bf16.mxu0 0
      %2413 = vmatpush1.bf16.msra.mxu0 0
      %2414 = vmatprep.subr.bf16.mxu0 0
      %2415 = vmatpush1.bf16.msra.mxu0 0
      %2416 = vmatprep.subr.bf16.mxu0 0
      %2417 = vmatpush1.bf16.msra.mxu0 0
      %2418 = vmatprep.subr.bf16.mxu0 0
      %2419 = vmatpush1.bf16.msra.mxu0 0
      %2420 = vmatprep.subr.bf16.mxu0 0
      %2421 = vmatpush1.bf16.msra.mxu0 0
      %2422 = vmatprep.subr.bf16.mxu0 0
      %2423 = vmatpush1.bf16.msra.mxu0 %v2191
      %2424 = vmatprep.subr.bf16.mxu0 0
      %2425 = vmatpush2.bf16.msra.mxu0 0
      %2426 = vmatprep.subr.bf16.mxu0 0
      %2427 = vmatpush2.bf16.msra.mxu0 0
      %2428 = vmatprep.subr.bf16.mxu0 0
      %2429 = vmatpush2.bf16.msra.mxu0 0
      %2430 = vmatprep.subr.bf16.mxu0 0
      %2431 = vmatpush2.bf16.msra.mxu0 0
      %2432 = vmatprep.subr.bf16.mxu0 0
      %2433 = vmatpush2.bf16.msra.mxu0 0
      %2434 = vmatprep.subr.bf16.mxu0 0
      %2435 = vmatpush2.bf16.msra.mxu0 0
      %2436 = vmatprep.subr.bf16.mxu0 0
      %2437 = vmatpush2.bf16.msra.mxu0 0
      %2438 = vmatprep.subr.bf16.mxu0 0
      %2439 = vmatpush2.bf16.msra.mxu0 0
      %2440 = vmatprep.mubr.bf16.mxu0 0
      %2441 = vmatmul.mubr.bf16.gmra.mxu0 %v2406
      %v2442 = vpop.f32.mrf.mxu0
      %v2443 = vadd.f32 0.0, %v2442
      %v2444 = vpop.f32.mrf.mxu0
      %v2445 = vpop.f32.mrf.mxu0
      %v2446 = vpop.f32.mrf.mxu0
      %2447 = vdwg.mxu0
      %v2449 = vsel %vm350, %v2182, 0
      %2451 = vmatprep.subr.bf16.mxu0 0
      %2452 = vmatpush1.bf16.msra.mxu0 0
      %2453 = vmatprep.subr.bf16.mxu0 0
      %2454 = vmatpush1.bf16.msra.mxu0 0
      %2455 = vmatprep.subr.bf16.mxu0 0
      %2456 = vmatpush1.bf16.msra.mxu0 0
      %2457 = vmatprep.subr.bf16.mxu0 0
      %2458 = vmatpush1.bf16.msra.mxu0 0
      %2459 = vmatprep.subr.bf16.mxu0 0
      %2460 = vmatpush1.bf16.msra.mxu0 0
      %2461 = vmatprep.subr.bf16.mxu0 0
      %2462 = vmatpush1.bf16.msra.mxu0 0
      %2463 = vmatprep.subr.bf16.mxu0 0
      %2464 = vmatpush1.bf16.msra.mxu0 0
      %2465 = vmatprep.subr.bf16.mxu0 0
      %2466 = vmatpush1.bf16.msra.mxu0 %v2191
      %2467 = vmatprep.subr.bf16.mxu0 0
      %2468 = vmatpush2.bf16.msra.mxu0 0
      %2469 = vmatprep.subr.bf16.mxu0 0
      %2470 = vmatpush2.bf16.msra.mxu0 0
      %2471 = vmatprep.subr.bf16.mxu0 0
      %2472 = vmatpush2.bf16.msra.mxu0 0
      %2473 = vmatprep.subr.bf16.mxu0 0
      %2474 = vmatpush2.bf16.msra.mxu0 0
      %2475 = vmatprep.subr.bf16.mxu0 0
      %2476 = vmatpush2.bf16.msra.mxu0 0
      %2477 = vmatprep.subr.bf16.mxu0 0
      %2478 = vmatpush2.bf16.msra.mxu0 0
      %2479 = vmatprep.subr.bf16.mxu0 0
      %2480 = vmatpush2.bf16.msra.mxu0 0
      %2481 = vmatprep.subr.bf16.mxu0 0
      %2482 = vmatpush2.bf16.msra.mxu0 0
      %2483 = vmatprep.mubr.bf16.mxu0 0
      %2484 = vmatmul.mubr.bf16.gmra.mxu0 %v2449
      %v2485 = vpop.f32.mrf.mxu0
      %v2486 = vadd.f32 0.0, %v2485
      %v2487 = vpop.f32.mrf.mxu0
      %v2488 = vpop.f32.mrf.mxu0
      %v2489 = vpop.f32.mrf.mxu0
      %2490 = vdwg.mxu0
      %v2492 = vsel %vm350, %v2183, 0
      %2494 = vmatprep.subr.bf16.mxu0 0
      %2495 = vmatpush1.bf16.msra.mxu0 0
      %2496 = vmatprep.subr.bf16.mxu0 0
      %2497 = vmatpush1.bf16.msra.mxu0 0
      %2498 = vmatprep.subr.bf16.mxu0 0
      %2499 = vmatpush1.bf16.msra.mxu0 0
      %2500 = vmatprep.subr.bf16.mxu0 0
      %2501 = vmatpush1.bf16.msra.mxu0 0
      %2502 = vmatprep.subr.bf16.mxu0 0
      %2503 = vmatpush1.bf16.msra.mxu0 0
      %2504 = vmatprep.subr.bf16.mxu0 0
      %2505 = vmatpush1.bf16.msra.mxu0 0
      %2506 = vmatprep.subr.bf16.mxu0 0
      %2507 = vmatpush1.bf16.msra.mxu0 0
      %2508 = vmatprep.subr.bf16.mxu0 0
      %2509 = vmatpush1.bf16.msra.mxu0 %v2191
      %2510 = vmatprep.subr.bf16.mxu0 0
      %2511 = vmatpush2.bf16.msra.mxu0 0
      %2512 = vmatprep.subr.bf16.mxu0 0
      %2513 = vmatpush2.bf16.msra.mxu0 0
      %2514 = vmatprep.subr.bf16.mxu0 0
      %2515 = vmatpush2.bf16.msra.mxu0 0
      %2516 = vmatprep.subr.bf16.mxu0 0
      %2517 = vmatpush2.bf16.msra.mxu0 0
      %2518 = vmatprep.subr.bf16.mxu0 0
      %2519 = vmatpush2.bf16.msra.mxu0 0
      %2520 = vmatprep.subr.bf16.mxu0 0
      %2521 = vmatpush2.bf16.msra.mxu0 0
      %2522 = vmatprep.subr.bf16.mxu0 0
      %2523 = vmatpush2.bf16.msra.mxu0 0
      %2524 = vmatprep.subr.bf16.mxu0 0
      %2525 = vmatpush2.bf16.msra.mxu0 0
      %2526 = vmatprep.mubr.bf16.mxu0 0
      %2527 = vmatmul.mubr.bf16.gmra.mxu0 %v2492
      %v2528 = vpop.f32.mrf.mxu0
      %v2529 = vadd.f32 0.0, %v2528
      %v2530 = vpop.f32.mrf.mxu0
      %v2531 = vpop.f32.mrf.mxu0
      %v2532 = vpop.f32.mrf.mxu0
      %2533 = vdwg.mxu0
      %v2534 = vadd.f32 %v2160, %v2228
      %v2535 = vadd.f32 %v2161, %v2271
      %v2536 = vadd.f32 %v2162, %v2314
      %v2537 = vadd.f32 %v2163, %v2357
      %v2538 = vadd.f32 %v2164, %v2400
      %v2539 = vadd.f32 %v2165, %v2443
      %v2540 = vadd.f32 %v2166, %v2486
      %v2541 = vadd.f32 %v2167, %v2529
      %s2542 = scalar_lea.vmem %s291, 16
      %v2543 = vld [vmem:[%s2542] sm:$0xff]
      %v2544 = vld [vmem:[%s2542 + $0x10] sm:$0xff]
      %v2545 = vld [vmem:[%s2542 + $0x20] sm:$0xff]
      %v2546 = vld [vmem:[%s2542 + $0x30] sm:$0xff]
      %v2547 = vld [vmem:[%s2542 + $0x40] sm:$0xff]
      %v2548 = vld [vmem:[%s2542 + $0x50] sm:$0xff]
      %v2549 = vld [vmem:[%s2542 + $0x60] sm:$0xff]
      %v2550 = vld [vmem:[%s2542 + $0x70] sm:$0xff]
      %v2551 = vpack.c.bf16 %v2543, %v2543
      %v2552 = vpack.c.bf16 %v2544, %v2544
      %v2553 = vpack.c.bf16 %v2545, %v2545
      %v2554 = vpack.c.bf16 %v2546, %v2546
      %v2555 = vpack.c.bf16 %v2547, %v2547
      %v2556 = vpack.c.bf16 %v2548, %v2548
      %v2557 = vpack.c.bf16 %v2549, %v2549
      %v2558 = vpack.c.bf16 %v2550, %v2550
      %s2559 = scalar_lea.vmem %s4, 24
      %v2560 = vld [vmem:[%s2559] sm:$0xf]
      %v2561 = vpack.c.bf16 %v2560, %v2560
      %v2563 = vsel %vm350, %v2551, 0
      %v2566 = vsel %vm354, %v2561, 0
      %2568 = vmatprep.subr.bf16.mxu0 0
      %2569 = vmatpush1.bf16.msra.mxu0 0
      %2570 = vmatprep.subr.bf16.mxu0 0
      %2571 = vmatpush1.bf16.msra.mxu0 0
      %2572 = vmatprep.subr.bf16.mxu0 0
      %2573 = vmatpush1.bf16.msra.mxu0 0
      %2574 = vmatprep.subr.bf16.mxu0 0
      %2575 = vmatpush1.bf16.msra.mxu0 0
      %2576 = vmatprep.subr.bf16.mxu0 0
      %2577 = vmatpush1.bf16.msra.mxu0 0
      %2578 = vmatprep.subr.bf16.mxu0 0
      %2579 = vmatpush1.bf16.msra.mxu0 0
      %2580 = vmatprep.subr.bf16.mxu0 0
      %2581 = vmatpush1.bf16.msra.mxu0 0
      %2582 = vmatprep.subr.bf16.mxu0 0
      %2583 = vmatpush1.bf16.msra.mxu0 %v2566
      %2584 = vmatprep.subr.bf16.mxu0 0
      %2585 = vmatpush2.bf16.msra.mxu0 0
      %2586 = vmatprep.subr.bf16.mxu0 0
      %2587 = vmatpush2.bf16.msra.mxu0 0
      %2588 = vmatprep.subr.bf16.mxu0 0
      %2589 = vmatpush2.bf16.msra.mxu0 0
      %2590 = vmatprep.subr.bf16.mxu0 0
      %2591 = vmatpush2.bf16.msra.mxu0 0
      %2592 = vmatprep.subr.bf16.mxu0 0
      %2593 = vmatpush2.bf16.msra.mxu0 0
      %2594 = vmatprep.subr.bf16.mxu0 0
      %2595 = vmatpush2.bf16.msra.mxu0 0
      %2596 = vmatprep.subr.bf16.mxu0 0
      %2597 = vmatpush2.bf16.msra.mxu0 0
      %2598 = vmatprep.subr.bf16.mxu0 0
      %2599 = vmatpush2.bf16.msra.mxu0 0
      %2600 = vmatprep.mubr.bf16.mxu0 0
      %2601 = vmatmul.mubr.bf16.gmra.mxu0 %v2563
      %v2602 = vpop.f32.mrf.mxu0
      %v2603 = vadd.f32 0.0, %v2602
      %v2604 = vpop.f32.mrf.mxu0
      %v2605 = vpop.f32.mrf.mxu0
      %v2606 = vpop.f32.mrf.mxu0
      %2607 = vdwg.mxu0
      %v2609 = vsel %vm350, %v2552, 0
      %2611 = vmatprep.subr.bf16.mxu0 0
      %2612 = vmatpush1.bf16.msra.mxu0 0
      %2613 = vmatprep.subr.bf16.mxu0 0
      %2614 = vmatpush1.bf16.msra.mxu0 0
      %2615 = vmatprep.subr.bf16.mxu0 0
      %2616 = vmatpush1.bf16.msra.mxu0 0
      %2617 = vmatprep.subr.bf16.mxu0 0
      %2618 = vmatpush1.bf16.msra.mxu0 0
      %2619 = vmatprep.subr.bf16.mxu0 0
      %2620 = vmatpush1.bf16.msra.mxu0 0
      %2621 = vmatprep.subr.bf16.mxu0 0
      %2622 = vmatpush1.bf16.msra.mxu0 0
      %2623 = vmatprep.subr.bf16.mxu0 0
      %2624 = vmatpush1.bf16.msra.mxu0 0
      %2625 = vmatprep.subr.bf16.mxu0 0
      %2626 = vmatpush1.bf16.msra.mxu0 %v2566
      %2627 = vmatprep.subr.bf16.mxu0 0
      %2628 = vmatpush2.bf16.msra.mxu0 0
      %2629 = vmatprep.subr.bf16.mxu0 0
      %2630 = vmatpush2.bf16.msra.mxu0 0
      %2631 = vmatprep.subr.bf16.mxu0 0
      %2632 = vmatpush2.bf16.msra.mxu0 0
      %2633 = vmatprep.subr.bf16.mxu0 0
      %2634 = vmatpush2.bf16.msra.mxu0 0
      %2635 = vmatprep.subr.bf16.mxu0 0
      %2636 = vmatpush2.bf16.msra.mxu0 0
      %2637 = vmatprep.subr.bf16.mxu0 0
      %2638 = vmatpush2.bf16.msra.mxu0 0
      %2639 = vmatprep.subr.bf16.mxu0 0
      %2640 = vmatpush2.bf16.msra.mxu0 0
      %2641 = vmatprep.subr.bf16.mxu0 0
      %2642 = vmatpush2.bf16.msra.mxu0 0
      %2643 = vmatprep.mubr.bf16.mxu0 0
      %2644 = vmatmul.mubr.bf16.gmra.mxu0 %v2609
      %v2645 = vpop.f32.mrf.mxu0
      %v2646 = vadd.f32 0.0, %v2645
      %v2647 = vpop.f32.mrf.mxu0
      %v2648 = vpop.f32.mrf.mxu0
      %v2649 = vpop.f32.mrf.mxu0
      %2650 = vdwg.mxu0
      %v2652 = vsel %vm350, %v2553, 0
      %2654 = vmatprep.subr.bf16.mxu0 0
      %2655 = vmatpush1.bf16.msra.mxu0 0
      %2656 = vmatprep.subr.bf16.mxu0 0
      %2657 = vmatpush1.bf16.msra.mxu0 0
      %2658 = vmatprep.subr.bf16.mxu0 0
      %2659 = vmatpush1.bf16.msra.mxu0 0
      %2660 = vmatprep.subr.bf16.mxu0 0
      %2661 = vmatpush1.bf16.msra.mxu0 0
      %2662 = vmatprep.subr.bf16.mxu0 0
      %2663 = vmatpush1.bf16.msra.mxu0 0
      %2664 = vmatprep.subr.bf16.mxu0 0
      %2665 = vmatpush1.bf16.msra.mxu0 0
      %2666 = vmatprep.subr.bf16.mxu0 0
      %2667 = vmatpush1.bf16.msra.mxu0 0
      %2668 = vmatprep.subr.bf16.mxu0 0
      %2669 = vmatpush1.bf16.msra.mxu0 %v2566
      %2670 = vmatprep.subr.bf16.mxu0 0
      %2671 = vmatpush2.bf16.msra.mxu0 0
      %2672 = vmatprep.subr.bf16.mxu0 0
      %2673 = vmatpush2.bf16.msra.mxu0 0
      %2674 = vmatprep.subr.bf16.mxu0 0
      %2675 = vmatpush2.bf16.msra.mxu0 0
      %2676 = vmatprep.subr.bf16.mxu0 0
      %2677 = vmatpush2.bf16.msra.mxu0 0
      %2678 = vmatprep.subr.bf16.mxu0 0
      %2679 = vmatpush2.bf16.msra.mxu0 0
      %2680 = vmatprep.subr.bf16.mxu0 0
      %2681 = vmatpush2.bf16.msra.mxu0 0
      %2682 = vmatprep.subr.bf16.mxu0 0
      %2683 = vmatpush2.bf16.msra.mxu0 0
      %2684 = vmatprep.subr.bf16.mxu0 0
      %2685 = vmatpush2.bf16.msra.mxu0 0
      %2686 = vmatprep.mubr.bf16.mxu0 0
      %2687 = vmatmul.mubr.bf16.gmra.mxu0 %v2652
      %v2688 = vpop.f32.mrf.mxu0
      %v2689 = vadd.f32 0.0, %v2688
      %v2690 = vpop.f32.mrf.mxu0
      %v2691 = vpop.f32.mrf.mxu0
      %v2692 = vpop.f32.mrf.mxu0
      %2693 = vdwg.mxu0
      %v2695 = vsel %vm350, %v2554, 0
      %2697 = vmatprep.subr.bf16.mxu0 0
      %2698 = vmatpush1.bf16.msra.mxu0 0
      %2699 = vmatprep.subr.bf16.mxu0 0
      %2700 = vmatpush1.bf16.msra.mxu0 0
      %2701 = vmatprep.subr.bf16.mxu0 0
      %2702 = vmatpush1.bf16.msra.mxu0 0
      %2703 = vmatprep.subr.bf16.mxu0 0
      %2704 = vmatpush1.bf16.msra.mxu0 0
      %2705 = vmatprep.subr.bf16.mxu0 0
      %2706 = vmatpush1.bf16.msra.mxu0 0
      %2707 = vmatprep.subr.bf16.mxu0 0
      %2708 = vmatpush1.bf16.msra.mxu0 0
      %2709 = vmatprep.subr.bf16.mxu0 0
      %2710 = vmatpush1.bf16.msra.mxu0 0
      %2711 = vmatprep.subr.bf16.mxu0 0
      %2712 = vmatpush1.bf16.msra.mxu0 %v2566
      %2713 = vmatprep.subr.bf16.mxu0 0
      %2714 = vmatpush2.bf16.msra.mxu0 0
      %2715 = vmatprep.subr.bf16.mxu0 0
      %2716 = vmatpush2.bf16.msra.mxu0 0
      %2717 = vmatprep.subr.bf16.mxu0 0
      %2718 = vmatpush2.bf16.msra.mxu0 0
      %2719 = vmatprep.subr.bf16.mxu0 0
      %2720 = vmatpush2.bf16.msra.mxu0 0
      %2721 = vmatprep.subr.bf16.mxu0 0
      %2722 = vmatpush2.bf16.msra.mxu0 0
      %2723 = vmatprep.subr.bf16.mxu0 0
      %2724 = vmatpush2.bf16.msra.mxu0 0
      %2725 = vmatprep.subr.bf16.mxu0 0
      %2726 = vmatpush2.bf16.msra.mxu0 0
      %2727 = vmatprep.subr.bf16.mxu0 0
      %2728 = vmatpush2.bf16.msra.mxu0 0
      %2729 = vmatprep.mubr.bf16.mxu0 0
      %2730 = vmatmul.mubr.bf16.gmra.mxu0 %v2695
      %v2731 = vpop.f32.mrf.mxu0
      %v2732 = vadd.f32 0.0, %v2731
      %v2733 = vpop.f32.mrf.mxu0
      %v2734 = vpop.f32.mrf.mxu0
      %v2735 = vpop.f32.mrf.mxu0
      %2736 = vdwg.mxu0
      %v2738 = vsel %vm350, %v2555, 0
      %2740 = vmatprep.subr.bf16.mxu0 0
      %2741 = vmatpush1.bf16.msra.mxu0 0
      %2742 = vmatprep.subr.bf16.mxu0 0
      %2743 = vmatpush1.bf16.msra.mxu0 0
      %2744 = vmatprep.subr.bf16.mxu0 0
      %2745 = vmatpush1.bf16.msra.mxu0 0
      %2746 = vmatprep.subr.bf16.mxu0 0
      %2747 = vmatpush1.bf16.msra.mxu0 0
      %2748 = vmatprep.subr.bf16.mxu0 0
      %2749 = vmatpush1.bf16.msra.mxu0 0
      %2750 = vmatprep.subr.bf16.mxu0 0
      %2751 = vmatpush1.bf16.msra.mxu0 0
      %2752 = vmatprep.subr.bf16.mxu0 0
      %2753 = vmatpush1.bf16.msra.mxu0 0
      %2754 = vmatprep.subr.bf16.mxu0 0
      %2755 = vmatpush1.bf16.msra.mxu0 %v2566
      %2756 = vmatprep.subr.bf16.mxu0 0
      %2757 = vmatpush2.bf16.msra.mxu0 0
      %2758 = vmatprep.subr.bf16.mxu0 0
      %2759 = vmatpush2.bf16.msra.mxu0 0
      %2760 = vmatprep.subr.bf16.mxu0 0
      %2761 = vmatpush2.bf16.msra.mxu0 0
      %2762 = vmatprep.subr.bf16.mxu0 0
      %2763 = vmatpush2.bf16.msra.mxu0 0
      %2764 = vmatprep.subr.bf16.mxu0 0
      %2765 = vmatpush2.bf16.msra.mxu0 0
      %2766 = vmatprep.subr.bf16.mxu0 0
      %2767 = vmatpush2.bf16.msra.mxu0 0
      %2768 = vmatprep.subr.bf16.mxu0 0
      %2769 = vmatpush2.bf16.msra.mxu0 0
      %2770 = vmatprep.subr.bf16.mxu0 0
      %2771 = vmatpush2.bf16.msra.mxu0 0
      %2772 = vmatprep.mubr.bf16.mxu0 0
      %2773 = vmatmul.mubr.bf16.gmra.mxu0 %v2738
      %v2774 = vpop.f32.mrf.mxu0
      %v2775 = vadd.f32 0.0, %v2774
      %v2776 = vpop.f32.mrf.mxu0
      %v2777 = vpop.f32.mrf.mxu0
      %v2778 = vpop.f32.mrf.mxu0
      %2779 = vdwg.mxu0
      %v2781 = vsel %vm350, %v2556, 0
      %2783 = vmatprep.subr.bf16.mxu0 0
      %2784 = vmatpush1.bf16.msra.mxu0 0
      %2785 = vmatprep.subr.bf16.mxu0 0
      %2786 = vmatpush1.bf16.msra.mxu0 0
      %2787 = vmatprep.subr.bf16.mxu0 0
      %2788 = vmatpush1.bf16.msra.mxu0 0
      %2789 = vmatprep.subr.bf16.mxu0 0
      %2790 = vmatpush1.bf16.msra.mxu0 0
      %2791 = vmatprep.subr.bf16.mxu0 0
      %2792 = vmatpush1.bf16.msra.mxu0 0
      %2793 = vmatprep.subr.bf16.mxu0 0
      %2794 = vmatpush1.bf16.msra.mxu0 0
      %2795 = vmatprep.subr.bf16.mxu0 0
      %2796 = vmatpush1.bf16.msra.mxu0 0
      %2797 = vmatprep.subr.bf16.mxu0 0
      %2798 = vmatpush1.bf16.msra.mxu0 %v2566
      %2799 = vmatprep.subr.bf16.mxu0 0
      %2800 = vmatpush2.bf16.msra.mxu0 0
      %2801 = vmatprep.subr.bf16.mxu0 0
      %2802 = vmatpush2.bf16.msra.mxu0 0
      %2803 = vmatprep.subr.bf16.mxu0 0
      %2804 = vmatpush2.bf16.msra.mxu0 0
      %2805 = vmatprep.subr.bf16.mxu0 0
      %2806 = vmatpush2.bf16.msra.mxu0 0
      %2807 = vmatprep.subr.bf16.mxu0 0
      %2808 = vmatpush2.bf16.msra.mxu0 0
      %2809 = vmatprep.subr.bf16.mxu0 0
      %2810 = vmatpush2.bf16.msra.mxu0 0
      %2811 = vmatprep.subr.bf16.mxu0 0
      %2812 = vmatpush2.bf16.msra.mxu0 0
      %2813 = vmatprep.subr.bf16.mxu0 0
      %2814 = vmatpush2.bf16.msra.mxu0 0
      %2815 = vmatprep.mubr.bf16.mxu0 0
      %2816 = vmatmul.mubr.bf16.gmra.mxu0 %v2781
      %v2817 = vpop.f32.mrf.mxu0
      %v2818 = vadd.f32 0.0, %v2817
      %v2819 = vpop.f32.mrf.mxu0
      %v2820 = vpop.f32.mrf.mxu0
      %v2821 = vpop.f32.mrf.mxu0
      %2822 = vdwg.mxu0
      %v2824 = vsel %vm350, %v2557, 0
      %2826 = vmatprep.subr.bf16.mxu0 0
      %2827 = vmatpush1.bf16.msra.mxu0 0
      %2828 = vmatprep.subr.bf16.mxu0 0
      %2829 = vmatpush1.bf16.msra.mxu0 0
      %2830 = vmatprep.subr.bf16.mxu0 0
      %2831 = vmatpush1.bf16.msra.mxu0 0
      %2832 = vmatprep.subr.bf16.mxu0 0
      %2833 = vmatpush1.bf16.msra.mxu0 0
      %2834 = vmatprep.subr.bf16.mxu0 0
      %2835 = vmatpush1.bf16.msra.mxu0 0
      %2836 = vmatprep.subr.bf16.mxu0 0
      %2837 = vmatpush1.bf16.msra.mxu0 0
      %2838 = vmatprep.subr.bf16.mxu0 0
      %2839 = vmatpush1.bf16.msra.mxu0 0
      %2840 = vmatprep.subr.bf16.mxu0 0
      %2841 = vmatpush1.bf16.msra.mxu0 %v2566
      %2842 = vmatprep.subr.bf16.mxu0 0
      %2843 = vmatpush2.bf16.msra.mxu0 0
      %2844 = vmatprep.subr.bf16.mxu0 0
      %2845 = vmatpush2.bf16.msra.mxu0 0
      %2846 = vmatprep.subr.bf16.mxu0 0
      %2847 = vmatpush2.bf16.msra.mxu0 0
      %2848 = vmatprep.subr.bf16.mxu0 0
      %2849 = vmatpush2.bf16.msra.mxu0 0
      %2850 = vmatprep.subr.bf16.mxu0 0
      %2851 = vmatpush2.bf16.msra.mxu0 0
      %2852 = vmatprep.subr.bf16.mxu0 0
      %2853 = vmatpush2.bf16.msra.mxu0 0
      %2854 = vmatprep.subr.bf16.mxu0 0
      %2855 = vmatpush2.bf16.msra.mxu0 0
      %2856 = vmatprep.subr.bf16.mxu0 0
      %2857 = vmatpush2.bf16.msra.mxu0 0
      %2858 = vmatprep.mubr.bf16.mxu0 0
      %2859 = vmatmul.mubr.bf16.gmra.mxu0 %v2824
      %v2860 = vpop.f32.mrf.mxu0
      %v2861 = vadd.f32 0.0, %v2860
      %v2862 = vpop.f32.mrf.mxu0
      %v2863 = vpop.f32.mrf.mxu0
      %v2864 = vpop.f32.mrf.mxu0
      %2865 = vdwg.mxu0
      %v2867 = vsel %vm350, %v2558, 0
      %2869 = vmatprep.subr.bf16.mxu0 0
      %2870 = vmatpush1.bf16.msra.mxu0 0
      %2871 = vmatprep.subr.bf16.mxu0 0
      %2872 = vmatpush1.bf16.msra.mxu0 0
      %2873 = vmatprep.subr.bf16.mxu0 0
      %2874 = vmatpush1.bf16.msra.mxu0 0
      %2875 = vmatprep.subr.bf16.mxu0 0
      %2876 = vmatpush1.bf16.msra.mxu0 0
      %2877 = vmatprep.subr.bf16.mxu0 0
      %2878 = vmatpush1.bf16.msra.mxu0 0
      %2879 = vmatprep.subr.bf16.mxu0 0
      %2880 = vmatpush1.bf16.msra.mxu0 0
      %2881 = vmatprep.subr.bf16.mxu0 0
      %2882 = vmatpush1.bf16.msra.mxu0 0
      %2883 = vmatprep.subr.bf16.mxu0 0
      %2884 = vmatpush1.bf16.msra.mxu0 %v2566
      %2885 = vmatprep.subr.bf16.mxu0 0
      %2886 = vmatpush2.bf16.msra.mxu0 0
      %2887 = vmatprep.subr.bf16.mxu0 0
      %2888 = vmatpush2.bf16.msra.mxu0 0
      %2889 = vmatprep.subr.bf16.mxu0 0
      %2890 = vmatpush2.bf16.msra.mxu0 0
      %2891 = vmatprep.subr.bf16.mxu0 0
      %2892 = vmatpush2.bf16.msra.mxu0 0
      %2893 = vmatprep.subr.bf16.mxu0 0
      %2894 = vmatpush2.bf16.msra.mxu0 0
      %2895 = vmatprep.subr.bf16.mxu0 0
      %2896 = vmatpush2.bf16.msra.mxu0 0
      %2897 = vmatprep.subr.bf16.mxu0 0
      %2898 = vmatpush2.bf16.msra.mxu0 0
      %2899 = vmatprep.subr.bf16.mxu0 0
      %2900 = vmatpush2.bf16.msra.mxu0 0
      %2901 = vmatprep.mubr.bf16.mxu0 0
      %2902 = vmatmul.mubr.bf16.gmra.mxu0 %v2867
      %v2903 = vpop.f32.mrf.mxu0
      %v2904 = vadd.f32 0.0, %v2903
      %v2905 = vpop.f32.mrf.mxu0
      %v2906 = vpop.f32.mrf.mxu0
      %v2907 = vpop.f32.mrf.mxu0
      %2908 = vdwg.mxu0
      %v2909 = vadd.f32 %v2534, %v2603
      %v2910 = vadd.f32 %v2535, %v2646
      %v2911 = vadd.f32 %v2536, %v2689
      %v2912 = vadd.f32 %v2537, %v2732
      %v2913 = vadd.f32 %v2538, %v2775
      %v2914 = vadd.f32 %v2539, %v2818
      %v2915 = vadd.f32 %v2540, %v2861
      %v2916 = vadd.f32 %v2541, %v2904
      %s2917 = scalar_lea.vmem %s296, 16
      %v2918 = vld [vmem:[%s2917] sm:$0xff]
      %v2919 = vld [vmem:[%s2917 + $0x10] sm:$0xff]
      %v2920 = vld [vmem:[%s2917 + $0x20] sm:$0xff]
      %v2921 = vld [vmem:[%s2917 + $0x30] sm:$0xff]
      %v2922 = vld [vmem:[%s2917 + $0x40] sm:$0xff]
      %v2923 = vld [vmem:[%s2917 + $0x50] sm:$0xff]
      %v2924 = vld [vmem:[%s2917 + $0x60] sm:$0xff]
      %v2925 = vld [vmem:[%s2917 + $0x70] sm:$0xff]
      %v2926 = vpack.c.bf16 %v2918, %v2918
      %v2927 = vpack.c.bf16 %v2919, %v2919
      %v2928 = vpack.c.bf16 %v2920, %v2920
      %v2929 = vpack.c.bf16 %v2921, %v2921
      %v2930 = vpack.c.bf16 %v2922, %v2922
      %v2931 = vpack.c.bf16 %v2923, %v2923
      %v2932 = vpack.c.bf16 %v2924, %v2924
      %v2933 = vpack.c.bf16 %v2925, %v2925
      %s2934 = scalar_lea.vmem %s4, 28
      %v2935 = vld [vmem:[%s2934] sm:$0xf]
      %v2936 = vpack.c.bf16 %v2935, %v2935
      %v2938 = vsel %vm350, %v2926, 0
      %v2941 = vsel %vm354, %v2936, 0
      %2943 = vmatprep.subr.bf16.mxu0 0
      %2944 = vmatpush1.bf16.msra.mxu0 0
      %2945 = vmatprep.subr.bf16.mxu0 0
      %2946 = vmatpush1.bf16.msra.mxu0 0
      %2947 = vmatprep.subr.bf16.mxu0 0
      %2948 = vmatpush1.bf16.msra.mxu0 0
      %2949 = vmatprep.subr.bf16.mxu0 0
      %2950 = vmatpush1.bf16.msra.mxu0 0
      %2951 = vmatprep.subr.bf16.mxu0 0
      %2952 = vmatpush1.bf16.msra.mxu0 0
      %2953 = vmatprep.subr.bf16.mxu0 0
      %2954 = vmatpush1.bf16.msra.mxu0 0
      %2955 = vmatprep.subr.bf16.mxu0 0
      %2956 = vmatpush1.bf16.msra.mxu0 0
      %2957 = vmatprep.subr.bf16.mxu0 0
      %2958 = vmatpush1.bf16.msra.mxu0 %v2941
      %2959 = vmatprep.subr.bf16.mxu0 0
      %2960 = vmatpush2.bf16.msra.mxu0 0
      %2961 = vmatprep.subr.bf16.mxu0 0
      %2962 = vmatpush2.bf16.msra.mxu0 0
      %2963 = vmatprep.subr.bf16.mxu0 0
      %2964 = vmatpush2.bf16.msra.mxu0 0
      %2965 = vmatprep.subr.bf16.mxu0 0
      %2966 = vmatpush2.bf16.msra.mxu0 0
      %2967 = vmatprep.subr.bf16.mxu0 0
      %2968 = vmatpush2.bf16.msra.mxu0 0
      %2969 = vmatprep.subr.bf16.mxu0 0
      %2970 = vmatpush2.bf16.msra.mxu0 0
      %2971 = vmatprep.subr.bf16.mxu0 0
      %2972 = vmatpush2.bf16.msra.mxu0 0
      %2973 = vmatprep.subr.bf16.mxu0 0
      %2974 = vmatpush2.bf16.msra.mxu0 0
      %2975 = vmatprep.mubr.bf16.mxu0 0
      %2976 = vmatmul.mubr.bf16.gmra.mxu0 %v2938
      %v2977 = vpop.f32.mrf.mxu0
      %v2978 = vadd.f32 0.0, %v2977
      %v2979 = vpop.f32.mrf.mxu0
      %v2980 = vpop.f32.mrf.mxu0
      %v2981 = vpop.f32.mrf.mxu0
      %2982 = vdwg.mxu0
      %v2984 = vsel %vm350, %v2927, 0
      %2986 = vmatprep.subr.bf16.mxu0 0
      %2987 = vmatpush1.bf16.msra.mxu0 0
      %2988 = vmatprep.subr.bf16.mxu0 0
      %2989 = vmatpush1.bf16.msra.mxu0 0
      %2990 = vmatprep.subr.bf16.mxu0 0
      %2991 = vmatpush1.bf16.msra.mxu0 0
      %2992 = vmatprep.subr.bf16.mxu0 0
      %2993 = vmatpush1.bf16.msra.mxu0 0
      %2994 = vmatprep.subr.bf16.mxu0 0
      %2995 = vmatpush1.bf16.msra.mxu0 0
      %2996 = vmatprep.subr.bf16.mxu0 0
      %2997 = vmatpush1.bf16.msra.mxu0 0
      %2998 = vmatprep.subr.bf16.mxu0 0
      %2999 = vmatpush1.bf16.msra.mxu0 0
      %3000 = vmatprep.subr.bf16.mxu0 0
      %3001 = vmatpush1.bf16.msra.mxu0 %v2941
      %3002 = vmatprep.subr.bf16.mxu0 0
      %3003 = vmatpush2.bf16.msra.mxu0 0
      %3004 = vmatprep.subr.bf16.mxu0 0
      %3005 = vmatpush2.bf16.msra.mxu0 0
      %3006 = vmatprep.subr.bf16.mxu0 0
      %3007 = vmatpush2.bf16.msra.mxu0 0
      %3008 = vmatprep.subr.bf16.mxu0 0
      %3009 = vmatpush2.bf16.msra.mxu0 0
      %3010 = vmatprep.subr.bf16.mxu0 0
      %3011 = vmatpush2.bf16.msra.mxu0 0
      %3012 = vmatprep.subr.bf16.mxu0 0
      %3013 = vmatpush2.bf16.msra.mxu0 0
      %3014 = vmatprep.subr.bf16.mxu0 0
      %3015 = vmatpush2.bf16.msra.mxu0 0
      %3016 = vmatprep.subr.bf16.mxu0 0
      %3017 = vmatpush2.bf16.msra.mxu0 0
      %3018 = vmatprep.mubr.bf16.mxu0 0
      %3019 = vmatmul.mubr.bf16.gmra.mxu0 %v2984
      %v3020 = vpop.f32.mrf.mxu0
      %v3021 = vadd.f32 0.0, %v3020
      %v3022 = vpop.f32.mrf.mxu0
      %v3023 = vpop.f32.mrf.mxu0
      %v3024 = vpop.f32.mrf.mxu0
      %3025 = vdwg.mxu0
      %v3027 = vsel %vm350, %v2928, 0
      %3029 = vmatprep.subr.bf16.mxu0 0
      %3030 = vmatpush1.bf16.msra.mxu0 0
      %3031 = vmatprep.subr.bf16.mxu0 0
      %3032 = vmatpush1.bf16.msra.mxu0 0
      %3033 = vmatprep.subr.bf16.mxu0 0
      %3034 = vmatpush1.bf16.msra.mxu0 0
      %3035 = vmatprep.subr.bf16.mxu0 0
      %3036 = vmatpush1.bf16.msra.mxu0 0
      %3037 = vmatprep.subr.bf16.mxu0 0
      %3038 = vmatpush1.bf16.msra.mxu0 0
      %3039 = vmatprep.subr.bf16.mxu0 0
      %3040 = vmatpush1.bf16.msra.mxu0 0
      %3041 = vmatprep.subr.bf16.mxu0 0
      %3042 = vmatpush1.bf16.msra.mxu0 0
      %3043 = vmatprep.subr.bf16.mxu0 0
      %3044 = vmatpush1.bf16.msra.mxu0 %v2941
      %3045 = vmatprep.subr.bf16.mxu0 0
      %3046 = vmatpush2.bf16.msra.mxu0 0
      %3047 = vmatprep.subr.bf16.mxu0 0
      %3048 = vmatpush2.bf16.msra.mxu0 0
      %3049 = vmatprep.subr.bf16.mxu0 0
      %3050 = vmatpush2.bf16.msra.mxu0 0
      %3051 = vmatprep.subr.bf16.mxu0 0
      %3052 = vmatpush2.bf16.msra.mxu0 0
      %3053 = vmatprep.subr.bf16.mxu0 0
      %3054 = vmatpush2.bf16.msra.mxu0 0
      %3055 = vmatprep.subr.bf16.mxu0 0
      %3056 = vmatpush2.bf16.msra.mxu0 0
      %3057 = vmatprep.subr.bf16.mxu0 0
      %3058 = vmatpush2.bf16.msra.mxu0 0
      %3059 = vmatprep.subr.bf16.mxu0 0
      %3060 = vmatpush2.bf16.msra.mxu0 0
      %3061 = vmatprep.mubr.bf16.mxu0 0
      %3062 = vmatmul.mubr.bf16.gmra.mxu0 %v3027
      %v3063 = vpop.f32.mrf.mxu0
      %v3064 = vadd.f32 0.0, %v3063
      %v3065 = vpop.f32.mrf.mxu0
      %v3066 = vpop.f32.mrf.mxu0
      %v3067 = vpop.f32.mrf.mxu0
      %3068 = vdwg.mxu0
      %v3070 = vsel %vm350, %v2929, 0
      %3072 = vmatprep.subr.bf16.mxu0 0
      %3073 = vmatpush1.bf16.msra.mxu0 0
      %3074 = vmatprep.subr.bf16.mxu0 0
      %3075 = vmatpush1.bf16.msra.mxu0 0
      %3076 = vmatprep.subr.bf16.mxu0 0
      %3077 = vmatpush1.bf16.msra.mxu0 0
      %3078 = vmatprep.subr.bf16.mxu0 0
      %3079 = vmatpush1.bf16.msra.mxu0 0
      %3080 = vmatprep.subr.bf16.mxu0 0
      %3081 = vmatpush1.bf16.msra.mxu0 0
      %3082 = vmatprep.subr.bf16.mxu0 0
      %3083 = vmatpush1.bf16.msra.mxu0 0
      %3084 = vmatprep.subr.bf16.mxu0 0
      %3085 = vmatpush1.bf16.msra.mxu0 0
      %3086 = vmatprep.subr.bf16.mxu0 0
      %3087 = vmatpush1.bf16.msra.mxu0 %v2941
      %3088 = vmatprep.subr.bf16.mxu0 0
      %3089 = vmatpush2.bf16.msra.mxu0 0
      %3090 = vmatprep.subr.bf16.mxu0 0
      %3091 = vmatpush2.bf16.msra.mxu0 0
      %3092 = vmatprep.subr.bf16.mxu0 0
      %3093 = vmatpush2.bf16.msra.mxu0 0
      %3094 = vmatprep.subr.bf16.mxu0 0
      %3095 = vmatpush2.bf16.msra.mxu0 0
      %3096 = vmatprep.subr.bf16.mxu0 0
      %3097 = vmatpush2.bf16.msra.mxu0 0
      %3098 = vmatprep.subr.bf16.mxu0 0
      %3099 = vmatpush2.bf16.msra.mxu0 0
      %3100 = vmatprep.subr.bf16.mxu0 0
      %3101 = vmatpush2.bf16.msra.mxu0 0
      %3102 = vmatprep.subr.bf16.mxu0 0
      %3103 = vmatpush2.bf16.msra.mxu0 0
      %3104 = vmatprep.mubr.bf16.mxu0 0
      %3105 = vmatmul.mubr.bf16.gmra.mxu0 %v3070
      %v3106 = vpop.f32.mrf.mxu0
      %v3107 = vadd.f32 0.0, %v3106
      %v3108 = vpop.f32.mrf.mxu0
      %v3109 = vpop.f32.mrf.mxu0
      %v3110 = vpop.f32.mrf.mxu0
      %3111 = vdwg.mxu0
      %v3113 = vsel %vm350, %v2930, 0
      %3115 = vmatprep.subr.bf16.mxu0 0
      %3116 = vmatpush1.bf16.msra.mxu0 0
      %3117 = vmatprep.subr.bf16.mxu0 0
      %3118 = vmatpush1.bf16.msra.mxu0 0
      %3119 = vmatprep.subr.bf16.mxu0 0
      %3120 = vmatpush1.bf16.msra.mxu0 0
      %3121 = vmatprep.subr.bf16.mxu0 0
      %3122 = vmatpush1.bf16.msra.mxu0 0
      %3123 = vmatprep.subr.bf16.mxu0 0
      %3124 = vmatpush1.bf16.msra.mxu0 0
      %3125 = vmatprep.subr.bf16.mxu0 0
      %3126 = vmatpush1.bf16.msra.mxu0 0
      %3127 = vmatprep.subr.bf16.mxu0 0
      %3128 = vmatpush1.bf16.msra.mxu0 0
      %3129 = vmatprep.subr.bf16.mxu0 0
      %3130 = vmatpush1.bf16.msra.mxu0 %v2941
      %3131 = vmatprep.subr.bf16.mxu0 0
      %3132 = vmatpush2.bf16.msra.mxu0 0
      %3133 = vmatprep.subr.bf16.mxu0 0
      %3134 = vmatpush2.bf16.msra.mxu0 0
      %3135 = vmatprep.subr.bf16.mxu0 0
      %3136 = vmatpush2.bf16.msra.mxu0 0
      %3137 = vmatprep.subr.bf16.mxu0 0
      %3138 = vmatpush2.bf16.msra.mxu0 0
      %3139 = vmatprep.subr.bf16.mxu0 0
      %3140 = vmatpush2.bf16.msra.mxu0 0
      %3141 = vmatprep.subr.bf16.mxu0 0
      %3142 = vmatpush2.bf16.msra.mxu0 0
      %3143 = vmatprep.subr.bf16.mxu0 0
      %3144 = vmatpush2.bf16.msra.mxu0 0
      %3145 = vmatprep.subr.bf16.mxu0 0
      %3146 = vmatpush2.bf16.msra.mxu0 0
      %3147 = vmatprep.mubr.bf16.mxu0 0
      %3148 = vmatmul.mubr.bf16.gmra.mxu0 %v3113
      %v3149 = vpop.f32.mrf.mxu0
      %v3150 = vadd.f32 0.0, %v3149
      %v3151 = vpop.f32.mrf.mxu0
      %v3152 = vpop.f32.mrf.mxu0
      %v3153 = vpop.f32.mrf.mxu0
      %3154 = vdwg.mxu0
      %v3156 = vsel %vm350, %v2931, 0
      %3158 = vmatprep.subr.bf16.mxu0 0
      %3159 = vmatpush1.bf16.msra.mxu0 0
      %3160 = vmatprep.subr.bf16.mxu0 0
      %3161 = vmatpush1.bf16.msra.mxu0 0
      %3162 = vmatprep.subr.bf16.mxu0 0
      %3163 = vmatpush1.bf16.msra.mxu0 0
      %3164 = vmatprep.subr.bf16.mxu0 0
      %3165 = vmatpush1.bf16.msra.mxu0 0
      %3166 = vmatprep.subr.bf16.mxu0 0
      %3167 = vmatpush1.bf16.msra.mxu0 0
      %3168 = vmatprep.subr.bf16.mxu0 0
      %3169 = vmatpush1.bf16.msra.mxu0 0
      %3170 = vmatprep.subr.bf16.mxu0 0
      %3171 = vmatpush1.bf16.msra.mxu0 0
      %3172 = vmatprep.subr.bf16.mxu0 0
      %3173 = vmatpush1.bf16.msra.mxu0 %v2941
      %3174 = vmatprep.subr.bf16.mxu0 0
      %3175 = vmatpush2.bf16.msra.mxu0 0
      %3176 = vmatprep.subr.bf16.mxu0 0
      %3177 = vmatpush2.bf16.msra.mxu0 0
      %3178 = vmatprep.subr.bf16.mxu0 0
      %3179 = vmatpush2.bf16.msra.mxu0 0
      %3180 = vmatprep.subr.bf16.mxu0 0
      %3181 = vmatpush2.bf16.msra.mxu0 0
      %3182 = vmatprep.subr.bf16.mxu0 0
      %3183 = vmatpush2.bf16.msra.mxu0 0
      %3184 = vmatprep.subr.bf16.mxu0 0
      %3185 = vmatpush2.bf16.msra.mxu0 0
      %3186 = vmatprep.subr.bf16.mxu0 0
      %3187 = vmatpush2.bf16.msra.mxu0 0
      %3188 = vmatprep.subr.bf16.mxu0 0
      %3189 = vmatpush2.bf16.msra.mxu0 0
      %3190 = vmatprep.mubr.bf16.mxu0 0
      %3191 = vmatmul.mubr.bf16.gmra.mxu0 %v3156
      %v3192 = vpop.f32.mrf.mxu0
      %v3193 = vadd.f32 0.0, %v3192
      %v3194 = vpop.f32.mrf.mxu0
      %v3195 = vpop.f32.mrf.mxu0
      %v3196 = vpop.f32.mrf.mxu0
      %3197 = vdwg.mxu0
      %v3199 = vsel %vm350, %v2932, 0
      %3201 = vmatprep.subr.bf16.mxu0 0
      %3202 = vmatpush1.bf16.msra.mxu0 0
      %3203 = vmatprep.subr.bf16.mxu0 0
      %3204 = vmatpush1.bf16.msra.mxu0 0
      %3205 = vmatprep.subr.bf16.mxu0 0
      %3206 = vmatpush1.bf16.msra.mxu0 0
      %3207 = vmatprep.subr.bf16.mxu0 0
      %3208 = vmatpush1.bf16.msra.mxu0 0
      %3209 = vmatprep.subr.bf16.mxu0 0
      %3210 = vmatpush1.bf16.msra.mxu0 0
      %3211 = vmatprep.subr.bf16.mxu0 0
      %3212 = vmatpush1.bf16.msra.mxu0 0
      %3213 = vmatprep.subr.bf16.mxu0 0
      %3214 = vmatpush1.bf16.msra.mxu0 0
      %3215 = vmatprep.subr.bf16.mxu0 0
      %3216 = vmatpush1.bf16.msra.mxu0 %v2941
      %3217 = vmatprep.subr.bf16.mxu0 0
      %3218 = vmatpush2.bf16.msra.mxu0 0
      %3219 = vmatprep.subr.bf16.mxu0 0
      %3220 = vmatpush2.bf16.msra.mxu0 0
      %3221 = vmatprep.subr.bf16.mxu0 0
      %3222 = vmatpush2.bf16.msra.mxu0 0
      %3223 = vmatprep.subr.bf16.mxu0 0
      %3224 = vmatpush2.bf16.msra.mxu0 0
      %3225 = vmatprep.subr.bf16.mxu0 0
      %3226 = vmatpush2.bf16.msra.mxu0 0
      %3227 = vmatprep.subr.bf16.mxu0 0
      %3228 = vmatpush2.bf16.msra.mxu0 0
      %3229 = vmatprep.subr.bf16.mxu0 0
      %3230 = vmatpush2.bf16.msra.mxu0 0
      %3231 = vmatprep.subr.bf16.mxu0 0
      %3232 = vmatpush2.bf16.msra.mxu0 0
      %3233 = vmatprep.mubr.bf16.mxu0 0
      %3234 = vmatmul.mubr.bf16.gmra.mxu0 %v3199
      %v3235 = vpop.f32.mrf.mxu0
      %v3236 = vadd.f32 0.0, %v3235
      %v3237 = vpop.f32.mrf.mxu0
      %v3238 = vpop.f32.mrf.mxu0
      %v3239 = vpop.f32.mrf.mxu0
      %3240 = vdwg.mxu0
      %v3242 = vsel %vm350, %v2933, 0
      %3244 = vmatprep.subr.bf16.mxu0 0
      %3245 = vmatpush1.bf16.msra.mxu0 0
      %3246 = vmatprep.subr.bf16.mxu0 0
      %3247 = vmatpush1.bf16.msra.mxu0 0
      %3248 = vmatprep.subr.bf16.mxu0 0
      %3249 = vmatpush1.bf16.msra.mxu0 0
      %3250 = vmatprep.subr.bf16.mxu0 0
      %3251 = vmatpush1.bf16.msra.mxu0 0
      %3252 = vmatprep.subr.bf16.mxu0 0
      %3253 = vmatpush1.bf16.msra.mxu0 0
      %3254 = vmatprep.subr.bf16.mxu0 0
      %3255 = vmatpush1.bf16.msra.mxu0 0
      %3256 = vmatprep.subr.bf16.mxu0 0
      %3257 = vmatpush1.bf16.msra.mxu0 0
      %3258 = vmatprep.subr.bf16.mxu0 0
      %3259 = vmatpush1.bf16.msra.mxu0 %v2941
      %3260 = vmatprep.subr.bf16.mxu0 0
      %3261 = vmatpush2.bf16.msra.mxu0 0
      %3262 = vmatprep.subr.bf16.mxu0 0
      %3263 = vmatpush2.bf16.msra.mxu0 0
      %3264 = vmatprep.subr.bf16.mxu0 0
      %3265 = vmatpush2.bf16.msra.mxu0 0
      %3266 = vmatprep.subr.bf16.mxu0 0
      %3267 = vmatpush2.bf16.msra.mxu0 0
      %3268 = vmatprep.subr.bf16.mxu0 0
      %3269 = vmatpush2.bf16.msra.mxu0 0
      %3270 = vmatprep.subr.bf16.mxu0 0
      %3271 = vmatpush2.bf16.msra.mxu0 0
      %3272 = vmatprep.subr.bf16.mxu0 0
      %3273 = vmatpush2.bf16.msra.mxu0 0
      %3274 = vmatprep.subr.bf16.mxu0 0
      %3275 = vmatpush2.bf16.msra.mxu0 0
      %3276 = vmatprep.mubr.bf16.mxu0 0
      %3277 = vmatmul.mubr.bf16.gmra.mxu0 %v3242
      %v3278 = vpop.f32.mrf.mxu0
      %v3279 = vadd.f32 0.0, %v3278
      %v3280 = vpop.f32.mrf.mxu0
      %v3281 = vpop.f32.mrf.mxu0
      %v3282 = vpop.f32.mrf.mxu0
      %3283 = vdwg.mxu0
      %v3284 = vadd.f32 %v2909, %v2978
      %v3285 = vadd.f32 %v2910, %v3021
      %v3286 = vadd.f32 %v2911, %v3064
      %v3287 = vadd.f32 %v2912, %v3107
      %v3288 = vadd.f32 %v2913, %v3150
      %v3289 = vadd.f32 %v2914, %v3193
      %v3290 = vadd.f32 %v2915, %v3236
      %v3291 = vadd.f32 %v2916, %v3279
      %v3292 = vld [vmem:[%s2542 + $0x1] sm:$0xff]
      %v3293 = vld [vmem:[%s2542 + $0x11] sm:$0xff]
      %v3294 = vld [vmem:[%s2542 + $0x21] sm:$0xff]
      %v3295 = vld [vmem:[%s2542 + $0x31] sm:$0xff]
      %v3296 = vld [vmem:[%s2542 + $0x41] sm:$0xff]
      %v3297 = vld [vmem:[%s2542 + $0x51] sm:$0xff]
      %v3298 = vld [vmem:[%s2542 + $0x61] sm:$0xff]
      %v3299 = vld [vmem:[%s2542 + $0x71] sm:$0xff]
      %v3300 = vpack.c.bf16 %v3292, %v3292
      %v3301 = vpack.c.bf16 %v3293, %v3293
      %v3302 = vpack.c.bf16 %v3294, %v3294
      %v3303 = vpack.c.bf16 %v3295, %v3295
      %v3304 = vpack.c.bf16 %v3296, %v3296
      %v3305 = vpack.c.bf16 %v3297, %v3297
      %v3306 = vpack.c.bf16 %v3298, %v3298
      %v3307 = vpack.c.bf16 %v3299, %v3299
      %s3308 = scalar_lea.vmem %s4, 32
      %v3309 = vld [vmem:[%s3308] sm:$0xf]
      %v3310 = vpack.c.bf16 %v3309, %v3309
      %v3312 = vsel %vm350, %v3300, 0
      %v3315 = vsel %vm354, %v3310, 0
      %3317 = vmatprep.subr.bf16.mxu0 0
      %3318 = vmatpush1.bf16.msra.mxu0 0
      %3319 = vmatprep.subr.bf16.mxu0 0
      %3320 = vmatpush1.bf16.msra.mxu0 0
      %3321 = vmatprep.subr.bf16.mxu0 0
      %3322 = vmatpush1.bf16.msra.mxu0 0
      %3323 = vmatprep.subr.bf16.mxu0 0
      %3324 = vmatpush1.bf16.msra.mxu0 0
      %3325 = vmatprep.subr.bf16.mxu0 0
      %3326 = vmatpush1.bf16.msra.mxu0 0
      %3327 = vmatprep.subr.bf16.mxu0 0
      %3328 = vmatpush1.bf16.msra.mxu0 0
      %3329 = vmatprep.subr.bf16.mxu0 0
      %3330 = vmatpush1.bf16.msra.mxu0 0
      %3331 = vmatprep.subr.bf16.mxu0 0
      %3332 = vmatpush1.bf16.msra.mxu0 %v3315
      %3333 = vmatprep.subr.bf16.mxu0 0
      %3334 = vmatpush2.bf16.msra.mxu0 0
      %3335 = vmatprep.subr.bf16.mxu0 0
      %3336 = vmatpush2.bf16.msra.mxu0 0
      %3337 = vmatprep.subr.bf16.mxu0 0
      %3338 = vmatpush2.bf16.msra.mxu0 0
      %3339 = vmatprep.subr.bf16.mxu0 0
      %3340 = vmatpush2.bf16.msra.mxu0 0
      %3341 = vmatprep.subr.bf16.mxu0 0
      %3342 = vmatpush2.bf16.msra.mxu0 0
      %3343 = vmatprep.subr.bf16.mxu0 0
      %3344 = vmatpush2.bf16.msra.mxu0 0
      %3345 = vmatprep.subr.bf16.mxu0 0
      %3346 = vmatpush2.bf16.msra.mxu0 0
      %3347 = vmatprep.subr.bf16.mxu0 0
      %3348 = vmatpush2.bf16.msra.mxu0 0
      %3349 = vmatprep.mubr.bf16.mxu0 0
      %3350 = vmatmul.mubr.bf16.gmra.mxu0 %v3312
      %v3351 = vpop.f32.mrf.mxu0
      %v3352 = vadd.f32 0.0, %v3351
      %v3353 = vpop.f32.mrf.mxu0
      %v3354 = vpop.f32.mrf.mxu0
      %v3355 = vpop.f32.mrf.mxu0
      %3356 = vdwg.mxu0
      %v3358 = vsel %vm350, %v3301, 0
      %3360 = vmatprep.subr.bf16.mxu0 0
      %3361 = vmatpush1.bf16.msra.mxu0 0
      %3362 = vmatprep.subr.bf16.mxu0 0
      %3363 = vmatpush1.bf16.msra.mxu0 0
      %3364 = vmatprep.subr.bf16.mxu0 0
      %3365 = vmatpush1.bf16.msra.mxu0 0
      %3366 = vmatprep.subr.bf16.mxu0 0
      %3367 = vmatpush1.bf16.msra.mxu0 0
      %3368 = vmatprep.subr.bf16.mxu0 0
      %3369 = vmatpush1.bf16.msra.mxu0 0
      %3370 = vmatprep.subr.bf16.mxu0 0
      %3371 = vmatpush1.bf16.msra.mxu0 0
      %3372 = vmatprep.subr.bf16.mxu0 0
      %3373 = vmatpush1.bf16.msra.mxu0 0
      %3374 = vmatprep.subr.bf16.mxu0 0
      %3375 = vmatpush1.bf16.msra.mxu0 %v3315
      %3376 = vmatprep.subr.bf16.mxu0 0
      %3377 = vmatpush2.bf16.msra.mxu0 0
      %3378 = vmatprep.subr.bf16.mxu0 0
      %3379 = vmatpush2.bf16.msra.mxu0 0
      %3380 = vmatprep.subr.bf16.mxu0 0
      %3381 = vmatpush2.bf16.msra.mxu0 0
      %3382 = vmatprep.subr.bf16.mxu0 0
      %3383 = vmatpush2.bf16.msra.mxu0 0
      %3384 = vmatprep.subr.bf16.mxu0 0
      %3385 = vmatpush2.bf16.msra.mxu0 0
      %3386 = vmatprep.subr.bf16.mxu0 0
      %3387 = vmatpush2.bf16.msra.mxu0 0
      %3388 = vmatprep.subr.bf16.mxu0 0
      %3389 = vmatpush2.bf16.msra.mxu0 0
      %3390 = vmatprep.subr.bf16.mxu0 0
      %3391 = vmatpush2.bf16.msra.mxu0 0
      %3392 = vmatprep.mubr.bf16.mxu0 0
      %3393 = vmatmul.mubr.bf16.gmra.mxu0 %v3358
      %v3394 = vpop.f32.mrf.mxu0
      %v3395 = vadd.f32 0.0, %v3394
      %v3396 = vpop.f32.mrf.mxu0
      %v3397 = vpop.f32.mrf.mxu0
      %v3398 = vpop.f32.mrf.mxu0
      %3399 = vdwg.mxu0
      %v3401 = vsel %vm350, %v3302, 0
      %3403 = vmatprep.subr.bf16.mxu0 0
      %3404 = vmatpush1.bf16.msra.mxu0 0
      %3405 = vmatprep.subr.bf16.mxu0 0
      %3406 = vmatpush1.bf16.msra.mxu0 0
      %3407 = vmatprep.subr.bf16.mxu0 0
      %3408 = vmatpush1.bf16.msra.mxu0 0
      %3409 = vmatprep.subr.bf16.mxu0 0
      %3410 = vmatpush1.bf16.msra.mxu0 0
      %3411 = vmatprep.subr.bf16.mxu0 0
      %3412 = vmatpush1.bf16.msra.mxu0 0
      %3413 = vmatprep.subr.bf16.mxu0 0
      %3414 = vmatpush1.bf16.msra.mxu0 0
      %3415 = vmatprep.subr.bf16.mxu0 0
      %3416 = vmatpush1.bf16.msra.mxu0 0
      %3417 = vmatprep.subr.bf16.mxu0 0
      %3418 = vmatpush1.bf16.msra.mxu0 %v3315
      %3419 = vmatprep.subr.bf16.mxu0 0
      %3420 = vmatpush2.bf16.msra.mxu0 0
      %3421 = vmatprep.subr.bf16.mxu0 0
      %3422 = vmatpush2.bf16.msra.mxu0 0
      %3423 = vmatprep.subr.bf16.mxu0 0
      %3424 = vmatpush2.bf16.msra.mxu0 0
      %3425 = vmatprep.subr.bf16.mxu0 0
      %3426 = vmatpush2.bf16.msra.mxu0 0
      %3427 = vmatprep.subr.bf16.mxu0 0
      %3428 = vmatpush2.bf16.msra.mxu0 0
      %3429 = vmatprep.subr.bf16.mxu0 0
      %3430 = vmatpush2.bf16.msra.mxu0 0
      %3431 = vmatprep.subr.bf16.mxu0 0
      %3432 = vmatpush2.bf16.msra.mxu0 0
      %3433 = vmatprep.subr.bf16.mxu0 0
      %3434 = vmatpush2.bf16.msra.mxu0 0
      %3435 = vmatprep.mubr.bf16.mxu0 0
      %3436 = vmatmul.mubr.bf16.gmra.mxu0 %v3401
      %v3437 = vpop.f32.mrf.mxu0
      %v3438 = vadd.f32 0.0, %v3437
      %v3439 = vpop.f32.mrf.mxu0
      %v3440 = vpop.f32.mrf.mxu0
      %v3441 = vpop.f32.mrf.mxu0
      %3442 = vdwg.mxu0
      %v3444 = vsel %vm350, %v3303, 0
      %3446 = vmatprep.subr.bf16.mxu0 0
      %3447 = vmatpush1.bf16.msra.mxu0 0
      %3448 = vmatprep.subr.bf16.mxu0 0
      %3449 = vmatpush1.bf16.msra.mxu0 0
      %3450 = vmatprep.subr.bf16.mxu0 0
      %3451 = vmatpush1.bf16.msra.mxu0 0
      %3452 = vmatprep.subr.bf16.mxu0 0
      %3453 = vmatpush1.bf16.msra.mxu0 0
      %3454 = vmatprep.subr.bf16.mxu0 0
      %3455 = vmatpush1.bf16.msra.mxu0 0
      %3456 = vmatprep.subr.bf16.mxu0 0
      %3457 = vmatpush1.bf16.msra.mxu0 0
      %3458 = vmatprep.subr.bf16.mxu0 0
      %3459 = vmatpush1.bf16.msra.mxu0 0
      %3460 = vmatprep.subr.bf16.mxu0 0
      %3461 = vmatpush1.bf16.msra.mxu0 %v3315
      %3462 = vmatprep.subr.bf16.mxu0 0
      %3463 = vmatpush2.bf16.msra.mxu0 0
      %3464 = vmatprep.subr.bf16.mxu0 0
      %3465 = vmatpush2.bf16.msra.mxu0 0
      %3466 = vmatprep.subr.bf16.mxu0 0
      %3467 = vmatpush2.bf16.msra.mxu0 0
      %3468 = vmatprep.subr.bf16.mxu0 0
      %3469 = vmatpush2.bf16.msra.mxu0 0
      %3470 = vmatprep.subr.bf16.mxu0 0
      %3471 = vmatpush2.bf16.msra.mxu0 0
      %3472 = vmatprep.subr.bf16.mxu0 0
      %3473 = vmatpush2.bf16.msra.mxu0 0
      %3474 = vmatprep.subr.bf16.mxu0 0
      %3475 = vmatpush2.bf16.msra.mxu0 0
      %3476 = vmatprep.subr.bf16.mxu0 0
      %3477 = vmatpush2.bf16.msra.mxu0 0
      %3478 = vmatprep.mubr.bf16.mxu0 0
      %3479 = vmatmul.mubr.bf16.gmra.mxu0 %v3444
      %v3480 = vpop.f32.mrf.mxu0
      %v3481 = vadd.f32 0.0, %v3480
      %v3482 = vpop.f32.mrf.mxu0
      %v3483 = vpop.f32.mrf.mxu0
      %v3484 = vpop.f32.mrf.mxu0
      %3485 = vdwg.mxu0
      %v3487 = vsel %vm350, %v3304, 0
      %3489 = vmatprep.subr.bf16.mxu0 0
      %3490 = vmatpush1.bf16.msra.mxu0 0
      %3491 = vmatprep.subr.bf16.mxu0 0
      %3492 = vmatpush1.bf16.msra.mxu0 0
      %3493 = vmatprep.subr.bf16.mxu0 0
      %3494 = vmatpush1.bf16.msra.mxu0 0
      %3495 = vmatprep.subr.bf16.mxu0 0
      %3496 = vmatpush1.bf16.msra.mxu0 0
      %3497 = vmatprep.subr.bf16.mxu0 0
      %3498 = vmatpush1.bf16.msra.mxu0 0
      %3499 = vmatprep.subr.bf16.mxu0 0
      %3500 = vmatpush1.bf16.msra.mxu0 0
      %3501 = vmatprep.subr.bf16.mxu0 0
      %3502 = vmatpush1.bf16.msra.mxu0 0
      %3503 = vmatprep.subr.bf16.mxu0 0
      %3504 = vmatpush1.bf16.msra.mxu0 %v3315
      %3505 = vmatprep.subr.bf16.mxu0 0
      %3506 = vmatpush2.bf16.msra.mxu0 0
      %3507 = vmatprep.subr.bf16.mxu0 0
      %3508 = vmatpush2.bf16.msra.mxu0 0
      %3509 = vmatprep.subr.bf16.mxu0 0
      %3510 = vmatpush2.bf16.msra.mxu0 0
      %3511 = vmatprep.subr.bf16.mxu0 0
      %3512 = vmatpush2.bf16.msra.mxu0 0
      %3513 = vmatprep.subr.bf16.mxu0 0
      %3514 = vmatpush2.bf16.msra.mxu0 0
      %3515 = vmatprep.subr.bf16.mxu0 0
      %3516 = vmatpush2.bf16.msra.mxu0 0
      %3517 = vmatprep.subr.bf16.mxu0 0
      %3518 = vmatpush2.bf16.msra.mxu0 0
      %3519 = vmatprep.subr.bf16.mxu0 0
      %3520 = vmatpush2.bf16.msra.mxu0 0
      %3521 = vmatprep.mubr.bf16.mxu0 0
      %3522 = vmatmul.mubr.bf16.gmra.mxu0 %v3487
      %v3523 = vpop.f32.mrf.mxu0
      %v3524 = vadd.f32 0.0, %v3523
      %v3525 = vpop.f32.mrf.mxu0
      %v3526 = vpop.f32.mrf.mxu0
      %v3527 = vpop.f32.mrf.mxu0
      %3528 = vdwg.mxu0
      %v3530 = vsel %vm350, %v3305, 0
      %3532 = vmatprep.subr.bf16.mxu0 0
      %3533 = vmatpush1.bf16.msra.mxu0 0
      %3534 = vmatprep.subr.bf16.mxu0 0
      %3535 = vmatpush1.bf16.msra.mxu0 0
      %3536 = vmatprep.subr.bf16.mxu0 0
      %3537 = vmatpush1.bf16.msra.mxu0 0
      %3538 = vmatprep.subr.bf16.mxu0 0
      %3539 = vmatpush1.bf16.msra.mxu0 0
      %3540 = vmatprep.subr.bf16.mxu0 0
      %3541 = vmatpush1.bf16.msra.mxu0 0
      %3542 = vmatprep.subr.bf16.mxu0 0
      %3543 = vmatpush1.bf16.msra.mxu0 0
      %3544 = vmatprep.subr.bf16.mxu0 0
      %3545 = vmatpush1.bf16.msra.mxu0 0
      %3546 = vmatprep.subr.bf16.mxu0 0
      %3547 = vmatpush1.bf16.msra.mxu0 %v3315
      %3548 = vmatprep.subr.bf16.mxu0 0
      %3549 = vmatpush2.bf16.msra.mxu0 0
      %3550 = vmatprep.subr.bf16.mxu0 0
      %3551 = vmatpush2.bf16.msra.mxu0 0
      %3552 = vmatprep.subr.bf16.mxu0 0
      %3553 = vmatpush2.bf16.msra.mxu0 0
      %3554 = vmatprep.subr.bf16.mxu0 0
      %3555 = vmatpush2.bf16.msra.mxu0 0
      %3556 = vmatprep.subr.bf16.mxu0 0
      %3557 = vmatpush2.bf16.msra.mxu0 0
      %3558 = vmatprep.subr.bf16.mxu0 0
      %3559 = vmatpush2.bf16.msra.mxu0 0
      %3560 = vmatprep.subr.bf16.mxu0 0
      %3561 = vmatpush2.bf16.msra.mxu0 0
      %3562 = vmatprep.subr.bf16.mxu0 0
      %3563 = vmatpush2.bf16.msra.mxu0 0
      %3564 = vmatprep.mubr.bf16.mxu0 0
      %3565 = vmatmul.mubr.bf16.gmra.mxu0 %v3530
      %v3566 = vpop.f32.mrf.mxu0
      %v3567 = vadd.f32 0.0, %v3566
      %v3568 = vpop.f32.mrf.mxu0
      %v3569 = vpop.f32.mrf.mxu0
      %v3570 = vpop.f32.mrf.mxu0
      %3571 = vdwg.mxu0
      %v3573 = vsel %vm350, %v3306, 0
      %3575 = vmatprep.subr.bf16.mxu0 0
      %3576 = vmatpush1.bf16.msra.mxu0 0
      %3577 = vmatprep.subr.bf16.mxu0 0
      %3578 = vmatpush1.bf16.msra.mxu0 0
      %3579 = vmatprep.subr.bf16.mxu0 0
      %3580 = vmatpush1.bf16.msra.mxu0 0
      %3581 = vmatprep.subr.bf16.mxu0 0
      %3582 = vmatpush1.bf16.msra.mxu0 0
      %3583 = vmatprep.subr.bf16.mxu0 0
      %3584 = vmatpush1.bf16.msra.mxu0 0
      %3585 = vmatprep.subr.bf16.mxu0 0
      %3586 = vmatpush1.bf16.msra.mxu0 0
      %3587 = vmatprep.subr.bf16.mxu0 0
      %3588 = vmatpush1.bf16.msra.mxu0 0
      %3589 = vmatprep.subr.bf16.mxu0 0
      %3590 = vmatpush1.bf16.msra.mxu0 %v3315
      %3591 = vmatprep.subr.bf16.mxu0 0
      %3592 = vmatpush2.bf16.msra.mxu0 0
      %3593 = vmatprep.subr.bf16.mxu0 0
      %3594 = vmatpush2.bf16.msra.mxu0 0
      %3595 = vmatprep.subr.bf16.mxu0 0
      %3596 = vmatpush2.bf16.msra.mxu0 0
      %3597 = vmatprep.subr.bf16.mxu0 0
      %3598 = vmatpush2.bf16.msra.mxu0 0
      %3599 = vmatprep.subr.bf16.mxu0 0
      %3600 = vmatpush2.bf16.msra.mxu0 0
      %3601 = vmatprep.subr.bf16.mxu0 0
      %3602 = vmatpush2.bf16.msra.mxu0 0
      %3603 = vmatprep.subr.bf16.mxu0 0
      %3604 = vmatpush2.bf16.msra.mxu0 0
      %3605 = vmatprep.subr.bf16.mxu0 0
      %3606 = vmatpush2.bf16.msra.mxu0 0
      %3607 = vmatprep.mubr.bf16.mxu0 0
      %3608 = vmatmul.mubr.bf16.gmra.mxu0 %v3573
      %v3609 = vpop.f32.mrf.mxu0
      %v3610 = vadd.f32 0.0, %v3609
      %v3611 = vpop.f32.mrf.mxu0
      %v3612 = vpop.f32.mrf.mxu0
      %v3613 = vpop.f32.mrf.mxu0
      %3614 = vdwg.mxu0
      %v3616 = vsel %vm350, %v3307, 0
      %3618 = vmatprep.subr.bf16.mxu0 0
      %3619 = vmatpush1.bf16.msra.mxu0 0
      %3620 = vmatprep.subr.bf16.mxu0 0
      %3621 = vmatpush1.bf16.msra.mxu0 0
      %3622 = vmatprep.subr.bf16.mxu0 0
      %3623 = vmatpush1.bf16.msra.mxu0 0
      %3624 = vmatprep.subr.bf16.mxu0 0
      %3625 = vmatpush1.bf16.msra.mxu0 0
      %3626 = vmatprep.subr.bf16.mxu0 0
      %3627 = vmatpush1.bf16.msra.mxu0 0
      %3628 = vmatprep.subr.bf16.mxu0 0
      %3629 = vmatpush1.bf16.msra.mxu0 0
      %3630 = vmatprep.subr.bf16.mxu0 0
      %3631 = vmatpush1.bf16.msra.mxu0 0
      %3632 = vmatprep.subr.bf16.mxu0 0
      %3633 = vmatpush1.bf16.msra.mxu0 %v3315
      %3634 = vmatprep.subr.bf16.mxu0 0
      %3635 = vmatpush2.bf16.msra.mxu0 0
      %3636 = vmatprep.subr.bf16.mxu0 0
      %3637 = vmatpush2.bf16.msra.mxu0 0
      %3638 = vmatprep.subr.bf16.mxu0 0
      %3639 = vmatpush2.bf16.msra.mxu0 0
      %3640 = vmatprep.subr.bf16.mxu0 0
      %3641 = vmatpush2.bf16.msra.mxu0 0
      %3642 = vmatprep.subr.bf16.mxu0 0
      %3643 = vmatpush2.bf16.msra.mxu0 0
      %3644 = vmatprep.subr.bf16.mxu0 0
      %3645 = vmatpush2.bf16.msra.mxu0 0
      %3646 = vmatprep.subr.bf16.mxu0 0
      %3647 = vmatpush2.bf16.msra.mxu0 0
      %3648 = vmatprep.subr.bf16.mxu0 0
      %3649 = vmatpush2.bf16.msra.mxu0 0
      %3650 = vmatprep.mubr.bf16.mxu0 0
      %3651 = vmatmul.mubr.bf16.gmra.mxu0 %v3616
      %v3652 = vpop.f32.mrf.mxu0
      %v3653 = vadd.f32 0.0, %v3652
      %v3654 = vpop.f32.mrf.mxu0
      %v3655 = vpop.f32.mrf.mxu0
      %v3656 = vpop.f32.mrf.mxu0
      %3657 = vdwg.mxu0
      %v3658 = vadd.f32 %v3284, %v3352
      %v3659 = vadd.f32 %v3285, %v3395
      %v3660 = vadd.f32 %v3286, %v3438
      %v3661 = vadd.f32 %v3287, %v3481
      %v3662 = vadd.f32 %v3288, %v3524
      %v3663 = vadd.f32 %v3289, %v3567
      %v3664 = vadd.f32 %v3290, %v3610
      %v3665 = vadd.f32 %v3291, %v3653
      %v3666 = vld [vmem:[%s5] sm:$0x1]
      %v3668 = vlaneseq
      %v3669 = vshrl.u32 %v3668, 7
      %v3670 = vsub.s32 0, %v3669
      %v3671 = vrot.slane %v3666, %v3670
      %v3673 = vadd.f32 %v3658, %v3671
      %v3674 = vadd.f32 %v3659, %v3671
      %v3675 = vadd.f32 %v3660, %v3671
      %v3676 = vadd.f32 %v3661, %v3671
      %v3677 = vadd.f32 %v3662, %v3671
      %v3678 = vadd.f32 %v3663, %v3671
      %v3679 = vadd.f32 %v3664, %v3671
      %v3680 = vadd.f32 %v3665, %v3671
      %vm3681 = vcmp.gt.f32.partialorder %v3673, 0.0
      %vm3682 = vcmp.gt.f32.partialorder %v3674, 0.0
      %vm3683 = vcmp.gt.f32.partialorder %v3675, 0.0
      %vm3684 = vcmp.gt.f32.partialorder %v3676, 0.0
      %vm3685 = vcmp.gt.f32.partialorder %v3677, 0.0
      %vm3686 = vcmp.gt.f32.partialorder %v3678, 0.0
      %vm3687 = vcmp.gt.f32.partialorder %v3679, 0.0
      %vm3688 = vcmp.gt.f32.partialorder %v3680, 0.0
      %v3689 = vmin.f32 %v3673, 0.0
      %v3690 = vmin.f32 %v3674, 0.0
      %v3691 = vmin.f32 %v3675, 0.0
      %v3692 = vmin.f32 %v3676, 0.0
      %v3693 = vmin.f32 %v3677, 0.0
      %v3694 = vmin.f32 %v3678, 0.0
      %v3695 = vmin.f32 %v3679, 0.0
      %v3696 = vmin.f32 %v3680, 0.0
      %v3697 = vmul.f32 %v3689, 1.442695
      %v3698 = vpow.pop %v3697
      %v3699 = vmul.f32 %v3690, 1.442695
      %v3700 = vpow.pop %v3699
      %v3701 = vmul.f32 %v3691, 1.442695
      %v3702 = vpow.pop %v3701
      %v3703 = vmul.f32 %v3692, 1.442695
      %v3704 = vpow.pop %v3703
      %v3705 = vmul.f32 %v3693, 1.442695
      %v3706 = vpow.pop %v3705
      %v3707 = vmul.f32 %v3694, 1.442695
      %v3708 = vpow.pop %v3707
      %v3709 = vmul.f32 %v3695, 1.442695
      %v3710 = vpow.pop %v3709
      %v3711 = vmul.f32 %v3696, 1.442695
      %v3712 = vpow.pop %v3711
      %v3713 = vsub.f32 %v3698, 1.0
      %v3714 = vsub.f32 %v3700, 1.0
      %v3715 = vsub.f32 %v3702, 1.0
      %v3716 = vsub.f32 %v3704, 1.0
      %v3717 = vsub.f32 %v3706, 1.0
      %v3718 = vsub.f32 %v3708, 1.0
      %v3719 = vsub.f32 %v3710, 1.0
      %v3720 = vsub.f32 %v3712, 1.0
      %v3721 = vsel %vm3681, %v3673, %v3713
      %v3722 = vsel %vm3682, %v3674, %v3714
      %v3723 = vsel %vm3683, %v3675, %v3715
      %v3724 = vsel %vm3684, %v3676, %v3716
      %v3725 = vsel %vm3685, %v3677, %v3717
      %v3726 = vsel %vm3686, %v3678, %v3718
      %v3727 = vsel %vm3687, %v3679, %v3719
      %v3728 = vsel %vm3688, %v3680, %v3720
      %vm3729 = vcmask 261120
      %3730 = vst.msk [vmem:[%s311] sm:$0xff] %vm3729, %v3721
      %3731 = vst.msk [vmem:[%s311 + $0x8] sm:$0xff] %vm3729, %v3722
      %3732 = vst.msk [vmem:[%s311 + $0x10] sm:$0xff] %vm3729, %v3723
      %3733 = vst.msk [vmem:[%s311 + $0x18] sm:$0xff] %vm3729, %v3724
      %3734 = vst.msk [vmem:[%s311 + $0x20] sm:$0xff] %vm3729, %v3725
      %3735 = vst.msk [vmem:[%s311 + $0x28] sm:$0xff] %vm3729, %v3726
      %3736 = vst.msk [vmem:[%s311 + $0x30] sm:$0xff] %vm3729, %v3727
      %3737 = vst.msk [vmem:[%s311 + $0x38] sm:$0xff] %vm3729, %v3728
      %p3738 = scmp.lt.s32.totalorder %s17, 3
      %s3739 = scalar_select %p3738, %s17, 3
      %s3740 = smul.addr %s3739, 8
      %s3741 = smul.addr %s3740, 8
      %s3742 = scalar_lea.vmem %s6, %s3741
      // Predicated region
      $region45: #{cnnrnn_forward.6} parent=43 // pred_check
        %p3743 = pneg %p181
      $region46: #{cnnrnn_forward.6} parent=43 // pred_check_branch
        %3745 = sbr.rel (%p3743) target = $region48
      $region47: #{cnnrnn_forward.6} parent=43 // pred_region
        _
      $region48: #{cnnrnn_forward.6} parent=43 // pred_fallthru
        _
    $region44: #{cnnrnn_forward.6} parent=5 // pred_fallthru
      _
    %p3746 = scmp.le.s32.totalorder 2, %s12
    // Predicated region
    $region49: #{cnnrnn_forward.6} parent=5 // pred_check
      %p3747 = pneg %p3746
    $region50: #{cnnrnn_forward.6} parent=5 // pred_check_branch
      %3749 = sbr.rel (%p3747) target = $region52
    $region51: #{cnnrnn_forward.6} parent=5 // pred_region
      %s3750 = ssub.s32 %s12, 2
      // Predicated region
      $region53: #{cnnrnn_forward.6} parent=51 // pred_check
        %p3751 = pneg %p187
      $region54: #{cnnrnn_forward.6} parent=51 // pred_check_branch
        %3753 = sbr.rel (%p3751) target = $region56
      $region55: #{cnnrnn_forward.6} parent=51 // pred_region
        %p3754 = scmp.lt.s32.totalorder %s18, 3
        %s3755 = scalar_select %p3754, %s18, 3
        %s3756 = smul.addr %s3755, 8
        %s3757 = smul.addr %s3756, 8
        %s3758 = scalar_lea.vmem %s6, %s3757
      $region56: #{cnnrnn_forward.6} parent=51 // pred_fallthru
        _
    $region52: #{cnnrnn_forward.6} parent=5 // pred_fallthru
      _
  $region6: #{cnnrnn_forward.6} parent=0 // loop_footer
    %s16 = sadd.s32 1, %s12
  $region7: #{cnnrnn_forward.6} parent=0 // loop_footer_branch
    %11 = sbr.rel target = $region3
  $region8: #{cnnrnn_forward.6} parent=0 // loop_exit
    _

// kernel: cnnrnn_forward.9
$region0: #{cnnrnn_forward.9}
  #allocation0 [shape = 'u32[]', space=smem, size = 0x4, offset = 0x4, fixed_abs, tag = 'smem constant byte address 0x4 - core index']
  #allocation1 [shape = 'u32[144,128]{1,0:T(1,128)}', space=vmem, size = 0x12000, scoped, tag = 'internal scratch']
  %s0 = inlined_call_operand.vmem [shape: f32[4,2,2,32], index: 0, kind: input, shape index: {}]
  %s1 = inlined_call_operand.vmem [shape: f32[4,2,2,32], index: 1, kind: input, shape index: {}]
  %s2 = inlined_call_operand.vmem [shape: f32[4,2,2,32], index: 2, kind: input, shape index: {}]
  %s3 = inlined_call_operand.vmem [shape: f32[4,2,2,32], index: 3, kind: input, shape index: {}]
  %s4 = inlined_call_operand.vmem [shape: f32[9,32,32], index: 4, kind: input, shape index: {}]
  %s5 = inlined_call_operand.vmem [shape: f32[1,32], index: 5, kind: input, shape index: {}]
  %s6 = inlined_call_operand.vmem [shape: f32[4,1,1,32], index: 6, kind: output, shape index: {}]
  %s7 = sld [smem:[#allocation0]]
  $region57: #{cnnrnn_forward.9} parent=0
    _
  %s9 = ssub.s32 1, %s7
  %s10 = scalar_select 0, %s9, %s7
  loop: start=0, step=1, limit=6
  $region2: #{cnnrnn_forward.9} parent=0 // loop_pre_header
    _
  $region3: #{cnnrnn_forward.9} parent=0 // loop_header
    %s12 = sphi 0, %s16
    %p13 = scmp.ge.s32.totalorder %s12, 6
    %s22 = sphi 0, %s24
    %s25 = sphi 0, %s22
    %s26 = sphi 0, %s25
    %s42 = sphi 0, %s26
    %s48 = sphi 0, %s50
    %s51 = sphi 0, %s48
    %s52 = sphi 0, %s51
    %s68 = sphi 0, %s52
    %s74 = sphi 0, %s76
    %s77 = sphi 0, %s74
    %s78 = sphi 0, %s77
    %s94 = sphi 0, %s78
    %s100 = sphi 0, %s102
    %s103 = sphi 0, %s100
    %s104 = sphi 0, %s103
    %s120 = sphi 0, %s104
    %s124 = sphi 0, %s124
    %s126 = sphi 0, %s124
    %s127 = sphi 0, %s126
    %s141 = sphi 0, %s127
    %s145 = sphi 0, %s145
    %s147 = sphi 0, %s145
    %s148 = sphi 0, %s147
    %s162 = sphi 0, %s148
    %s168 = sphi 0, %s170
    %s171 = sphi 0, %s168
    %s172 = sphi 0, %s171
    %s188 = sphi 0, %s172
  $region4: #{cnnrnn_forward.9} parent=0 // loop_header_branch
    %15 = sbr.rel (%p13) target = $region8
  $region5: #{cnnrnn_forward.9} parent=0 // loop_body
    %s17 = ssub.s32 %s12, 1
    %s18 = ssub.s32 %s12, 2
    %s19 = sadd.s32 %s12, 1
    %s20 = ssub.s32 %s12, %s19
    %p21 = scmp.eq.s32.totalorder %s20, 0
    %s23 = sadd.s32 %s22, 1
    %s24 = scalar_select %p21, %s22, %s23
    %p27 = pneg %p21
    %p28 = scmp.eq.s32.totalorder %s12, 3
    %p29 = por %p27, %p28
    %p30 = scmp.ne.s32.totalorder %s22, %s25
    %p31 = scmp.eq.s32.totalorder %s12, 0
    %p32 = por %p30, %p31
    %p33 = scmp.ne.s32.totalorder %s22, %s25
    %p34 = scmp.eq.s32.totalorder %s17, 3
    %p35 = por %p33, %p34
    %p36 = scmp.ne.s32.totalorder %s25, %s26
    %p37 = scmp.eq.s32.totalorder %s17, 0
    %p38 = por %p36, %p37
    %p39 = scmp.ne.s32.totalorder %s25, %s26
    %p40 = scmp.eq.s32.totalorder %s18, 3
    %p41 = por %p39, %p40
    %p43 = scmp.ne.s32.totalorder %s26, %s42
    %p44 = scmp.eq.s32.totalorder %s18, 0
    %p45 = por %p43, %p44
    %s46 = ssub.s32 %s12, %s19
    %p47 = scmp.eq.s32.totalorder %s46, 0
    %s49 = sadd.s32 %s48, 1
    %s50 = scalar_select %p47, %s48, %s49
    %p53 = pneg %p47
    %p54 = scmp.eq.s32.totalorder %s12, 3
    %p55 = por %p53, %p54
    %p56 = scmp.ne.s32.totalorder %s48, %s51
    %p57 = scmp.eq.s32.totalorder %s12, 0
    %p58 = por %p56, %p57
    %p59 = scmp.ne.s32.totalorder %s48, %s51
    %p60 = scmp.eq.s32.totalorder %s17, 3
    %p61 = por %p59, %p60
    %p62 = scmp.ne.s32.totalorder %s51, %s52
    %p63 = scmp.eq.s32.totalorder %s17, 0
    %p64 = por %p62, %p63
    %p65 = scmp.ne.s32.totalorder %s51, %s52
    %p66 = scmp.eq.s32.totalorder %s18, 3
    %p67 = por %p65, %p66
    %p69 = scmp.ne.s32.totalorder %s52, %s68
    %p70 = scmp.eq.s32.totalorder %s18, 0
    %p71 = por %p69, %p70
    %s72 = ssub.s32 %s12, %s19
    %p73 = scmp.eq.s32.totalorder %s72, 0
    %s75 = sadd.s32 %s74, 1
    %s76 = scalar_select %p73, %s74, %s75
    %p79 = pneg %p73
    %p80 = scmp.eq.s32.totalorder %s12, 3
    %p81 = por %p79, %p80
    %p82 = scmp.ne.s32.totalorder %s74, %s77
    %p83 = scmp.eq.s32.totalorder %s12, 0
    %p84 = por %p82, %p83
    %p85 = scmp.ne.s32.totalorder %s74, %s77
    %p86 = scmp.eq.s32.totalorder %s17, 3
    %p87 = por %p85, %p86
    %p88 = scmp.ne.s32.totalorder %s77, %s78
    %p89 = scmp.eq.s32.totalorder %s17, 0
    %p90 = por %p88, %p89
    %p91 = scmp.ne.s32.totalorder %s77, %s78
    %p92 = scmp.eq.s32.totalorder %s18, 3
    %p93 = por %p91, %p92
    %p95 = scmp.ne.s32.totalorder %s78, %s94
    %p96 = scmp.eq.s32.totalorder %s18, 0
    %p97 = por %p95, %p96
    %s98 = ssub.s32 %s12, %s19
    %p99 = scmp.eq.s32.totalorder %s98, 0
    %s101 = sadd.s32 %s100, 1
    %s102 = scalar_select %p99, %s100, %s101
    %p105 = pneg %p99
    %p106 = scmp.eq.s32.totalorder %s12, 3
    %p107 = por %p105, %p106
    %p108 = scmp.ne.s32.totalorder %s100, %s103
    %p109 = scmp.eq.s32.totalorder %s12, 0
    %p110 = por %p108, %p109
    %p111 = scmp.ne.s32.totalorder %s100, %s103
    %p112 = scmp.eq.s32.totalorder %s17, 3
    %p113 = por %p111, %p112
    %p114 = scmp.ne.s32.totalorder %s103, %s104
    %p115 = scmp.eq.s32.totalorder %s17, 0
    %p116 = por %p114, %p115
    %p117 = scmp.ne.s32.totalorder %s103, %s104
    %p118 = scmp.eq.s32.totalorder %s18, 3
    %p119 = por %p117, %p118
    %p121 = scmp.ne.s32.totalorder %s104, %s120
    %p122 = scmp.eq.s32.totalorder %s18, 0
    %p123 = por %p121, %p122
    %s125 = sadd.s32 %s124, 1
    %p128 = scmp.eq.s32.totalorder %s12, 3
    %p129 = scmp.ne.s32.totalorder %s124, %s126
    %p130 = scmp.eq.s32.totalorder %s12, 0
    %p131 = por %p129, %p130
    %p132 = scmp.ne.s32.totalorder %s124, %s126
    %p133 = scmp.eq.s32.totalorder %s17, 3
    %p134 = por %p132, %p133
    %p135 = scmp.ne.s32.totalorder %s126, %s127
    %p136 = scmp.eq.s32.totalorder %s17, 0
    %p137 = por %p135, %p136
    %p138 = scmp.ne.s32.totalorder %s126, %s127
    %p139 = scmp.eq.s32.totalorder %s18, 3
    %p140 = por %p138, %p139
    %p142 = scmp.ne.s32.totalorder %s127, %s141
    %p143 = scmp.eq.s32.totalorder %s18, 0
    %p144 = por %p142, %p143
    %s146 = sadd.s32 %s145, 1
    %p149 = scmp.eq.s32.totalorder %s12, 3
    %p150 = scmp.ne.s32.totalorder %s145, %s147
    %p151 = scmp.eq.s32.totalorder %s12, 0
    %p152 = por %p150, %p151
    %p153 = scmp.ne.s32.totalorder %s145, %s147
    %p154 = scmp.eq.s32.totalorder %s17, 3
    %p155 = por %p153, %p154
    %p156 = scmp.ne.s32.totalorder %s147, %s148
    %p157 = scmp.eq.s32.totalorder %s17, 0
    %p158 = por %p156, %p157
    %p159 = scmp.ne.s32.totalorder %s147, %s148
    %p160 = scmp.eq.s32.totalorder %s18, 3
    %p161 = por %p159, %p160
    %p163 = scmp.ne.s32.totalorder %s148, %s162
    %p164 = scmp.eq.s32.totalorder %s18, 0
    %p165 = por %p163, %p164
    %s166 = ssub.s32 %s12, %s19
    %p167 = scmp.eq.s32.totalorder %s166, 0
    %s169 = sadd.s32 %s168, 1
    %s170 = scalar_select %p167, %s168, %s169
    %p173 = pneg %p167
    %p174 = scmp.eq.s32.totalorder %s12, 3
    %p175 = por %p173, %p174
    %p176 = scmp.ne.s32.totalorder %s168, %s171
    %p177 = scmp.eq.s32.totalorder %s12, 0
    %p178 = por %p176, %p177
    %p179 = scmp.ne.s32.totalorder %s168, %s171
    %p180 = scmp.eq.s32.totalorder %s17, 3
    %p181 = por %p179, %p180
    %p182 = scmp.ne.s32.totalorder %s171, %s172
    %p183 = scmp.eq.s32.totalorder %s17, 0
    %p184 = por %p182, %p183
    %p185 = scmp.ne.s32.totalorder %s171, %s172
    %p186 = scmp.eq.s32.totalorder %s18, 3
    %p187 = por %p185, %p186
    %p189 = scmp.ne.s32.totalorder %s172, %s188
    %p190 = scmp.eq.s32.totalorder %s18, 0
    %p191 = por %p189, %p190
    %p192 = scmp.le.s32.totalorder 1, %s12
    %p193 = scmp.lt.s32.totalorder %s12, 5
    %p194 = pnand %p192, %p193
    %p195 = pneg %p194
    // Predicated region
    $region9: #{cnnrnn_forward.9} parent=5 // pred_check
      _
    $region10: #{cnnrnn_forward.9} parent=5 // pred_check_branch
      %197 = sbr.rel (%p194) target = $region12
    $region11: #{cnnrnn_forward.9} parent=5 // pred_region
      %s198 = ssub.s32 %s12, 1
      // Predicated region
      $region13: #{cnnrnn_forward.9} parent=11 // pred_check
        %p199 = pneg %p137
      $region14: #{cnnrnn_forward.9} parent=11 // pred_check_branch
        %201 = sbr.rel (%p199) target = $region16
      $region15: #{cnnrnn_forward.9} parent=11 // pred_region
        _
      $region16: #{cnnrnn_forward.9} parent=11 // pred_fallthru
        _
      // Predicated region
      $region17: #{cnnrnn_forward.9} parent=11 // pred_check
        %p202 = pneg %p158
      $region18: #{cnnrnn_forward.9} parent=11 // pred_check_branch
        %204 = sbr.rel (%p202) target = $region20
      $region19: #{cnnrnn_forward.9} parent=11 // pred_region
        _
      $region20: #{cnnrnn_forward.9} parent=11 // pred_fallthru
        _
    $region12: #{cnnrnn_forward.9} parent=5 // pred_fallthru
      _
    %p205 = scmp.lt.s32.totalorder %s12, 4
    // Predicated region
    $region21: #{cnnrnn_forward.9} parent=5 // pred_check
      %p206 = pneg %p205
    $region22: #{cnnrnn_forward.9} parent=5 // pred_check_branch
      %208 = sbr.rel (%p206) target = $region24
    $region23: #{cnnrnn_forward.9} parent=5 // pred_region
      // Predicated region
      $region25: #{cnnrnn_forward.9} parent=23 // pred_check
        %p209 = pneg %p32
      $region26: #{cnnrnn_forward.9} parent=23 // pred_check_branch
        %211 = sbr.rel (%p209) target = $region28
      $region27: #{cnnrnn_forward.9} parent=23 // pred_region
        %p212 = scmp.lt.s32.totalorder %s12, 3
        %s213 = scalar_select %p212, %s12, 3
        %s214 = smul.addr %s213, 2
        %s215 = smul.addr %s214, 2
        %s216 = scalar_lea.vmem %s0, %s215
      $region28: #{cnnrnn_forward.9} parent=23 // pred_fallthru
        _
      // Predicated region
      $region29: #{cnnrnn_forward.9} parent=23 // pred_check
        %p217 = pneg %p58
      $region30: #{cnnrnn_forward.9} parent=23 // pred_check_branch
        %219 = sbr.rel (%p217) target = $region32
      $region31: #{cnnrnn_forward.9} parent=23 // pred_region
        %p220 = scmp.lt.s32.totalorder %s12, 3
        %s221 = scalar_select %p220, %s12, 3
        %s222 = smul.addr %s221, 2
        %s223 = smul.addr %s222, 2
        %s224 = scalar_lea.vmem %s1, %s223
      $region32: #{cnnrnn_forward.9} parent=23 // pred_fallthru
        _
      // Predicated region
      $region33: #{cnnrnn_forward.9} parent=23 // pred_check
        %p225 = pneg %p84
      $region34: #{cnnrnn_forward.9} parent=23 // pred_check_branch
        %227 = sbr.rel (%p225) target = $region36
      $region35: #{cnnrnn_forward.9} parent=23 // pred_region
        %p228 = scmp.lt.s32.totalorder %s12, 3
        %s229 = scalar_select %p228, %s12, 3
        %s230 = smul.addr %s229, 2
        %s231 = smul.addr %s230, 2
        %s232 = scalar_lea.vmem %s2, %s231
      $region36: #{cnnrnn_forward.9} parent=23 // pred_fallthru
        _
      // Predicated region
      $region37: #{cnnrnn_forward.9} parent=23 // pred_check
        %p233 = pneg %p110
      $region38: #{cnnrnn_forward.9} parent=23 // pred_check_branch
        %235 = sbr.rel (%p233) target = $region40
      $region39: #{cnnrnn_forward.9} parent=23 // pred_region
        %p236 = scmp.lt.s32.totalorder %s12, 3
        %s237 = scalar_select %p236, %s12, 3
        %s238 = smul.addr %s237, 2
        %s239 = smul.addr %s238, 2
        %s240 = scalar_lea.vmem %s3, %s239
      $region40: #{cnnrnn_forward.9} parent=23 // pred_fallthru
        _
    $region24: #{cnnrnn_forward.9} parent=5 // pred_fallthru
      _
    %p241 = scmp.le.s32.totalorder 1, %s12
    %p242 = scmp.lt.s32.totalorder %s12, 5
    %p243 = pnand %p241, %p242
    %p244 = pneg %p243
    // Predicated region
    $region41: #{cnnrnn_forward.9} parent=5 // pred_check
      _
    $region42: #{cnnrnn_forward.9} parent=5 // pred_check_branch
      %246 = sbr.rel (%p243) target = $region44
    $region43: #{cnnrnn_forward.9} parent=5 // pred_region
      %s247 = ssub.s32 %s12, 1
      %p248 = scmp.lt.s32.totalorder %s17, 3
      %s249 = scalar_select %p248, %s17, 3
      %s250 = smul.addr %s249, 2
      %s251 = smul.addr %s250, 2
      %s252 = scalar_lea.vmem %s0, %s251
      %p253 = pneg %p38
      %p254 = pneg %p35
      %p255 = scmp.lt.s32.totalorder %s17, 3
      %s256 = scalar_select %p255, %s17, 3
      %s257 = smul.addr %s256, 2
      %s258 = smul.addr %s257, 2
      %s259 = scalar_lea.vmem %s1, %s258
      %p260 = pneg %p64
      %p261 = pneg %p61
      %p262 = scmp.lt.s32.totalorder %s17, 3
      %s263 = scalar_select %p262, %s17, 3
      %s264 = smul.addr %s263, 2
      %s265 = smul.addr %s264, 2
      %s266 = scalar_lea.vmem %s2, %s265
      %p267 = pneg %p90
      %p268 = pneg %p87
      %p269 = scmp.lt.s32.totalorder %s17, 3
      %s270 = scalar_select %p269, %s17, 3
      %s271 = smul.addr %s270, 2
      %s272 = smul.addr %s271, 2
      %s273 = scalar_lea.vmem %s3, %s272
      %p274 = pneg %p116
      %p275 = pneg %p113
      %p276 = pneg %p137
      %p277 = pneg %p134
      %p278 = pneg %p158
      %p279 = pneg %p155
      %p280 = pneg %p184
      %p281 = pneg %p181
      %p282 = scmp.lt.s32.totalorder %s17, 3
      %s283 = scalar_select %p282, %s17, 3
      %s284 = scalar_lea.vmem %s6, %s283
      %p285 = scmp.lt.s32.totalorder %s17, 3
      %s286 = scalar_select %p285, %s17, 3
      %s287 = smul.addr %s286, 2
      %s288 = smul.addr %s287, 2
      %s289 = scalar_lea.vmem %s0, %s288
      %p290 = scmp.lt.s32.totalorder %s17, 3
      %s291 = scalar_select %p290, %s17, 3
      %s292 = smul.addr %s291, 2
      %s293 = smul.addr %s292, 2
      %s294 = scalar_lea.vmem %s1, %s293
      %p295 = scmp.lt.s32.totalorder %s17, 3
      %s296 = scalar_select %p295, %s17, 3
      %s297 = smul.addr %s296, 2
      %s298 = smul.addr %s297, 2
      %s299 = scalar_lea.vmem %s2, %s298
      %p300 = scmp.lt.s32.totalorder %s17, 3
      %s301 = scalar_select %p300, %s17, 3
      %s302 = smul.addr %s301, 2
      %s303 = smul.addr %s302, 2
      %s304 = scalar_lea.vmem %s3, %s303
      %p305 = scmp.lt.s32.totalorder %s17, 3
      %s306 = scalar_select %p305, %s17, 3
      %s307 = scalar_lea.vmem %s6, %s306
      %v309 = vld [vmem:[%s289] sm:$0x1]
      %v310 = vpack.c.bf16 %v309, %v309
      %v311 = vld [vmem:[%s4] sm:$0xff]
      %v312 = vld [vmem:[%s4 + $0x8] sm:$0xff]
      %v313 = vld [vmem:[%s4 + $0x10] sm:$0xff]
      %v314 = vld [vmem:[%s4 + $0x18] sm:$0xff]
      %v315 = vpack.c.bf16 %v312, %v311
      %v316 = vpack.c.bf16 %v314, %v313
      %v317 = vld [vmem:[%s294] sm:$0x1]
      %v318 = vpack.c.bf16 %v317, %v317
      %s319 = scalar_lea.vmem %s4, 32
      %v320 = vld [vmem:[%s319] sm:$0xff]
      %v321 = vld [vmem:[%s319 + $0x8] sm:$0xff]
      %v322 = vld [vmem:[%s319 + $0x10] sm:$0xff]
      %v323 = vld [vmem:[%s319 + $0x18] sm:$0xff]
      %v324 = vpack.c.bf16 %v321, %v320
      %v325 = vpack.c.bf16 %v323, %v322
      %vm326 = vcmask 261120
      %v328 = vsel %vm326, %v318, 0
      %330 = vmatprep.subr.bf16.mxu0 0
      %331 = vmatpush1.bf16.msra.mxu0 0
      %332 = vmatprep.subr.bf16.mxu0 0
      %333 = vmatpush1.bf16.msra.mxu0 0
      %334 = vmatprep.subr.bf16.mxu0 0
      %335 = vmatpush1.bf16.msra.mxu0 0
      %336 = vmatprep.subr.bf16.mxu0 0
      %337 = vmatpush1.bf16.msra.mxu0 0
      %338 = vmatprep.subr.bf16.mxu0 0
      %339 = vmatpush1.bf16.msra.mxu0 0
      %340 = vmatprep.subr.bf16.mxu0 0
      %341 = vmatpush1.bf16.msra.mxu0 0
      %342 = vmatprep.subr.bf16.mxu0 0
      %343 = vmatpush1.bf16.msra.mxu0 %v325
      %344 = vmatprep.subr.bf16.mxu0 0
      %345 = vmatpush1.bf16.msra.mxu0 %v324
      %346 = vmatprep.subr.bf16.mxu0 0
      %347 = vmatpush2.bf16.msra.mxu0 0
      %348 = vmatprep.subr.bf16.mxu0 0
      %349 = vmatpush2.bf16.msra.mxu0 0
      %350 = vmatprep.subr.bf16.mxu0 0
      %351 = vmatpush2.bf16.msra.mxu0 0
      %352 = vmatprep.subr.bf16.mxu0 0
      %353 = vmatpush2.bf16.msra.mxu0 0
      %354 = vmatprep.subr.bf16.mxu0 0
      %355 = vmatpush2.bf16.msra.mxu0 0
      %356 = vmatprep.subr.bf16.mxu0 0
      %357 = vmatpush2.bf16.msra.mxu0 0
      %358 = vmatprep.subr.bf16.mxu0 0
      %359 = vmatpush2.bf16.msra.mxu0 0
      %360 = vmatprep.subr.bf16.mxu0 0
      %361 = vmatpush2.bf16.msra.mxu0 0
      %362 = vmatprep.mubr.bf16.mxu0 0
      %363 = vmatmul.mubr.bf16.gmra.mxu0 %v328
      %v364 = vpop.f32.mrf.mxu0
      %v365 = vadd.f32 0.0, %v364
      %v366 = vpop.f32.mrf.mxu0
      %v367 = vpop.f32.mrf.mxu0
      %v368 = vpop.f32.mrf.mxu0
      %369 = vdwg.mxu0
      %v371 = vsel %vm326, %v310, 0
      %373 = vmatprep.subr.bf16.mxu0 0
      %374 = vmatpush1.bf16.msra.mxu0 0
      %375 = vmatprep.subr.bf16.mxu0 0
      %376 = vmatpush1.bf16.msra.mxu0 0
      %377 = vmatprep.subr.bf16.mxu0 0
      %378 = vmatpush1.bf16.msra.mxu0 0
      %379 = vmatprep.subr.bf16.mxu0 0
      %380 = vmatpush1.bf16.msra.mxu0 0
      %381 = vmatprep.subr.bf16.mxu0 0
      %382 = vmatpush1.bf16.msra.mxu0 0
      %383 = vmatprep.subr.bf16.mxu0 0
      %384 = vmatpush1.bf16.msra.mxu0 0
      %385 = vmatprep.subr.bf16.mxu0 0
      %386 = vmatpush1.bf16.msra.mxu0 %v316
      %387 = vmatprep.subr.bf16.mxu0 0
      %388 = vmatpush1.bf16.msra.mxu0 %v315
      %389 = vmatprep.subr.bf16.mxu0 0
      %390 = vmatpush2.bf16.msra.mxu0 0
      %391 = vmatprep.subr.bf16.mxu0 0
      %392 = vmatpush2.bf16.msra.mxu0 0
      %393 = vmatprep.subr.bf16.mxu0 0
      %394 = vmatpush2.bf16.msra.mxu0 0
      %395 = vmatprep.subr.bf16.mxu0 0
      %396 = vmatpush2.bf16.msra.mxu0 0
      %397 = vmatprep.subr.bf16.mxu0 0
      %398 = vmatpush2.bf16.msra.mxu0 0
      %399 = vmatprep.subr.bf16.mxu0 0
      %400 = vmatpush2.bf16.msra.mxu0 0
      %401 = vmatprep.subr.bf16.mxu0 0
      %402 = vmatpush2.bf16.msra.mxu0 0
      %403 = vmatprep.subr.bf16.mxu0 0
      %404 = vmatpush2.bf16.msra.mxu0 0
      %405 = vmatprep.mubr.bf16.mxu0 0
      %406 = vmatmul.mubr.bf16.gmra.mxu0 %v371
      %v407 = vpop.f32.mrf.mxu0
      %v408 = vadd.f32 %v365, %v407
      %v409 = vpop.f32.mrf.mxu0
      %v410 = vpop.f32.mrf.mxu0
      %v411 = vpop.f32.mrf.mxu0
      %412 = vdwg.mxu0
      %v413 = vld [vmem:[%s289 + $0x1] sm:$0x1]
      %v414 = vpack.c.bf16 %v413, %v413
      %s415 = scalar_lea.vmem %s4, 64
      %v416 = vld [vmem:[%s415] sm:$0xff]
      %v417 = vld [vmem:[%s415 + $0x8] sm:$0xff]
      %v418 = vld [vmem:[%s415 + $0x10] sm:$0xff]
      %v419 = vld [vmem:[%s415 + $0x18] sm:$0xff]
      %v420 = vpack.c.bf16 %v417, %v416
      %v421 = vpack.c.bf16 %v419, %v418
      %v423 = vsel %vm326, %v414, 0
      %425 = vmatprep.subr.bf16.mxu0 0
      %426 = vmatpush1.bf16.msra.mxu0 0
      %427 = vmatprep.subr.bf16.mxu0 0
      %428 = vmatpush1.bf16.msra.mxu0 0
      %429 = vmatprep.subr.bf16.mxu0 0
      %430 = vmatpush1.bf16.msra.mxu0 0
      %431 = vmatprep.subr.bf16.mxu0 0
      %432 = vmatpush1.bf16.msra.mxu0 0
      %433 = vmatprep.subr.bf16.mxu0 0
      %434 = vmatpush1.bf16.msra.mxu0 0
      %435 = vmatprep.subr.bf16.mxu0 0
      %436 = vmatpush1.bf16.msra.mxu0 0
      %437 = vmatprep.subr.bf16.mxu0 0
      %438 = vmatpush1.bf16.msra.mxu0 %v421
      %439 = vmatprep.subr.bf16.mxu0 0
      %440 = vmatpush1.bf16.msra.mxu0 %v420
      %441 = vmatprep.subr.bf16.mxu0 0
      %442 = vmatpush2.bf16.msra.mxu0 0
      %443 = vmatprep.subr.bf16.mxu0 0
      %444 = vmatpush2.bf16.msra.mxu0 0
      %445 = vmatprep.subr.bf16.mxu0 0
      %446 = vmatpush2.bf16.msra.mxu0 0
      %447 = vmatprep.subr.bf16.mxu0 0
      %448 = vmatpush2.bf16.msra.mxu0 0
      %449 = vmatprep.subr.bf16.mxu0 0
      %450 = vmatpush2.bf16.msra.mxu0 0
      %451 = vmatprep.subr.bf16.mxu0 0
      %452 = vmatpush2.bf16.msra.mxu0 0
      %453 = vmatprep.subr.bf16.mxu0 0
      %454 = vmatpush2.bf16.msra.mxu0 0
      %455 = vmatprep.subr.bf16.mxu0 0
      %456 = vmatpush2.bf16.msra.mxu0 0
      %457 = vmatprep.mubr.bf16.mxu0 0
      %458 = vmatmul.mubr.bf16.gmra.mxu0 %v423
      %v459 = vpop.f32.mrf.mxu0
      %v460 = vadd.f32 0.0, %v459
      %v461 = vpop.f32.mrf.mxu0
      %v462 = vpop.f32.mrf.mxu0
      %v463 = vpop.f32.mrf.mxu0
      %464 = vdwg.mxu0
      %v465 = vadd.f32 %v408, %v460
      %v466 = vld [vmem:[%s299] sm:$0x1]
      %v467 = vpack.c.bf16 %v466, %v466
      %s468 = scalar_lea.vmem %s4, 96
      %v469 = vld [vmem:[%s468] sm:$0xff]
      %v470 = vld [vmem:[%s468 + $0x8] sm:$0xff]
      %v471 = vld [vmem:[%s468 + $0x10] sm:$0xff]
      %v472 = vld [vmem:[%s468 + $0x18] sm:$0xff]
      %v473 = vpack.c.bf16 %v470, %v469
      %v474 = vpack.c.bf16 %v472, %v471
      %v476 = vsel %vm326, %v467, 0
      %478 = vmatprep.subr.bf16.mxu0 0
      %479 = vmatpush1.bf16.msra.mxu0 0
      %480 = vmatprep.subr.bf16.mxu0 0
      %481 = vmatpush1.bf16.msra.mxu0 0
      %482 = vmatprep.subr.bf16.mxu0 0
      %483 = vmatpush1.bf16.msra.mxu0 0
      %484 = vmatprep.subr.bf16.mxu0 0
      %485 = vmatpush1.bf16.msra.mxu0 0
      %486 = vmatprep.subr.bf16.mxu0 0
      %487 = vmatpush1.bf16.msra.mxu0 0
      %488 = vmatprep.subr.bf16.mxu0 0
      %489 = vmatpush1.bf16.msra.mxu0 0
      %490 = vmatprep.subr.bf16.mxu0 0
      %491 = vmatpush1.bf16.msra.mxu0 %v474
      %492 = vmatprep.subr.bf16.mxu0 0
      %493 = vmatpush1.bf16.msra.mxu0 %v473
      %494 = vmatprep.subr.bf16.mxu0 0
      %495 = vmatpush2.bf16.msra.mxu0 0
      %496 = vmatprep.subr.bf16.mxu0 0
      %497 = vmatpush2.bf16.msra.mxu0 0
      %498 = vmatprep.subr.bf16.mxu0 0
      %499 = vmatpush2.bf16.msra.mxu0 0
      %500 = vmatprep.subr.bf16.mxu0 0
      %501 = vmatpush2.bf16.msra.mxu0 0
      %502 = vmatprep.subr.bf16.mxu0 0
      %503 = vmatpush2.bf16.msra.mxu0 0
      %504 = vmatprep.subr.bf16.mxu0 0
      %505 = vmatpush2.bf16.msra.mxu0 0
      %506 = vmatprep.subr.bf16.mxu0 0
      %507 = vmatpush2.bf16.msra.mxu0 0
      %508 = vmatprep.subr.bf16.mxu0 0
      %509 = vmatpush2.bf16.msra.mxu0 0
      %510 = vmatprep.mubr.bf16.mxu0 0
      %511 = vmatmul.mubr.bf16.gmra.mxu0 %v476
      %v512 = vpop.f32.mrf.mxu0
      %v513 = vadd.f32 0.0, %v512
      %v514 = vpop.f32.mrf.mxu0
      %v515 = vpop.f32.mrf.mxu0
      %v516 = vpop.f32.mrf.mxu0
      %517 = vdwg.mxu0
      %v518 = vadd.f32 %v465, %v513
      %v519 = vld [vmem:[%s304] sm:$0x1]
      %v520 = vpack.c.bf16 %v519, %v519
      %s521 = scalar_lea.vmem %s4, 128
      %v522 = vld [vmem:[%s521] sm:$0xff]
      %v523 = vld [vmem:[%s521 + $0x8] sm:$0xff]
      %v524 = vld [vmem:[%s521 + $0x10] sm:$0xff]
      %v525 = vld [vmem:[%s521 + $0x18] sm:$0xff]
      %v526 = vpack.c.bf16 %v523, %v522
      %v527 = vpack.c.bf16 %v525, %v524
      %v529 = vsel %vm326, %v520, 0
      %531 = vmatprep.subr.bf16.mxu0 0
      %532 = vmatpush1.bf16.msra.mxu0 0
      %533 = vmatprep.subr.bf16.mxu0 0
      %534 = vmatpush1.bf16.msra.mxu0 0
      %535 = vmatprep.subr.bf16.mxu0 0
      %536 = vmatpush1.bf16.msra.mxu0 0
      %537 = vmatprep.subr.bf16.mxu0 0
      %538 = vmatpush1.bf16.msra.mxu0 0
      %539 = vmatprep.subr.bf16.mxu0 0
      %540 = vmatpush1.bf16.msra.mxu0 0
      %541 = vmatprep.subr.bf16.mxu0 0
      %542 = vmatpush1.bf16.msra.mxu0 0
      %543 = vmatprep.subr.bf16.mxu0 0
      %544 = vmatpush1.bf16.msra.mxu0 %v527
      %545 = vmatprep.subr.bf16.mxu0 0
      %546 = vmatpush1.bf16.msra.mxu0 %v526
      %547 = vmatprep.subr.bf16.mxu0 0
      %548 = vmatpush2.bf16.msra.mxu0 0
      %549 = vmatprep.subr.bf16.mxu0 0
      %550 = vmatpush2.bf16.msra.mxu0 0
      %551 = vmatprep.subr.bf16.mxu0 0
      %552 = vmatpush2.bf16.msra.mxu0 0
      %553 = vmatprep.subr.bf16.mxu0 0
      %554 = vmatpush2.bf16.msra.mxu0 0
      %555 = vmatprep.subr.bf16.mxu0 0
      %556 = vmatpush2.bf16.msra.mxu0 0
      %557 = vmatprep.subr.bf16.mxu0 0
      %558 = vmatpush2.bf16.msra.mxu0 0
      %559 = vmatprep.subr.bf16.mxu0 0
      %560 = vmatpush2.bf16.msra.mxu0 0
      %561 = vmatprep.subr.bf16.mxu0 0
      %562 = vmatpush2.bf16.msra.mxu0 0
      %563 = vmatprep.mubr.bf16.mxu0 0
      %564 = vmatmul.mubr.bf16.gmra.mxu0 %v529
      %v565 = vpop.f32.mrf.mxu0
      %v566 = vadd.f32 0.0, %v565
      %v567 = vpop.f32.mrf.mxu0
      %v568 = vpop.f32.mrf.mxu0
      %v569 = vpop.f32.mrf.mxu0
      %570 = vdwg.mxu0
      %v571 = vadd.f32 %v518, %v566
      %v572 = vld [vmem:[%s299 + $0x1] sm:$0x1]
      %v573 = vpack.c.bf16 %v572, %v572
      %s574 = scalar_lea.vmem %s4, 160
      %v575 = vld [vmem:[%s574] sm:$0xff]
      %v576 = vld [vmem:[%s574 + $0x8] sm:$0xff]
      %v577 = vld [vmem:[%s574 + $0x10] sm:$0xff]
      %v578 = vld [vmem:[%s574 + $0x18] sm:$0xff]
      %v579 = vpack.c.bf16 %v576, %v575
      %v580 = vpack.c.bf16 %v578, %v577
      %v582 = vsel %vm326, %v573, 0
      %584 = vmatprep.subr.bf16.mxu0 0
      %585 = vmatpush1.bf16.msra.mxu0 0
      %586 = vmatprep.subr.bf16.mxu0 0
      %587 = vmatpush1.bf16.msra.mxu0 0
      %588 = vmatprep.subr.bf16.mxu0 0
      %589 = vmatpush1.bf16.msra.mxu0 0
      %590 = vmatprep.subr.bf16.mxu0 0
      %591 = vmatpush1.bf16.msra.mxu0 0
      %592 = vmatprep.subr.bf16.mxu0 0
      %593 = vmatpush1.bf16.msra.mxu0 0
      %594 = vmatprep.subr.bf16.mxu0 0
      %595 = vmatpush1.bf16.msra.mxu0 0
      %596 = vmatprep.subr.bf16.mxu0 0
      %597 = vmatpush1.bf16.msra.mxu0 %v580
      %598 = vmatprep.subr.bf16.mxu0 0
      %599 = vmatpush1.bf16.msra.mxu0 %v579
      %600 = vmatprep.subr.bf16.mxu0 0
      %601 = vmatpush2.bf16.msra.mxu0 0
      %602 = vmatprep.subr.bf16.mxu0 0
      %603 = vmatpush2.bf16.msra.mxu0 0
      %604 = vmatprep.subr.bf16.mxu0 0
      %605 = vmatpush2.bf16.msra.mxu0 0
      %606 = vmatprep.subr.bf16.mxu0 0
      %607 = vmatpush2.bf16.msra.mxu0 0
      %608 = vmatprep.subr.bf16.mxu0 0
      %609 = vmatpush2.bf16.msra.mxu0 0
      %610 = vmatprep.subr.bf16.mxu0 0
      %611 = vmatpush2.bf16.msra.mxu0 0
      %612 = vmatprep.subr.bf16.mxu0 0
      %613 = vmatpush2.bf16.msra.mxu0 0
      %614 = vmatprep.subr.bf16.mxu0 0
      %615 = vmatpush2.bf16.msra.mxu0 0
      %616 = vmatprep.mubr.bf16.mxu0 0
      %617 = vmatmul.mubr.bf16.gmra.mxu0 %v582
      %v618 = vpop.f32.mrf.mxu0
      %v619 = vadd.f32 0.0, %v618
      %v620 = vpop.f32.mrf.mxu0
      %v621 = vpop.f32.mrf.mxu0
      %v622 = vpop.f32.mrf.mxu0
      %623 = vdwg.mxu0
      %v624 = vadd.f32 %v571, %v619
      %s625 = scalar_lea.vmem %s289, 2
      %v626 = vld [vmem:[%s625] sm:$0x1]
      %v627 = vpack.c.bf16 %v626, %v626
      %s628 = scalar_lea.vmem %s4, 192
      %v629 = vld [vmem:[%s628] sm:$0xff]
      %v630 = vld [vmem:[%s628 + $0x8] sm:$0xff]
      %v631 = vld [vmem:[%s628 + $0x10] sm:$0xff]
      %v632 = vld [vmem:[%s628 + $0x18] sm:$0xff]
      %v633 = vpack.c.bf16 %v630, %v629
      %v634 = vpack.c.bf16 %v632, %v631
      %v636 = vsel %vm326, %v627, 0
      %638 = vmatprep.subr.bf16.mxu0 0
      %639 = vmatpush1.bf16.msra.mxu0 0
      %640 = vmatprep.subr.bf16.mxu0 0
      %641 = vmatpush1.bf16.msra.mxu0 0
      %642 = vmatprep.subr.bf16.mxu0 0
      %643 = vmatpush1.bf16.msra.mxu0 0
      %644 = vmatprep.subr.bf16.mxu0 0
      %645 = vmatpush1.bf16.msra.mxu0 0
      %646 = vmatprep.subr.bf16.mxu0 0
      %647 = vmatpush1.bf16.msra.mxu0 0
      %648 = vmatprep.subr.bf16.mxu0 0
      %649 = vmatpush1.bf16.msra.mxu0 0
      %650 = vmatprep.subr.bf16.mxu0 0
      %651 = vmatpush1.bf16.msra.mxu0 %v634
      %652 = vmatprep.subr.bf16.mxu0 0
      %653 = vmatpush1.bf16.msra.mxu0 %v633
      %654 = vmatprep.subr.bf16.mxu0 0
      %655 = vmatpush2.bf16.msra.mxu0 0
      %656 = vmatprep.subr.bf16.mxu0 0
      %657 = vmatpush2.bf16.msra.mxu0 0
      %658 = vmatprep.subr.bf16.mxu0 0
      %659 = vmatpush2.bf16.msra.mxu0 0
      %660 = vmatprep.subr.bf16.mxu0 0
      %661 = vmatpush2.bf16.msra.mxu0 0
      %662 = vmatprep.subr.bf16.mxu0 0
      %663 = vmatpush2.bf16.msra.mxu0 0
      %664 = vmatprep.subr.bf16.mxu0 0
      %665 = vmatpush2.bf16.msra.mxu0 0
      %666 = vmatprep.subr.bf16.mxu0 0
      %667 = vmatpush2.bf16.msra.mxu0 0
      %668 = vmatprep.subr.bf16.mxu0 0
      %669 = vmatpush2.bf16.msra.mxu0 0
      %670 = vmatprep.mubr.bf16.mxu0 0
      %671 = vmatmul.mubr.bf16.gmra.mxu0 %v636
      %v672 = vpop.f32.mrf.mxu0
      %v673 = vadd.f32 0.0, %v672
      %v674 = vpop.f32.mrf.mxu0
      %v675 = vpop.f32.mrf.mxu0
      %v676 = vpop.f32.mrf.mxu0
      %677 = vdwg.mxu0
      %v678 = vadd.f32 %v624, %v673
      %s679 = scalar_lea.vmem %s294, 2
      %v680 = vld [vmem:[%s679] sm:$0x1]
      %v681 = vpack.c.bf16 %v680, %v680
      %s682 = scalar_lea.vmem %s4, 224
      %v683 = vld [vmem:[%s682] sm:$0xff]
      %v684 = vld [vmem:[%s682 + $0x8] sm:$0xff]
      %v685 = vld [vmem:[%s682 + $0x10] sm:$0xff]
      %v686 = vld [vmem:[%s682 + $0x18] sm:$0xff]
      %v687 = vpack.c.bf16 %v684, %v683
      %v688 = vpack.c.bf16 %v686, %v685
      %v690 = vsel %vm326, %v681, 0
      %692 = vmatprep.subr.bf16.mxu0 0
      %693 = vmatpush1.bf16.msra.mxu0 0
      %694 = vmatprep.subr.bf16.mxu0 0
      %695 = vmatpush1.bf16.msra.mxu0 0
      %696 = vmatprep.subr.bf16.mxu0 0
      %697 = vmatpush1.bf16.msra.mxu0 0
      %698 = vmatprep.subr.bf16.mxu0 0
      %699 = vmatpush1.bf16.msra.mxu0 0
      %700 = vmatprep.subr.bf16.mxu0 0
      %701 = vmatpush1.bf16.msra.mxu0 0
      %702 = vmatprep.subr.bf16.mxu0 0
      %703 = vmatpush1.bf16.msra.mxu0 0
      %704 = vmatprep.subr.bf16.mxu0 0
      %705 = vmatpush1.bf16.msra.mxu0 %v688
      %706 = vmatprep.subr.bf16.mxu0 0
      %707 = vmatpush1.bf16.msra.mxu0 %v687
      %708 = vmatprep.subr.bf16.mxu0 0
      %709 = vmatpush2.bf16.msra.mxu0 0
      %710 = vmatprep.subr.bf16.mxu0 0
      %711 = vmatpush2.bf16.msra.mxu0 0
      %712 = vmatprep.subr.bf16.mxu0 0
      %713 = vmatpush2.bf16.msra.mxu0 0
      %714 = vmatprep.subr.bf16.mxu0 0
      %715 = vmatpush2.bf16.msra.mxu0 0
      %716 = vmatprep.subr.bf16.mxu0 0
      %717 = vmatpush2.bf16.msra.mxu0 0
      %718 = vmatprep.subr.bf16.mxu0 0
      %719 = vmatpush2.bf16.msra.mxu0 0
      %720 = vmatprep.subr.bf16.mxu0 0
      %721 = vmatpush2.bf16.msra.mxu0 0
      %722 = vmatprep.subr.bf16.mxu0 0
      %723 = vmatpush2.bf16.msra.mxu0 0
      %724 = vmatprep.mubr.bf16.mxu0 0
      %725 = vmatmul.mubr.bf16.gmra.mxu0 %v690
      %v726 = vpop.f32.mrf.mxu0
      %v727 = vadd.f32 0.0, %v726
      %v728 = vpop.f32.mrf.mxu0
      %v729 = vpop.f32.mrf.mxu0
      %v730 = vpop.f32.mrf.mxu0
      %731 = vdwg.mxu0
      %v732 = vadd.f32 %v678, %v727
      %v733 = vld [vmem:[%s625 + $0x1] sm:$0x1]
      %v734 = vpack.c.bf16 %v733, %v733
      %s735 = scalar_lea.vmem %s4, 256
      %v736 = vld [vmem:[%s735] sm:$0xff]
      %v737 = vld [vmem:[%s735 + $0x8] sm:$0xff]
      %v738 = vld [vmem:[%s735 + $0x10] sm:$0xff]
      %v739 = vld [vmem:[%s735 + $0x18] sm:$0xff]
      %v740 = vpack.c.bf16 %v737, %v736
      %v741 = vpack.c.bf16 %v739, %v738
      %v743 = vsel %vm326, %v734, 0
      %745 = vmatprep.subr.bf16.mxu0 0
      %746 = vmatpush1.bf16.msra.mxu0 0
      %747 = vmatprep.subr.bf16.mxu0 0
      %748 = vmatpush1.bf16.msra.mxu0 0
      %749 = vmatprep.subr.bf16.mxu0 0
      %750 = vmatpush1.bf16.msra.mxu0 0
      %751 = vmatprep.subr.bf16.mxu0 0
      %752 = vmatpush1.bf16.msra.mxu0 0
      %753 = vmatprep.subr.bf16.mxu0 0
      %754 = vmatpush1.bf16.msra.mxu0 0
      %755 = vmatprep.subr.bf16.mxu0 0
      %756 = vmatpush1.bf16.msra.mxu0 0
      %757 = vmatprep.subr.bf16.mxu0 0
      %758 = vmatpush1.bf16.msra.mxu0 %v741
      %759 = vmatprep.subr.bf16.mxu0 0
      %760 = vmatpush1.bf16.msra.mxu0 %v740
      %761 = vmatprep.subr.bf16.mxu0 0
      %762 = vmatpush2.bf16.msra.mxu0 0
      %763 = vmatprep.subr.bf16.mxu0 0
      %764 = vmatpush2.bf16.msra.mxu0 0
      %765 = vmatprep.subr.bf16.mxu0 0
      %766 = vmatpush2.bf16.msra.mxu0 0
      %767 = vmatprep.subr.bf16.mxu0 0
      %768 = vmatpush2.bf16.msra.mxu0 0
      %769 = vmatprep.subr.bf16.mxu0 0
      %770 = vmatpush2.bf16.msra.mxu0 0
      %771 = vmatprep.subr.bf16.mxu0 0
      %772 = vmatpush2.bf16.msra.mxu0 0
      %773 = vmatprep.subr.bf16.mxu0 0
      %774 = vmatpush2.bf16.msra.mxu0 0
      %775 = vmatprep.subr.bf16.mxu0 0
      %776 = vmatpush2.bf16.msra.mxu0 0
      %777 = vmatprep.mubr.bf16.mxu0 0
      %778 = vmatmul.mubr.bf16.gmra.mxu0 %v743
      %v779 = vpop.f32.mrf.mxu0
      %v780 = vadd.f32 0.0, %v779
      %v781 = vpop.f32.mrf.mxu0
      %v782 = vpop.f32.mrf.mxu0
      %v783 = vpop.f32.mrf.mxu0
      %784 = vdwg.mxu0
      %v785 = vadd.f32 %v732, %v780
      %v786 = vld [vmem:[%s5] sm:$0x1]
      %v787 = vadd.f32 %v785, %v786
      %vm788 = vcmp.gt.f32.partialorder %v787, 0.0
      %v789 = vmin.f32 %v787, 0.0
      %v790 = vmul.f32 %v789, 1.442695
      %v791 = vpow.pop %v790
      %v792 = vsub.f32 %v791, 1.0
      %v793 = vsel %vm788, %v787, %v792
      %vm794 = vcmask 253952
      %795 = vst.msk [vmem:[%s307] sm:$0x1] %vm794, %v793
      %p796 = scmp.lt.s32.totalorder %s17, 3
      %s797 = scalar_select %p796, %s17, 3
      %s798 = scalar_lea.vmem %s6, %s797
      // Predicated region
      $region45: #{cnnrnn_forward.9} parent=43 // pred_check
        %p799 = pneg %p181
      $region46: #{cnnrnn_forward.9} parent=43 // pred_check_branch
        %801 = sbr.rel (%p799) target = $region48
      $region47: #{cnnrnn_forward.9} parent=43 // pred_region
        _
      $region48: #{cnnrnn_forward.9} parent=43 // pred_fallthru
        _
    $region44: #{cnnrnn_forward.9} parent=5 // pred_fallthru
      _
    %p802 = scmp.le.s32.totalorder 2, %s12
    // Predicated region
    $region49: #{cnnrnn_forward.9} parent=5 // pred_check
      %p803 = pneg %p802
    $region50: #{cnnrnn_forward.9} parent=5 // pred_check_branch
      %805 = sbr.rel (%p803) target = $region52
    $region51: #{cnnrnn_forward.9} parent=5 // pred_region
      %s806 = ssub.s32 %s12, 2
      // Predicated region
      $region53: #{cnnrnn_forward.9} parent=51 // pred_check
        %p807 = pneg %p187
      $region54: #{cnnrnn_forward.9} parent=51 // pred_check_branch
        %809 = sbr.rel (%p807) target = $region56
      $region55: #{cnnrnn_forward.9} parent=51 // pred_region
        %p810 = scmp.lt.s32.totalorder %s18, 3
        %s811 = scalar_select %p810, %s18, 3
        %s812 = scalar_lea.vmem %s6, %s811
      $region56: #{cnnrnn_forward.9} parent=51 // pred_fallthru
        _
    $region52: #{cnnrnn_forward.9} parent=5 // pred_fallthru
      _
  $region6: #{cnnrnn_forward.9} parent=0 // loop_footer
    %s16 = sadd.s32 1, %s12
  $region7: #{cnnrnn_forward.9} parent=0 // loop_footer_branch
    %11 = sbr.rel target = $region3
  $region8: #{cnnrnn_forward.9} parent=0 // loop_exit
    _

// kernel: cnnrnn_forward.8
$region0: #{cnnrnn_forward.8}
  #allocation0 [shape = 'u32[]', space=smem, size = 0x4, offset = 0x4, fixed_abs, tag = 'smem constant byte address 0x4 - core index']
  #allocation1 [shape = 'u32[144,128]{1,0:T(1,128)}', space=vmem, size = 0x12000, scoped, tag = 'internal scratch']
  %s0 = inlined_call_operand.vmem [shape: f32[4,3,3,32], index: 0, kind: input, shape index: {}]
  %s1 = inlined_call_operand.vmem [shape: f32[4,3,3,32], index: 1, kind: input, shape index: {}]
  %s2 = inlined_call_operand.vmem [shape: f32[4,3,3,32], index: 2, kind: input, shape index: {}]
  %s3 = inlined_call_operand.vmem [shape: f32[4,3,3,32], index: 3, kind: input, shape index: {}]
  %s4 = inlined_call_operand.vmem [shape: f32[9,32,32], index: 4, kind: input, shape index: {}]
  %s5 = inlined_call_operand.vmem [shape: f32[1,32], index: 5, kind: input, shape index: {}]
  %s6 = inlined_call_operand.vmem [shape: f32[4,2,2,32], index: 6, kind: output, shape index: {}]
  %s7 = sld [smem:[#allocation0]]
  $region57: #{cnnrnn_forward.8} parent=0
    _
  %s9 = ssub.s32 1, %s7
  %s10 = scalar_select 0, %s9, %s7
  loop: start=0, step=1, limit=6
  $region2: #{cnnrnn_forward.8} parent=0 // loop_pre_header
    _
  $region3: #{cnnrnn_forward.8} parent=0 // loop_header
    %s12 = sphi 0, %s16
    %p13 = scmp.ge.s32.totalorder %s12, 6
    %s22 = sphi 0, %s24
    %s25 = sphi 0, %s22
    %s26 = sphi 0, %s25
    %s42 = sphi 0, %s26
    %s48 = sphi 0, %s50
    %s51 = sphi 0, %s48
    %s52 = sphi 0, %s51
    %s68 = sphi 0, %s52
    %s74 = sphi 0, %s76
    %s77 = sphi 0, %s74
    %s78 = sphi 0, %s77
    %s94 = sphi 0, %s78
    %s100 = sphi 0, %s102
    %s103 = sphi 0, %s100
    %s104 = sphi 0, %s103
    %s120 = sphi 0, %s104
    %s124 = sphi 0, %s124
    %s126 = sphi 0, %s124
    %s127 = sphi 0, %s126
    %s141 = sphi 0, %s127
    %s145 = sphi 0, %s145
    %s147 = sphi 0, %s145
    %s148 = sphi 0, %s147
    %s162 = sphi 0, %s148
    %s168 = sphi 0, %s170
    %s171 = sphi 0, %s168
    %s172 = sphi 0, %s171
    %s188 = sphi 0, %s172
  $region4: #{cnnrnn_forward.8} parent=0 // loop_header_branch
    %15 = sbr.rel (%p13) target = $region8
  $region5: #{cnnrnn_forward.8} parent=0 // loop_body
    %s17 = ssub.s32 %s12, 1
    %s18 = ssub.s32 %s12, 2
    %s19 = sadd.s32 %s12, 1
    %s20 = ssub.s32 %s12, %s19
    %p21 = scmp.eq.s32.totalorder %s20, 0
    %s23 = sadd.s32 %s22, 1
    %s24 = scalar_select %p21, %s22, %s23
    %p27 = pneg %p21
    %p28 = scmp.eq.s32.totalorder %s12, 3
    %p29 = por %p27, %p28
    %p30 = scmp.ne.s32.totalorder %s22, %s25
    %p31 = scmp.eq.s32.totalorder %s12, 0
    %p32 = por %p30, %p31
    %p33 = scmp.ne.s32.totalorder %s22, %s25
    %p34 = scmp.eq.s32.totalorder %s17, 3
    %p35 = por %p33, %p34
    %p36 = scmp.ne.s32.totalorder %s25, %s26
    %p37 = scmp.eq.s32.totalorder %s17, 0
    %p38 = por %p36, %p37
    %p39 = scmp.ne.s32.totalorder %s25, %s26
    %p40 = scmp.eq.s32.totalorder %s18, 3
    %p41 = por %p39, %p40
    %p43 = scmp.ne.s32.totalorder %s26, %s42
    %p44 = scmp.eq.s32.totalorder %s18, 0
    %p45 = por %p43, %p44
    %s46 = ssub.s32 %s12, %s19
    %p47 = scmp.eq.s32.totalorder %s46, 0
    %s49 = sadd.s32 %s48, 1
    %s50 = scalar_select %p47, %s48, %s49
    %p53 = pneg %p47
    %p54 = scmp.eq.s32.totalorder %s12, 3
    %p55 = por %p53, %p54
    %p56 = scmp.ne.s32.totalorder %s48, %s51
    %p57 = scmp.eq.s32.totalorder %s12, 0
    %p58 = por %p56, %p57
    %p59 = scmp.ne.s32.totalorder %s48, %s51
    %p60 = scmp.eq.s32.totalorder %s17, 3
    %p61 = por %p59, %p60
    %p62 = scmp.ne.s32.totalorder %s51, %s52
    %p63 = scmp.eq.s32.totalorder %s17, 0
    %p64 = por %p62, %p63
    %p65 = scmp.ne.s32.totalorder %s51, %s52
    %p66 = scmp.eq.s32.totalorder %s18, 3
    %p67 = por %p65, %p66
    %p69 = scmp.ne.s32.totalorder %s52, %s68
    %p70 = scmp.eq.s32.totalorder %s18, 0
    %p71 = por %p69, %p70
    %s72 = ssub.s32 %s12, %s19
    %p73 = scmp.eq.s32.totalorder %s72, 0
    %s75 = sadd.s32 %s74, 1
    %s76 = scalar_select %p73, %s74, %s75
    %p79 = pneg %p73
    %p80 = scmp.eq.s32.totalorder %s12, 3
    %p81 = por %p79, %p80
    %p82 = scmp.ne.s32.totalorder %s74, %s77
    %p83 = scmp.eq.s32.totalorder %s12, 0
    %p84 = por %p82, %p83
    %p85 = scmp.ne.s32.totalorder %s74, %s77
    %p86 = scmp.eq.s32.totalorder %s17, 3
    %p87 = por %p85, %p86
    %p88 = scmp.ne.s32.totalorder %s77, %s78
    %p89 = scmp.eq.s32.totalorder %s17, 0
    %p90 = por %p88, %p89
    %p91 = scmp.ne.s32.totalorder %s77, %s78
    %p92 = scmp.eq.s32.totalorder %s18, 3
    %p93 = por %p91, %p92
    %p95 = scmp.ne.s32.totalorder %s78, %s94
    %p96 = scmp.eq.s32.totalorder %s18, 0
    %p97 = por %p95, %p96
    %s98 = ssub.s32 %s12, %s19
    %p99 = scmp.eq.s32.totalorder %s98, 0
    %s101 = sadd.s32 %s100, 1
    %s102 = scalar_select %p99, %s100, %s101
    %p105 = pneg %p99
    %p106 = scmp.eq.s32.totalorder %s12, 3
    %p107 = por %p105, %p106
    %p108 = scmp.ne.s32.totalorder %s100, %s103
    %p109 = scmp.eq.s32.totalorder %s12, 0
    %p110 = por %p108, %p109
    %p111 = scmp.ne.s32.totalorder %s100, %s103
    %p112 = scmp.eq.s32.totalorder %s17, 3
    %p113 = por %p111, %p112
    %p114 = scmp.ne.s32.totalorder %s103, %s104
    %p115 = scmp.eq.s32.totalorder %s17, 0
    %p116 = por %p114, %p115
    %p117 = scmp.ne.s32.totalorder %s103, %s104
    %p118 = scmp.eq.s32.totalorder %s18, 3
    %p119 = por %p117, %p118
    %p121 = scmp.ne.s32.totalorder %s104, %s120
    %p122 = scmp.eq.s32.totalorder %s18, 0
    %p123 = por %p121, %p122
    %s125 = sadd.s32 %s124, 1
    %p128 = scmp.eq.s32.totalorder %s12, 3
    %p129 = scmp.ne.s32.totalorder %s124, %s126
    %p130 = scmp.eq.s32.totalorder %s12, 0
    %p131 = por %p129, %p130
    %p132 = scmp.ne.s32.totalorder %s124, %s126
    %p133 = scmp.eq.s32.totalorder %s17, 3
    %p134 = por %p132, %p133
    %p135 = scmp.ne.s32.totalorder %s126, %s127
    %p136 = scmp.eq.s32.totalorder %s17, 0
    %p137 = por %p135, %p136
    %p138 = scmp.ne.s32.totalorder %s126, %s127
    %p139 = scmp.eq.s32.totalorder %s18, 3
    %p140 = por %p138, %p139
    %p142 = scmp.ne.s32.totalorder %s127, %s141
    %p143 = scmp.eq.s32.totalorder %s18, 0
    %p144 = por %p142, %p143
    %s146 = sadd.s32 %s145, 1
    %p149 = scmp.eq.s32.totalorder %s12, 3
    %p150 = scmp.ne.s32.totalorder %s145, %s147
    %p151 = scmp.eq.s32.totalorder %s12, 0
    %p152 = por %p150, %p151
    %p153 = scmp.ne.s32.totalorder %s145, %s147
    %p154 = scmp.eq.s32.totalorder %s17, 3
    %p155 = por %p153, %p154
    %p156 = scmp.ne.s32.totalorder %s147, %s148
    %p157 = scmp.eq.s32.totalorder %s17, 0
    %p158 = por %p156, %p157
    %p159 = scmp.ne.s32.totalorder %s147, %s148
    %p160 = scmp.eq.s32.totalorder %s18, 3
    %p161 = por %p159, %p160
    %p163 = scmp.ne.s32.totalorder %s148, %s162
    %p164 = scmp.eq.s32.totalorder %s18, 0
    %p165 = por %p163, %p164
    %s166 = ssub.s32 %s12, %s19
    %p167 = scmp.eq.s32.totalorder %s166, 0
    %s169 = sadd.s32 %s168, 1
    %s170 = scalar_select %p167, %s168, %s169
    %p173 = pneg %p167
    %p174 = scmp.eq.s32.totalorder %s12, 3
    %p175 = por %p173, %p174
    %p176 = scmp.ne.s32.totalorder %s168, %s171
    %p177 = scmp.eq.s32.totalorder %s12, 0
    %p178 = por %p176, %p177
    %p179 = scmp.ne.s32.totalorder %s168, %s171
    %p180 = scmp.eq.s32.totalorder %s17, 3
    %p181 = por %p179, %p180
    %p182 = scmp.ne.s32.totalorder %s171, %s172
    %p183 = scmp.eq.s32.totalorder %s17, 0
    %p184 = por %p182, %p183
    %p185 = scmp.ne.s32.totalorder %s171, %s172
    %p186 = scmp.eq.s32.totalorder %s18, 3
    %p187 = por %p185, %p186
    %p189 = scmp.ne.s32.totalorder %s172, %s188
    %p190 = scmp.eq.s32.totalorder %s18, 0
    %p191 = por %p189, %p190
    %p192 = scmp.le.s32.totalorder 1, %s12
    %p193 = scmp.lt.s32.totalorder %s12, 5
    %p194 = pnand %p192, %p193
    %p195 = pneg %p194
    // Predicated region
    $region9: #{cnnrnn_forward.8} parent=5 // pred_check
      _
    $region10: #{cnnrnn_forward.8} parent=5 // pred_check_branch
      %197 = sbr.rel (%p194) target = $region12
    $region11: #{cnnrnn_forward.8} parent=5 // pred_region
      %s198 = ssub.s32 %s12, 1
      // Predicated region
      $region13: #{cnnrnn_forward.8} parent=11 // pred_check
        %p199 = pneg %p137
      $region14: #{cnnrnn_forward.8} parent=11 // pred_check_branch
        %201 = sbr.rel (%p199) target = $region16
      $region15: #{cnnrnn_forward.8} parent=11 // pred_region
        _
      $region16: #{cnnrnn_forward.8} parent=11 // pred_fallthru
        _
      // Predicated region
      $region17: #{cnnrnn_forward.8} parent=11 // pred_check
        %p202 = pneg %p158
      $region18: #{cnnrnn_forward.8} parent=11 // pred_check_branch
        %204 = sbr.rel (%p202) target = $region20
      $region19: #{cnnrnn_forward.8} parent=11 // pred_region
        _
      $region20: #{cnnrnn_forward.8} parent=11 // pred_fallthru
        _
    $region12: #{cnnrnn_forward.8} parent=5 // pred_fallthru
      _
    %p205 = scmp.lt.s32.totalorder %s12, 4
    // Predicated region
    $region21: #{cnnrnn_forward.8} parent=5 // pred_check
      %p206 = pneg %p205
    $region22: #{cnnrnn_forward.8} parent=5 // pred_check_branch
      %208 = sbr.rel (%p206) target = $region24
    $region23: #{cnnrnn_forward.8} parent=5 // pred_region
      // Predicated region
      $region25: #{cnnrnn_forward.8} parent=23 // pred_check
        %p209 = pneg %p32
      $region26: #{cnnrnn_forward.8} parent=23 // pred_check_branch
        %211 = sbr.rel (%p209) target = $region28
      $region27: #{cnnrnn_forward.8} parent=23 // pred_region
        %p212 = scmp.lt.s32.totalorder %s12, 3
        %s213 = scalar_select %p212, %s12, 3
        %s214 = smul.addr %s213, 3
        %s215 = smul.addr %s214, 4
        %s216 = scalar_lea.vmem %s0, %s215
      $region28: #{cnnrnn_forward.8} parent=23 // pred_fallthru
        _
      // Predicated region
      $region29: #{cnnrnn_forward.8} parent=23 // pred_check
        %p217 = pneg %p58
      $region30: #{cnnrnn_forward.8} parent=23 // pred_check_branch
        %219 = sbr.rel (%p217) target = $region32
      $region31: #{cnnrnn_forward.8} parent=23 // pred_region
        %p220 = scmp.lt.s32.totalorder %s12, 3
        %s221 = scalar_select %p220, %s12, 3
        %s222 = smul.addr %s221, 3
        %s223 = smul.addr %s222, 4
        %s224 = scalar_lea.vmem %s1, %s223
      $region32: #{cnnrnn_forward.8} parent=23 // pred_fallthru
        _
      // Predicated region
      $region33: #{cnnrnn_forward.8} parent=23 // pred_check
        %p225 = pneg %p84
      $region34: #{cnnrnn_forward.8} parent=23 // pred_check_branch
        %227 = sbr.rel (%p225) target = $region36
      $region35: #{cnnrnn_forward.8} parent=23 // pred_region
        %p228 = scmp.lt.s32.totalorder %s12, 3
        %s229 = scalar_select %p228, %s12, 3
        %s230 = smul.addr %s229, 3
        %s231 = smul.addr %s230, 4
        %s232 = scalar_lea.vmem %s2, %s231
      $region36: #{cnnrnn_forward.8} parent=23 // pred_fallthru
        _
      // Predicated region
      $region37: #{cnnrnn_forward.8} parent=23 // pred_check
        %p233 = pneg %p110
      $region38: #{cnnrnn_forward.8} parent=23 // pred_check_branch
        %235 = sbr.rel (%p233) target = $region40
      $region39: #{cnnrnn_forward.8} parent=23 // pred_region
        %p236 = scmp.lt.s32.totalorder %s12, 3
        %s237 = scalar_select %p236, %s12, 3
        %s238 = smul.addr %s237, 3
        %s239 = smul.addr %s238, 4
        %s240 = scalar_lea.vmem %s3, %s239
      $region40: #{cnnrnn_forward.8} parent=23 // pred_fallthru
        _
    $region24: #{cnnrnn_forward.8} parent=5 // pred_fallthru
      _
    %p241 = scmp.le.s32.totalorder 1, %s12
    %p242 = scmp.lt.s32.totalorder %s12, 5
    %p243 = pnand %p241, %p242
    %p244 = pneg %p243
    // Predicated region
    $region41: #{cnnrnn_forward.8} parent=5 // pred_check
      _
    $region42: #{cnnrnn_forward.8} parent=5 // pred_check_branch
      %246 = sbr.rel (%p243) target = $region44
    $region43: #{cnnrnn_forward.8} parent=5 // pred_region
      %s247 = ssub.s32 %s12, 1
      %p248 = scmp.lt.s32.totalorder %s17, 3
      %s249 = scalar_select %p248, %s17, 3
      %s250 = smul.addr %s249, 3
      %s251 = smul.addr %s250, 4
      %s252 = scalar_lea.vmem %s0, %s251
      %p253 = pneg %p38
      %p254 = pneg %p35
      %p255 = scmp.lt.s32.totalorder %s17, 3
      %s256 = scalar_select %p255, %s17, 3
      %s257 = smul.addr %s256, 3
      %s258 = smul.addr %s257, 4
      %s259 = scalar_lea.vmem %s1, %s258
      %p260 = pneg %p64
      %p261 = pneg %p61
      %p262 = scmp.lt.s32.totalorder %s17, 3
      %s263 = scalar_select %p262, %s17, 3
      %s264 = smul.addr %s263, 3
      %s265 = smul.addr %s264, 4
      %s266 = scalar_lea.vmem %s2, %s265
      %p267 = pneg %p90
      %p268 = pneg %p87
      %p269 = scmp.lt.s32.totalorder %s17, 3
      %s270 = scalar_select %p269, %s17, 3
      %s271 = smul.addr %s270, 3
      %s272 = smul.addr %s271, 4
      %s273 = scalar_lea.vmem %s3, %s272
      %p274 = pneg %p116
      %p275 = pneg %p113
      %p276 = pneg %p137
      %p277 = pneg %p134
      %p278 = pneg %p158
      %p279 = pneg %p155
      %p280 = pneg %p184
      %p281 = pneg %p181
      %p282 = scmp.lt.s32.totalorder %s17, 3
      %s283 = scalar_select %p282, %s17, 3
      %s284 = smul.addr %s283, 2
      %s285 = smul.addr %s284, 2
      %s286 = scalar_lea.vmem %s6, %s285
      %p287 = scmp.lt.s32.totalorder %s17, 3
      %s288 = scalar_select %p287, %s17, 3
      %s289 = smul.addr %s288, 3
      %s290 = smul.addr %s289, 4
      %s291 = scalar_lea.vmem %s0, %s290
      %p292 = scmp.lt.s32.totalorder %s17, 3
      %s293 = scalar_select %p292, %s17, 3
      %s294 = smul.addr %s293, 3
      %s295 = smul.addr %s294, 4
      %s296 = scalar_lea.vmem %s1, %s295
      %p297 = scmp.lt.s32.totalorder %s17, 3
      %s298 = scalar_select %p297, %s17, 3
      %s299 = smul.addr %s298, 3
      %s300 = smul.addr %s299, 4
      %s301 = scalar_lea.vmem %s2, %s300
      %p302 = scmp.lt.s32.totalorder %s17, 3
      %s303 = scalar_select %p302, %s17, 3
      %s304 = smul.addr %s303, 3
      %s305 = smul.addr %s304, 4
      %s306 = scalar_lea.vmem %s3, %s305
      %p307 = scmp.lt.s32.totalorder %s17, 3
      %s308 = scalar_select %p307, %s17, 3
      %s309 = smul.addr %s308, 2
      %s310 = smul.addr %s309, 2
      %s311 = scalar_lea.vmem %s6, %s310
      %v313 = vld [vmem:[%s291] sm:$0x3]
      %v314 = vld [vmem:[%s291 + $0x4] sm:$0x3]
      %v315 = vpack.c.bf16 %v313, %v313
      %v316 = vpack.c.bf16 %v314, %v314
      %v317 = vld [vmem:[%s4] sm:$0xff]
      %v318 = vld [vmem:[%s4 + $0x8] sm:$0xff]
      %v319 = vld [vmem:[%s4 + $0x10] sm:$0xff]
      %v320 = vld [vmem:[%s4 + $0x18] sm:$0xff]
      %v321 = vpack.c.bf16 %v318, %v317
      %v322 = vpack.c.bf16 %v320, %v319
      %v323 = vld [vmem:[%s296] sm:$0x3]
      %v324 = vld [vmem:[%s296 + $0x4] sm:$0x3]
      %v325 = vpack.c.bf16 %v323, %v323
      %v326 = vpack.c.bf16 %v324, %v324
      %s327 = scalar_lea.vmem %s4, 32
      %v328 = vld [vmem:[%s327] sm:$0xff]
      %v329 = vld [vmem:[%s327 + $0x8] sm:$0xff]
      %v330 = vld [vmem:[%s327 + $0x10] sm:$0xff]
      %v331 = vld [vmem:[%s327 + $0x18] sm:$0xff]
      %v332 = vpack.c.bf16 %v329, %v328
      %v333 = vpack.c.bf16 %v331, %v330
      %vm334 = vcmask 261120
      %v336 = vsel %vm334, %v325, 0
      %338 = vmatprep.subr.bf16.mxu0 0
      %339 = vmatpush1.bf16.msra.mxu0 0
      %340 = vmatprep.subr.bf16.mxu0 0
      %341 = vmatpush1.bf16.msra.mxu0 0
      %342 = vmatprep.subr.bf16.mxu0 0
      %343 = vmatpush1.bf16.msra.mxu0 0
      %344 = vmatprep.subr.bf16.mxu0 0
      %345 = vmatpush1.bf16.msra.mxu0 0
      %346 = vmatprep.subr.bf16.mxu0 0
      %347 = vmatpush1.bf16.msra.mxu0 0
      %348 = vmatprep.subr.bf16.mxu0 0
      %349 = vmatpush1.bf16.msra.mxu0 0
      %350 = vmatprep.subr.bf16.mxu0 0
      %351 = vmatpush1.bf16.msra.mxu0 %v333
      %352 = vmatprep.subr.bf16.mxu0 0
      %353 = vmatpush1.bf16.msra.mxu0 %v332
      %354 = vmatprep.subr.bf16.mxu0 0
      %355 = vmatpush2.bf16.msra.mxu0 0
      %356 = vmatprep.subr.bf16.mxu0 0
      %357 = vmatpush2.bf16.msra.mxu0 0
      %358 = vmatprep.subr.bf16.mxu0 0
      %359 = vmatpush2.bf16.msra.mxu0 0
      %360 = vmatprep.subr.bf16.mxu0 0
      %361 = vmatpush2.bf16.msra.mxu0 0
      %362 = vmatprep.subr.bf16.mxu0 0
      %363 = vmatpush2.bf16.msra.mxu0 0
      %364 = vmatprep.subr.bf16.mxu0 0
      %365 = vmatpush2.bf16.msra.mxu0 0
      %366 = vmatprep.subr.bf16.mxu0 0
      %367 = vmatpush2.bf16.msra.mxu0 0
      %368 = vmatprep.subr.bf16.mxu0 0
      %369 = vmatpush2.bf16.msra.mxu0 0
      %370 = vmatprep.mubr.bf16.mxu0 0
      %371 = vmatmul.mubr.bf16.gmra.mxu0 %v336
      %v372 = vpop.f32.mrf.mxu0
      %v373 = vadd.f32 0.0, %v372
      %v374 = vpop.f32.mrf.mxu0
      %v375 = vpop.f32.mrf.mxu0
      %v376 = vpop.f32.mrf.mxu0
      %377 = vdwg.mxu0
      %v379 = vsel %vm334, %v326, 0
      %381 = vmatprep.subr.bf16.mxu0 0
      %382 = vmatpush1.bf16.msra.mxu0 0
      %383 = vmatprep.subr.bf16.mxu0 0
      %384 = vmatpush1.bf16.msra.mxu0 0
      %385 = vmatprep.subr.bf16.mxu0 0
      %386 = vmatpush1.bf16.msra.mxu0 0
      %387 = vmatprep.subr.bf16.mxu0 0
      %388 = vmatpush1.bf16.msra.mxu0 0
      %389 = vmatprep.subr.bf16.mxu0 0
      %390 = vmatpush1.bf16.msra.mxu0 0
      %391 = vmatprep.subr.bf16.mxu0 0
      %392 = vmatpush1.bf16.msra.mxu0 0
      %393 = vmatprep.subr.bf16.mxu0 0
      %394 = vmatpush1.bf16.msra.mxu0 %v333
      %395 = vmatprep.subr.bf16.mxu0 0
      %396 = vmatpush1.bf16.msra.mxu0 %v332
      %397 = vmatprep.subr.bf16.mxu0 0
      %398 = vmatpush2.bf16.msra.mxu0 0
      %399 = vmatprep.subr.bf16.mxu0 0
      %400 = vmatpush2.bf16.msra.mxu0 0
      %401 = vmatprep.subr.bf16.mxu0 0
      %402 = vmatpush2.bf16.msra.mxu0 0
      %403 = vmatprep.subr.bf16.mxu0 0
      %404 = vmatpush2.bf16.msra.mxu0 0
      %405 = vmatprep.subr.bf16.mxu0 0
      %406 = vmatpush2.bf16.msra.mxu0 0
      %407 = vmatprep.subr.bf16.mxu0 0
      %408 = vmatpush2.bf16.msra.mxu0 0
      %409 = vmatprep.subr.bf16.mxu0 0
      %410 = vmatpush2.bf16.msra.mxu0 0
      %411 = vmatprep.subr.bf16.mxu0 0
      %412 = vmatpush2.bf16.msra.mxu0 0
      %413 = vmatprep.mubr.bf16.mxu0 0
      %414 = vmatmul.mubr.bf16.gmra.mxu0 %v379
      %v415 = vpop.f32.mrf.mxu0
      %v416 = vadd.f32 0.0, %v415
      %v417 = vpop.f32.mrf.mxu0
      %v418 = vpop.f32.mrf.mxu0
      %v419 = vpop.f32.mrf.mxu0
      %420 = vdwg.mxu0
      %v422 = vsel %vm334, %v315, 0
      %424 = vmatprep.subr.bf16.mxu0 0
      %425 = vmatpush1.bf16.msra.mxu0 0
      %426 = vmatprep.subr.bf16.mxu0 0
      %427 = vmatpush1.bf16.msra.mxu0 0
      %428 = vmatprep.subr.bf16.mxu0 0
      %429 = vmatpush1.bf16.msra.mxu0 0
      %430 = vmatprep.subr.bf16.mxu0 0
      %431 = vmatpush1.bf16.msra.mxu0 0
      %432 = vmatprep.subr.bf16.mxu0 0
      %433 = vmatpush1.bf16.msra.mxu0 0
      %434 = vmatprep.subr.bf16.mxu0 0
      %435 = vmatpush1.bf16.msra.mxu0 0
      %436 = vmatprep.subr.bf16.mxu0 0
      %437 = vmatpush1.bf16.msra.mxu0 %v322
      %438 = vmatprep.subr.bf16.mxu0 0
      %439 = vmatpush1.bf16.msra.mxu0 %v321
      %440 = vmatprep.subr.bf16.mxu0 0
      %441 = vmatpush2.bf16.msra.mxu0 0
      %442 = vmatprep.subr.bf16.mxu0 0
      %443 = vmatpush2.bf16.msra.mxu0 0
      %444 = vmatprep.subr.bf16.mxu0 0
      %445 = vmatpush2.bf16.msra.mxu0 0
      %446 = vmatprep.subr.bf16.mxu0 0
      %447 = vmatpush2.bf16.msra.mxu0 0
      %448 = vmatprep.subr.bf16.mxu0 0
      %449 = vmatpush2.bf16.msra.mxu0 0
      %450 = vmatprep.subr.bf16.mxu0 0
      %451 = vmatpush2.bf16.msra.mxu0 0
      %452 = vmatprep.subr.bf16.mxu0 0
      %453 = vmatpush2.bf16.msra.mxu0 0
      %454 = vmatprep.subr.bf16.mxu0 0
      %455 = vmatpush2.bf16.msra.mxu0 0
      %456 = vmatprep.mubr.bf16.mxu0 0
      %457 = vmatmul.mubr.bf16.gmra.mxu0 %v422
      %v458 = vpop.f32.mrf.mxu0
      %v459 = vadd.f32 %v373, %v458
      %v460 = vpop.f32.mrf.mxu0
      %v461 = vpop.f32.mrf.mxu0
      %v462 = vpop.f32.mrf.mxu0
      %463 = vdwg.mxu0
      %v465 = vsel %vm334, %v316, 0
      %467 = vmatprep.subr.bf16.mxu0 0
      %468 = vmatpush1.bf16.msra.mxu0 0
      %469 = vmatprep.subr.bf16.mxu0 0
      %470 = vmatpush1.bf16.msra.mxu0 0
      %471 = vmatprep.subr.bf16.mxu0 0
      %472 = vmatpush1.bf16.msra.mxu0 0
      %473 = vmatprep.subr.bf16.mxu0 0
      %474 = vmatpush1.bf16.msra.mxu0 0
      %475 = vmatprep.subr.bf16.mxu0 0
      %476 = vmatpush1.bf16.msra.mxu0 0
      %477 = vmatprep.subr.bf16.mxu0 0
      %478 = vmatpush1.bf16.msra.mxu0 0
      %479 = vmatprep.subr.bf16.mxu0 0
      %480 = vmatpush1.bf16.msra.mxu0 %v322
      %481 = vmatprep.subr.bf16.mxu0 0
      %482 = vmatpush1.bf16.msra.mxu0 %v321
      %483 = vmatprep.subr.bf16.mxu0 0
      %484 = vmatpush2.bf16.msra.mxu0 0
      %485 = vmatprep.subr.bf16.mxu0 0
      %486 = vmatpush2.bf16.msra.mxu0 0
      %487 = vmatprep.subr.bf16.mxu0 0
      %488 = vmatpush2.bf16.msra.mxu0 0
      %489 = vmatprep.subr.bf16.mxu0 0
      %490 = vmatpush2.bf16.msra.mxu0 0
      %491 = vmatprep.subr.bf16.mxu0 0
      %492 = vmatpush2.bf16.msra.mxu0 0
      %493 = vmatprep.subr.bf16.mxu0 0
      %494 = vmatpush2.bf16.msra.mxu0 0
      %495 = vmatprep.subr.bf16.mxu0 0
      %496 = vmatpush2.bf16.msra.mxu0 0
      %497 = vmatprep.subr.bf16.mxu0 0
      %498 = vmatpush2.bf16.msra.mxu0 0
      %499 = vmatprep.mubr.bf16.mxu0 0
      %500 = vmatmul.mubr.bf16.gmra.mxu0 %v465
      %v501 = vpop.f32.mrf.mxu0
      %v502 = vadd.f32 %v416, %v501
      %v503 = vpop.f32.mrf.mxu0
      %v504 = vpop.f32.mrf.mxu0
      %v505 = vpop.f32.mrf.mxu0
      %506 = vdwg.mxu0
      %v507 = vld [vmem:[%s291 + $0x1] sm:$0x3]
      %v508 = vld [vmem:[%s291 + $0x5] sm:$0x3]
      %v509 = vpack.c.bf16 %v507, %v507
      %v510 = vpack.c.bf16 %v508, %v508
      %s511 = scalar_lea.vmem %s4, 64
      %v512 = vld [vmem:[%s511] sm:$0xff]
      %v513 = vld [vmem:[%s511 + $0x8] sm:$0xff]
      %v514 = vld [vmem:[%s511 + $0x10] sm:$0xff]
      %v515 = vld [vmem:[%s511 + $0x18] sm:$0xff]
      %v516 = vpack.c.bf16 %v513, %v512
      %v517 = vpack.c.bf16 %v515, %v514
      %v519 = vsel %vm334, %v509, 0
      %521 = vmatprep.subr.bf16.mxu0 0
      %522 = vmatpush1.bf16.msra.mxu0 0
      %523 = vmatprep.subr.bf16.mxu0 0
      %524 = vmatpush1.bf16.msra.mxu0 0
      %525 = vmatprep.subr.bf16.mxu0 0
      %526 = vmatpush1.bf16.msra.mxu0 0
      %527 = vmatprep.subr.bf16.mxu0 0
      %528 = vmatpush1.bf16.msra.mxu0 0
      %529 = vmatprep.subr.bf16.mxu0 0
      %530 = vmatpush1.bf16.msra.mxu0 0
      %531 = vmatprep.subr.bf16.mxu0 0
      %532 = vmatpush1.bf16.msra.mxu0 0
      %533 = vmatprep.subr.bf16.mxu0 0
      %534 = vmatpush1.bf16.msra.mxu0 %v517
      %535 = vmatprep.subr.bf16.mxu0 0
      %536 = vmatpush1.bf16.msra.mxu0 %v516
      %537 = vmatprep.subr.bf16.mxu0 0
      %538 = vmatpush2.bf16.msra.mxu0 0
      %539 = vmatprep.subr.bf16.mxu0 0
      %540 = vmatpush2.bf16.msra.mxu0 0
      %541 = vmatprep.subr.bf16.mxu0 0
      %542 = vmatpush2.bf16.msra.mxu0 0
      %543 = vmatprep.subr.bf16.mxu0 0
      %544 = vmatpush2.bf16.msra.mxu0 0
      %545 = vmatprep.subr.bf16.mxu0 0
      %546 = vmatpush2.bf16.msra.mxu0 0
      %547 = vmatprep.subr.bf16.mxu0 0
      %548 = vmatpush2.bf16.msra.mxu0 0
      %549 = vmatprep.subr.bf16.mxu0 0
      %550 = vmatpush2.bf16.msra.mxu0 0
      %551 = vmatprep.subr.bf16.mxu0 0
      %552 = vmatpush2.bf16.msra.mxu0 0
      %553 = vmatprep.mubr.bf16.mxu0 0
      %554 = vmatmul.mubr.bf16.gmra.mxu0 %v519
      %v555 = vpop.f32.mrf.mxu0
      %v556 = vadd.f32 0.0, %v555
      %v557 = vpop.f32.mrf.mxu0
      %v558 = vpop.f32.mrf.mxu0
      %v559 = vpop.f32.mrf.mxu0
      %560 = vdwg.mxu0
      %v562 = vsel %vm334, %v510, 0
      %564 = vmatprep.subr.bf16.mxu0 0
      %565 = vmatpush1.bf16.msra.mxu0 0
      %566 = vmatprep.subr.bf16.mxu0 0
      %567 = vmatpush1.bf16.msra.mxu0 0
      %568 = vmatprep.subr.bf16.mxu0 0
      %569 = vmatpush1.bf16.msra.mxu0 0
      %570 = vmatprep.subr.bf16.mxu0 0
      %571 = vmatpush1.bf16.msra.mxu0 0
      %572 = vmatprep.subr.bf16.mxu0 0
      %573 = vmatpush1.bf16.msra.mxu0 0
      %574 = vmatprep.subr.bf16.mxu0 0
      %575 = vmatpush1.bf16.msra.mxu0 0
      %576 = vmatprep.subr.bf16.mxu0 0
      %577 = vmatpush1.bf16.msra.mxu0 %v517
      %578 = vmatprep.subr.bf16.mxu0 0
      %579 = vmatpush1.bf16.msra.mxu0 %v516
      %580 = vmatprep.subr.bf16.mxu0 0
      %581 = vmatpush2.bf16.msra.mxu0 0
      %582 = vmatprep.subr.bf16.mxu0 0
      %583 = vmatpush2.bf16.msra.mxu0 0
      %584 = vmatprep.subr.bf16.mxu0 0
      %585 = vmatpush2.bf16.msra.mxu0 0
      %586 = vmatprep.subr.bf16.mxu0 0
      %587 = vmatpush2.bf16.msra.mxu0 0
      %588 = vmatprep.subr.bf16.mxu0 0
      %589 = vmatpush2.bf16.msra.mxu0 0
      %590 = vmatprep.subr.bf16.mxu0 0
      %591 = vmatpush2.bf16.msra.mxu0 0
      %592 = vmatprep.subr.bf16.mxu0 0
      %593 = vmatpush2.bf16.msra.mxu0 0
      %594 = vmatprep.subr.bf16.mxu0 0
      %595 = vmatpush2.bf16.msra.mxu0 0
      %596 = vmatprep.mubr.bf16.mxu0 0
      %597 = vmatmul.mubr.bf16.gmra.mxu0 %v562
      %v598 = vpop.f32.mrf.mxu0
      %v599 = vadd.f32 0.0, %v598
      %v600 = vpop.f32.mrf.mxu0
      %v601 = vpop.f32.mrf.mxu0
      %v602 = vpop.f32.mrf.mxu0
      %603 = vdwg.mxu0
      %v604 = vadd.f32 %v459, %v556
      %v605 = vadd.f32 %v502, %v599
      %v606 = vld [vmem:[%s301] sm:$0x3]
      %v607 = vld [vmem:[%s301 + $0x4] sm:$0x3]
      %v608 = vpack.c.bf16 %v606, %v606
      %v609 = vpack.c.bf16 %v607, %v607
      %s610 = scalar_lea.vmem %s4, 96
      %v611 = vld [vmem:[%s610] sm:$0xff]
      %v612 = vld [vmem:[%s610 + $0x8] sm:$0xff]
      %v613 = vld [vmem:[%s610 + $0x10] sm:$0xff]
      %v614 = vld [vmem:[%s610 + $0x18] sm:$0xff]
      %v615 = vpack.c.bf16 %v612, %v611
      %v616 = vpack.c.bf16 %v614, %v613
      %v618 = vsel %vm334, %v608, 0
      %620 = vmatprep.subr.bf16.mxu0 0
      %621 = vmatpush1.bf16.msra.mxu0 0
      %622 = vmatprep.subr.bf16.mxu0 0
      %623 = vmatpush1.bf16.msra.mxu0 0
      %624 = vmatprep.subr.bf16.mxu0 0
      %625 = vmatpush1.bf16.msra.mxu0 0
      %626 = vmatprep.subr.bf16.mxu0 0
      %627 = vmatpush1.bf16.msra.mxu0 0
      %628 = vmatprep.subr.bf16.mxu0 0
      %629 = vmatpush1.bf16.msra.mxu0 0
      %630 = vmatprep.subr.bf16.mxu0 0
      %631 = vmatpush1.bf16.msra.mxu0 0
      %632 = vmatprep.subr.bf16.mxu0 0
      %633 = vmatpush1.bf16.msra.mxu0 %v616
      %634 = vmatprep.subr.bf16.mxu0 0
      %635 = vmatpush1.bf16.msra.mxu0 %v615
      %636 = vmatprep.subr.bf16.mxu0 0
      %637 = vmatpush2.bf16.msra.mxu0 0
      %638 = vmatprep.subr.bf16.mxu0 0
      %639 = vmatpush2.bf16.msra.mxu0 0
      %640 = vmatprep.subr.bf16.mxu0 0
      %641 = vmatpush2.bf16.msra.mxu0 0
      %642 = vmatprep.subr.bf16.mxu0 0
      %643 = vmatpush2.bf16.msra.mxu0 0
      %644 = vmatprep.subr.bf16.mxu0 0
      %645 = vmatpush2.bf16.msra.mxu0 0
      %646 = vmatprep.subr.bf16.mxu0 0
      %647 = vmatpush2.bf16.msra.mxu0 0
      %648 = vmatprep.subr.bf16.mxu0 0
      %649 = vmatpush2.bf16.msra.mxu0 0
      %650 = vmatprep.subr.bf16.mxu0 0
      %651 = vmatpush2.bf16.msra.mxu0 0
      %652 = vmatprep.mubr.bf16.mxu0 0
      %653 = vmatmul.mubr.bf16.gmra.mxu0 %v618
      %v654 = vpop.f32.mrf.mxu0
      %v655 = vadd.f32 0.0, %v654
      %v656 = vpop.f32.mrf.mxu0
      %v657 = vpop.f32.mrf.mxu0
      %v658 = vpop.f32.mrf.mxu0
      %659 = vdwg.mxu0
      %v661 = vsel %vm334, %v609, 0
      %663 = vmatprep.subr.bf16.mxu0 0
      %664 = vmatpush1.bf16.msra.mxu0 0
      %665 = vmatprep.subr.bf16.mxu0 0
      %666 = vmatpush1.bf16.msra.mxu0 0
      %667 = vmatprep.subr.bf16.mxu0 0
      %668 = vmatpush1.bf16.msra.mxu0 0
      %669 = vmatprep.subr.bf16.mxu0 0
      %670 = vmatpush1.bf16.msra.mxu0 0
      %671 = vmatprep.subr.bf16.mxu0 0
      %672 = vmatpush1.bf16.msra.mxu0 0
      %673 = vmatprep.subr.bf16.mxu0 0
      %674 = vmatpush1.bf16.msra.mxu0 0
      %675 = vmatprep.subr.bf16.mxu0 0
      %676 = vmatpush1.bf16.msra.mxu0 %v616
      %677 = vmatprep.subr.bf16.mxu0 0
      %678 = vmatpush1.bf16.msra.mxu0 %v615
      %679 = vmatprep.subr.bf16.mxu0 0
      %680 = vmatpush2.bf16.msra.mxu0 0
      %681 = vmatprep.subr.bf16.mxu0 0
      %682 = vmatpush2.bf16.msra.mxu0 0
      %683 = vmatprep.subr.bf16.mxu0 0
      %684 = vmatpush2.bf16.msra.mxu0 0
      %685 = vmatprep.subr.bf16.mxu0 0
      %686 = vmatpush2.bf16.msra.mxu0 0
      %687 = vmatprep.subr.bf16.mxu0 0
      %688 = vmatpush2.bf16.msra.mxu0 0
      %689 = vmatprep.subr.bf16.mxu0 0
      %690 = vmatpush2.bf16.msra.mxu0 0
      %691 = vmatprep.subr.bf16.mxu0 0
      %692 = vmatpush2.bf16.msra.mxu0 0
      %693 = vmatprep.subr.bf16.mxu0 0
      %694 = vmatpush2.bf16.msra.mxu0 0
      %695 = vmatprep.mubr.bf16.mxu0 0
      %696 = vmatmul.mubr.bf16.gmra.mxu0 %v661
      %v697 = vpop.f32.mrf.mxu0
      %v698 = vadd.f32 0.0, %v697
      %v699 = vpop.f32.mrf.mxu0
      %v700 = vpop.f32.mrf.mxu0
      %v701 = vpop.f32.mrf.mxu0
      %702 = vdwg.mxu0
      %v703 = vadd.f32 %v604, %v655
      %v704 = vadd.f32 %v605, %v698
      %v705 = vld [vmem:[%s306] sm:$0x3]
      %v706 = vld [vmem:[%s306 + $0x4] sm:$0x3]
      %v707 = vpack.c.bf16 %v705, %v705
      %v708 = vpack.c.bf16 %v706, %v706
      %s709 = scalar_lea.vmem %s4, 128
      %v710 = vld [vmem:[%s709] sm:$0xff]
      %v711 = vld [vmem:[%s709 + $0x8] sm:$0xff]
      %v712 = vld [vmem:[%s709 + $0x10] sm:$0xff]
      %v713 = vld [vmem:[%s709 + $0x18] sm:$0xff]
      %v714 = vpack.c.bf16 %v711, %v710
      %v715 = vpack.c.bf16 %v713, %v712
      %v717 = vsel %vm334, %v707, 0
      %719 = vmatprep.subr.bf16.mxu0 0
      %720 = vmatpush1.bf16.msra.mxu0 0
      %721 = vmatprep.subr.bf16.mxu0 0
      %722 = vmatpush1.bf16.msra.mxu0 0
      %723 = vmatprep.subr.bf16.mxu0 0
      %724 = vmatpush1.bf16.msra.mxu0 0
      %725 = vmatprep.subr.bf16.mxu0 0
      %726 = vmatpush1.bf16.msra.mxu0 0
      %727 = vmatprep.subr.bf16.mxu0 0
      %728 = vmatpush1.bf16.msra.mxu0 0
      %729 = vmatprep.subr.bf16.mxu0 0
      %730 = vmatpush1.bf16.msra.mxu0 0
      %731 = vmatprep.subr.bf16.mxu0 0
      %732 = vmatpush1.bf16.msra.mxu0 %v715
      %733 = vmatprep.subr.bf16.mxu0 0
      %734 = vmatpush1.bf16.msra.mxu0 %v714
      %735 = vmatprep.subr.bf16.mxu0 0
      %736 = vmatpush2.bf16.msra.mxu0 0
      %737 = vmatprep.subr.bf16.mxu0 0
      %738 = vmatpush2.bf16.msra.mxu0 0
      %739 = vmatprep.subr.bf16.mxu0 0
      %740 = vmatpush2.bf16.msra.mxu0 0
      %741 = vmatprep.subr.bf16.mxu0 0
      %742 = vmatpush2.bf16.msra.mxu0 0
      %743 = vmatprep.subr.bf16.mxu0 0
      %744 = vmatpush2.bf16.msra.mxu0 0
      %745 = vmatprep.subr.bf16.mxu0 0
      %746 = vmatpush2.bf16.msra.mxu0 0
      %747 = vmatprep.subr.bf16.mxu0 0
      %748 = vmatpush2.bf16.msra.mxu0 0
      %749 = vmatprep.subr.bf16.mxu0 0
      %750 = vmatpush2.bf16.msra.mxu0 0
      %751 = vmatprep.mubr.bf16.mxu0 0
      %752 = vmatmul.mubr.bf16.gmra.mxu0 %v717
      %v753 = vpop.f32.mrf.mxu0
      %v754 = vadd.f32 0.0, %v753
      %v755 = vpop.f32.mrf.mxu0
      %v756 = vpop.f32.mrf.mxu0
      %v757 = vpop.f32.mrf.mxu0
      %758 = vdwg.mxu0
      %v760 = vsel %vm334, %v708, 0
      %762 = vmatprep.subr.bf16.mxu0 0
      %763 = vmatpush1.bf16.msra.mxu0 0
      %764 = vmatprep.subr.bf16.mxu0 0
      %765 = vmatpush1.bf16.msra.mxu0 0
      %766 = vmatprep.subr.bf16.mxu0 0
      %767 = vmatpush1.bf16.msra.mxu0 0
      %768 = vmatprep.subr.bf16.mxu0 0
      %769 = vmatpush1.bf16.msra.mxu0 0
      %770 = vmatprep.subr.bf16.mxu0 0
      %771 = vmatpush1.bf16.msra.mxu0 0
      %772 = vmatprep.subr.bf16.mxu0 0
      %773 = vmatpush1.bf16.msra.mxu0 0
      %774 = vmatprep.subr.bf16.mxu0 0
      %775 = vmatpush1.bf16.msra.mxu0 %v715
      %776 = vmatprep.subr.bf16.mxu0 0
      %777 = vmatpush1.bf16.msra.mxu0 %v714
      %778 = vmatprep.subr.bf16.mxu0 0
      %779 = vmatpush2.bf16.msra.mxu0 0
      %780 = vmatprep.subr.bf16.mxu0 0
      %781 = vmatpush2.bf16.msra.mxu0 0
      %782 = vmatprep.subr.bf16.mxu0 0
      %783 = vmatpush2.bf16.msra.mxu0 0
      %784 = vmatprep.subr.bf16.mxu0 0
      %785 = vmatpush2.bf16.msra.mxu0 0
      %786 = vmatprep.subr.bf16.mxu0 0
      %787 = vmatpush2.bf16.msra.mxu0 0
      %788 = vmatprep.subr.bf16.mxu0 0
      %789 = vmatpush2.bf16.msra.mxu0 0
      %790 = vmatprep.subr.bf16.mxu0 0
      %791 = vmatpush2.bf16.msra.mxu0 0
      %792 = vmatprep.subr.bf16.mxu0 0
      %793 = vmatpush2.bf16.msra.mxu0 0
      %794 = vmatprep.mubr.bf16.mxu0 0
      %795 = vmatmul.mubr.bf16.gmra.mxu0 %v760
      %v796 = vpop.f32.mrf.mxu0
      %v797 = vadd.f32 0.0, %v796
      %v798 = vpop.f32.mrf.mxu0
      %v799 = vpop.f32.mrf.mxu0
      %v800 = vpop.f32.mrf.mxu0
      %801 = vdwg.mxu0
      %v802 = vadd.f32 %v703, %v754
      %v803 = vadd.f32 %v704, %v797
      %v804 = vld [vmem:[%s301 + $0x1] sm:$0x3]
      %v805 = vld [vmem:[%s301 + $0x5] sm:$0x3]
      %v806 = vpack.c.bf16 %v804, %v804
      %v807 = vpack.c.bf16 %v805, %v805
      %s808 = scalar_lea.vmem %s4, 160
      %v809 = vld [vmem:[%s808] sm:$0xff]
      %v810 = vld [vmem:[%s808 + $0x8] sm:$0xff]
      %v811 = vld [vmem:[%s808 + $0x10] sm:$0xff]
      %v812 = vld [vmem:[%s808 + $0x18] sm:$0xff]
      %v813 = vpack.c.bf16 %v810, %v809
      %v814 = vpack.c.bf16 %v812, %v811
      %v816 = vsel %vm334, %v806, 0
      %818 = vmatprep.subr.bf16.mxu0 0
      %819 = vmatpush1.bf16.msra.mxu0 0
      %820 = vmatprep.subr.bf16.mxu0 0
      %821 = vmatpush1.bf16.msra.mxu0 0
      %822 = vmatprep.subr.bf16.mxu0 0
      %823 = vmatpush1.bf16.msra.mxu0 0
      %824 = vmatprep.subr.bf16.mxu0 0
      %825 = vmatpush1.bf16.msra.mxu0 0
      %826 = vmatprep.subr.bf16.mxu0 0
      %827 = vmatpush1.bf16.msra.mxu0 0
      %828 = vmatprep.subr.bf16.mxu0 0
      %829 = vmatpush1.bf16.msra.mxu0 0
      %830 = vmatprep.subr.bf16.mxu0 0
      %831 = vmatpush1.bf16.msra.mxu0 %v814
      %832 = vmatprep.subr.bf16.mxu0 0
      %833 = vmatpush1.bf16.msra.mxu0 %v813
      %834 = vmatprep.subr.bf16.mxu0 0
      %835 = vmatpush2.bf16.msra.mxu0 0
      %836 = vmatprep.subr.bf16.mxu0 0
      %837 = vmatpush2.bf16.msra.mxu0 0
      %838 = vmatprep.subr.bf16.mxu0 0
      %839 = vmatpush2.bf16.msra.mxu0 0
      %840 = vmatprep.subr.bf16.mxu0 0
      %841 = vmatpush2.bf16.msra.mxu0 0
      %842 = vmatprep.subr.bf16.mxu0 0
      %843 = vmatpush2.bf16.msra.mxu0 0
      %844 = vmatprep.subr.bf16.mxu0 0
      %845 = vmatpush2.bf16.msra.mxu0 0
      %846 = vmatprep.subr.bf16.mxu0 0
      %847 = vmatpush2.bf16.msra.mxu0 0
      %848 = vmatprep.subr.bf16.mxu0 0
      %849 = vmatpush2.bf16.msra.mxu0 0
      %850 = vmatprep.mubr.bf16.mxu0 0
      %851 = vmatmul.mubr.bf16.gmra.mxu0 %v816
      %v852 = vpop.f32.mrf.mxu0
      %v853 = vadd.f32 0.0, %v852
      %v854 = vpop.f32.mrf.mxu0
      %v855 = vpop.f32.mrf.mxu0
      %v856 = vpop.f32.mrf.mxu0
      %857 = vdwg.mxu0
      %v859 = vsel %vm334, %v807, 0
      %861 = vmatprep.subr.bf16.mxu0 0
      %862 = vmatpush1.bf16.msra.mxu0 0
      %863 = vmatprep.subr.bf16.mxu0 0
      %864 = vmatpush1.bf16.msra.mxu0 0
      %865 = vmatprep.subr.bf16.mxu0 0
      %866 = vmatpush1.bf16.msra.mxu0 0
      %867 = vmatprep.subr.bf16.mxu0 0
      %868 = vmatpush1.bf16.msra.mxu0 0
      %869 = vmatprep.subr.bf16.mxu0 0
      %870 = vmatpush1.bf16.msra.mxu0 0
      %871 = vmatprep.subr.bf16.mxu0 0
      %872 = vmatpush1.bf16.msra.mxu0 0
      %873 = vmatprep.subr.bf16.mxu0 0
      %874 = vmatpush1.bf16.msra.mxu0 %v814
      %875 = vmatprep.subr.bf16.mxu0 0
      %876 = vmatpush1.bf16.msra.mxu0 %v813
      %877 = vmatprep.subr.bf16.mxu0 0
      %878 = vmatpush2.bf16.msra.mxu0 0
      %879 = vmatprep.subr.bf16.mxu0 0
      %880 = vmatpush2.bf16.msra.mxu0 0
      %881 = vmatprep.subr.bf16.mxu0 0
      %882 = vmatpush2.bf16.msra.mxu0 0
      %883 = vmatprep.subr.bf16.mxu0 0
      %884 = vmatpush2.bf16.msra.mxu0 0
      %885 = vmatprep.subr.bf16.mxu0 0
      %886 = vmatpush2.bf16.msra.mxu0 0
      %887 = vmatprep.subr.bf16.mxu0 0
      %888 = vmatpush2.bf16.msra.mxu0 0
      %889 = vmatprep.subr.bf16.mxu0 0
      %890 = vmatpush2.bf16.msra.mxu0 0
      %891 = vmatprep.subr.bf16.mxu0 0
      %892 = vmatpush2.bf16.msra.mxu0 0
      %893 = vmatprep.mubr.bf16.mxu0 0
      %894 = vmatmul.mubr.bf16.gmra.mxu0 %v859
      %v895 = vpop.f32.mrf.mxu0
      %v896 = vadd.f32 0.0, %v895
      %v897 = vpop.f32.mrf.mxu0
      %v898 = vpop.f32.mrf.mxu0
      %v899 = vpop.f32.mrf.mxu0
      %900 = vdwg.mxu0
      %v901 = vadd.f32 %v802, %v853
      %v902 = vadd.f32 %v803, %v896
      %s903 = scalar_lea.vmem %s291, 4
      %v904 = vld [vmem:[%s903] sm:$0x3]
      %v905 = vld [vmem:[%s903 + $0x4] sm:$0x3]
      %v906 = vpack.c.bf16 %v904, %v904
      %v907 = vpack.c.bf16 %v905, %v905
      %s908 = scalar_lea.vmem %s4, 192
      %v909 = vld [vmem:[%s908] sm:$0xff]
      %v910 = vld [vmem:[%s908 + $0x8] sm:$0xff]
      %v911 = vld [vmem:[%s908 + $0x10] sm:$0xff]
      %v912 = vld [vmem:[%s908 + $0x18] sm:$0xff]
      %v913 = vpack.c.bf16 %v910, %v909
      %v914 = vpack.c.bf16 %v912, %v911
      %v916 = vsel %vm334, %v906, 0
      %918 = vmatprep.subr.bf16.mxu0 0
      %919 = vmatpush1.bf16.msra.mxu0 0
      %920 = vmatprep.subr.bf16.mxu0 0
      %921 = vmatpush1.bf16.msra.mxu0 0
      %922 = vmatprep.subr.bf16.mxu0 0
      %923 = vmatpush1.bf16.msra.mxu0 0
      %924 = vmatprep.subr.bf16.mxu0 0
      %925 = vmatpush1.bf16.msra.mxu0 0
      %926 = vmatprep.subr.bf16.mxu0 0
      %927 = vmatpush1.bf16.msra.mxu0 0
      %928 = vmatprep.subr.bf16.mxu0 0
      %929 = vmatpush1.bf16.msra.mxu0 0
      %930 = vmatprep.subr.bf16.mxu0 0
      %931 = vmatpush1.bf16.msra.mxu0 %v914
      %932 = vmatprep.subr.bf16.mxu0 0
      %933 = vmatpush1.bf16.msra.mxu0 %v913
      %934 = vmatprep.subr.bf16.mxu0 0
      %935 = vmatpush2.bf16.msra.mxu0 0
      %936 = vmatprep.subr.bf16.mxu0 0
      %937 = vmatpush2.bf16.msra.mxu0 0
      %938 = vmatprep.subr.bf16.mxu0 0
      %939 = vmatpush2.bf16.msra.mxu0 0
      %940 = vmatprep.subr.bf16.mxu0 0
      %941 = vmatpush2.bf16.msra.mxu0 0
      %942 = vmatprep.subr.bf16.mxu0 0
      %943 = vmatpush2.bf16.msra.mxu0 0
      %944 = vmatprep.subr.bf16.mxu0 0
      %945 = vmatpush2.bf16.msra.mxu0 0
      %946 = vmatprep.subr.bf16.mxu0 0
      %947 = vmatpush2.bf16.msra.mxu0 0
      %948 = vmatprep.subr.bf16.mxu0 0
      %949 = vmatpush2.bf16.msra.mxu0 0
      %950 = vmatprep.mubr.bf16.mxu0 0
      %951 = vmatmul.mubr.bf16.gmra.mxu0 %v916
      %v952 = vpop.f32.mrf.mxu0
      %v953 = vadd.f32 0.0, %v952
      %v954 = vpop.f32.mrf.mxu0
      %v955 = vpop.f32.mrf.mxu0
      %v956 = vpop.f32.mrf.mxu0
      %957 = vdwg.mxu0
      %v959 = vsel %vm334, %v907, 0
      %961 = vmatprep.subr.bf16.mxu0 0
      %962 = vmatpush1.bf16.msra.mxu0 0
      %963 = vmatprep.subr.bf16.mxu0 0
      %964 = vmatpush1.bf16.msra.mxu0 0
      %965 = vmatprep.subr.bf16.mxu0 0
      %966 = vmatpush1.bf16.msra.mxu0 0
      %967 = vmatprep.subr.bf16.mxu0 0
      %968 = vmatpush1.bf16.msra.mxu0 0
      %969 = vmatprep.subr.bf16.mxu0 0
      %970 = vmatpush1.bf16.msra.mxu0 0
      %971 = vmatprep.subr.bf16.mxu0 0
      %972 = vmatpush1.bf16.msra.mxu0 0
      %973 = vmatprep.subr.bf16.mxu0 0
      %974 = vmatpush1.bf16.msra.mxu0 %v914
      %975 = vmatprep.subr.bf16.mxu0 0
      %976 = vmatpush1.bf16.msra.mxu0 %v913
      %977 = vmatprep.subr.bf16.mxu0 0
      %978 = vmatpush2.bf16.msra.mxu0 0
      %979 = vmatprep.subr.bf16.mxu0 0
      %980 = vmatpush2.bf16.msra.mxu0 0
      %981 = vmatprep.subr.bf16.mxu0 0
      %982 = vmatpush2.bf16.msra.mxu0 0
      %983 = vmatprep.subr.bf16.mxu0 0
      %984 = vmatpush2.bf16.msra.mxu0 0
      %985 = vmatprep.subr.bf16.mxu0 0
      %986 = vmatpush2.bf16.msra.mxu0 0
      %987 = vmatprep.subr.bf16.mxu0 0
      %988 = vmatpush2.bf16.msra.mxu0 0
      %989 = vmatprep.subr.bf16.mxu0 0
      %990 = vmatpush2.bf16.msra.mxu0 0
      %991 = vmatprep.subr.bf16.mxu0 0
      %992 = vmatpush2.bf16.msra.mxu0 0
      %993 = vmatprep.mubr.bf16.mxu0 0
      %994 = vmatmul.mubr.bf16.gmra.mxu0 %v959
      %v995 = vpop.f32.mrf.mxu0
      %v996 = vadd.f32 0.0, %v995
      %v997 = vpop.f32.mrf.mxu0
      %v998 = vpop.f32.mrf.mxu0
      %v999 = vpop.f32.mrf.mxu0
      %1000 = vdwg.mxu0
      %v1001 = vadd.f32 %v901, %v953
      %v1002 = vadd.f32 %v902, %v996
      %s1003 = scalar_lea.vmem %s296, 4
      %v1004 = vld [vmem:[%s1003] sm:$0x3]
      %v1005 = vld [vmem:[%s1003 + $0x4] sm:$0x3]
      %v1006 = vpack.c.bf16 %v1004, %v1004
      %v1007 = vpack.c.bf16 %v1005, %v1005
      %s1008 = scalar_lea.vmem %s4, 224
      %v1009 = vld [vmem:[%s1008] sm:$0xff]
      %v1010 = vld [vmem:[%s1008 + $0x8] sm:$0xff]
      %v1011 = vld [vmem:[%s1008 + $0x10] sm:$0xff]
      %v1012 = vld [vmem:[%s1008 + $0x18] sm:$0xff]
      %v1013 = vpack.c.bf16 %v1010, %v1009
      %v1014 = vpack.c.bf16 %v1012, %v1011
      %v1016 = vsel %vm334, %v1006, 0
      %1018 = vmatprep.subr.bf16.mxu0 0
      %1019 = vmatpush1.bf16.msra.mxu0 0
      %1020 = vmatprep.subr.bf16.mxu0 0
      %1021 = vmatpush1.bf16.msra.mxu0 0
      %1022 = vmatprep.subr.bf16.mxu0 0
      %1023 = vmatpush1.bf16.msra.mxu0 0
      %1024 = vmatprep.subr.bf16.mxu0 0
      %1025 = vmatpush1.bf16.msra.mxu0 0
      %1026 = vmatprep.subr.bf16.mxu0 0
      %1027 = vmatpush1.bf16.msra.mxu0 0
      %1028 = vmatprep.subr.bf16.mxu0 0
      %1029 = vmatpush1.bf16.msra.mxu0 0
      %1030 = vmatprep.subr.bf16.mxu0 0
      %1031 = vmatpush1.bf16.msra.mxu0 %v1014
      %1032 = vmatprep.subr.bf16.mxu0 0
      %1033 = vmatpush1.bf16.msra.mxu0 %v1013
      %1034 = vmatprep.subr.bf16.mxu0 0
      %1035 = vmatpush2.bf16.msra.mxu0 0
      %1036 = vmatprep.subr.bf16.mxu0 0
      %1037 = vmatpush2.bf16.msra.mxu0 0
      %1038 = vmatprep.subr.bf16.mxu0 0
      %1039 = vmatpush2.bf16.msra.mxu0 0
      %1040 = vmatprep.subr.bf16.mxu0 0
      %1041 = vmatpush2.bf16.msra.mxu0 0
      %1042 = vmatprep.subr.bf16.mxu0 0
      %1043 = vmatpush2.bf16.msra.mxu0 0
      %1044 = vmatprep.subr.bf16.mxu0 0
      %1045 = vmatpush2.bf16.msra.mxu0 0
      %1046 = vmatprep.subr.bf16.mxu0 0
      %1047 = vmatpush2.bf16.msra.mxu0 0
      %1048 = vmatprep.subr.bf16.mxu0 0
      %1049 = vmatpush2.bf16.msra.mxu0 0
      %1050 = vmatprep.mubr.bf16.mxu0 0
      %1051 = vmatmul.mubr.bf16.gmra.mxu0 %v1016
      %v1052 = vpop.f32.mrf.mxu0
      %v1053 = vadd.f32 0.0, %v1052
      %v1054 = vpop.f32.mrf.mxu0
      %v1055 = vpop.f32.mrf.mxu0
      %v1056 = vpop.f32.mrf.mxu0
      %1057 = vdwg.mxu0
      %v1059 = vsel %vm334, %v1007, 0
      %1061 = vmatprep.subr.bf16.mxu0 0
      %1062 = vmatpush1.bf16.msra.mxu0 0
      %1063 = vmatprep.subr.bf16.mxu0 0
      %1064 = vmatpush1.bf16.msra.mxu0 0
      %1065 = vmatprep.subr.bf16.mxu0 0
      %1066 = vmatpush1.bf16.msra.mxu0 0
      %1067 = vmatprep.subr.bf16.mxu0 0
      %1068 = vmatpush1.bf16.msra.mxu0 0
      %1069 = vmatprep.subr.bf16.mxu0 0
      %1070 = vmatpush1.bf16.msra.mxu0 0
      %1071 = vmatprep.subr.bf16.mxu0 0
      %1072 = vmatpush1.bf16.msra.mxu0 0
      %1073 = vmatprep.subr.bf16.mxu0 0
      %1074 = vmatpush1.bf16.msra.mxu0 %v1014
      %1075 = vmatprep.subr.bf16.mxu0 0
      %1076 = vmatpush1.bf16.msra.mxu0 %v1013
      %1077 = vmatprep.subr.bf16.mxu0 0
      %1078 = vmatpush2.bf16.msra.mxu0 0
      %1079 = vmatprep.subr.bf16.mxu0 0
      %1080 = vmatpush2.bf16.msra.mxu0 0
      %1081 = vmatprep.subr.bf16.mxu0 0
      %1082 = vmatpush2.bf16.msra.mxu0 0
      %1083 = vmatprep.subr.bf16.mxu0 0
      %1084 = vmatpush2.bf16.msra.mxu0 0
      %1085 = vmatprep.subr.bf16.mxu0 0
      %1086 = vmatpush2.bf16.msra.mxu0 0
      %1087 = vmatprep.subr.bf16.mxu0 0
      %1088 = vmatpush2.bf16.msra.mxu0 0
      %1089 = vmatprep.subr.bf16.mxu0 0
      %1090 = vmatpush2.bf16.msra.mxu0 0
      %1091 = vmatprep.subr.bf16.mxu0 0
      %1092 = vmatpush2.bf16.msra.mxu0 0
      %1093 = vmatprep.mubr.bf16.mxu0 0
      %1094 = vmatmul.mubr.bf16.gmra.mxu0 %v1059
      %v1095 = vpop.f32.mrf.mxu0
      %v1096 = vadd.f32 0.0, %v1095
      %v1097 = vpop.f32.mrf.mxu0
      %v1098 = vpop.f32.mrf.mxu0
      %v1099 = vpop.f32.mrf.mxu0
      %1100 = vdwg.mxu0
      %v1101 = vadd.f32 %v1001, %v1053
      %v1102 = vadd.f32 %v1002, %v1096
      %v1103 = vld [vmem:[%s903 + $0x1] sm:$0x3]
      %v1104 = vld [vmem:[%s903 + $0x5] sm:$0x3]
      %v1105 = vpack.c.bf16 %v1103, %v1103
      %v1106 = vpack.c.bf16 %v1104, %v1104
      %s1107 = scalar_lea.vmem %s4, 256
      %v1108 = vld [vmem:[%s1107] sm:$0xff]
      %v1109 = vld [vmem:[%s1107 + $0x8] sm:$0xff]
      %v1110 = vld [vmem:[%s1107 + $0x10] sm:$0xff]
      %v1111 = vld [vmem:[%s1107 + $0x18] sm:$0xff]
      %v1112 = vpack.c.bf16 %v1109, %v1108
      %v1113 = vpack.c.bf16 %v1111, %v1110
      %v1115 = vsel %vm334, %v1105, 0
      %1117 = vmatprep.subr.bf16.mxu0 0
      %1118 = vmatpush1.bf16.msra.mxu0 0
      %1119 = vmatprep.subr.bf16.mxu0 0
      %1120 = vmatpush1.bf16.msra.mxu0 0
      %1121 = vmatprep.subr.bf16.mxu0 0
      %1122 = vmatpush1.bf16.msra.mxu0 0
      %1123 = vmatprep.subr.bf16.mxu0 0
      %1124 = vmatpush1.bf16.msra.mxu0 0
      %1125 = vmatprep.subr.bf16.mxu0 0
      %1126 = vmatpush1.bf16.msra.mxu0 0
      %1127 = vmatprep.subr.bf16.mxu0 0
      %1128 = vmatpush1.bf16.msra.mxu0 0
      %1129 = vmatprep.subr.bf16.mxu0 0
      %1130 = vmatpush1.bf16.msra.mxu0 %v1113
      %1131 = vmatprep.subr.bf16.mxu0 0
      %1132 = vmatpush1.bf16.msra.mxu0 %v1112
      %1133 = vmatprep.subr.bf16.mxu0 0
      %1134 = vmatpush2.bf16.msra.mxu0 0
      %1135 = vmatprep.subr.bf16.mxu0 0
      %1136 = vmatpush2.bf16.msra.mxu0 0
      %1137 = vmatprep.subr.bf16.mxu0 0
      %1138 = vmatpush2.bf16.msra.mxu0 0
      %1139 = vmatprep.subr.bf16.mxu0 0
      %1140 = vmatpush2.bf16.msra.mxu0 0
      %1141 = vmatprep.subr.bf16.mxu0 0
      %1142 = vmatpush2.bf16.msra.mxu0 0
      %1143 = vmatprep.subr.bf16.mxu0 0
      %1144 = vmatpush2.bf16.msra.mxu0 0
      %1145 = vmatprep.subr.bf16.mxu0 0
      %1146 = vmatpush2.bf16.msra.mxu0 0
      %1147 = vmatprep.subr.bf16.mxu0 0
      %1148 = vmatpush2.bf16.msra.mxu0 0
      %1149 = vmatprep.mubr.bf16.mxu0 0
      %1150 = vmatmul.mubr.bf16.gmra.mxu0 %v1115
      %v1151 = vpop.f32.mrf.mxu0
      %v1152 = vadd.f32 0.0, %v1151
      %v1153 = vpop.f32.mrf.mxu0
      %v1154 = vpop.f32.mrf.mxu0
      %v1155 = vpop.f32.mrf.mxu0
      %1156 = vdwg.mxu0
      %v1158 = vsel %vm334, %v1106, 0
      %1160 = vmatprep.subr.bf16.mxu0 0
      %1161 = vmatpush1.bf16.msra.mxu0 0
      %1162 = vmatprep.subr.bf16.mxu0 0
      %1163 = vmatpush1.bf16.msra.mxu0 0
      %1164 = vmatprep.subr.bf16.mxu0 0
      %1165 = vmatpush1.bf16.msra.mxu0 0
      %1166 = vmatprep.subr.bf16.mxu0 0
      %1167 = vmatpush1.bf16.msra.mxu0 0
      %1168 = vmatprep.subr.bf16.mxu0 0
      %1169 = vmatpush1.bf16.msra.mxu0 0
      %1170 = vmatprep.subr.bf16.mxu0 0
      %1171 = vmatpush1.bf16.msra.mxu0 0
      %1172 = vmatprep.subr.bf16.mxu0 0
      %1173 = vmatpush1.bf16.msra.mxu0 %v1113
      %1174 = vmatprep.subr.bf16.mxu0 0
      %1175 = vmatpush1.bf16.msra.mxu0 %v1112
      %1176 = vmatprep.subr.bf16.mxu0 0
      %1177 = vmatpush2.bf16.msra.mxu0 0
      %1178 = vmatprep.subr.bf16.mxu0 0
      %1179 = vmatpush2.bf16.msra.mxu0 0
      %1180 = vmatprep.subr.bf16.mxu0 0
      %1181 = vmatpush2.bf16.msra.mxu0 0
      %1182 = vmatprep.subr.bf16.mxu0 0
      %1183 = vmatpush2.bf16.msra.mxu0 0
      %1184 = vmatprep.subr.bf16.mxu0 0
      %1185 = vmatpush2.bf16.msra.mxu0 0
      %1186 = vmatprep.subr.bf16.mxu0 0
      %1187 = vmatpush2.bf16.msra.mxu0 0
      %1188 = vmatprep.subr.bf16.mxu0 0
      %1189 = vmatpush2.bf16.msra.mxu0 0
      %1190 = vmatprep.subr.bf16.mxu0 0
      %1191 = vmatpush2.bf16.msra.mxu0 0
      %1192 = vmatprep.mubr.bf16.mxu0 0
      %1193 = vmatmul.mubr.bf16.gmra.mxu0 %v1158
      %v1194 = vpop.f32.mrf.mxu0
      %v1195 = vadd.f32 0.0, %v1194
      %v1196 = vpop.f32.mrf.mxu0
      %v1197 = vpop.f32.mrf.mxu0
      %v1198 = vpop.f32.mrf.mxu0
      %1199 = vdwg.mxu0
      %v1200 = vadd.f32 %v1101, %v1152
      %v1201 = vadd.f32 %v1102, %v1195
      %v1202 = vld [vmem:[%s5] sm:$0x1]
      %v1204 = vlaneseq
      %v1205 = vshrl.u32 %v1204, 7
      %v1206 = vsub.s32 0, %v1205
      %v1207 = vrot.slane %v1202, %v1206
      %v1209 = vadd.f32 %v1200, %v1207
      %v1210 = vadd.f32 %v1201, %v1207
      %vm1211 = vcmp.gt.f32.partialorder %v1209, 0.0
      %vm1212 = vcmp.gt.f32.partialorder %v1210, 0.0
      %v1213 = vmin.f32 %v1209, 0.0
      %v1214 = vmin.f32 %v1210, 0.0
      %v1215 = vmul.f32 %v1213, 1.442695
      %v1216 = vpow.pop %v1215
      %v1217 = vmul.f32 %v1214, 1.442695
      %v1218 = vpow.pop %v1217
      %v1219 = vsub.f32 %v1216, 1.0
      %v1220 = vsub.f32 %v1218, 1.0
      %v1221 = vsel %vm1211, %v1209, %v1219
      %v1222 = vsel %vm1212, %v1210, %v1220
      %vm1223 = vcmask 254976
      %1224 = vst.msk [vmem:[%s311] sm:$0x3] %vm1223, %v1221
      %1225 = vst.msk [vmem:[%s311 + $0x2] sm:$0x3] %vm1223, %v1222
      %p1226 = scmp.lt.s32.totalorder %s17, 3
      %s1227 = scalar_select %p1226, %s17, 3
      %s1228 = smul.addr %s1227, 2
      %s1229 = smul.addr %s1228, 2
      %s1230 = scalar_lea.vmem %s6, %s1229
      // Predicated region
      $region45: #{cnnrnn_forward.8} parent=43 // pred_check
        %p1231 = pneg %p181
      $region46: #{cnnrnn_forward.8} parent=43 // pred_check_branch
        %1233 = sbr.rel (%p1231) target = $region48
      $region47: #{cnnrnn_forward.8} parent=43 // pred_region
        _
      $region48: #{cnnrnn_forward.8} parent=43 // pred_fallthru
        _
    $region44: #{cnnrnn_forward.8} parent=5 // pred_fallthru
      _
    %p1234 = scmp.le.s32.totalorder 2, %s12
    // Predicated region
    $region49: #{cnnrnn_forward.8} parent=5 // pred_check
      %p1235 = pneg %p1234
    $region50: #{cnnrnn_forward.8} parent=5 // pred_check_branch
      %1237 = sbr.rel (%p1235) target = $region52
    $region51: #{cnnrnn_forward.8} parent=5 // pred_region
      %s1238 = ssub.s32 %s12, 2
      // Predicated region
      $region53: #{cnnrnn_forward.8} parent=51 // pred_check
        %p1239 = pneg %p187
      $region54: #{cnnrnn_forward.8} parent=51 // pred_check_branch
        %1241 = sbr.rel (%p1239) target = $region56
      $region55: #{cnnrnn_forward.8} parent=51 // pred_region
        %p1242 = scmp.lt.s32.totalorder %s18, 3
        %s1243 = scalar_select %p1242, %s18, 3
        %s1244 = smul.addr %s1243, 2
        %s1245 = smul.addr %s1244, 2
        %s1246 = scalar_lea.vmem %s6, %s1245
      $region56: #{cnnrnn_forward.8} parent=51 // pred_fallthru
        _
    $region52: #{cnnrnn_forward.8} parent=5 // pred_fallthru
      _
  $region6: #{cnnrnn_forward.8} parent=0 // loop_footer
    %s16 = sadd.s32 1, %s12
  $region7: #{cnnrnn_forward.8} parent=0 // loop_footer_branch
    %11 = sbr.rel target = $region3
  $region8: #{cnnrnn_forward.8} parent=0 // loop_exit
    _

// kernel: cnnrnn_forward.10
$region0: #{cnnrnn_forward.10}
  #allocation0 [shape = 'u32[]', space=smem, size = 0x4, offset = 0x4, fixed_abs, tag = 'smem constant byte address 0x4 - core index']
  #allocation1 [shape = 'u32[144,128]{1,0:T(1,128)}', space=vmem, size = 0x12000, scoped, tag = 'internal scratch']
  %s0 = inlined_call_operand.vmem [shape: f32[4,38], index: 0, kind: input, shape index: {}]
  %s1 = inlined_call_operand.vmem [shape: f32[38,96], index: 1, kind: input, shape index: {}]
  %s2 = inlined_call_operand.vmem [shape: f32[1,96], index: 2, kind: input, shape index: {}]
  %s3 = inlined_call_operand.vmem [shape: f32[4,96], index: 3, kind: output, shape index: {}]
  %s4 = sld [smem:[#allocation0]]
  $region22: #{cnnrnn_forward.10} parent=0
    _
  %s6 = ssub.s32 1, %s4
  %s7 = scalar_select 0, %s6, %s4
  // Predicated region
  $region2: #{cnnrnn_forward.10} parent=0 // pred_check
    _
  $region3: #{cnnrnn_forward.10} parent=0 // pred_check_branch
    %9 = sbr.rel (0) target = $region5
  $region4: #{cnnrnn_forward.10} parent=0 // pred_region
    _
  $region5: #{cnnrnn_forward.10} parent=0 // pred_fallthru
    _
  // Predicated region
  $region6: #{cnnrnn_forward.10} parent=0 // pred_check
    _
  $region7: #{cnnrnn_forward.10} parent=0 // pred_check_branch
    %11 = sbr.rel (0) target = $region9
  $region8: #{cnnrnn_forward.10} parent=0 // pred_region
    _
  $region9: #{cnnrnn_forward.10} parent=0 // pred_fallthru
    _
  // Predicated region
  $region10: #{cnnrnn_forward.10} parent=0 // pred_check
    _
  $region11: #{cnnrnn_forward.10} parent=0 // pred_check_branch
    %13 = sbr.rel (0) target = $region13
  $region12: #{cnnrnn_forward.10} parent=0 // pred_region
    _
  $region13: #{cnnrnn_forward.10} parent=0 // pred_fallthru
    _
  %v14 = vld [vmem:[%s0] sm:$0xf]
  %v15 = vld [vmem:[%s1] sm:$0xff]
  %v16 = vld [vmem:[%s1 + $0x8] sm:$0xff]
  %v17 = vld [vmem:[%s1 + $0x10] sm:$0xff]
  %v18 = vld [vmem:[%s1 + $0x18] sm:$0xff]
  %v19 = vld [vmem:[%s1 + $0x20] sm:$0x3f]
  %v20 = vld [vmem:[%s2] sm:$0x1]
  %v22 = vlaneseq
  %v23 = vshrl.u32 %v22, 7
  %v24 = vsub.s32 0, %v23
  %v25 = vrot.slane %v20, %v24
  %vm27 = vcmask 310272
  %v29 = vsel %vm27, %v14, 0
  %vm31 = vcmask 1045504
  %v33 = vsel %vm31, %v19, 0
  %35 = vmatprep.subr.mxu0 0.0
  %36 = vmatpush1.msra.mxu0 0.0
  %37 = vmatprep.subr.mxu0 0.0
  %38 = vmatpush1.msra.mxu0 0.0
  %39 = vmatprep.subr.mxu0 0.0
  %40 = vmatpush1.msra.mxu0 0.0
  %41 = vmatprep.subr.mxu0 0.0
  %42 = vmatpush1.msra.mxu0 0.0
  %43 = vmatprep.subr.mxu0 0.0
  %44 = vmatpush1.msra.mxu0 0.0
  %45 = vmatprep.subr.mxu0 0.0
  %46 = vmatpush1.msra.mxu0 0.0
  %47 = vmatprep.subr.mxu0 0.0
  %48 = vmatpush1.msra.mxu0 0.0
  %49 = vmatprep.subr.mxu0 0.0
  %50 = vmatpush1.msra.mxu0 0.0
  %51 = vmatprep.subr.mxu0 0.0
  %52 = vmatpush1.msra.mxu0 0.0
  %53 = vmatprep.subr.mxu0 0.0
  %54 = vmatpush1.msra.mxu0 0.0
  %55 = vmatprep.subr.mxu0 0.0
  %56 = vmatpush1.msra.mxu0 0.0
  %57 = vmatprep.subr.mxu0 0.0
  %v58 = vand.u32 %v33, 4294901760
  %59 = vmatpush1.msra.mxu0 %v58
  %60 = vmatprep.subr.mxu0 0.0
  %v61 = vand.u32 %v18, 4294901760
  %62 = vmatpush1.msra.mxu0 %v61
  %63 = vmatprep.subr.mxu0 0.0
  %v64 = vand.u32 %v17, 4294901760
  %65 = vmatpush1.msra.mxu0 %v64
  %66 = vmatprep.subr.mxu0 0.0
  %v67 = vand.u32 %v16, 4294901760
  %68 = vmatpush1.msra.mxu0 %v67
  %69 = vmatprep.subr.mxu0 0.0
  %v70 = vand.u32 %v15, 4294901760
  %71 = vmatpush1.msra.mxu0 %v70
  %72 = vmatprep.subr.mxu0 0.0
  %73 = vmatpush2.msra.mxu0 0.0
  %74 = vmatprep.subr.mxu0 0.0
  %75 = vmatpush2.msra.mxu0 0.0
  %76 = vmatprep.subr.mxu0 0.0
  %77 = vmatpush2.msra.mxu0 0.0
  %78 = vmatprep.subr.mxu0 0.0
  %79 = vmatpush2.msra.mxu0 0.0
  %80 = vmatprep.subr.mxu0 0.0
  %81 = vmatpush2.msra.mxu0 0.0
  %82 = vmatprep.subr.mxu0 0.0
  %83 = vmatpush2.msra.mxu0 0.0
  %84 = vmatprep.subr.mxu0 0.0
  %85 = vmatpush2.msra.mxu0 0.0
  %86 = vmatprep.subr.mxu0 0.0
  %87 = vmatpush2.msra.mxu0 0.0
  %88 = vmatprep.subr.mxu0 0.0
  %89 = vmatpush2.msra.mxu0 0.0
  %90 = vmatprep.subr.mxu0 0.0
  %91 = vmatpush2.msra.mxu0 0.0
  %92 = vmatprep.subr.mxu0 0.0
  %93 = vmatpush2.msra.mxu0 0.0
  %94 = vmatprep.subr.mxu0 0.0
  %95 = vmatpush2.msra.mxu0 0.0
  %96 = vmatprep.subr.mxu0 0.0
  %97 = vmatpush2.msra.mxu0 0.0
  %98 = vmatprep.subr.mxu0 0.0
  %99 = vmatpush2.msra.mxu0 0.0
  %100 = vmatprep.subr.mxu0 0.0
  %101 = vmatpush2.msra.mxu0 0.0
  %102 = vmatprep.subr.mxu0 0.0
  %103 = vmatpush2.msra.mxu0 0.0
  %104 = vmatprep.mubr.f32.mxu0 0.0
  %v105 = vand.u32 %v29, 4294901760
  %v106 = vsub.f32 %v29, %v105
  %v107 = vand.u32 %v106, 4294901760
  %v108 = vsub.f32 %v106, %v107
  %v109 = vand.u32 %v108, 4294901760
  %110 = vmatmul.mubr.f32.gmra.mxu0 %v109
  %v111 = vpop.f32.mrf.mxu0
  %v112 = vadd.f32 %v25, %v111
  %v113 = vpop.f32.mrf.mxu0
  %114 = vdwg.mxu0
  %115 = vmatprep.subr.mxu0 0.0
  %116 = vmatpush1.msra.mxu0 0.0
  %117 = vmatprep.subr.mxu0 0.0
  %118 = vmatpush1.msra.mxu0 0.0
  %119 = vmatprep.subr.mxu0 0.0
  %120 = vmatpush1.msra.mxu0 0.0
  %121 = vmatprep.subr.mxu0 0.0
  %122 = vmatpush1.msra.mxu0 0.0
  %123 = vmatprep.subr.mxu0 0.0
  %124 = vmatpush1.msra.mxu0 0.0
  %125 = vmatprep.subr.mxu0 0.0
  %126 = vmatpush1.msra.mxu0 0.0
  %127 = vmatprep.subr.mxu0 0.0
  %128 = vmatpush1.msra.mxu0 0.0
  %129 = vmatprep.subr.mxu0 0.0
  %130 = vmatpush1.msra.mxu0 0.0
  %131 = vmatprep.subr.mxu0 0.0
  %132 = vmatpush1.msra.mxu0 0.0
  %133 = vmatprep.subr.mxu0 0.0
  %134 = vmatpush1.msra.mxu0 0.0
  %135 = vmatprep.subr.mxu0 0.0
  %136 = vmatpush1.msra.mxu0 0.0
  %137 = vmatprep.subr.mxu0 0.0
  %v138 = vand.u32 %v33, 4294901760
  %v139 = vsub.f32 %v33, %v138
  %v140 = vand.u32 %v139, 4294901760
  %v141 = vsub.f32 %v139, %v140
  %v142 = vand.u32 %v141, 4294901760
  %143 = vmatpush1.msra.mxu0 %v142
  %144 = vmatprep.subr.mxu0 0.0
  %v145 = vand.u32 %v18, 4294901760
  %v146 = vsub.f32 %v18, %v145
  %v147 = vand.u32 %v146, 4294901760
  %v148 = vsub.f32 %v146, %v147
  %v149 = vand.u32 %v148, 4294901760
  %150 = vmatpush1.msra.mxu0 %v149
  %151 = vmatprep.subr.mxu0 0.0
  %v152 = vand.u32 %v17, 4294901760
  %v153 = vsub.f32 %v17, %v152
  %v154 = vand.u32 %v153, 4294901760
  %v155 = vsub.f32 %v153, %v154
  %v156 = vand.u32 %v155, 4294901760
  %157 = vmatpush1.msra.mxu0 %v156
  %158 = vmatprep.subr.mxu0 0.0
  %v159 = vand.u32 %v16, 4294901760
  %v160 = vsub.f32 %v16, %v159
  %v161 = vand.u32 %v160, 4294901760
  %v162 = vsub.f32 %v160, %v161
  %v163 = vand.u32 %v162, 4294901760
  %164 = vmatpush1.msra.mxu0 %v163
  %165 = vmatprep.subr.mxu0 0.0
  %v166 = vand.u32 %v15, 4294901760
  %v167 = vsub.f32 %v15, %v166
  %v168 = vand.u32 %v167, 4294901760
  %v169 = vsub.f32 %v167, %v168
  %v170 = vand.u32 %v169, 4294901760
  %171 = vmatpush1.msra.mxu0 %v170
  %172 = vmatprep.subr.mxu0 0.0
  %173 = vmatpush2.msra.mxu0 0.0
  %174 = vmatprep.subr.mxu0 0.0
  %175 = vmatpush2.msra.mxu0 0.0
  %176 = vmatprep.subr.mxu0 0.0
  %177 = vmatpush2.msra.mxu0 0.0
  %178 = vmatprep.subr.mxu0 0.0
  %179 = vmatpush2.msra.mxu0 0.0
  %180 = vmatprep.subr.mxu0 0.0
  %181 = vmatpush2.msra.mxu0 0.0
  %182 = vmatprep.subr.mxu0 0.0
  %183 = vmatpush2.msra.mxu0 0.0
  %184 = vmatprep.subr.mxu0 0.0
  %185 = vmatpush2.msra.mxu0 0.0
  %186 = vmatprep.subr.mxu0 0.0
  %187 = vmatpush2.msra.mxu0 0.0
  %188 = vmatprep.subr.mxu0 0.0
  %189 = vmatpush2.msra.mxu0 0.0
  %190 = vmatprep.subr.mxu0 0.0
  %191 = vmatpush2.msra.mxu0 0.0
  %192 = vmatprep.subr.mxu0 0.0
  %193 = vmatpush2.msra.mxu0 0.0
  %194 = vmatprep.subr.mxu0 0.0
  %195 = vmatpush2.msra.mxu0 0.0
  %196 = vmatprep.subr.mxu0 0.0
  %197 = vmatpush2.msra.mxu0 0.0
  %198 = vmatprep.subr.mxu0 0.0
  %199 = vmatpush2.msra.mxu0 0.0
  %200 = vmatprep.subr.mxu0 0.0
  %201 = vmatpush2.msra.mxu0 0.0
  %202 = vmatprep.subr.mxu0 0.0
  %203 = vmatpush2.msra.mxu0 0.0
  %204 = vmatprep.mubr.f32.mxu0 0.0
  %v205 = vand.u32 %v29, 4294901760
  %206 = vmatmul.mubr.f32.gmra.mxu0 %v205
  %v207 = vpop.f32.mrf.mxu0
  %v208 = vadd.f32 %v112, %v207
  %v209 = vpop.f32.mrf.mxu0
  %210 = vdwg.mxu0
  %211 = vmatprep.subr.mxu0 0.0
  %212 = vmatpush1.msra.mxu0 0.0
  %213 = vmatprep.subr.mxu0 0.0
  %214 = vmatpush1.msra.mxu0 0.0
  %215 = vmatprep.subr.mxu0 0.0
  %216 = vmatpush1.msra.mxu0 0.0
  %217 = vmatprep.subr.mxu0 0.0
  %218 = vmatpush1.msra.mxu0 0.0
  %219 = vmatprep.subr.mxu0 0.0
  %220 = vmatpush1.msra.mxu0 0.0
  %221 = vmatprep.subr.mxu0 0.0
  %222 = vmatpush1.msra.mxu0 0.0
  %223 = vmatprep.subr.mxu0 0.0
  %224 = vmatpush1.msra.mxu0 0.0
  %225 = vmatprep.subr.mxu0 0.0
  %226 = vmatpush1.msra.mxu0 0.0
  %227 = vmatprep.subr.mxu0 0.0
  %228 = vmatpush1.msra.mxu0 0.0
  %229 = vmatprep.subr.mxu0 0.0
  %230 = vmatpush1.msra.mxu0 0.0
  %231 = vmatprep.subr.mxu0 0.0
  %232 = vmatpush1.msra.mxu0 0.0
  %233 = vmatprep.subr.mxu0 0.0
  %v234 = vand.u32 %v33, 4294901760
  %v235 = vsub.f32 %v33, %v234
  %236 = vmatpush1.msra.mxu0 %v235
  %237 = vmatprep.subr.mxu0 0.0
  %v238 = vand.u32 %v18, 4294901760
  %v239 = vsub.f32 %v18, %v238
  %240 = vmatpush1.msra.mxu0 %v239
  %241 = vmatprep.subr.mxu0 0.0
  %v242 = vand.u32 %v17, 4294901760
  %v243 = vsub.f32 %v17, %v242
  %244 = vmatpush1.msra.mxu0 %v243
  %245 = vmatprep.subr.mxu0 0.0
  %v246 = vand.u32 %v16, 4294901760
  %v247 = vsub.f32 %v16, %v246
  %248 = vmatpush1.msra.mxu0 %v247
  %249 = vmatprep.subr.mxu0 0.0
  %v250 = vand.u32 %v15, 4294901760
  %v251 = vsub.f32 %v15, %v250
  %252 = vmatpush1.msra.mxu0 %v251
  %253 = vmatprep.subr.mxu0 0.0
  %254 = vmatpush2.msra.mxu0 0.0
  %255 = vmatprep.subr.mxu0 0.0
  %256 = vmatpush2.msra.mxu0 0.0
  %257 = vmatprep.subr.mxu0 0.0
  %258 = vmatpush2.msra.mxu0 0.0
  %259 = vmatprep.subr.mxu0 0.0
  %260 = vmatpush2.msra.mxu0 0.0
  %261 = vmatprep.subr.mxu0 0.0
  %262 = vmatpush2.msra.mxu0 0.0
  %263 = vmatprep.subr.mxu0 0.0
  %264 = vmatpush2.msra.mxu0 0.0
  %265 = vmatprep.subr.mxu0 0.0
  %266 = vmatpush2.msra.mxu0 0.0
  %267 = vmatprep.subr.mxu0 0.0
  %268 = vmatpush2.msra.mxu0 0.0
  %269 = vmatprep.subr.mxu0 0.0
  %270 = vmatpush2.msra.mxu0 0.0
  %271 = vmatprep.subr.mxu0 0.0
  %272 = vmatpush2.msra.mxu0 0.0
  %273 = vmatprep.subr.mxu0 0.0
  %274 = vmatpush2.msra.mxu0 0.0
  %275 = vmatprep.subr.mxu0 0.0
  %276 = vmatpush2.msra.mxu0 0.0
  %277 = vmatprep.subr.mxu0 0.0
  %278 = vmatpush2.msra.mxu0 0.0
  %279 = vmatprep.subr.mxu0 0.0
  %280 = vmatpush2.msra.mxu0 0.0
  %281 = vmatprep.subr.mxu0 0.0
  %282 = vmatpush2.msra.mxu0 0.0
  %283 = vmatprep.subr.mxu0 0.0
  %284 = vmatpush2.msra.mxu0 0.0
  %285 = vmatprep.mubr.f32.mxu0 0.0
  %v286 = vand.u32 %v29, 4294901760
  %v287 = vsub.f32 %v29, %v286
  %288 = vmatmul.mubr.f32.gmra.mxu0 %v287
  %v289 = vpop.f32.mrf.mxu0
  %v290 = vadd.f32 %v208, %v289
  %v291 = vpop.f32.mrf.mxu0
  %292 = vdwg.mxu0
  %293 = vmatprep.subr.mxu0 0.0
  %294 = vmatpush1.msra.mxu0 0.0
  %295 = vmatprep.subr.mxu0 0.0
  %296 = vmatpush1.msra.mxu0 0.0
  %297 = vmatprep.subr.mxu0 0.0
  %298 = vmatpush1.msra.mxu0 0.0
  %299 = vmatprep.subr.mxu0 0.0
  %300 = vmatpush1.msra.mxu0 0.0
  %301 = vmatprep.subr.mxu0 0.0
  %302 = vmatpush1.msra.mxu0 0.0
  %303 = vmatprep.subr.mxu0 0.0
  %304 = vmatpush1.msra.mxu0 0.0
  %305 = vmatprep.subr.mxu0 0.0
  %306 = vmatpush1.msra.mxu0 0.0
  %307 = vmatprep.subr.mxu0 0.0
  %308 = vmatpush1.msra.mxu0 0.0
  %309 = vmatprep.subr.mxu0 0.0
  %310 = vmatpush1.msra.mxu0 0.0
  %311 = vmatprep.subr.mxu0 0.0
  %312 = vmatpush1.msra.mxu0 0.0
  %313 = vmatprep.subr.mxu0 0.0
  %314 = vmatpush1.msra.mxu0 0.0
  %315 = vmatprep.subr.mxu0 0.0
  %v316 = vand.u32 %v33, 4294901760
  %317 = vmatpush1.msra.mxu0 %v316
  %318 = vmatprep.subr.mxu0 0.0
  %v319 = vand.u32 %v18, 4294901760
  %320 = vmatpush1.msra.mxu0 %v319
  %321 = vmatprep.subr.mxu0 0.0
  %v322 = vand.u32 %v17, 4294901760
  %323 = vmatpush1.msra.mxu0 %v322
  %324 = vmatprep.subr.mxu0 0.0
  %v325 = vand.u32 %v16, 4294901760
  %326 = vmatpush1.msra.mxu0 %v325
  %327 = vmatprep.subr.mxu0 0.0
  %v328 = vand.u32 %v15, 4294901760
  %329 = vmatpush1.msra.mxu0 %v328
  %330 = vmatprep.subr.mxu0 0.0
  %331 = vmatpush2.msra.mxu0 0.0
  %332 = vmatprep.subr.mxu0 0.0
  %333 = vmatpush2.msra.mxu0 0.0
  %334 = vmatprep.subr.mxu0 0.0
  %335 = vmatpush2.msra.mxu0 0.0
  %336 = vmatprep.subr.mxu0 0.0
  %337 = vmatpush2.msra.mxu0 0.0
  %338 = vmatprep.subr.mxu0 0.0
  %339 = vmatpush2.msra.mxu0 0.0
  %340 = vmatprep.subr.mxu0 0.0
  %341 = vmatpush2.msra.mxu0 0.0
  %342 = vmatprep.subr.mxu0 0.0
  %343 = vmatpush2.msra.mxu0 0.0
  %344 = vmatprep.subr.mxu0 0.0
  %345 = vmatpush2.msra.mxu0 0.0
  %346 = vmatprep.subr.mxu0 0.0
  %347 = vmatpush2.msra.mxu0 0.0
  %348 = vmatprep.subr.mxu0 0.0
  %349 = vmatpush2.msra.mxu0 0.0
  %350 = vmatprep.subr.mxu0 0.0
  %351 = vmatpush2.msra.mxu0 0.0
  %352 = vmatprep.subr.mxu0 0.0
  %353 = vmatpush2.msra.mxu0 0.0
  %354 = vmatprep.subr.mxu0 0.0
  %355 = vmatpush2.msra.mxu0 0.0
  %356 = vmatprep.subr.mxu0 0.0
  %357 = vmatpush2.msra.mxu0 0.0
  %358 = vmatprep.subr.mxu0 0.0
  %359 = vmatpush2.msra.mxu0 0.0
  %360 = vmatprep.subr.mxu0 0.0
  %361 = vmatpush2.msra.mxu0 0.0
  %362 = vmatprep.mubr.f32.mxu0 0.0
  %v363 = vand.u32 %v29, 4294901760
  %v364 = vsub.f32 %v29, %v363
  %v365 = vand.u32 %v364, 4294901760
  %366 = vmatmul.mubr.f32.gmra.mxu0 %v365
  %v367 = vpop.f32.mrf.mxu0
  %v368 = vadd.f32 %v290, %v367
  %v369 = vpop.f32.mrf.mxu0
  %370 = vdwg.mxu0
  %371 = vmatprep.subr.mxu0 0.0
  %372 = vmatpush1.msra.mxu0 0.0
  %373 = vmatprep.subr.mxu0 0.0
  %374 = vmatpush1.msra.mxu0 0.0
  %375 = vmatprep.subr.mxu0 0.0
  %376 = vmatpush1.msra.mxu0 0.0
  %377 = vmatprep.subr.mxu0 0.0
  %378 = vmatpush1.msra.mxu0 0.0
  %379 = vmatprep.subr.mxu0 0.0
  %380 = vmatpush1.msra.mxu0 0.0
  %381 = vmatprep.subr.mxu0 0.0
  %382 = vmatpush1.msra.mxu0 0.0
  %383 = vmatprep.subr.mxu0 0.0
  %384 = vmatpush1.msra.mxu0 0.0
  %385 = vmatprep.subr.mxu0 0.0
  %386 = vmatpush1.msra.mxu0 0.0
  %387 = vmatprep.subr.mxu0 0.0
  %388 = vmatpush1.msra.mxu0 0.0
  %389 = vmatprep.subr.mxu0 0.0
  %390 = vmatpush1.msra.mxu0 0.0
  %391 = vmatprep.subr.mxu0 0.0
  %392 = vmatpush1.msra.mxu0 0.0
  %393 = vmatprep.subr.mxu0 0.0
  %v394 = vand.u32 %v33, 4294901760
  %v395 = vsub.f32 %v33, %v394
  %v396 = vand.u32 %v395, 4294901760
  %397 = vmatpush1.msra.mxu0 %v396
  %398 = vmatprep.subr.mxu0 0.0
  %v399 = vand.u32 %v18, 4294901760
  %v400 = vsub.f32 %v18, %v399
  %v401 = vand.u32 %v400, 4294901760
  %402 = vmatpush1.msra.mxu0 %v401
  %403 = vmatprep.subr.mxu0 0.0
  %v404 = vand.u32 %v17, 4294901760
  %v405 = vsub.f32 %v17, %v404
  %v406 = vand.u32 %v405, 4294901760
  %407 = vmatpush1.msra.mxu0 %v406
  %408 = vmatprep.subr.mxu0 0.0
  %v409 = vand.u32 %v16, 4294901760
  %v410 = vsub.f32 %v16, %v409
  %v411 = vand.u32 %v410, 4294901760
  %412 = vmatpush1.msra.mxu0 %v411
  %413 = vmatprep.subr.mxu0 0.0
  %v414 = vand.u32 %v15, 4294901760
  %v415 = vsub.f32 %v15, %v414
  %v416 = vand.u32 %v415, 4294901760
  %417 = vmatpush1.msra.mxu0 %v416
  %418 = vmatprep.subr.mxu0 0.0
  %419 = vmatpush2.msra.mxu0 0.0
  %420 = vmatprep.subr.mxu0 0.0
  %421 = vmatpush2.msra.mxu0 0.0
  %422 = vmatprep.subr.mxu0 0.0
  %423 = vmatpush2.msra.mxu0 0.0
  %424 = vmatprep.subr.mxu0 0.0
  %425 = vmatpush2.msra.mxu0 0.0
  %426 = vmatprep.subr.mxu0 0.0
  %427 = vmatpush2.msra.mxu0 0.0
  %428 = vmatprep.subr.mxu0 0.0
  %429 = vmatpush2.msra.mxu0 0.0
  %430 = vmatprep.subr.mxu0 0.0
  %431 = vmatpush2.msra.mxu0 0.0
  %432 = vmatprep.subr.mxu0 0.0
  %433 = vmatpush2.msra.mxu0 0.0
  %434 = vmatprep.subr.mxu0 0.0
  %435 = vmatpush2.msra.mxu0 0.0
  %436 = vmatprep.subr.mxu0 0.0
  %437 = vmatpush2.msra.mxu0 0.0
  %438 = vmatprep.subr.mxu0 0.0
  %439 = vmatpush2.msra.mxu0 0.0
  %440 = vmatprep.subr.mxu0 0.0
  %441 = vmatpush2.msra.mxu0 0.0
  %442 = vmatprep.subr.mxu0 0.0
  %443 = vmatpush2.msra.mxu0 0.0
  %444 = vmatprep.subr.mxu0 0.0
  %445 = vmatpush2.msra.mxu0 0.0
  %446 = vmatprep.subr.mxu0 0.0
  %447 = vmatpush2.msra.mxu0 0.0
  %448 = vmatprep.subr.mxu0 0.0
  %449 = vmatpush2.msra.mxu0 0.0
  %450 = vmatprep.mubr.f32.mxu0 0.0
  %v451 = vand.u32 %v29, 4294901760
  %452 = vmatmul.mubr.f32.gmra.mxu0 %v451
  %v453 = vpop.f32.mrf.mxu0
  %v454 = vadd.f32 %v368, %v453
  %v455 = vpop.f32.mrf.mxu0
  %456 = vdwg.mxu0
  %457 = vmatprep.subr.mxu0 0.0
  %458 = vmatpush1.msra.mxu0 0.0
  %459 = vmatprep.subr.mxu0 0.0
  %460 = vmatpush1.msra.mxu0 0.0
  %461 = vmatprep.subr.mxu0 0.0
  %462 = vmatpush1.msra.mxu0 0.0
  %463 = vmatprep.subr.mxu0 0.0
  %464 = vmatpush1.msra.mxu0 0.0
  %465 = vmatprep.subr.mxu0 0.0
  %466 = vmatpush1.msra.mxu0 0.0
  %467 = vmatprep.subr.mxu0 0.0
  %468 = vmatpush1.msra.mxu0 0.0
  %469 = vmatprep.subr.mxu0 0.0
  %470 = vmatpush1.msra.mxu0 0.0
  %471 = vmatprep.subr.mxu0 0.0
  %472 = vmatpush1.msra.mxu0 0.0
  %473 = vmatprep.subr.mxu0 0.0
  %474 = vmatpush1.msra.mxu0 0.0
  %475 = vmatprep.subr.mxu0 0.0
  %476 = vmatpush1.msra.mxu0 0.0
  %477 = vmatprep.subr.mxu0 0.0
  %478 = vmatpush1.msra.mxu0 0.0
  %479 = vmatprep.subr.mxu0 0.0
  %v480 = vand.u32 %v33, 4294901760
  %481 = vmatpush1.msra.mxu0 %v480
  %482 = vmatprep.subr.mxu0 0.0
  %v483 = vand.u32 %v18, 4294901760
  %484 = vmatpush1.msra.mxu0 %v483
  %485 = vmatprep.subr.mxu0 0.0
  %v486 = vand.u32 %v17, 4294901760
  %487 = vmatpush1.msra.mxu0 %v486
  %488 = vmatprep.subr.mxu0 0.0
  %v489 = vand.u32 %v16, 4294901760
  %490 = vmatpush1.msra.mxu0 %v489
  %491 = vmatprep.subr.mxu0 0.0
  %v492 = vand.u32 %v15, 4294901760
  %493 = vmatpush1.msra.mxu0 %v492
  %494 = vmatprep.subr.mxu0 0.0
  %495 = vmatpush2.msra.mxu0 0.0
  %496 = vmatprep.subr.mxu0 0.0
  %497 = vmatpush2.msra.mxu0 0.0
  %498 = vmatprep.subr.mxu0 0.0
  %499 = vmatpush2.msra.mxu0 0.0
  %500 = vmatprep.subr.mxu0 0.0
  %501 = vmatpush2.msra.mxu0 0.0
  %502 = vmatprep.subr.mxu0 0.0
  %503 = vmatpush2.msra.mxu0 0.0
  %504 = vmatprep.subr.mxu0 0.0
  %505 = vmatpush2.msra.mxu0 0.0
  %506 = vmatprep.subr.mxu0 0.0
  %507 = vmatpush2.msra.mxu0 0.0
  %508 = vmatprep.subr.mxu0 0.0
  %509 = vmatpush2.msra.mxu0 0.0
  %510 = vmatprep.subr.mxu0 0.0
  %511 = vmatpush2.msra.mxu0 0.0
  %512 = vmatprep.subr.mxu0 0.0
  %513 = vmatpush2.msra.mxu0 0.0
  %514 = vmatprep.subr.mxu0 0.0
  %515 = vmatpush2.msra.mxu0 0.0
  %516 = vmatprep.subr.mxu0 0.0
  %517 = vmatpush2.msra.mxu0 0.0
  %518 = vmatprep.subr.mxu0 0.0
  %519 = vmatpush2.msra.mxu0 0.0
  %520 = vmatprep.subr.mxu0 0.0
  %521 = vmatpush2.msra.mxu0 0.0
  %522 = vmatprep.subr.mxu0 0.0
  %523 = vmatpush2.msra.mxu0 0.0
  %524 = vmatprep.subr.mxu0 0.0
  %525 = vmatpush2.msra.mxu0 0.0
  %526 = vmatprep.mubr.f32.mxu0 0.0
  %v527 = vand.u32 %v29, 4294901760
  %528 = vmatmul.mubr.f32.gmra.mxu0 %v527
  %v529 = vpop.f32.mrf.mxu0
  %v530 = vadd.f32 %v454, %v529
  %v531 = vpop.f32.mrf.mxu0
  %532 = vdwg.mxu0
  %vm533 = vcmask 781312
  %534 = vst.msk [vmem:[%s3] sm:$0xf] %vm533, %v530
  // Predicated region
  $region14: #{cnnrnn_forward.10} parent=0 // pred_check
    _
  $region15: #{cnnrnn_forward.10} parent=0 // pred_check_branch
    %536 = sbr.rel (0) target = $region17
  $region16: #{cnnrnn_forward.10} parent=0 // pred_region
    _
  $region17: #{cnnrnn_forward.10} parent=0 // pred_fallthru
    _
  // Predicated region
  $region18: #{cnnrnn_forward.10} parent=0 // pred_check
    _
  $region19: #{cnnrnn_forward.10} parent=0 // pred_check_branch
    %538 = sbr.rel (0) target = $region21
  $region20: #{cnnrnn_forward.10} parent=0 // pred_region
    _
  $region21: #{cnnrnn_forward.10} parent=0 // pred_fallthru
    _

// kernel: cnnrnn_forward.11
$region0: #{cnnrnn_forward.11}
  #allocation0 [shape = 'u32[]', space=smem, size = 0x4, offset = 0x4, fixed_abs, tag = 'smem constant byte address 0x4 - core index']
  #allocation1 [shape = 'u32[144,128]{1,0:T(1,128)}', space=vmem, size = 0x12000, scoped, tag = 'internal scratch']
  #allocation2 [shape = 'f32[2,32]{1,0:T(2,128)}', space=vmem, size = 0x400, scoped, tag = 'scratch operand']
  %s0 = inlined_call_operand.vmem [shape: f32[2,2,96], index: 0, kind: input, shape index: {}]
  %s1 = inlined_call_operand.vmem [shape: f32[2,2,1], index: 1, kind: input, shape index: {}]
  %s2 = inlined_call_operand.vmem [shape: f32[2,32], index: 2, kind: input, shape index: {}]
  %s3 = inlined_call_operand.vmem [shape: f32[32,96], index: 3, kind: input, shape index: {}]
  %s4 = inlined_call_operand.vmem [shape: f32[1,96], index: 4, kind: input, shape index: {}]
  %s5 = inlined_call_operand.hbm [shape: f32[2,2,32], index: 5, kind: output, shape index: {}]
  %s6 = sld [smem:[#allocation0]]
  $region57: #{cnnrnn_forward.11} parent=0
    _
  %s8 = ssub.s32 1, %s6
  %s9 = scalar_select 0, %s8, %s6
  $region1: #{cnnrnn_forward.11} parent=0
    #allocation3 [shape = 'u8[2048]{0}', space=vmem, size = 0x800, scoped, tag = 'output window, operand 0']
    #allocation4 [shape = 's32[2]{0}', space=sflag, size = 0x8, scoped, tag = 'scoped memory for cnnrnn_forward.11']
    %10 = vsyncpa [#allocation4], 0
    %s11 = scalar_lea.sflag [#allocation4], 1
    %12 = vsyncpa %s11, 0
    loop: start=0, step=1, limit=4
    $region2: #{cnnrnn_forward.11} parent=1 // loop_pre_header
      _
    $region3: #{cnnrnn_forward.11} parent=1 // loop_header
      %s14 = sphi 0, %s18
      %p15 = scmp.ge.s32.totalorder %s14, 4
      %s24 = sphi 0, %s26
      %s27 = sphi 0, %s24
      %s28 = sphi 0, %s27
      %s44 = sphi 0, %s28
      %s50 = sphi 0, %s52
      %s53 = sphi 0, %s50
      %s54 = sphi 0, %s53
      %s70 = sphi 0, %s54
      %s74 = sphi 0, %s74
      %s76 = sphi 0, %s74
      %s77 = sphi 0, %s76
      %s91 = sphi 0, %s77
      %s95 = sphi 0, %s95
      %s97 = sphi 0, %s95
      %s98 = sphi 0, %s97
      %s112 = sphi 0, %s98
      %s116 = sphi 0, %s116
      %s118 = sphi 0, %s116
      %s119 = sphi 0, %s118
      %s133 = sphi 0, %s119
      %s139 = sphi 0, %s141
      %s142 = sphi 0, %s139
      %s143 = sphi 0, %s142
      %s159 = sphi 0, %s143
    $region4: #{cnnrnn_forward.11} parent=1 // loop_header_branch
      %17 = sbr.rel (%p15) target = $region8
    $region5: #{cnnrnn_forward.11} parent=1 // loop_body
      %s19 = ssub.s32 %s14, 1
      %s20 = ssub.s32 %s14, 2
      %s21 = sadd.s32 %s14, 1
      %s22 = ssub.s32 %s14, %s21
      %p23 = scmp.eq.s32.totalorder %s22, 0
      %s25 = sadd.s32 %s24, 1
      %s26 = scalar_select %p23, %s24, %s25
      %p29 = pneg %p23
      %p30 = scmp.eq.s32.totalorder %s14, 1
      %p31 = por %p29, %p30
      %p32 = scmp.ne.s32.totalorder %s24, %s27
      %p33 = scmp.eq.s32.totalorder %s14, 0
      %p34 = por %p32, %p33
      %p35 = scmp.ne.s32.totalorder %s24, %s27
      %p36 = scmp.eq.s32.totalorder %s19, 1
      %p37 = por %p35, %p36
      %p38 = scmp.ne.s32.totalorder %s27, %s28
      %p39 = scmp.eq.s32.totalorder %s19, 0
      %p40 = por %p38, %p39
      %p41 = scmp.ne.s32.totalorder %s27, %s28
      %p42 = scmp.eq.s32.totalorder %s20, 1
      %p43 = por %p41, %p42
      %p45 = scmp.ne.s32.totalorder %s28, %s44
      %p46 = scmp.eq.s32.totalorder %s20, 0
      %p47 = por %p45, %p46
      %s48 = ssub.s32 %s14, %s21
      %p49 = scmp.eq.s32.totalorder %s48, 0
      %s51 = sadd.s32 %s50, 1
      %s52 = scalar_select %p49, %s50, %s51
      %p55 = pneg %p49
      %p56 = scmp.eq.s32.totalorder %s14, 1
      %p57 = por %p55, %p56
      %p58 = scmp.ne.s32.totalorder %s50, %s53
      %p59 = scmp.eq.s32.totalorder %s14, 0
      %p60 = por %p58, %p59
      %p61 = scmp.ne.s32.totalorder %s50, %s53
      %p62 = scmp.eq.s32.totalorder %s19, 1
      %p63 = por %p61, %p62
      %p64 = scmp.ne.s32.totalorder %s53, %s54
      %p65 = scmp.eq.s32.totalorder %s19, 0
      %p66 = por %p64, %p65
      %p67 = scmp.ne.s32.totalorder %s53, %s54
      %p68 = scmp.eq.s32.totalorder %s20, 1
      %p69 = por %p67, %p68
      %p71 = scmp.ne.s32.totalorder %s54, %s70
      %p72 = scmp.eq.s32.totalorder %s20, 0
      %p73 = por %p71, %p72
      %s75 = sadd.s32 %s74, 1
      %p78 = scmp.eq.s32.totalorder %s14, 1
      %p79 = scmp.ne.s32.totalorder %s74, %s76
      %p80 = scmp.eq.s32.totalorder %s14, 0
      %p81 = por %p79, %p80
      %p82 = scmp.ne.s32.totalorder %s74, %s76
      %p83 = scmp.eq.s32.totalorder %s19, 1
      %p84 = por %p82, %p83
      %p85 = scmp.ne.s32.totalorder %s76, %s77
      %p86 = scmp.eq.s32.totalorder %s19, 0
      %p87 = por %p85, %p86
      %p88 = scmp.ne.s32.totalorder %s76, %s77
      %p89 = scmp.eq.s32.totalorder %s20, 1
      %p90 = por %p88, %p89
      %p92 = scmp.ne.s32.totalorder %s77, %s91
      %p93 = scmp.eq.s32.totalorder %s20, 0
      %p94 = por %p92, %p93
      %s96 = sadd.s32 %s95, 1
      %p99 = scmp.eq.s32.totalorder %s14, 1
      %p100 = scmp.ne.s32.totalorder %s95, %s97
      %p101 = scmp.eq.s32.totalorder %s14, 0
      %p102 = por %p100, %p101
      %p103 = scmp.ne.s32.totalorder %s95, %s97
      %p104 = scmp.eq.s32.totalorder %s19, 1
      %p105 = por %p103, %p104
      %p106 = scmp.ne.s32.totalorder %s97, %s98
      %p107 = scmp.eq.s32.totalorder %s19, 0
      %p108 = por %p106, %p107
      %p109 = scmp.ne.s32.totalorder %s97, %s98
      %p110 = scmp.eq.s32.totalorder %s20, 1
      %p111 = por %p109, %p110
      %p113 = scmp.ne.s32.totalorder %s98, %s112
      %p114 = scmp.eq.s32.totalorder %s20, 0
      %p115 = por %p113, %p114
      %s117 = sadd.s32 %s116, 1
      %p120 = scmp.eq.s32.totalorder %s14, 1
      %p121 = scmp.ne.s32.totalorder %s116, %s118
      %p122 = scmp.eq.s32.totalorder %s14, 0
      %p123 = por %p121, %p122
      %p124 = scmp.ne.s32.totalorder %s116, %s118
      %p125 = scmp.eq.s32.totalorder %s19, 1
      %p126 = por %p124, %p125
      %p127 = scmp.ne.s32.totalorder %s118, %s119
      %p128 = scmp.eq.s32.totalorder %s19, 0
      %p129 = por %p127, %p128
      %p130 = scmp.ne.s32.totalorder %s118, %s119
      %p131 = scmp.eq.s32.totalorder %s20, 1
      %p132 = por %p130, %p131
      %p134 = scmp.ne.s32.totalorder %s119, %s133
      %p135 = scmp.eq.s32.totalorder %s20, 0
      %p136 = por %p134, %p135
      %s137 = ssub.s32 %s14, %s21
      %p138 = scmp.eq.s32.totalorder %s137, 0
      %s140 = sadd.s32 %s139, 1
      %s141 = scalar_select %p138, %s139, %s140
      %p144 = pneg %p138
      %p145 = scmp.eq.s32.totalorder %s14, 1
      %p146 = por %p144, %p145
      %p147 = scmp.ne.s32.totalorder %s139, %s142
      %p148 = scmp.eq.s32.totalorder %s14, 0
      %p149 = por %p147, %p148
      %p150 = scmp.ne.s32.totalorder %s139, %s142
      %p151 = scmp.eq.s32.totalorder %s19, 1
      %p152 = por %p150, %p151
      %p153 = scmp.ne.s32.totalorder %s142, %s143
      %p154 = scmp.eq.s32.totalorder %s19, 0
      %p155 = por %p153, %p154
      %p156 = scmp.ne.s32.totalorder %s142, %s143
      %p157 = scmp.eq.s32.totalorder %s20, 1
      %p158 = por %p156, %p157
      %p160 = scmp.ne.s32.totalorder %s143, %s159
      %p161 = scmp.eq.s32.totalorder %s20, 0
      %p162 = por %p160, %p161
      %p163 = scmp.le.s32.totalorder 1, %s14
      %p164 = scmp.lt.s32.totalorder %s14, 3
      %p165 = pnand %p163, %p164
      %p166 = pneg %p165
      // Predicated region
      $region9: #{cnnrnn_forward.11} parent=5 // pred_check
        _
      $region10: #{cnnrnn_forward.11} parent=5 // pred_check_branch
        %168 = sbr.rel (%p165) target = $region12
      $region11: #{cnnrnn_forward.11} parent=5 // pred_region
        %s169 = ssub.s32 %s14, 1
        // Predicated region
        $region13: #{cnnrnn_forward.11} parent=11 // pred_check
          %p170 = pneg %p87
        $region14: #{cnnrnn_forward.11} parent=11 // pred_check_branch
          %172 = sbr.rel (%p170) target = $region16
        $region15: #{cnnrnn_forward.11} parent=11 // pred_region
          _
        $region16: #{cnnrnn_forward.11} parent=11 // pred_fallthru
          _
        // Predicated region
        $region17: #{cnnrnn_forward.11} parent=11 // pred_check
          %p173 = pneg %p108
        $region18: #{cnnrnn_forward.11} parent=11 // pred_check_branch
          %175 = sbr.rel (%p173) target = $region20
        $region19: #{cnnrnn_forward.11} parent=11 // pred_region
          _
        $region20: #{cnnrnn_forward.11} parent=11 // pred_fallthru
          _
        // Predicated region
        $region21: #{cnnrnn_forward.11} parent=11 // pred_check
          %p176 = pneg %p129
        $region22: #{cnnrnn_forward.11} parent=11 // pred_check_branch
          %178 = sbr.rel (%p176) target = $region24
        $region23: #{cnnrnn_forward.11} parent=11 // pred_region
          _
        $region24: #{cnnrnn_forward.11} parent=11 // pred_fallthru
          _
      $region12: #{cnnrnn_forward.11} parent=5 // pred_fallthru
        _
      %p179 = scmp.lt.s32.totalorder %s14, 2
      // Predicated region
      $region25: #{cnnrnn_forward.11} parent=5 // pred_check
        %p180 = pneg %p179
      $region26: #{cnnrnn_forward.11} parent=5 // pred_check_branch
        %182 = sbr.rel (%p180) target = $region28
      $region27: #{cnnrnn_forward.11} parent=5 // pred_region
        // Predicated region
        $region29: #{cnnrnn_forward.11} parent=27 // pred_check
          %p183 = pneg %p34
        $region30: #{cnnrnn_forward.11} parent=27 // pred_check_branch
          %185 = sbr.rel (%p183) target = $region32
        $region31: #{cnnrnn_forward.11} parent=27 // pred_region
          %p186 = scmp.lt.s32.totalorder %s14, 1
          %s187 = scalar_select %p186, %s14, 1
          %s188 = smul.addr %s187, 2
          %s189 = scalar_lea.vmem %s0, %s188
        $region32: #{cnnrnn_forward.11} parent=27 // pred_fallthru
          _
        // Predicated region
        $region33: #{cnnrnn_forward.11} parent=27 // pred_check
          %p190 = pneg %p60
        $region34: #{cnnrnn_forward.11} parent=27 // pred_check_branch
          %192 = sbr.rel (%p190) target = $region36
        $region35: #{cnnrnn_forward.11} parent=27 // pred_region
          %p193 = scmp.lt.s32.totalorder %s14, 1
          %s194 = scalar_select %p193, %s14, 1
          %s195 = smul.addr %s194, 2
          %s196 = scalar_lea.vmem %s1, %s195
        $region36: #{cnnrnn_forward.11} parent=27 // pred_fallthru
          _
      $region28: #{cnnrnn_forward.11} parent=5 // pred_fallthru
        _
      %p197 = scmp.le.s32.totalorder 1, %s14
      %p198 = scmp.lt.s32.totalorder %s14, 3
      %p199 = pnand %p197, %p198
      %p200 = pneg %p199
      // Predicated region
      $region37: #{cnnrnn_forward.11} parent=5 // pred_check
        _
      $region38: #{cnnrnn_forward.11} parent=5 // pred_check_branch
        %202 = sbr.rel (%p199) target = $region40
      $region39: #{cnnrnn_forward.11} parent=5 // pred_region
        %s203 = ssub.s32 %s14, 1
        %p204 = scmp.lt.s32.totalorder %s19, 1
        %s205 = scalar_select %p204, %s19, 1
        %s206 = smul.addr %s205, 2
        %s207 = scalar_lea.vmem %s0, %s206
        %p208 = pneg %p40
        %p209 = pneg %p37
        %p210 = scmp.lt.s32.totalorder %s19, 1
        %s211 = scalar_select %p210, %s19, 1
        %s212 = smul.addr %s211, 2
        %s213 = scalar_lea.vmem %s1, %s212
        %p214 = pneg %p66
        %p215 = pneg %p63
        %p216 = pneg %p87
        %p217 = pneg %p84
        %p218 = pneg %p108
        %p219 = pneg %p105
        %p220 = pneg %p129
        %p221 = pneg %p126
        %p222 = pneg %p155
        %p223 = pneg %p152
        %s224 = sand.u32 %s142, 1
        %s225 = scalar_lea.sflag [#allocation4], %s224
        %s226 = sand.u32 %s142, 1
        %s227 = smul.addr %s226, 2
        %s228 = scalar_lea.vmem [#allocation3], %s227
        %p229 = scmp.lt.s32.totalorder %s19, 1
        %s230 = scalar_select %p229, %s19, 1
        %s231 = smul.addr %s230, 2
        %s232 = scalar_lea.vmem %s0, %s231
        %p233 = scmp.lt.s32.totalorder %s19, 1
        %s234 = scalar_select %p233, %s19, 1
        %s235 = smul.addr %s234, 2
        %s236 = scalar_lea.vmem %s1, %s235
        %p237 = scmp.eq.s32.totalorder %s19, 0
        // Predicated region
        $region41: #{cnnrnn_forward.11} parent=39 // pred_check
          %p238 = pneg %p237
        $region42: #{cnnrnn_forward.11} parent=39 // pred_check_branch
          %240 = sbr.rel (%p238) target = $region44
        $region43: #{cnnrnn_forward.11} parent=39 // pred_region
          %v241 = vld [vmem:[%s2] sm:$0x3]
          %vm242 = vcmask 254976
          %243 = vst.msk [vmem:[#allocation2] sm:$0x3] %vm242, %v241
        $region44: #{cnnrnn_forward.11} parent=39 // pred_fallthru
          _
        %v244 = vld [vmem:[#allocation2] sm:$0x3]
        %v245 = vld [vmem:[%s236] sm:$0x3]
        %247 = vset.pattern.permute.xlu0 0
        %248 = vperm.xlu0 %247, %v245
        %v249 = vpop.permute.xlu0 %248
        %v251 = vmul.f32 %v244, %v249
        %v252 = vld [vmem:[%s3] sm:$0xff]
        %v253 = vld [vmem:[%s3 + $0x8] sm:$0xff]
        %v254 = vld [vmem:[%s3 + $0x10] sm:$0xff]
        %v255 = vld [vmem:[%s3 + $0x18] sm:$0xff]
        %v256 = vld [vmem:[%s4] sm:$0x1]
        %v258 = vlaneseq
        %v259 = vshrl.u32 %v258, 7
        %v260 = vsub.s32 0, %v259
        %v261 = vrot.slane %v256, %v260
        %vm263 = vcmask 261120
        %v265 = vsel %vm263, %v251, 0
        %267 = vmatprep.subr.mxu0 0.0
        %268 = vmatpush1.msra.mxu0 0.0
        %269 = vmatprep.subr.mxu0 0.0
        %270 = vmatpush1.msra.mxu0 0.0
        %271 = vmatprep.subr.mxu0 0.0
        %272 = vmatpush1.msra.mxu0 0.0
        %273 = vmatprep.subr.mxu0 0.0
        %274 = vmatpush1.msra.mxu0 0.0
        %275 = vmatprep.subr.mxu0 0.0
        %276 = vmatpush1.msra.mxu0 0.0
        %277 = vmatprep.subr.mxu0 0.0
        %278 = vmatpush1.msra.mxu0 0.0
        %279 = vmatprep.subr.mxu0 0.0
        %280 = vmatpush1.msra.mxu0 0.0
        %281 = vmatprep.subr.mxu0 0.0
        %282 = vmatpush1.msra.mxu0 0.0
        %283 = vmatprep.subr.mxu0 0.0
        %284 = vmatpush1.msra.mxu0 0.0
        %285 = vmatprep.subr.mxu0 0.0
        %286 = vmatpush1.msra.mxu0 0.0
        %287 = vmatprep.subr.mxu0 0.0
        %288 = vmatpush1.msra.mxu0 0.0
        %289 = vmatprep.subr.mxu0 0.0
        %290 = vmatpush1.msra.mxu0 0.0
        %291 = vmatprep.subr.mxu0 0.0
        %v292 = vand.u32 %v255, 4294901760
        %293 = vmatpush1.msra.mxu0 %v292
        %294 = vmatprep.subr.mxu0 0.0
        %v295 = vand.u32 %v254, 4294901760
        %296 = vmatpush1.msra.mxu0 %v295
        %297 = vmatprep.subr.mxu0 0.0
        %v298 = vand.u32 %v253, 4294901760
        %299 = vmatpush1.msra.mxu0 %v298
        %300 = vmatprep.subr.mxu0 0.0
        %v301 = vand.u32 %v252, 4294901760
        %302 = vmatpush1.msra.mxu0 %v301
        %303 = vmatprep.subr.mxu0 0.0
        %304 = vmatpush2.msra.mxu0 0.0
        %305 = vmatprep.subr.mxu0 0.0
        %306 = vmatpush2.msra.mxu0 0.0
        %307 = vmatprep.subr.mxu0 0.0
        %308 = vmatpush2.msra.mxu0 0.0
        %309 = vmatprep.subr.mxu0 0.0
        %310 = vmatpush2.msra.mxu0 0.0
        %311 = vmatprep.subr.mxu0 0.0
        %312 = vmatpush2.msra.mxu0 0.0
        %313 = vmatprep.subr.mxu0 0.0
        %314 = vmatpush2.msra.mxu0 0.0
        %315 = vmatprep.subr.mxu0 0.0
        %316 = vmatpush2.msra.mxu0 0.0
        %317 = vmatprep.subr.mxu0 0.0
        %318 = vmatpush2.msra.mxu0 0.0
        %319 = vmatprep.subr.mxu0 0.0
        %320 = vmatpush2.msra.mxu0 0.0
        %321 = vmatprep.subr.mxu0 0.0
        %322 = vmatpush2.msra.mxu0 0.0
        %323 = vmatprep.subr.mxu0 0.0
        %324 = vmatpush2.msra.mxu0 0.0
        %325 = vmatprep.subr.mxu0 0.0
        %326 = vmatpush2.msra.mxu0 0.0
        %327 = vmatprep.subr.mxu0 0.0
        %328 = vmatpush2.msra.mxu0 0.0
        %329 = vmatprep.subr.mxu0 0.0
        %330 = vmatpush2.msra.mxu0 0.0
        %331 = vmatprep.subr.mxu0 0.0
        %332 = vmatpush2.msra.mxu0 0.0
        %333 = vmatprep.subr.mxu0 0.0
        %334 = vmatpush2.msra.mxu0 0.0
        %335 = vmatprep.mubr.f32.mxu0 0.0
        %v336 = vand.u32 %v265, 4294901760
        %v337 = vsub.f32 %v265, %v336
        %v338 = vand.u32 %v337, 4294901760
        %v339 = vsub.f32 %v337, %v338
        %v340 = vand.u32 %v339, 4294901760
        %341 = vmatmul.mubr.f32.gmra.mxu0 %v340
        %v342 = vpop.f32.mrf.mxu0
        %v343 = vadd.f32 %v261, %v342
        %v344 = vpop.f32.mrf.mxu0
        %345 = vdwg.mxu0
        %346 = vmatprep.subr.mxu0 0.0
        %347 = vmatpush1.msra.mxu0 0.0
        %348 = vmatprep.subr.mxu0 0.0
        %349 = vmatpush1.msra.mxu0 0.0
        %350 = vmatprep.subr.mxu0 0.0
        %351 = vmatpush1.msra.mxu0 0.0
        %352 = vmatprep.subr.mxu0 0.0
        %353 = vmatpush1.msra.mxu0 0.0
        %354 = vmatprep.subr.mxu0 0.0
        %355 = vmatpush1.msra.mxu0 0.0
        %356 = vmatprep.subr.mxu0 0.0
        %357 = vmatpush1.msra.mxu0 0.0
        %358 = vmatprep.subr.mxu0 0.0
        %359 = vmatpush1.msra.mxu0 0.0
        %360 = vmatprep.subr.mxu0 0.0
        %361 = vmatpush1.msra.mxu0 0.0
        %362 = vmatprep.subr.mxu0 0.0
        %363 = vmatpush1.msra.mxu0 0.0
        %364 = vmatprep.subr.mxu0 0.0
        %365 = vmatpush1.msra.mxu0 0.0
        %366 = vmatprep.subr.mxu0 0.0
        %367 = vmatpush1.msra.mxu0 0.0
        %368 = vmatprep.subr.mxu0 0.0
        %369 = vmatpush1.msra.mxu0 0.0
        %370 = vmatprep.subr.mxu0 0.0
        %v371 = vand.u32 %v255, 4294901760
        %v372 = vsub.f32 %v255, %v371
        %v373 = vand.u32 %v372, 4294901760
        %v374 = vsub.f32 %v372, %v373
        %v375 = vand.u32 %v374, 4294901760
        %376 = vmatpush1.msra.mxu0 %v375
        %377 = vmatprep.subr.mxu0 0.0
        %v378 = vand.u32 %v254, 4294901760
        %v379 = vsub.f32 %v254, %v378
        %v380 = vand.u32 %v379, 4294901760
        %v381 = vsub.f32 %v379, %v380
        %v382 = vand.u32 %v381, 4294901760
        %383 = vmatpush1.msra.mxu0 %v382
        %384 = vmatprep.subr.mxu0 0.0
        %v385 = vand.u32 %v253, 4294901760
        %v386 = vsub.f32 %v253, %v385
        %v387 = vand.u32 %v386, 4294901760
        %v388 = vsub.f32 %v386, %v387
        %v389 = vand.u32 %v388, 4294901760
        %390 = vmatpush1.msra.mxu0 %v389
        %391 = vmatprep.subr.mxu0 0.0
        %v392 = vand.u32 %v252, 4294901760
        %v393 = vsub.f32 %v252, %v392
        %v394 = vand.u32 %v393, 4294901760
        %v395 = vsub.f32 %v393, %v394
        %v396 = vand.u32 %v395, 4294901760
        %397 = vmatpush1.msra.mxu0 %v396
        %398 = vmatprep.subr.mxu0 0.0
        %399 = vmatpush2.msra.mxu0 0.0
        %400 = vmatprep.subr.mxu0 0.0
        %401 = vmatpush2.msra.mxu0 0.0
        %402 = vmatprep.subr.mxu0 0.0
        %403 = vmatpush2.msra.mxu0 0.0
        %404 = vmatprep.subr.mxu0 0.0
        %405 = vmatpush2.msra.mxu0 0.0
        %406 = vmatprep.subr.mxu0 0.0
        %407 = vmatpush2.msra.mxu0 0.0
        %408 = vmatprep.subr.mxu0 0.0
        %409 = vmatpush2.msra.mxu0 0.0
        %410 = vmatprep.subr.mxu0 0.0
        %411 = vmatpush2.msra.mxu0 0.0
        %412 = vmatprep.subr.mxu0 0.0
        %413 = vmatpush2.msra.mxu0 0.0
        %414 = vmatprep.subr.mxu0 0.0
        %415 = vmatpush2.msra.mxu0 0.0
        %416 = vmatprep.subr.mxu0 0.0
        %417 = vmatpush2.msra.mxu0 0.0
        %418 = vmatprep.subr.mxu0 0.0
        %419 = vmatpush2.msra.mxu0 0.0
        %420 = vmatprep.subr.mxu0 0.0
        %421 = vmatpush2.msra.mxu0 0.0
        %422 = vmatprep.subr.mxu0 0.0
        %423 = vmatpush2.msra.mxu0 0.0
        %424 = vmatprep.subr.mxu0 0.0
        %425 = vmatpush2.msra.mxu0 0.0
        %426 = vmatprep.subr.mxu0 0.0
        %427 = vmatpush2.msra.mxu0 0.0
        %428 = vmatprep.subr.mxu0 0.0
        %429 = vmatpush2.msra.mxu0 0.0
        %430 = vmatprep.mubr.f32.mxu0 0.0
        %v431 = vand.u32 %v265, 4294901760
        %432 = vmatmul.mubr.f32.gmra.mxu0 %v431
        %v433 = vpop.f32.mrf.mxu0
        %v434 = vadd.f32 %v343, %v433
        %v435 = vpop.f32.mrf.mxu0
        %436 = vdwg.mxu0
        %437 = vmatprep.subr.mxu0 0.0
        %438 = vmatpush1.msra.mxu0 0.0
        %439 = vmatprep.subr.mxu0 0.0
        %440 = vmatpush1.msra.mxu0 0.0
        %441 = vmatprep.subr.mxu0 0.0
        %442 = vmatpush1.msra.mxu0 0.0
        %443 = vmatprep.subr.mxu0 0.0
        %444 = vmatpush1.msra.mxu0 0.0
        %445 = vmatprep.subr.mxu0 0.0
        %446 = vmatpush1.msra.mxu0 0.0
        %447 = vmatprep.subr.mxu0 0.0
        %448 = vmatpush1.msra.mxu0 0.0
        %449 = vmatprep.subr.mxu0 0.0
        %450 = vmatpush1.msra.mxu0 0.0
        %451 = vmatprep.subr.mxu0 0.0
        %452 = vmatpush1.msra.mxu0 0.0
        %453 = vmatprep.subr.mxu0 0.0
        %454 = vmatpush1.msra.mxu0 0.0
        %455 = vmatprep.subr.mxu0 0.0
        %456 = vmatpush1.msra.mxu0 0.0
        %457 = vmatprep.subr.mxu0 0.0
        %458 = vmatpush1.msra.mxu0 0.0
        %459 = vmatprep.subr.mxu0 0.0
        %460 = vmatpush1.msra.mxu0 0.0
        %461 = vmatprep.subr.mxu0 0.0
        %v462 = vand.u32 %v255, 4294901760
        %v463 = vsub.f32 %v255, %v462
        %464 = vmatpush1.msra.mxu0 %v463
        %465 = vmatprep.subr.mxu0 0.0
        %v466 = vand.u32 %v254, 4294901760
        %v467 = vsub.f32 %v254, %v466
        %468 = vmatpush1.msra.mxu0 %v467
        %469 = vmatprep.subr.mxu0 0.0
        %v470 = vand.u32 %v253, 4294901760
        %v471 = vsub.f32 %v253, %v470
        %472 = vmatpush1.msra.mxu0 %v471
        %473 = vmatprep.subr.mxu0 0.0
        %v474 = vand.u32 %v252, 4294901760
        %v475 = vsub.f32 %v252, %v474
        %476 = vmatpush1.msra.mxu0 %v475
        %477 = vmatprep.subr.mxu0 0.0
        %478 = vmatpush2.msra.mxu0 0.0
        %479 = vmatprep.subr.mxu0 0.0
        %480 = vmatpush2.msra.mxu0 0.0
        %481 = vmatprep.subr.mxu0 0.0
        %482 = vmatpush2.msra.mxu0 0.0
        %483 = vmatprep.subr.mxu0 0.0
        %484 = vmatpush2.msra.mxu0 0.0
        %485 = vmatprep.subr.mxu0 0.0
        %486 = vmatpush2.msra.mxu0 0.0
        %487 = vmatprep.subr.mxu0 0.0
        %488 = vmatpush2.msra.mxu0 0.0
        %489 = vmatprep.subr.mxu0 0.0
        %490 = vmatpush2.msra.mxu0 0.0
        %491 = vmatprep.subr.mxu0 0.0
        %492 = vmatpush2.msra.mxu0 0.0
        %493 = vmatprep.subr.mxu0 0.0
        %494 = vmatpush2.msra.mxu0 0.0
        %495 = vmatprep.subr.mxu0 0.0
        %496 = vmatpush2.msra.mxu0 0.0
        %497 = vmatprep.subr.mxu0 0.0
        %498 = vmatpush2.msra.mxu0 0.0
        %499 = vmatprep.subr.mxu0 0.0
        %500 = vmatpush2.msra.mxu0 0.0
        %501 = vmatprep.subr.mxu0 0.0
        %502 = vmatpush2.msra.mxu0 0.0
        %503 = vmatprep.subr.mxu0 0.0
        %504 = vmatpush2.msra.mxu0 0.0
        %505 = vmatprep.subr.mxu0 0.0
        %506 = vmatpush2.msra.mxu0 0.0
        %507 = vmatprep.subr.mxu0 0.0
        %508 = vmatpush2.msra.mxu0 0.0
        %509 = vmatprep.mubr.f32.mxu0 0.0
        %v510 = vand.u32 %v265, 4294901760
        %v511 = vsub.f32 %v265, %v510
        %512 = vmatmul.mubr.f32.gmra.mxu0 %v511
        %v513 = vpop.f32.mrf.mxu0
        %v514 = vadd.f32 %v434, %v513
        %v515 = vpop.f32.mrf.mxu0
        %516 = vdwg.mxu0
        %517 = vmatprep.subr.mxu0 0.0
        %518 = vmatpush1.msra.mxu0 0.0
        %519 = vmatprep.subr.mxu0 0.0
        %520 = vmatpush1.msra.mxu0 0.0
        %521 = vmatprep.subr.mxu0 0.0
        %522 = vmatpush1.msra.mxu0 0.0
        %523 = vmatprep.subr.mxu0 0.0
        %524 = vmatpush1.msra.mxu0 0.0
        %525 = vmatprep.subr.mxu0 0.0
        %526 = vmatpush1.msra.mxu0 0.0
        %527 = vmatprep.subr.mxu0 0.0
        %528 = vmatpush1.msra.mxu0 0.0
        %529 = vmatprep.subr.mxu0 0.0
        %530 = vmatpush1.msra.mxu0 0.0
        %531 = vmatprep.subr.mxu0 0.0
        %532 = vmatpush1.msra.mxu0 0.0
        %533 = vmatprep.subr.mxu0 0.0
        %534 = vmatpush1.msra.mxu0 0.0
        %535 = vmatprep.subr.mxu0 0.0
        %536 = vmatpush1.msra.mxu0 0.0
        %537 = vmatprep.subr.mxu0 0.0
        %538 = vmatpush1.msra.mxu0 0.0
        %539 = vmatprep.subr.mxu0 0.0
        %540 = vmatpush1.msra.mxu0 0.0
        %541 = vmatprep.subr.mxu0 0.0
        %v542 = vand.u32 %v255, 4294901760
        %543 = vmatpush1.msra.mxu0 %v542
        %544 = vmatprep.subr.mxu0 0.0
        %v545 = vand.u32 %v254, 4294901760
        %546 = vmatpush1.msra.mxu0 %v545
        %547 = vmatprep.subr.mxu0 0.0
        %v548 = vand.u32 %v253, 4294901760
        %549 = vmatpush1.msra.mxu0 %v548
        %550 = vmatprep.subr.mxu0 0.0
        %v551 = vand.u32 %v252, 4294901760
        %552 = vmatpush1.msra.mxu0 %v551
        %553 = vmatprep.subr.mxu0 0.0
        %554 = vmatpush2.msra.mxu0 0.0
        %555 = vmatprep.subr.mxu0 0.0
        %556 = vmatpush2.msra.mxu0 0.0
        %557 = vmatprep.subr.mxu0 0.0
        %558 = vmatpush2.msra.mxu0 0.0
        %559 = vmatprep.subr.mxu0 0.0
        %560 = vmatpush2.msra.mxu0 0.0
        %561 = vmatprep.subr.mxu0 0.0
        %562 = vmatpush2.msra.mxu0 0.0
        %563 = vmatprep.subr.mxu0 0.0
        %564 = vmatpush2.msra.mxu0 0.0
        %565 = vmatprep.subr.mxu0 0.0
        %566 = vmatpush2.msra.mxu0 0.0
        %567 = vmatprep.subr.mxu0 0.0
        %568 = vmatpush2.msra.mxu0 0.0
        %569 = vmatprep.subr.mxu0 0.0
        %570 = vmatpush2.msra.mxu0 0.0
        %571 = vmatprep.subr.mxu0 0.0
        %572 = vmatpush2.msra.mxu0 0.0
        %573 = vmatprep.subr.mxu0 0.0
        %574 = vmatpush2.msra.mxu0 0.0
        %575 = vmatprep.subr.mxu0 0.0
        %576 = vmatpush2.msra.mxu0 0.0
        %577 = vmatprep.subr.mxu0 0.0
        %578 = vmatpush2.msra.mxu0 0.0
        %579 = vmatprep.subr.mxu0 0.0
        %580 = vmatpush2.msra.mxu0 0.0
        %581 = vmatprep.subr.mxu0 0.0
        %582 = vmatpush2.msra.mxu0 0.0
        %583 = vmatprep.subr.mxu0 0.0
        %584 = vmatpush2.msra.mxu0 0.0
        %585 = vmatprep.mubr.f32.mxu0 0.0
        %v586 = vand.u32 %v265, 4294901760
        %v587 = vsub.f32 %v265, %v586
        %v588 = vand.u32 %v587, 4294901760
        %589 = vmatmul.mubr.f32.gmra.mxu0 %v588
        %v590 = vpop.f32.mrf.mxu0
        %v591 = vadd.f32 %v514, %v590
        %v592 = vpop.f32.mrf.mxu0
        %593 = vdwg.mxu0
        %594 = vmatprep.subr.mxu0 0.0
        %595 = vmatpush1.msra.mxu0 0.0
        %596 = vmatprep.subr.mxu0 0.0
        %597 = vmatpush1.msra.mxu0 0.0
        %598 = vmatprep.subr.mxu0 0.0
        %599 = vmatpush1.msra.mxu0 0.0
        %600 = vmatprep.subr.mxu0 0.0
        %601 = vmatpush1.msra.mxu0 0.0
        %602 = vmatprep.subr.mxu0 0.0
        %603 = vmatpush1.msra.mxu0 0.0
        %604 = vmatprep.subr.mxu0 0.0
        %605 = vmatpush1.msra.mxu0 0.0
        %606 = vmatprep.subr.mxu0 0.0
        %607 = vmatpush1.msra.mxu0 0.0
        %608 = vmatprep.subr.mxu0 0.0
        %609 = vmatpush1.msra.mxu0 0.0
        %610 = vmatprep.subr.mxu0 0.0
        %611 = vmatpush1.msra.mxu0 0.0
        %612 = vmatprep.subr.mxu0 0.0
        %613 = vmatpush1.msra.mxu0 0.0
        %614 = vmatprep.subr.mxu0 0.0
        %615 = vmatpush1.msra.mxu0 0.0
        %616 = vmatprep.subr.mxu0 0.0
        %617 = vmatpush1.msra.mxu0 0.0
        %618 = vmatprep.subr.mxu0 0.0
        %v619 = vand.u32 %v255, 4294901760
        %v620 = vsub.f32 %v255, %v619
        %v621 = vand.u32 %v620, 4294901760
        %622 = vmatpush1.msra.mxu0 %v621
        %623 = vmatprep.subr.mxu0 0.0
        %v624 = vand.u32 %v254, 4294901760
        %v625 = vsub.f32 %v254, %v624
        %v626 = vand.u32 %v625, 4294901760
        %627 = vmatpush1.msra.mxu0 %v626
        %628 = vmatprep.subr.mxu0 0.0
        %v629 = vand.u32 %v253, 4294901760
        %v630 = vsub.f32 %v253, %v629
        %v631 = vand.u32 %v630, 4294901760
        %632 = vmatpush1.msra.mxu0 %v631
        %633 = vmatprep.subr.mxu0 0.0
        %v634 = vand.u32 %v252, 4294901760
        %v635 = vsub.f32 %v252, %v634
        %v636 = vand.u32 %v635, 4294901760
        %637 = vmatpush1.msra.mxu0 %v636
        %638 = vmatprep.subr.mxu0 0.0
        %639 = vmatpush2.msra.mxu0 0.0
        %640 = vmatprep.subr.mxu0 0.0
        %641 = vmatpush2.msra.mxu0 0.0
        %642 = vmatprep.subr.mxu0 0.0
        %643 = vmatpush2.msra.mxu0 0.0
        %644 = vmatprep.subr.mxu0 0.0
        %645 = vmatpush2.msra.mxu0 0.0
        %646 = vmatprep.subr.mxu0 0.0
        %647 = vmatpush2.msra.mxu0 0.0
        %648 = vmatprep.subr.mxu0 0.0
        %649 = vmatpush2.msra.mxu0 0.0
        %650 = vmatprep.subr.mxu0 0.0
        %651 = vmatpush2.msra.mxu0 0.0
        %652 = vmatprep.subr.mxu0 0.0
        %653 = vmatpush2.msra.mxu0 0.0
        %654 = vmatprep.subr.mxu0 0.0
        %655 = vmatpush2.msra.mxu0 0.0
        %656 = vmatprep.subr.mxu0 0.0
        %657 = vmatpush2.msra.mxu0 0.0
        %658 = vmatprep.subr.mxu0 0.0
        %659 = vmatpush2.msra.mxu0 0.0
        %660 = vmatprep.subr.mxu0 0.0
        %661 = vmatpush2.msra.mxu0 0.0
        %662 = vmatprep.subr.mxu0 0.0
        %663 = vmatpush2.msra.mxu0 0.0
        %664 = vmatprep.subr.mxu0 0.0
        %665 = vmatpush2.msra.mxu0 0.0
        %666 = vmatprep.subr.mxu0 0.0
        %667 = vmatpush2.msra.mxu0 0.0
        %668 = vmatprep.subr.mxu0 0.0
        %669 = vmatpush2.msra.mxu0 0.0
        %670 = vmatprep.mubr.f32.mxu0 0.0
        %v671 = vand.u32 %v265, 4294901760
        %672 = vmatmul.mubr.f32.gmra.mxu0 %v671
        %v673 = vpop.f32.mrf.mxu0
        %v674 = vadd.f32 %v591, %v673
        %v675 = vpop.f32.mrf.mxu0
        %676 = vdwg.mxu0
        %677 = vmatprep.subr.mxu0 0.0
        %678 = vmatpush1.msra.mxu0 0.0
        %679 = vmatprep.subr.mxu0 0.0
        %680 = vmatpush1.msra.mxu0 0.0
        %681 = vmatprep.subr.mxu0 0.0
        %682 = vmatpush1.msra.mxu0 0.0
        %683 = vmatprep.subr.mxu0 0.0
        %684 = vmatpush1.msra.mxu0 0.0
        %685 = vmatprep.subr.mxu0 0.0
        %686 = vmatpush1.msra.mxu0 0.0
        %687 = vmatprep.subr.mxu0 0.0
        %688 = vmatpush1.msra.mxu0 0.0
        %689 = vmatprep.subr.mxu0 0.0
        %690 = vmatpush1.msra.mxu0 0.0
        %691 = vmatprep.subr.mxu0 0.0
        %692 = vmatpush1.msra.mxu0 0.0
        %693 = vmatprep.subr.mxu0 0.0
        %694 = vmatpush1.msra.mxu0 0.0
        %695 = vmatprep.subr.mxu0 0.0
        %696 = vmatpush1.msra.mxu0 0.0
        %697 = vmatprep.subr.mxu0 0.0
        %698 = vmatpush1.msra.mxu0 0.0
        %699 = vmatprep.subr.mxu0 0.0
        %700 = vmatpush1.msra.mxu0 0.0
        %701 = vmatprep.subr.mxu0 0.0
        %v702 = vand.u32 %v255, 4294901760
        %703 = vmatpush1.msra.mxu0 %v702
        %704 = vmatprep.subr.mxu0 0.0
        %v705 = vand.u32 %v254, 4294901760
        %706 = vmatpush1.msra.mxu0 %v705
        %707 = vmatprep.subr.mxu0 0.0
        %v708 = vand.u32 %v253, 4294901760
        %709 = vmatpush1.msra.mxu0 %v708
        %710 = vmatprep.subr.mxu0 0.0
        %v711 = vand.u32 %v252, 4294901760
        %712 = vmatpush1.msra.mxu0 %v711
        %713 = vmatprep.subr.mxu0 0.0
        %714 = vmatpush2.msra.mxu0 0.0
        %715 = vmatprep.subr.mxu0 0.0
        %716 = vmatpush2.msra.mxu0 0.0
        %717 = vmatprep.subr.mxu0 0.0
        %718 = vmatpush2.msra.mxu0 0.0
        %719 = vmatprep.subr.mxu0 0.0
        %720 = vmatpush2.msra.mxu0 0.0
        %721 = vmatprep.subr.mxu0 0.0
        %722 = vmatpush2.msra.mxu0 0.0
        %723 = vmatprep.subr.mxu0 0.0
        %724 = vmatpush2.msra.mxu0 0.0
        %725 = vmatprep.subr.mxu0 0.0
        %726 = vmatpush2.msra.mxu0 0.0
        %727 = vmatprep.subr.mxu0 0.0
        %728 = vmatpush2.msra.mxu0 0.0
        %729 = vmatprep.subr.mxu0 0.0
        %730 = vmatpush2.msra.mxu0 0.0
        %731 = vmatprep.subr.mxu0 0.0
        %732 = vmatpush2.msra.mxu0 0.0
        %733 = vmatprep.subr.mxu0 0.0
        %734 = vmatpush2.msra.mxu0 0.0
        %735 = vmatprep.subr.mxu0 0.0
        %736 = vmatpush2.msra.mxu0 0.0
        %737 = vmatprep.subr.mxu0 0.0
        %738 = vmatpush2.msra.mxu0 0.0
        %739 = vmatprep.subr.mxu0 0.0
        %740 = vmatpush2.msra.mxu0 0.0
        %741 = vmatprep.subr.mxu0 0.0
        %742 = vmatpush2.msra.mxu0 0.0
        %743 = vmatprep.subr.mxu0 0.0
        %744 = vmatpush2.msra.mxu0 0.0
        %745 = vmatprep.mubr.f32.mxu0 0.0
        %v746 = vand.u32 %v265, 4294901760
        %747 = vmatmul.mubr.f32.gmra.mxu0 %v746
        %v748 = vpop.f32.mrf.mxu0
        %v749 = vadd.f32 %v674, %v748
        %v750 = vpop.f32.mrf.mxu0
        %751 = vdwg.mxu0
        %v752 = vld [vmem:[%s232] sm:$0x3]
        %v753 = vadd.f32 %v752, %v749
        %v754 = vxor.u32 %v753, 2147483648
        %v755 = vmul.f32 %v754, 1.442695
        %v756 = vpow.pop %v755
        %v757 = vadd.f32 %v756, 1.0
        %v758 = vrcp.pop %v757
        %v759 = vmul.f32 1.0, %v758
        %761 = vrot.lane.b32.xlu0 %v749, 64
        %v762 = vpop.permute.xlu0 %761
        %v764 = vmul.f32 %v759, %v762
        %766 = vrot.lane.b32.xlu0 %v764, 64
        %v767 = vpop.permute.xlu0 %766
        %v769 = vadd.f32 %v752, %v767
        %v770 = vtanh.pop %v769
        %v771 = vsub.f32 1.0, %v759
        %773 = vrot.lane.b32.xlu0 %v770, 96
        %v774 = vpop.permute.xlu0 %773
        %v776 = vmul.f32 %v771, %v774
        %777 = vrot.lane.b32.xlu0 %v251, 32
        %v778 = vpop.permute.xlu0 %777
        %v780 = vmul.f32 %v759, %v778
        %v781 = vadd.f32 %v776, %v780
        %783 = vrot.lane.b32.xlu0 %v781, 96
        %v784 = vpop.permute.xlu0 %783
        %vm786 = vcmask 254976
        %787 = vst.msk [vmem:[#allocation2] sm:$0x3] %vm786, %v784
        %788 = vst.msk [vmem:[%s228] sm:$0x3] %vm786, %v784
        %s789 = sand.u32 %s142, 1
        %s790 = scalar_lea.sflag [#allocation4], %s789
        %s791 = sand.u32 %s142, 1
        %s792 = smul.addr %s791, 2
        %s793 = scalar_lea.vmem [#allocation3], %s792
        // Predicated region
        $region45: #{cnnrnn_forward.11} parent=39 // pred_check
          %p794 = pneg %p152
        $region46: #{cnnrnn_forward.11} parent=39 // pred_check_branch
          %796 = sbr.rel (%p794) target = $region48
        $region47: #{cnnrnn_forward.11} parent=39 // pred_region
          %s798 = ssub.s32 32, 32
          %799 = vsyncadd %s790, %s798
          %s800 = smul.addr %s19, 32
          %s801 = scalar_lea.hbm %s5, %s800
          %s803 = sshll.u32 %s793, 4
          %s804 = int_to_ptr.vmem [resolvable:$true] %s803
          %806 = dma.vmem_to_hbm [thread:$0]  %s804, 32, %s801, %s790
        $region48: #{cnnrnn_forward.11} parent=39 // pred_fallthru
          _
      $region40: #{cnnrnn_forward.11} parent=5 // pred_fallthru
        _
      %p807 = scmp.le.s32.totalorder 2, %s14
      // Predicated region
      $region49: #{cnnrnn_forward.11} parent=5 // pred_check
        %p808 = pneg %p807
      $region50: #{cnnrnn_forward.11} parent=5 // pred_check_branch
        %810 = sbr.rel (%p808) target = $region52
      $region51: #{cnnrnn_forward.11} parent=5 // pred_region
        %s811 = ssub.s32 %s14, 2
        // Predicated region
        $region53: #{cnnrnn_forward.11} parent=51 // pred_check
          %p812 = pneg %p158
        $region54: #{cnnrnn_forward.11} parent=51 // pred_check_branch
          %814 = sbr.rel (%p812) target = $region56
        $region55: #{cnnrnn_forward.11} parent=51 // pred_region
          %s815 = sand.u32 %s143, 1
          %s816 = scalar_lea.sflag [#allocation4], %s815
          %s817 = sand.u32 %s143, 1
          %s818 = smul.addr %s817, 2
          %s819 = scalar_lea.vmem [#allocation3], %s818
          %820 = dma.done %s816, 32
        $region56: #{cnnrnn_forward.11} parent=51 // pred_fallthru
          _
      $region52: #{cnnrnn_forward.11} parent=5 // pred_fallthru
        _
    $region6: #{cnnrnn_forward.11} parent=1 // loop_footer
      %s18 = sadd.s32 1, %s14
    $region7: #{cnnrnn_forward.11} parent=1 // loop_footer_branch
      %13 = sbr.rel target = $region3
    $region8: #{cnnrnn_forward.11} parent=1 // loop_exit
      _
    %821 = vsyncpa [#allocation4], 1
    %s822 = scalar_lea.sflag [#allocation4], 1
    %823 = vsyncpa %s822, 1

</llo_original>
